<compile_context>
chip_gen: v7x
topology: tpu7x:2x2x1
jax: 0.10.0
libtpu: 0.0.40
codegen_flags: <defaults>
</compile_context>

<pallas_src>
import jax
import jax.numpy as jnp
import numpy as np
from jax.experimental import pallas as pl
from jax.experimental.pallas import tpu as pltpu

EPS = 1e-5
L_IN = 24          # 24 -> pool -> 12 -> pool -> 6 -> pool -> 3  (matches fc1 = 512*3)
C_IN = 14


# ---------------------------------------------------------------------------
# Kernel helpers
# ---------------------------------------------------------------------------
def _maxpool2(h):
    """MaxPool1d(kernel_size=2) along the stacked time rows: (M, C) -> (M//2, C).

    L is even at every stage, so row pairs never straddle a sample boundary.
    """
    M, C = h.shape
    return jnp.max(h.reshape(M // 2, 2, C), axis=1)


def _conv_bn_relu_fused(h, w_ref, shift, seq_len):
    """Conv1d(k=3, pad=1) + folded BN + ReLU as ONE matmul on a stacked matrix.

    h: (M, Cin) with M = BB*seq_len; w_ref: (3*Cin, Cout) VMEM ref (BN scale
    already folded in); shift: (1, Cout).  Per-sample boundary rows of the
    shifted taps are masked to zero so stacked samples don't leak into each
    other (this also provides the padding=1 semantics).
    """
    M, C = h.shape
    zero = jnp.zeros((1, C), dtype=h.dtype)
    # (M, 1) time-position iota; broadcast in the where (cheap VALU mask).
    tpos = jax.lax.broadcasted_iota(jnp.int32, (M, 1), 0) % seq_len
    # TODO(synk): pltpu.roll(h, +/-1, axis=0) would move these shifts to the
    # XLU; kept as concat (known-good lowering) since the wrap rows are masked.
    h_prev = jnp.where(tpos == 0, 0.0,
                       jnp.concatenate([zero, h[:-1, :]], axis=0))      # row i <- h[i-1]
    h_next = jnp.where(tpos == seq_len - 1, 0.0,
                       jnp.concatenate([h[1:, :], zero], axis=0))       # row i <- h[i+1]
    h_cat = jnp.concatenate([h_prev, h, h_next], axis=1)                # (M, 3*Cin)
    y = jnp.dot(h_cat, w_ref[...], preferred_element_type=jnp.float32)
    return jnp.maximum(y + shift, 0.0)


# ---------------------------------------------------------------------------
# Pallas kernel (one block of BB samples per grid step)
# ---------------------------------------------------------------------------
def nhits_kernel(x_ref,
                 w1_ref, b1_ref,
                 w2_ref, b2_ref,
                 w3_ref, b3_ref,
                 fc1w_ref, fc1b_ref,
                 fc2w_ref, fc2b_ref,
                 fc3w_ref, fc3b_ref,
                 out_ref):
    BB, L, Cf = x_ref.shape                            # (BB, 24, 42)  taps pre-fused
    h = x_ref[...].reshape(BB * L, Cf)                 # stacked time-major rows

    # conv1 + BN + ReLU: single fused-tap matmul, K = 42 (BN scale in weight).
    h = jnp.maximum(
        jnp.dot(h, w1_ref[...], preferred_element_type=jnp.float32)
        + b1_ref[...], 0.0)                            # (BB*24, 128)
    h = _maxpool2(h)                                   # (BB*12, 128)

    h = _conv_bn_relu_fused(h, w2_ref, b2_ref[...], L // 2)   # (BB*12, 256)
    h = _maxpool2(h)                                   # (BB*6, 256)

    h = _conv_bn_relu_fused(h, w3_ref, b3_ref[...], L // 4)   # (BB*6, 512)
    h = _maxpool2(h)                                   # (BB*3, 512)

    # fc1 as a single (BB, 1536) @ (1536, 256) matmul.  The per-sample flatten
    # row (index t*512 + c) is built via slice + lane-concat; the weight was
    # pre-reordered from PyTorch's c*3 + t order in make_params.
    h3 = h.reshape(BB, L // 8, h.shape[1])             # (BB, 3, 512) leading split
    h_flat = jnp.concatenate([h3[:, 0, :], h3[:, 1, :], h3[:, 2, :]], axis=1)
    f1 = jnp.maximum(
        jnp.dot(h_flat, fc1w_ref[...], preferred_element_type=jnp.float32)
        + fc1b_ref[...], 0.0)                          # (BB, 256)

    # dropout -> identity (eval mode)

    f2 = jnp.maximum(
        jnp.dot(f1, fc2w_ref[...], preferred_element_type=jnp.float32)
        + fc2b_ref[...], 0.0)                          # (BB, 128)

    # fc3 padded to 128 lanes -> lane-dense unmasked output store.
    out_ref[...] = (jnp.dot(f2, fc3w_ref[...], preferred_element_type=jnp.float32)
                    + fc3b_ref[...])                   # (BB, 128)


# ---------------------------------------------------------------------------
# Wrapper (layout plumbing + pallas_call)
# ---------------------------------------------------------------------------
def nhits_forward(x, params, block_b=64):
    """x: (B, 24, 14) pre-permute input (same tensor the PyTorch module receives).

    block_b: samples per grid step.  Default 64 keeps MXU row occupancy high at
    production B; choose block_b so Bp // block_b >= 2 (and even) on v7x so both
    TensorCores get work via the 'parallel' grid axis.
    """
    B = x.shape[0]

    # im2col for conv1 only: concat the k=3 shifted taps along channels so the
    # kernel does a single K=42 matmul; pure layout plumbing on tiny data.
    zero = jnp.zeros_like(x[:, :1, :])
    x_prev = jnp.concatenate([zero, x[:, :-1, :]], axis=1)
    x_next = jnp.concatenate([x[:, 1:, :], zero], axis=1)
    xf = jnp.concatenate([x_prev, x, x_next], axis=2)         # (B, 24, 42)

    # Pad the batch to a multiple of block_b.
    Bp = ((B + block_b - 1) // block_b) * block_b
    if Bp != B:
        xf = jnp.concatenate(
            [xf, jnp.zeros((Bp - B,) + xf.shape[1:], xf.dtype)], axis=0)

    kernel_args = (
        xf,
        params["w1"], params["b1"],
        params["w2"], params["b2"],
        params["w3"], params["b3"],
        params["fc1w"], params["fc1b"],
        params["fc2w"], params["fc2b"],
        params["fc3w"], params["fc3b"],
    )

    def full_spec(a):
        # Grid-invariant weights/shifts (all 2-D): same block index every step.
        return pl.BlockSpec(a.shape, lambda b: (0, 0))

    in_specs = [pl.BlockSpec((block_b, L_IN, 3 * C_IN), lambda b: (b, 0, 0))]
    in_specs += [full_spec(a) for a in kernel_args[1:]]

    out = pl.pallas_call(
        nhits_kernel,
        out_shape=jax.ShapeDtypeStruct((Bp, 128), jnp.float32),
        grid_spec=pltpu.PrefetchScalarGridSpec(
            num_scalar_prefetch=0,
            grid=(Bp // block_b,),
            in_specs=in_specs,
            out_specs=pl.BlockSpec((block_b, 128), lambda b: (b, 0)),
        ),
        compiler_params=pltpu.CompilerParams(
            dimension_semantics=("parallel",),
            # v7x budget (64 MiB VMEM): ~3.8 MiB weights x2 buffers + <=~12 MiB
            # of activations at BB=64 -> 48 MiB leaves headroom and still
            # permits larger BB on v5e/v6e's 128 MiB.
            vmem_limit_bytes=48 * 1024 * 1024,
        ),
    )(*kernel_args)

    return out[:B, :2]


# ---------------------------------------------------------------------------
# Deterministic parameter construction (PyTorch-shaped, then folded)
# ---------------------------------------------------------------------------
def make_params(key):
    ks = iter(jax.random.split(key, 64))

    def norm(shape, scale=0.05):
        return (scale * jax.random.normal(next(ks), shape)).astype(jnp.float32)

    raw = {}
    for i, (cin, cout) in enumerate([(14, 128), (128, 256), (256, 512)], start=1):
        raw[f"conv{i}_w"] = norm((cout, cin, 3))
        raw[f"conv{i}_b"] = norm((cout,), 0.01)
        raw[f"bn{i}_gamma"] = 1.0 + norm((cout,), 0.1)
        raw[f"bn{i}_beta"] = norm((cout,), 0.1)
        raw[f"bn{i}_mean"] = norm((cout,), 0.1)
        raw[f"bn{i}_var"] = 0.5 + jnp.abs(norm((cout,), 0.5))
    raw["fc1_w"] = norm((256, 512 * 3)); raw["fc1_b"] = norm((256,), 0.01)
    raw["fc2_w"] = norm((128, 256));     raw["fc2_b"] = norm((128,), 0.01)
    raw["fc3_w"] = norm((2, 128));       raw["fc3_b"] = norm((2,), 0.01)

    # ---- fold into kernel layout ----
    p = {}
    for i in (1, 2, 3):
        w = raw[f"conv{i}_w"]                          # (Cout, Cin, 3)
        cout, cin, _ = w.shape
        scale = raw[f"bn{i}_gamma"] / jnp.sqrt(raw[f"bn{i}_var"] + EPS)      # (Cout,)
        shift = raw[f"bn{i}_beta"] + (raw[f"conv{i}_b"] - raw[f"bn{i}_mean"]) * scale
        # Wk[k, c, co] = w[co, c, k]; BN scale folded along Cout; then fused
        # tap rows = [k=0 (x[t-1]) | k=1 (x[t]) | k=2 (x[t+1])] matching the
        # [prev | cur | next] channel/lane concat order used by wrapper/kernel.
        wk = jnp.transpose(w, (2, 1, 0)) * scale       # (3, Cin, Cout)
        p[f"w{i}"] = wk.reshape(3 * cin, cout)         # (3*Cin, Cout)
        p[f"b{i}"] = shift.reshape(1, -1)

    # fc1: PyTorch flatten index is c*3 + t (x is (B, 512, 3) NCL before .view);
    # kernel flatten index is t*512 + c -> reorder rows accordingly.
    fc1_wT = raw["fc1_w"].T                                        # (1536, 256), row = c*3+t
    p["fc1w"] = (fc1_wT.reshape(512, 3, 256)
                 .transpose(1, 0, 2).reshape(3 * 512, 256))        # row = t*512+c
    p["fc1b"] = raw["fc1_b"].reshape(1, -1)
    p["fc2w"] = raw["fc2_w"].T                                     # (256, 128)
    p["fc2b"] = raw["fc2_b"].reshape(1, -1)
    # fc3 zero-padded to 128 output lanes (lane-dense output store).
    p["fc3w"] = jnp.pad(raw["fc3_w"].T, ((0, 0), (0, 126)))        # (128, 128)
    p["fc3b"] = jnp.pad(raw["fc3_b"].reshape(1, -1), ((0, 0), (0, 126)))
    return raw, p


# ---------------------------------------------------------------------------
# Pure-JAX reference with PyTorch semantics (for correctness check)
# ---------------------------------------------------------------------------
def reference_forward(x, raw):
    def conv1d(h, w, b):          # h: (L, Cin), w: (Cout, Cin, 3)
        zero = jnp.zeros((1, h.shape[1]), h.dtype)
        hp = jnp.concatenate([zero, h[:-1]], 0)
        hn = jnp.concatenate([h[1:], zero], 0)
        return hp @ w[:, :, 0].T + h @ w[:, :, 1].T + hn @ w[:, :, 2].T + b

    def bn(y, g, bta, m, v):
        return (y - m) / jnp.sqrt(v + EPS) * g + bta

    def pool(h):
        L, C = h.shape
        return jnp.max(h.reshape(L // 2, 2, C), axis=1)

    outs = []
    for b in range(x.shape[0]):
        h = x[b]                                             # (24, 14)
        for i in (1, 2, 3):
            h = conv1d(h, raw[f"conv{i}_w"], raw[f"conv{i}_b"])
            h = bn(h, raw[f"bn{i}_gamma"], raw[f"bn{i}_beta"],
                   raw[f"bn{i}_mean"], raw[f"bn{i}_var"])
            h = pool(jnp.maximum(h, 0.0))
        # PyTorch .view flatten of (512, 3) NCL -> channel-major (index c*3 + t)
        flat = h.T.reshape(-1)
        f1 = jnp.maximum(flat @ raw["fc1_w"].T + raw["fc1_b"], 0.0)
        f2 = jnp.maximum(f1 @ raw["fc2_w"].T + raw["fc2_b"], 0.0)
        outs.append(f2 @ raw["fc3_w"].T + raw["fc3_b"])
    return jnp.stack(outs)


if __name__ == "__main__":
    key = jax.random.PRNGKey(0)
    k_x, k_p = jax.random.split(key)

    B = 16                                   # small check: BB=8 per step -> grid of 2
    x = jax.random.normal(k_x, (B, L_IN, C_IN), dtype=jnp.float32)
    raw, params = make_params(k_p)

    out = nhits_forward(x, params, block_b=8)
    out = jax.block_until_ready(out)

    ref = reference_forward(x, raw)
    np.testing.assert_allclose(np.asarray(out), np.asarray(ref),
                               rtol=1e-4, atol=1e-4)
    print("KERNEL_OK")
</pallas_src>

<mosaic_0001>
module attributes {stable_mosaic.version = 11 : i64} {
  func.func @nhits_kernel(%arg0: i32, %arg1: memref<8x24x42xf32, #tpu.memory_space<vmem>>, %arg2: memref<42x128xf32, #tpu.memory_space<vmem>>, %arg3: memref<1x128xf32, #tpu.memory_space<vmem>>, %arg4: memref<384x256xf32, #tpu.memory_space<vmem>>, %arg5: memref<1x256xf32, #tpu.memory_space<vmem>>, %arg6: memref<768x512xf32, #tpu.memory_space<vmem>>, %arg7: memref<1x512xf32, #tpu.memory_space<vmem>>, %arg8: memref<1536x256xf32, #tpu.memory_space<vmem>>, %arg9: memref<1x256xf32, #tpu.memory_space<vmem>>, %arg10: memref<256x128xf32, #tpu.memory_space<vmem>>, %arg11: memref<1x128xf32, #tpu.memory_space<vmem>>, %arg12: memref<128x128xf32, #tpu.memory_space<vmem>>, %arg13: memref<1x128xf32, #tpu.memory_space<vmem>>, %arg14: memref<8x128xf32, #tpu.memory_space<vmem>>) attributes {dimension_semantics = [#tpu.dimension_semantics<parallel>], iteration_bounds = array<i64: 2>, scalar_prefetch = 0 : i64, scratch_operands = 0 : i64, tpu.core_type = #tpu.core_type<tc>, window_params = [{transform_indices = @transform_0, window_bounds = array<i64: 8, 24, 42>}, {pipeline_mode = #tpu.pipeline_mode<synchronous>, transform_indices = @transform_1, window_bounds = array<i64: 42, 128>}, {pipeline_mode = #tpu.pipeline_mode<synchronous>, transform_indices = @transform_2, window_bounds = array<i64: 1, 128>}, {pipeline_mode = #tpu.pipeline_mode<synchronous>, transform_indices = @transform_3, window_bounds = array<i64: 384, 256>}, {pipeline_mode = #tpu.pipeline_mode<synchronous>, transform_indices = @transform_4, window_bounds = array<i64: 1, 256>}, {pipeline_mode = #tpu.pipeline_mode<synchronous>, transform_indices = @transform_5, window_bounds = array<i64: 768, 512>}, {pipeline_mode = #tpu.pipeline_mode<synchronous>, transform_indices = @transform_6, window_bounds = array<i64: 1, 512>}, {pipeline_mode = #tpu.pipeline_mode<synchronous>, transform_indices = @transform_7, window_bounds = array<i64: 1536, 256>}, {pipeline_mode = #tpu.pipeline_mode<synchronous>, transform_indices = @transform_8, window_bounds = array<i64: 1, 256>}, {pipeline_mode = #tpu.pipeline_mode<synchronous>, transform_indices = @transform_9, window_bounds = array<i64: 256, 128>}, {pipeline_mode = #tpu.pipeline_mode<synchronous>, transform_indices = @transform_10, window_bounds = array<i64: 1, 128>}, {pipeline_mode = #tpu.pipeline_mode<synchronous>, transform_indices = @transform_11, window_bounds = array<i64: 128, 128>}, {pipeline_mode = #tpu.pipeline_mode<synchronous>, transform_indices = @transform_12, window_bounds = array<i64: 1, 128>}, {transform_indices = @transform_13, window_bounds = array<i64: 8, 128>}]} {
    %c0 = arith.constant 0 : index
    %c0_0 = arith.constant 0 : index
    %c0_1 = arith.constant 0 : index
    %0 = vector.load %arg1[%c0, %c0_0, %c0_1] : memref<8x24x42xf32, #tpu.memory_space<vmem>>, vector<8x24x42xf32>
    %1 = vector.shape_cast %0 : vector<8x24x42xf32> to vector<192x42xf32>
    %c0_2 = arith.constant 0 : index
    %c0_3 = arith.constant 0 : index
    %2 = vector.load %arg2[%c0_2, %c0_3] : memref<42x128xf32, #tpu.memory_space<vmem>>, vector<42x128xf32>
    %cst = arith.constant dense<0.000000e+00> : vector<192x128xf32>
    %3 = tpu.matmul %1, %2, %cst {dimension_numbers = #tpu.dot_dimension_numbers<[1], [0], [0], [1], [0, 0, 1, 1], [], []>} : vector<192x42xf32>, vector<42x128xf32>, vector<192x128xf32> -> vector<192x128xf32>
    %c0_4 = arith.constant 0 : index
    %c0_5 = arith.constant 0 : index
    %4 = vector.load %arg3[%c0_4, %c0_5] : memref<1x128xf32, #tpu.memory_space<vmem>>, vector<1x128xf32>
    %5 = vector.broadcast %4 : vector<1x128xf32> to vector<192x128xf32>
    %6 = arith.addf %3, %5 : vector<192x128xf32>
    %cst_6 = arith.constant 0.000000e+00 : f32
    %7 = vector.broadcast %cst_6 : f32 to vector<192x128xf32>
    %8 = arith.maximumf %6, %7 : vector<192x128xf32>
    %9 = vector.shape_cast %8 : vector<192x128xf32> to vector<96x2x128xf32>
    %cst_7 = arith.constant dense<0xFF800000> : vector<96x128xf32>
    %10 = vector.multi_reduction <maximumf>, %9, %cst_7 [1] : vector<96x2x128xf32> to vector<96x128xf32>
    %c0_8 = arith.constant 0 : index
    %c0_9 = arith.constant 0 : index
    %11 = vector.load %arg5[%c0_8, %c0_9] : memref<1x256xf32, #tpu.memory_space<vmem>>, vector<1x256xf32>
    %cst_10 = arith.constant 0.000000e+00 : f32
    %12 = vector.broadcast %cst_10 : f32 to vector<1x128xf32>
    %13 = tpu.iota {dimensions = array<i32: 0>} : vector<96x1xi32>
    %c12_i32 = arith.constant 12 : i32
    %c0_i32 = arith.constant 0 : i32
    %14 = arith.cmpi eq, %c12_i32, %c0_i32 : i32
    %c1_i32 = arith.constant 1 : i32
    %15 = arith.select %14, %c1_i32, %c12_i32 : i32
    %16 = vector.broadcast %15 : i32 to vector<96x1xi32>
    %17 = arith.remsi %13, %16 : vector<96x1xi32>
    %c0_i32_11 = arith.constant 0 : i32
    %18 = vector.broadcast %c0_i32_11 : i32 to vector<96x1xi32>
    %19 = arith.cmpi ne, %17, %18 : vector<96x1xi32>
    %c0_i32_12 = arith.constant 0 : i32
    %20 = vector.broadcast %c0_i32_12 : i32 to vector<96x1xi32>
    %21 = arith.cmpi slt, %17, %20 : vector<96x1xi32>
    %c0_i32_13 = arith.constant 0 : i32
    %22 = arith.cmpi slt, %15, %c0_i32_13 : i32
    %23 = vector.broadcast %22 : i1 to vector<96x1xi1>
    %24 = vector.broadcast %23 : vector<96x1xi1> to vector<96x1xi1>
    %25 = arith.xori %21, %24 : vector<96x1xi1>
    %26 = arith.andi %25, %19 : vector<96x1xi1>
    %27 = vector.broadcast %15 : i32 to vector<96x1xi32>
    %28 = arith.addi %17, %27 : vector<96x1xi32>
    %29 = arith.select %26, %28, %17 : vector<96x1xi1>, vector<96x1xi32>
    %c0_i32_14 = arith.constant 0 : i32
    %30 = vector.broadcast %c0_i32_14 : i32 to vector<96x1xi32>
    %31 = arith.cmpi eq, %29, %30 : vector<96x1xi32>
    %32 = vector.extract_strided_slice %10 {offsets = [0, 0], sizes = [95, 128], strides = [1, 1]} : vector<96x128xf32> to vector<95x128xf32>
    %33 = tpu.concatenate %12, %32 in 0 : vector<1x128xf32>, vector<95x128xf32> -> vector<96x128xf32>
    %cst_15 = arith.constant 0.000000e+00 : f32
    %34 = vector.shape_cast %31 : vector<96x1xi1> to vector<96x1xi1>
    %35 = vector.broadcast %34 : vector<96x1xi1> to vector<96x128xi1>
    %36 = vector.broadcast %cst_15 : f32 to vector<96x128xf32>
    %37 = arith.select %35, %36, %33 : vector<96x128xi1>, vector<96x128xf32>
    %c11_i32 = arith.constant 11 : i32
    %38 = vector.broadcast %c11_i32 : i32 to vector<96x1xi32>
    %39 = arith.cmpi eq, %29, %38 : vector<96x1xi32>
    %40 = vector.extract_strided_slice %10 {offsets = [1, 0], sizes = [95, 128], strides = [1, 1]} : vector<96x128xf32> to vector<95x128xf32>
    %41 = tpu.concatenate %40, %12 in 0 : vector<95x128xf32>, vector<1x128xf32> -> vector<96x128xf32>
    %cst_16 = arith.constant 0.000000e+00 : f32
    %42 = vector.shape_cast %39 : vector<96x1xi1> to vector<96x1xi1>
    %43 = vector.broadcast %42 : vector<96x1xi1> to vector<96x128xi1>
    %44 = vector.broadcast %cst_16 : f32 to vector<96x128xf32>
    %45 = arith.select %43, %44, %41 : vector<96x128xi1>, vector<96x128xf32>
    %46 = tpu.concatenate %37, %10, %45 in 1 : vector<96x128xf32>, vector<96x128xf32>, vector<96x128xf32> -> vector<96x384xf32>
    %c0_17 = arith.constant 0 : index
    %c0_18 = arith.constant 0 : index
    %47 = vector.load %arg4[%c0_17, %c0_18] : memref<384x256xf32, #tpu.memory_space<vmem>>, vector<384x256xf32>
    %cst_19 = arith.constant dense<0.000000e+00> : vector<96x256xf32>
    %48 = tpu.matmul %46, %47, %cst_19 {dimension_numbers = #tpu.dot_dimension_numbers<[1], [0], [0], [1], [0, 0, 1, 1], [], []>} : vector<96x384xf32>, vector<384x256xf32>, vector<96x256xf32> -> vector<96x256xf32>
    %49 = vector.broadcast %11 : vector<1x256xf32> to vector<96x256xf32>
    %50 = arith.addf %48, %49 : vector<96x256xf32>
    %cst_20 = arith.constant 0.000000e+00 : f32
    %51 = vector.broadcast %cst_20 : f32 to vector<96x256xf32>
    %52 = arith.maximumf %50, %51 : vector<96x256xf32>
    %53 = vector.shape_cast %52 : vector<96x256xf32> to vector<48x2x256xf32>
    %cst_21 = arith.constant dense<0xFF800000> : vector<48x256xf32>
    %54 = vector.multi_reduction <maximumf>, %53, %cst_21 [1] : vector<48x2x256xf32> to vector<48x256xf32>
    %c0_22 = arith.constant 0 : index
    %c0_23 = arith.constant 0 : index
    %55 = vector.load %arg7[%c0_22, %c0_23] : memref<1x512xf32, #tpu.memory_space<vmem>>, vector<1x512xf32>
    %cst_24 = arith.constant 0.000000e+00 : f32
    %56 = vector.broadcast %cst_24 : f32 to vector<1x256xf32>
    %57 = tpu.iota {dimensions = array<i32: 0>} : vector<48x1xi32>
    %c6_i32 = arith.constant 6 : i32
    %c0_i32_25 = arith.constant 0 : i32
    %58 = arith.cmpi eq, %c6_i32, %c0_i32_25 : i32
    %c1_i32_26 = arith.constant 1 : i32
    %59 = arith.select %58, %c1_i32_26, %c6_i32 : i32
    %60 = vector.broadcast %59 : i32 to vector<48x1xi32>
    %61 = arith.remsi %57, %60 : vector<48x1xi32>
    %c0_i32_27 = arith.constant 0 : i32
    %62 = vector.broadcast %c0_i32_27 : i32 to vector<48x1xi32>
    %63 = arith.cmpi ne, %61, %62 : vector<48x1xi32>
    %c0_i32_28 = arith.constant 0 : i32
    %64 = vector.broadcast %c0_i32_28 : i32 to vector<48x1xi32>
    %65 = arith.cmpi slt, %61, %64 : vector<48x1xi32>
    %c0_i32_29 = arith.constant 0 : i32
    %66 = arith.cmpi slt, %59, %c0_i32_29 : i32
    %67 = vector.broadcast %66 : i1 to vector<48x1xi1>
    %68 = vector.broadcast %67 : vector<48x1xi1> to vector<48x1xi1>
    %69 = arith.xori %65, %68 : vector<48x1xi1>
    %70 = arith.andi %69, %63 : vector<48x1xi1>
    %71 = vector.broadcast %59 : i32 to vector<48x1xi32>
    %72 = arith.addi %61, %71 : vector<48x1xi32>
    %73 = arith.select %70, %72, %61 : vector<48x1xi1>, vector<48x1xi32>
    %c0_i32_30 = arith.constant 0 : i32
    %74 = vector.broadcast %c0_i32_30 : i32 to vector<48x1xi32>
    %75 = arith.cmpi eq, %73, %74 : vector<48x1xi32>
    %76 = vector.extract_strided_slice %54 {offsets = [0, 0], sizes = [47, 256], strides = [1, 1]} : vector<48x256xf32> to vector<47x256xf32>
    %77 = tpu.concatenate %56, %76 in 0 : vector<1x256xf32>, vector<47x256xf32> -> vector<48x256xf32>
    %cst_31 = arith.constant 0.000000e+00 : f32
    %78 = vector.shape_cast %75 : vector<48x1xi1> to vector<48x1xi1>
    %79 = vector.broadcast %78 : vector<48x1xi1> to vector<48x256xi1>
    %80 = vector.broadcast %cst_31 : f32 to vector<48x256xf32>
    %81 = arith.select %79, %80, %77 : vector<48x256xi1>, vector<48x256xf32>
    %c5_i32 = arith.constant 5 : i32
    %82 = vector.broadcast %c5_i32 : i32 to vector<48x1xi32>
    %83 = arith.cmpi eq, %73, %82 : vector<48x1xi32>
    %84 = vector.extract_strided_slice %54 {offsets = [1, 0], sizes = [47, 256], strides = [1, 1]} : vector<48x256xf32> to vector<47x256xf32>
    %85 = tpu.concatenate %84, %56 in 0 : vector<47x256xf32>, vector<1x256xf32> -> vector<48x256xf32>
    %cst_32 = arith.constant 0.000000e+00 : f32
    %86 = vector.shape_cast %83 : vector<48x1xi1> to vector<48x1xi1>
    %87 = vector.broadcast %86 : vector<48x1xi1> to vector<48x256xi1>
    %88 = vector.broadcast %cst_32 : f32 to vector<48x256xf32>
    %89 = arith.select %87, %88, %85 : vector<48x256xi1>, vector<48x256xf32>
    %90 = tpu.concatenate %81, %54, %89 in 1 : vector<48x256xf32>, vector<48x256xf32>, vector<48x256xf32> -> vector<48x768xf32>
    %c0_33 = arith.constant 0 : index
    %c0_34 = arith.constant 0 : index
    %91 = vector.load %arg6[%c0_33, %c0_34] : memref<768x512xf32, #tpu.memory_space<vmem>>, vector<768x512xf32>
    %cst_35 = arith.constant dense<0.000000e+00> : vector<48x512xf32>
    %92 = tpu.matmul %90, %91, %cst_35 {dimension_numbers = #tpu.dot_dimension_numbers<[1], [0], [0], [1], [0, 0, 1, 1], [], []>} : vector<48x768xf32>, vector<768x512xf32>, vector<48x512xf32> -> vector<48x512xf32>
    %93 = vector.broadcast %55 : vector<1x512xf32> to vector<48x512xf32>
    %94 = arith.addf %92, %93 : vector<48x512xf32>
    %cst_36 = arith.constant 0.000000e+00 : f32
    %95 = vector.broadcast %cst_36 : f32 to vector<48x512xf32>
    %96 = arith.maximumf %94, %95 : vector<48x512xf32>
    %97 = vector.shape_cast %96 : vector<48x512xf32> to vector<24x2x512xf32>
    %cst_37 = arith.constant dense<0xFF800000> : vector<24x512xf32>
    %98 = vector.multi_reduction <maximumf>, %97, %cst_37 [1] : vector<24x2x512xf32> to vector<24x512xf32>
    %99 = vector.shape_cast %98 : vector<24x512xf32> to vector<8x3x512xf32>
    %100 = vector.extract_strided_slice %99 {offsets = [0, 0, 0], sizes = [8, 1, 512], strides = [1, 1, 1]} : vector<8x3x512xf32> to vector<8x1x512xf32>
    %101 = vector.shape_cast %100 : vector<8x1x512xf32> to vector<8x512xf32>
    %102 = vector.extract_strided_slice %99 {offsets = [0, 1, 0], sizes = [8, 1, 512], strides = [1, 1, 1]} : vector<8x3x512xf32> to vector<8x1x512xf32>
    %103 = vector.shape_cast %102 : vector<8x1x512xf32> to vector<8x512xf32>
    %104 = vector.extract_strided_slice %99 {offsets = [0, 2, 0], sizes = [8, 1, 512], strides = [1, 1, 1]} : vector<8x3x512xf32> to vector<8x1x512xf32>
    %105 = vector.shape_cast %104 : vector<8x1x512xf32> to vector<8x512xf32>
    %106 = tpu.concatenate %101, %103, %105 in 1 : vector<8x512xf32>, vector<8x512xf32>, vector<8x512xf32> -> vector<8x1536xf32>
    %c0_38 = arith.constant 0 : index
    %c0_39 = arith.constant 0 : index
    %107 = vector.load %arg8[%c0_38, %c0_39] : memref<1536x256xf32, #tpu.memory_space<vmem>>, vector<1536x256xf32>
    %cst_40 = arith.constant dense<0.000000e+00> : vector<8x256xf32>
    %108 = tpu.matmul %106, %107, %cst_40 {dimension_numbers = #tpu.dot_dimension_numbers<[1], [0], [0], [1], [0, 0, 1, 1], [], []>} : vector<8x1536xf32>, vector<1536x256xf32>, vector<8x256xf32> -> vector<8x256xf32>
    %c0_41 = arith.constant 0 : index
    %c0_42 = arith.constant 0 : index
    %109 = vector.load %arg9[%c0_41, %c0_42] : memref<1x256xf32, #tpu.memory_space<vmem>>, vector<1x256xf32>
    %110 = vector.broadcast %109 : vector<1x256xf32> to vector<8x256xf32>
    %111 = arith.addf %108, %110 : vector<8x256xf32>
    %cst_43 = arith.constant 0.000000e+00 : f32
    %112 = vector.broadcast %cst_43 : f32 to vector<8x256xf32>
    %113 = arith.maximumf %111, %112 : vector<8x256xf32>
    %c0_44 = arith.constant 0 : index
    %c0_45 = arith.constant 0 : index
    %114 = vector.load %arg10[%c0_44, %c0_45] : memref<256x128xf32, #tpu.memory_space<vmem>>, vector<256x128xf32>
    %cst_46 = arith.constant dense<0.000000e+00> : vector<8x128xf32>
    %115 = tpu.matmul %113, %114, %cst_46 {dimension_numbers = #tpu.dot_dimension_numbers<[1], [0], [0], [1], [0, 0, 1, 1], [], []>} : vector<8x256xf32>, vector<256x128xf32>, vector<8x128xf32> -> vector<8x128xf32>
    %c0_47 = arith.constant 0 : index
    %c0_48 = arith.constant 0 : index
    %116 = vector.load %arg11[%c0_47, %c0_48] : memref<1x128xf32, #tpu.memory_space<vmem>>, vector<1x128xf32>
    %117 = vector.broadcast %116 : vector<1x128xf32> to vector<8x128xf32>
    %118 = arith.addf %115, %117 : vector<8x128xf32>
    %cst_49 = arith.constant 0.000000e+00 : f32
    %119 = vector.broadcast %cst_49 : f32 to vector<8x128xf32>
    %120 = arith.maximumf %118, %119 : vector<8x128xf32>
    %c0_50 = arith.constant 0 : index
    %c0_51 = arith.constant 0 : index
    %121 = vector.load %arg12[%c0_50, %c0_51] : memref<128x128xf32, #tpu.memory_space<vmem>>, vector<128x128xf32>
    %cst_52 = arith.constant dense<0.000000e+00> : vector<8x128xf32>
    %122 = tpu.matmul %120, %121, %cst_52 {dimension_numbers = #tpu.dot_dimension_numbers<[1], [0], [0], [1], [0, 0, 1, 1], [], []>} : vector<8x128xf32>, vector<128x128xf32>, vector<8x128xf32> -> vector<8x128xf32>
    %c0_53 = arith.constant 0 : index
    %c0_54 = arith.constant 0 : index
    %123 = vector.load %arg13[%c0_53, %c0_54] : memref<1x128xf32, #tpu.memory_space<vmem>>, vector<1x128xf32>
    %124 = vector.broadcast %123 : vector<1x128xf32> to vector<8x128xf32>
    %125 = arith.addf %122, %124 : vector<8x128xf32>
    %c0_55 = arith.constant 0 : index
    %c0_56 = arith.constant 0 : index
    %126 = vector.load %arg14[%c0_55, %c0_56] : memref<8x128xf32, #tpu.memory_space<vmem>>, vector<8x128xf32>
    tpu.vector_store %arg14[%c0_55, %c0_56], %125 {strides = array<i32>} : memref<8x128xf32, #tpu.memory_space<vmem>>, vector<8x128xf32>,
    return
  }
  func.func @transform_0(%arg0: i32) -> (i32, i32, i32) {
    %c0_i32 = arith.constant 0 : i32
    %c0_i32_0 = arith.constant 0 : i32
    %c0_i32_1 = arith.constant 0 : i32
    return %arg0, %c0_i32, %c0_i32_0 : i32, i32, i32
  }
  func.func @transform_1(%arg0: i32) -> (i32, i32) {
    %c0_i32 = arith.constant 0 : i32
    %c0_i32_0 = arith.constant 0 : i32
    %c0_i32_1 = arith.constant 0 : i32
    return %c0_i32, %c0_i32_0 : i32, i32
  }
  func.func @transform_2(%arg0: i32) -> (i32, i32) {
    %c0_i32 = arith.constant 0 : i32
    %c0_i32_0 = arith.constant 0 : i32
    %c0_i32_1 = arith.constant 0 : i32
    return %c0_i32, %c0_i32_0 : i32, i32
  }
  func.func @transform_3(%arg0: i32) -> (i32, i32) {
    %c0_i32 = arith.constant 0 : i32
    %c0_i32_0 = arith.constant 0 : i32
    %c0_i32_1 = arith.constant 0 : i32
    return %c0_i32, %c0_i32_0 : i32, i32
  }
  func.func @transform_4(%arg0: i32) -> (i32, i32) {
    %c0_i32 = arith.constant 0 : i32
    %c0_i32_0 = arith.constant 0 : i32
    %c0_i32_1 = arith.constant 0 : i32
    return %c0_i32, %c0_i32_0 : i32, i32
  }
  func.func @transform_5(%arg0: i32) -> (i32, i32) {
    %c0_i32 = arith.constant 0 : i32
    %c0_i32_0 = arith.constant 0 : i32
    %c0_i32_1 = arith.constant 0 : i32
    return %c0_i32, %c0_i32_0 : i32, i32
  }
  func.func @transform_6(%arg0: i32) -> (i32, i32) {
    %c0_i32 = arith.constant 0 : i32
    %c0_i32_0 = arith.constant 0 : i32
    %c0_i32_1 = arith.constant 0 : i32
    return %c0_i32, %c0_i32_0 : i32, i32
  }
  func.func @transform_7(%arg0: i32) -> (i32, i32) {
    %c0_i32 = arith.constant 0 : i32
    %c0_i32_0 = arith.constant 0 : i32
    %c0_i32_1 = arith.constant 0 : i32
    return %c0_i32, %c0_i32_0 : i32, i32
  }
  func.func @transform_8(%arg0: i32) -> (i32, i32) {
    %c0_i32 = arith.constant 0 : i32
    %c0_i32_0 = arith.constant 0 : i32
    %c0_i32_1 = arith.constant 0 : i32
    return %c0_i32, %c0_i32_0 : i32, i32
  }
  func.func @transform_9(%arg0: i32) -> (i32, i32) {
    %c0_i32 = arith.constant 0 : i32
    %c0_i32_0 = arith.constant 0 : i32
    %c0_i32_1 = arith.constant 0 : i32
    return %c0_i32, %c0_i32_0 : i32, i32
  }
  func.func @transform_10(%arg0: i32) -> (i32, i32) {
    %c0_i32 = arith.constant 0 : i32
    %c0_i32_0 = arith.constant 0 : i32
    %c0_i32_1 = arith.constant 0 : i32
    return %c0_i32, %c0_i32_0 : i32, i32
  }
  func.func @transform_11(%arg0: i32) -> (i32, i32) {
    %c0_i32 = arith.constant 0 : i32
    %c0_i32_0 = arith.constant 0 : i32
    %c0_i32_1 = arith.constant 0 : i32
    return %c0_i32, %c0_i32_0 : i32, i32
  }
  func.func @transform_12(%arg0: i32) -> (i32, i32) {
    %c0_i32 = arith.constant 0 : i32
    %c0_i32_0 = arith.constant 0 : i32
    %c0_i32_1 = arith.constant 0 : i32
    return %c0_i32, %c0_i32_0 : i32, i32
  }
  func.func @transform_13(%arg0: i32) -> (i32, i32) {
    %c0_i32 = arith.constant 0 : i32
    %c0_i32_0 = arith.constant 0 : i32
    return %arg0, %c0_i32 : i32, i32
  }
}

</mosaic_0001>

<llo_original>
// kernel: tpu_custom_call.1
$region0: #{tpu_custom_call.1}
  #allocation0 [shape = 'u32[]', space=smem, size = 0x4, offset = 0x4, fixed_abs, tag = 'smem constant byte address 0x4 - core index']
  #allocation1 [shape = 'u32[144,128]{1,0:T(1,128)}', space=vmem, size = 0x12000, scoped, tag = 'internal scratch']
  %s0 = inlined_call_operand.hbm [shape: f32[16,24,42], index: 0, kind: input, shape index: {}]
  %s1 = inlined_call_operand.hbm [shape: f32[42,128], index: 1, kind: input, shape index: {}]
  %s2 = inlined_call_operand.hbm [shape: f32[1,128], index: 2, kind: input, shape index: {}]
  %s3 = inlined_call_operand.hbm [shape: f32[384,256], index: 3, kind: input, shape index: {}]
  %s4 = inlined_call_operand.hbm [shape: f32[1,256], index: 4, kind: input, shape index: {}]
  %s5 = inlined_call_operand.hbm [shape: f32[768,512], index: 5, kind: input, shape index: {}]
  %s6 = inlined_call_operand.hbm [shape: f32[1,512], index: 6, kind: input, shape index: {}]
  %s7 = inlined_call_operand.hbm [shape: f32[1536,256], index: 7, kind: input, shape index: {}]
  %s8 = inlined_call_operand.hbm [shape: f32[1,256], index: 8, kind: input, shape index: {}]
  %s9 = inlined_call_operand.hbm [shape: f32[256,128], index: 9, kind: input, shape index: {}]
  %s10 = inlined_call_operand.hbm [shape: f32[1,128], index: 10, kind: input, shape index: {}]
  %s11 = inlined_call_operand.hbm [shape: f32[128,128], index: 11, kind: input, shape index: {}]
  %s12 = inlined_call_operand.hbm [shape: f32[1,128], index: 12, kind: input, shape index: {}]
  %s13 = inlined_call_operand.hbm [shape: f32[16,128], index: 13, kind: output, shape index: {}]
  %s14 = sld [smem:[#allocation0]]
  $region137: #{tpu_custom_call.1} parent=0
    _
  %s16 = ssub.s32 1, %s14
  %s17 = scalar_select 0, %s16, %s14
  $region1: #{tpu_custom_call.1} parent=0
    #allocation2 [shape = 'u8[196608]{0}', space=vmem, size = 0x30000, scoped, tag = 'input window, operand 0']
    #allocation3 [shape = 's32[2]{0}', space=sflag, size = 0x8, scoped, tag = 'scoped memory for tpu_custom_call.1']
    #allocation4 [shape = 's32[2]{0}', space=sflag, size = 0x8, scoped, tag = 'scoped memory for tpu_custom_call.1']
    #allocation5 [shape = 'u8[24576]{0}', space=vmem, size = 0x6000, scoped, tag = 'input window, operand 1, single buffered']
    #allocation6 [shape = 's32[1]{0}', space=sflag, size = 0x4, scoped, tag = 'scoped memory for tpu_custom_call.1']
    #allocation7 [shape = 'u8[512]{0}', space=vmem, size = 0x400, scoped, tag = 'input window, operand 2, single buffered']
    #allocation8 [shape = 'u8[393216]{0}', space=vmem, size = 0x60000, scoped, tag = 'input window, operand 3, single buffered']
    #allocation9 [shape = 's32[1]{0}', space=sflag, size = 0x4, scoped, tag = 'scoped memory for tpu_custom_call.1']
    #allocation10 [shape = 'u8[1024]{0}', space=vmem, size = 0x400, scoped, tag = 'input window, operand 4, single buffered']
    #allocation11 [shape = 'u8[1572864]{0}', space=vmem, size = 0x180000, scoped, tag = 'input window, operand 5, single buffered']
    #allocation12 [shape = 's32[1]{0}', space=sflag, size = 0x4, scoped, tag = 'scoped memory for tpu_custom_call.1']
    #allocation13 [shape = 'u8[2048]{0}', space=vmem, size = 0x800, scoped, tag = 'input window, operand 6, single buffered']
    #allocation14 [shape = 'u8[1572864]{0}', space=vmem, size = 0x180000, scoped, tag = 'input window, operand 7, single buffered']
    #allocation15 [shape = 's32[1]{0}', space=sflag, size = 0x4, scoped, tag = 'scoped memory for tpu_custom_call.1']
    #allocation16 [shape = 'u8[1024]{0}', space=vmem, size = 0x400, scoped, tag = 'input window, operand 8, single buffered']
    #allocation17 [shape = 'u8[131072]{0}', space=vmem, size = 0x20000, scoped, tag = 'input window, operand 9, single buffered']
    #allocation18 [shape = 's32[1]{0}', space=sflag, size = 0x4, scoped, tag = 'scoped memory for tpu_custom_call.1']
    #allocation19 [shape = 'u8[512]{0}', space=vmem, size = 0x400, scoped, tag = 'input window, operand 10, single buffered']
    #allocation20 [shape = 'u8[65536]{0}', space=vmem, size = 0x10000, scoped, tag = 'input window, operand 11, single buffered']
    #allocation21 [shape = 's32[1]{0}', space=sflag, size = 0x4, scoped, tag = 'scoped memory for tpu_custom_call.1']
    #allocation22 [shape = 'u8[512]{0}', space=vmem, size = 0x400, scoped, tag = 'input window, operand 12, single buffered']
    #allocation23 [shape = 'u8[8192]{0}', space=vmem, size = 0x2000, scoped, tag = 'output window, operand 0']
    %18 = vsyncpa [#allocation3], 0
    %s19 = scalar_lea.sflag [#allocation3], 1
    %20 = vsyncpa %s19, 0
    %21 = vsyncpa [#allocation6], 0
    %22 = vsyncpa [#allocation9], 0
    %23 = vsyncpa [#allocation12], 0
    %24 = vsyncpa [#allocation15], 0
    %25 = vsyncpa [#allocation18], 0
    %26 = vsyncpa [#allocation21], 0
    %27 = vsyncpa [#allocation4], 0
    %s28 = scalar_lea.sflag [#allocation4], 1
    %29 = vsyncpa %s28, 0
    loop: start=0, step=1, limit=4
    $region2: #{tpu_custom_call.1} parent=1 // loop_pre_header
      _
    $region3: #{tpu_custom_call.1} parent=1 // loop_header
      %s31 = sphi 0, %s35
      %p32 = scmp.ge.s32.totalorder %s31, 4
      %s41 = sphi 0, %s43
      %s44 = sphi 0, %s41
      %s45 = sphi 0, %s44
      %s61 = sphi 0, %s45
      %s65 = sphi 0, %s65
      %s67 = sphi 0, %s65
      %s68 = sphi 0, %s67
      %s82 = sphi 0, %s68
      %s86 = sphi 0, %s86
      %s88 = sphi 0, %s86
      %s89 = sphi 0, %s88
      %s103 = sphi 0, %s89
      %s107 = sphi 0, %s107
      %s109 = sphi 0, %s107
      %s110 = sphi 0, %s109
      %s124 = sphi 0, %s110
      %s128 = sphi 0, %s128
      %s130 = sphi 0, %s128
      %s131 = sphi 0, %s130
      %s145 = sphi 0, %s131
      %s149 = sphi 0, %s149
      %s151 = sphi 0, %s149
      %s152 = sphi 0, %s151
      %s166 = sphi 0, %s152
      %s170 = sphi 0, %s170
      %s172 = sphi 0, %s170
      %s173 = sphi 0, %s172
      %s187 = sphi 0, %s173
      %s191 = sphi 0, %s191
      %s193 = sphi 0, %s191
      %s194 = sphi 0, %s193
      %s208 = sphi 0, %s194
      %s212 = sphi 0, %s212
      %s214 = sphi 0, %s212
      %s215 = sphi 0, %s214
      %s229 = sphi 0, %s215
      %s233 = sphi 0, %s233
      %s235 = sphi 0, %s233
      %s236 = sphi 0, %s235
      %s250 = sphi 0, %s236
      %s254 = sphi 0, %s254
      %s256 = sphi 0, %s254
      %s257 = sphi 0, %s256
      %s271 = sphi 0, %s257
      %s275 = sphi 0, %s275
      %s277 = sphi 0, %s275
      %s278 = sphi 0, %s277
      %s292 = sphi 0, %s278
      %s296 = sphi 0, %s296
      %s298 = sphi 0, %s296
      %s299 = sphi 0, %s298
      %s313 = sphi 0, %s299
      %s319 = sphi 0, %s321
      %s322 = sphi 0, %s319
      %s323 = sphi 0, %s322
      %s339 = sphi 0, %s323
    $region4: #{tpu_custom_call.1} parent=1 // loop_header_branch
      %34 = sbr.rel (%p32) target = $region8
    $region5: #{tpu_custom_call.1} parent=1 // loop_body
      %s36 = ssub.s32 %s31, 1
      %s37 = ssub.s32 %s31, 2
      %s38 = sadd.s32 %s31, 1
      %s39 = ssub.s32 %s31, %s38
      %p40 = scmp.eq.s32.totalorder %s39, 0
      %s42 = sadd.s32 %s41, 1
      %s43 = scalar_select %p40, %s41, %s42
      %p46 = pneg %p40
      %p47 = scmp.eq.s32.totalorder %s31, 1
      %p48 = por %p46, %p47
      %p49 = scmp.ne.s32.totalorder %s41, %s44
      %p50 = scmp.eq.s32.totalorder %s31, 0
      %p51 = por %p49, %p50
      %p52 = scmp.ne.s32.totalorder %s41, %s44
      %p53 = scmp.eq.s32.totalorder %s36, 1
      %p54 = por %p52, %p53
      %p55 = scmp.ne.s32.totalorder %s44, %s45
      %p56 = scmp.eq.s32.totalorder %s36, 0
      %p57 = por %p55, %p56
      %p58 = scmp.ne.s32.totalorder %s44, %s45
      %p59 = scmp.eq.s32.totalorder %s37, 1
      %p60 = por %p58, %p59
      %p62 = scmp.ne.s32.totalorder %s45, %s61
      %p63 = scmp.eq.s32.totalorder %s37, 0
      %p64 = por %p62, %p63
      %s66 = sadd.s32 %s65, 1
      %p69 = scmp.eq.s32.totalorder %s31, 1
      %p70 = scmp.ne.s32.totalorder %s65, %s67
      %p71 = scmp.eq.s32.totalorder %s31, 0
      %p72 = por %p70, %p71
      %p73 = scmp.ne.s32.totalorder %s65, %s67
      %p74 = scmp.eq.s32.totalorder %s36, 1
      %p75 = por %p73, %p74
      %p76 = scmp.ne.s32.totalorder %s67, %s68
      %p77 = scmp.eq.s32.totalorder %s36, 0
      %p78 = por %p76, %p77
      %p79 = scmp.ne.s32.totalorder %s67, %s68
      %p80 = scmp.eq.s32.totalorder %s37, 1
      %p81 = por %p79, %p80
      %p83 = scmp.ne.s32.totalorder %s68, %s82
      %p84 = scmp.eq.s32.totalorder %s37, 0
      %p85 = por %p83, %p84
      %s87 = sadd.s32 %s86, 1
      %p90 = scmp.eq.s32.totalorder %s31, 1
      %p91 = scmp.ne.s32.totalorder %s86, %s88
      %p92 = scmp.eq.s32.totalorder %s31, 0
      %p93 = por %p91, %p92
      %p94 = scmp.ne.s32.totalorder %s86, %s88
      %p95 = scmp.eq.s32.totalorder %s36, 1
      %p96 = por %p94, %p95
      %p97 = scmp.ne.s32.totalorder %s88, %s89
      %p98 = scmp.eq.s32.totalorder %s36, 0
      %p99 = por %p97, %p98
      %p100 = scmp.ne.s32.totalorder %s88, %s89
      %p101 = scmp.eq.s32.totalorder %s37, 1
      %p102 = por %p100, %p101
      %p104 = scmp.ne.s32.totalorder %s89, %s103
      %p105 = scmp.eq.s32.totalorder %s37, 0
      %p106 = por %p104, %p105
      %s108 = sadd.s32 %s107, 1
      %p111 = scmp.eq.s32.totalorder %s31, 1
      %p112 = scmp.ne.s32.totalorder %s107, %s109
      %p113 = scmp.eq.s32.totalorder %s31, 0
      %p114 = por %p112, %p113
      %p115 = scmp.ne.s32.totalorder %s107, %s109
      %p116 = scmp.eq.s32.totalorder %s36, 1
      %p117 = por %p115, %p116
      %p118 = scmp.ne.s32.totalorder %s109, %s110
      %p119 = scmp.eq.s32.totalorder %s36, 0
      %p120 = por %p118, %p119
      %p121 = scmp.ne.s32.totalorder %s109, %s110
      %p122 = scmp.eq.s32.totalorder %s37, 1
      %p123 = por %p121, %p122
      %p125 = scmp.ne.s32.totalorder %s110, %s124
      %p126 = scmp.eq.s32.totalorder %s37, 0
      %p127 = por %p125, %p126
      %s129 = sadd.s32 %s128, 1
      %p132 = scmp.eq.s32.totalorder %s31, 1
      %p133 = scmp.ne.s32.totalorder %s128, %s130
      %p134 = scmp.eq.s32.totalorder %s31, 0
      %p135 = por %p133, %p134
      %p136 = scmp.ne.s32.totalorder %s128, %s130
      %p137 = scmp.eq.s32.totalorder %s36, 1
      %p138 = por %p136, %p137
      %p139 = scmp.ne.s32.totalorder %s130, %s131
      %p140 = scmp.eq.s32.totalorder %s36, 0
      %p141 = por %p139, %p140
      %p142 = scmp.ne.s32.totalorder %s130, %s131
      %p143 = scmp.eq.s32.totalorder %s37, 1
      %p144 = por %p142, %p143
      %p146 = scmp.ne.s32.totalorder %s131, %s145
      %p147 = scmp.eq.s32.totalorder %s37, 0
      %p148 = por %p146, %p147
      %s150 = sadd.s32 %s149, 1
      %p153 = scmp.eq.s32.totalorder %s31, 1
      %p154 = scmp.ne.s32.totalorder %s149, %s151
      %p155 = scmp.eq.s32.totalorder %s31, 0
      %p156 = por %p154, %p155
      %p157 = scmp.ne.s32.totalorder %s149, %s151
      %p158 = scmp.eq.s32.totalorder %s36, 1
      %p159 = por %p157, %p158
      %p160 = scmp.ne.s32.totalorder %s151, %s152
      %p161 = scmp.eq.s32.totalorder %s36, 0
      %p162 = por %p160, %p161
      %p163 = scmp.ne.s32.totalorder %s151, %s152
      %p164 = scmp.eq.s32.totalorder %s37, 1
      %p165 = por %p163, %p164
      %p167 = scmp.ne.s32.totalorder %s152, %s166
      %p168 = scmp.eq.s32.totalorder %s37, 0
      %p169 = por %p167, %p168
      %s171 = sadd.s32 %s170, 1
      %p174 = scmp.eq.s32.totalorder %s31, 1
      %p175 = scmp.ne.s32.totalorder %s170, %s172
      %p176 = scmp.eq.s32.totalorder %s31, 0
      %p177 = por %p175, %p176
      %p178 = scmp.ne.s32.totalorder %s170, %s172
      %p179 = scmp.eq.s32.totalorder %s36, 1
      %p180 = por %p178, %p179
      %p181 = scmp.ne.s32.totalorder %s172, %s173
      %p182 = scmp.eq.s32.totalorder %s36, 0
      %p183 = por %p181, %p182
      %p184 = scmp.ne.s32.totalorder %s172, %s173
      %p185 = scmp.eq.s32.totalorder %s37, 1
      %p186 = por %p184, %p185
      %p188 = scmp.ne.s32.totalorder %s173, %s187
      %p189 = scmp.eq.s32.totalorder %s37, 0
      %p190 = por %p188, %p189
      %s192 = sadd.s32 %s191, 1
      %p195 = scmp.eq.s32.totalorder %s31, 1
      %p196 = scmp.ne.s32.totalorder %s191, %s193
      %p197 = scmp.eq.s32.totalorder %s31, 0
      %p198 = por %p196, %p197
      %p199 = scmp.ne.s32.totalorder %s191, %s193
      %p200 = scmp.eq.s32.totalorder %s36, 1
      %p201 = por %p199, %p200
      %p202 = scmp.ne.s32.totalorder %s193, %s194
      %p203 = scmp.eq.s32.totalorder %s36, 0
      %p204 = por %p202, %p203
      %p205 = scmp.ne.s32.totalorder %s193, %s194
      %p206 = scmp.eq.s32.totalorder %s37, 1
      %p207 = por %p205, %p206
      %p209 = scmp.ne.s32.totalorder %s194, %s208
      %p210 = scmp.eq.s32.totalorder %s37, 0
      %p211 = por %p209, %p210
      %s213 = sadd.s32 %s212, 1
      %p216 = scmp.eq.s32.totalorder %s31, 1
      %p217 = scmp.ne.s32.totalorder %s212, %s214
      %p218 = scmp.eq.s32.totalorder %s31, 0
      %p219 = por %p217, %p218
      %p220 = scmp.ne.s32.totalorder %s212, %s214
      %p221 = scmp.eq.s32.totalorder %s36, 1
      %p222 = por %p220, %p221
      %p223 = scmp.ne.s32.totalorder %s214, %s215
      %p224 = scmp.eq.s32.totalorder %s36, 0
      %p225 = por %p223, %p224
      %p226 = scmp.ne.s32.totalorder %s214, %s215
      %p227 = scmp.eq.s32.totalorder %s37, 1
      %p228 = por %p226, %p227
      %p230 = scmp.ne.s32.totalorder %s215, %s229
      %p231 = scmp.eq.s32.totalorder %s37, 0
      %p232 = por %p230, %p231
      %s234 = sadd.s32 %s233, 1
      %p237 = scmp.eq.s32.totalorder %s31, 1
      %p238 = scmp.ne.s32.totalorder %s233, %s235
      %p239 = scmp.eq.s32.totalorder %s31, 0
      %p240 = por %p238, %p239
      %p241 = scmp.ne.s32.totalorder %s233, %s235
      %p242 = scmp.eq.s32.totalorder %s36, 1
      %p243 = por %p241, %p242
      %p244 = scmp.ne.s32.totalorder %s235, %s236
      %p245 = scmp.eq.s32.totalorder %s36, 0
      %p246 = por %p244, %p245
      %p247 = scmp.ne.s32.totalorder %s235, %s236
      %p248 = scmp.eq.s32.totalorder %s37, 1
      %p249 = por %p247, %p248
      %p251 = scmp.ne.s32.totalorder %s236, %s250
      %p252 = scmp.eq.s32.totalorder %s37, 0
      %p253 = por %p251, %p252
      %s255 = sadd.s32 %s254, 1
      %p258 = scmp.eq.s32.totalorder %s31, 1
      %p259 = scmp.ne.s32.totalorder %s254, %s256
      %p260 = scmp.eq.s32.totalorder %s31, 0
      %p261 = por %p259, %p260
      %p262 = scmp.ne.s32.totalorder %s254, %s256
      %p263 = scmp.eq.s32.totalorder %s36, 1
      %p264 = por %p262, %p263
      %p265 = scmp.ne.s32.totalorder %s256, %s257
      %p266 = scmp.eq.s32.totalorder %s36, 0
      %p267 = por %p265, %p266
      %p268 = scmp.ne.s32.totalorder %s256, %s257
      %p269 = scmp.eq.s32.totalorder %s37, 1
      %p270 = por %p268, %p269
      %p272 = scmp.ne.s32.totalorder %s257, %s271
      %p273 = scmp.eq.s32.totalorder %s37, 0
      %p274 = por %p272, %p273
      %s276 = sadd.s32 %s275, 1
      %p279 = scmp.eq.s32.totalorder %s31, 1
      %p280 = scmp.ne.s32.totalorder %s275, %s277
      %p281 = scmp.eq.s32.totalorder %s31, 0
      %p282 = por %p280, %p281
      %p283 = scmp.ne.s32.totalorder %s275, %s277
      %p284 = scmp.eq.s32.totalorder %s36, 1
      %p285 = por %p283, %p284
      %p286 = scmp.ne.s32.totalorder %s277, %s278
      %p287 = scmp.eq.s32.totalorder %s36, 0
      %p288 = por %p286, %p287
      %p289 = scmp.ne.s32.totalorder %s277, %s278
      %p290 = scmp.eq.s32.totalorder %s37, 1
      %p291 = por %p289, %p290
      %p293 = scmp.ne.s32.totalorder %s278, %s292
      %p294 = scmp.eq.s32.totalorder %s37, 0
      %p295 = por %p293, %p294
      %s297 = sadd.s32 %s296, 1
      %p300 = scmp.eq.s32.totalorder %s31, 1
      %p301 = scmp.ne.s32.totalorder %s296, %s298
      %p302 = scmp.eq.s32.totalorder %s31, 0
      %p303 = por %p301, %p302
      %p304 = scmp.ne.s32.totalorder %s296, %s298
      %p305 = scmp.eq.s32.totalorder %s36, 1
      %p306 = por %p304, %p305
      %p307 = scmp.ne.s32.totalorder %s298, %s299
      %p308 = scmp.eq.s32.totalorder %s36, 0
      %p309 = por %p307, %p308
      %p310 = scmp.ne.s32.totalorder %s298, %s299
      %p311 = scmp.eq.s32.totalorder %s37, 1
      %p312 = por %p310, %p311
      %p314 = scmp.ne.s32.totalorder %s299, %s313
      %p315 = scmp.eq.s32.totalorder %s37, 0
      %p316 = por %p314, %p315
      %s317 = ssub.s32 %s31, %s38
      %p318 = scmp.eq.s32.totalorder %s317, 0
      %s320 = sadd.s32 %s319, 1
      %s321 = scalar_select %p318, %s319, %s320
      %p324 = pneg %p318
      %p325 = scmp.eq.s32.totalorder %s31, 1
      %p326 = por %p324, %p325
      %p327 = scmp.ne.s32.totalorder %s319, %s322
      %p328 = scmp.eq.s32.totalorder %s31, 0
      %p329 = por %p327, %p328
      %p330 = scmp.ne.s32.totalorder %s319, %s322
      %p331 = scmp.eq.s32.totalorder %s36, 1
      %p332 = por %p330, %p331
      %p333 = scmp.ne.s32.totalorder %s322, %s323
      %p334 = scmp.eq.s32.totalorder %s36, 0
      %p335 = por %p333, %p334
      %p336 = scmp.ne.s32.totalorder %s322, %s323
      %p337 = scmp.eq.s32.totalorder %s37, 1
      %p338 = por %p336, %p337
      %p340 = scmp.ne.s32.totalorder %s323, %s339
      %p341 = scmp.eq.s32.totalorder %s37, 0
      %p342 = por %p340, %p341
      %p343 = scmp.le.s32.totalorder 1, %s31
      %p344 = scmp.lt.s32.totalorder %s31, 3
      %p345 = pnand %p343, %p344
      %p346 = pneg %p345
      // Predicated region
      $region9: #{tpu_custom_call.1} parent=5 // pred_check
        _
      $region10: #{tpu_custom_call.1} parent=5 // pred_check_branch
        %348 = sbr.rel (%p345) target = $region12
      $region11: #{tpu_custom_call.1} parent=5 // pred_region
        %s349 = ssub.s32 %s31, 1
        // Predicated region
        $region13: #{tpu_custom_call.1} parent=11 // pred_check
          %p350 = pneg %p78
        $region14: #{tpu_custom_call.1} parent=11 // pred_check_branch
          %352 = sbr.rel (%p350) target = $region16
        $region15: #{tpu_custom_call.1} parent=11 // pred_region
          %s354 = ssub.s32 768, 768
          %355 = vsyncadd [#allocation6], %s354
          %s356 = sshll.u32 [#allocation5], 4
          %s357 = int_to_ptr.vmem [resolvable:$true] %s356
          %362 = dma.hbm_to_vmem [thread:$0]  %s1, 768, %s357, [#allocation6], 128, 128, 8
        $region16: #{tpu_custom_call.1} parent=11 // pred_fallthru
          _
        // Predicated region
        $region17: #{tpu_custom_call.1} parent=11 // pred_check
          %p363 = pneg %p99
        $region18: #{tpu_custom_call.1} parent=11 // pred_check_branch
          %365 = sbr.rel (%p363) target = $region20
        $region19: #{tpu_custom_call.1} parent=11 // pred_region
          %s367 = ssub.s32 16, 16
          %368 = vsyncadd [#allocation6], %s367
          %s370 = sshll.u32 [#allocation7], 4
          %s371 = int_to_ptr.vmem [resolvable:$true] %s370
          %373 = dma.hbm_to_vmem [thread:$0]  %s2, 16, %s371, [#allocation6]
        $region20: #{tpu_custom_call.1} parent=11 // pred_fallthru
          _
        // Predicated region
        $region21: #{tpu_custom_call.1} parent=11 // pred_check
          %p374 = pneg %p120
        $region22: #{tpu_custom_call.1} parent=11 // pred_check_branch
          %376 = sbr.rel (%p374) target = $region24
        $region23: #{tpu_custom_call.1} parent=11 // pred_region
          %s378 = ssub.s32 12288, 12288
          %379 = vsyncadd [#allocation9], %s378
          %s380 = sshll.u32 [#allocation8], 4
          %s381 = int_to_ptr.vmem [resolvable:$true] %s380
          %386 = dma.hbm_to_vmem [thread:$0]  %s3, 12288, %s381, [#allocation9], 256, 256, 16
        $region24: #{tpu_custom_call.1} parent=11 // pred_fallthru
          _
        // Predicated region
        $region25: #{tpu_custom_call.1} parent=11 // pred_check
          %p387 = pneg %p141
        $region26: #{tpu_custom_call.1} parent=11 // pred_check_branch
          %389 = sbr.rel (%p387) target = $region28
        $region27: #{tpu_custom_call.1} parent=11 // pred_region
          %s391 = ssub.s32 32, 32
          %392 = vsyncadd [#allocation9], %s391
          %s394 = sshll.u32 [#allocation10], 4
          %s395 = int_to_ptr.vmem [resolvable:$true] %s394
          %397 = dma.hbm_to_vmem [thread:$0]  %s4, 32, %s395, [#allocation9]
        $region28: #{tpu_custom_call.1} parent=11 // pred_fallthru
          _
        // Predicated region
        $region29: #{tpu_custom_call.1} parent=11 // pred_check
          %p398 = pneg %p162
        $region30: #{tpu_custom_call.1} parent=11 // pred_check_branch
          %400 = sbr.rel (%p398) target = $region32
        $region31: #{tpu_custom_call.1} parent=11 // pred_region
          %s402 = ssub.s32 49152, 49152
          %403 = vsyncadd [#allocation12], %s402
          %s404 = sshll.u32 [#allocation11], 4
          %s405 = int_to_ptr.vmem [resolvable:$true] %s404
          %410 = dma.hbm_to_vmem [thread:$0]  %s5, 49152, %s405, [#allocation12], 512, 512, 32
        $region32: #{tpu_custom_call.1} parent=11 // pred_fallthru
          _
        // Predicated region
        $region33: #{tpu_custom_call.1} parent=11 // pred_check
          %p411 = pneg %p183
        $region34: #{tpu_custom_call.1} parent=11 // pred_check_branch
          %413 = sbr.rel (%p411) target = $region36
        $region35: #{tpu_custom_call.1} parent=11 // pred_region
          %s415 = ssub.s32 64, 64
          %416 = vsyncadd [#allocation12], %s415
          %s418 = sshll.u32 [#allocation13], 4
          %s419 = int_to_ptr.vmem [resolvable:$true] %s418
          %421 = dma.hbm_to_vmem [thread:$0]  %s6, 64, %s419, [#allocation12]
        $region36: #{tpu_custom_call.1} parent=11 // pred_fallthru
          _
        // Predicated region
        $region37: #{tpu_custom_call.1} parent=11 // pred_check
          %p422 = pneg %p204
        $region38: #{tpu_custom_call.1} parent=11 // pred_check_branch
          %424 = sbr.rel (%p422) target = $region40
        $region39: #{tpu_custom_call.1} parent=11 // pred_region
          %s426 = ssub.s32 49152, 49152
          %427 = vsyncadd [#allocation15], %s426
          %s428 = sshll.u32 [#allocation14], 4
          %s429 = int_to_ptr.vmem [resolvable:$true] %s428
          %434 = dma.hbm_to_vmem [thread:$0]  %s7, 49152, %s429, [#allocation15], 256, 256, 16
        $region40: #{tpu_custom_call.1} parent=11 // pred_fallthru
          _
        // Predicated region
        $region41: #{tpu_custom_call.1} parent=11 // pred_check
          %p435 = pneg %p225
        $region42: #{tpu_custom_call.1} parent=11 // pred_check_branch
          %437 = sbr.rel (%p435) target = $region44
        $region43: #{tpu_custom_call.1} parent=11 // pred_region
          %s439 = ssub.s32 32, 32
          %440 = vsyncadd [#allocation15], %s439
          %s442 = sshll.u32 [#allocation16], 4
          %s443 = int_to_ptr.vmem [resolvable:$true] %s442
          %445 = dma.hbm_to_vmem [thread:$0]  %s8, 32, %s443, [#allocation15]
        $region44: #{tpu_custom_call.1} parent=11 // pred_fallthru
          _
        // Predicated region
        $region45: #{tpu_custom_call.1} parent=11 // pred_check
          %p446 = pneg %p246
        $region46: #{tpu_custom_call.1} parent=11 // pred_check_branch
          %448 = sbr.rel (%p446) target = $region48
        $region47: #{tpu_custom_call.1} parent=11 // pred_region
          %s450 = ssub.s32 4096, 4096
          %451 = vsyncadd [#allocation18], %s450
          %s452 = sshll.u32 [#allocation17], 4
          %s453 = int_to_ptr.vmem [resolvable:$true] %s452
          %458 = dma.hbm_to_vmem [thread:$0]  %s9, 4096, %s453, [#allocation18], 128, 128, 8
        $region48: #{tpu_custom_call.1} parent=11 // pred_fallthru
          _
        // Predicated region
        $region49: #{tpu_custom_call.1} parent=11 // pred_check
          %p459 = pneg %p267
        $region50: #{tpu_custom_call.1} parent=11 // pred_check_branch
          %461 = sbr.rel (%p459) target = $region52
        $region51: #{tpu_custom_call.1} parent=11 // pred_region
          %s463 = ssub.s32 16, 16
          %464 = vsyncadd [#allocation18], %s463
          %s466 = sshll.u32 [#allocation19], 4
          %s467 = int_to_ptr.vmem [resolvable:$true] %s466
          %469 = dma.hbm_to_vmem [thread:$0]  %s10, 16, %s467, [#allocation18]
        $region52: #{tpu_custom_call.1} parent=11 // pred_fallthru
          _
        // Predicated region
        $region53: #{tpu_custom_call.1} parent=11 // pred_check
          %p470 = pneg %p288
        $region54: #{tpu_custom_call.1} parent=11 // pred_check_branch
          %472 = sbr.rel (%p470) target = $region56
        $region55: #{tpu_custom_call.1} parent=11 // pred_region
          %s474 = ssub.s32 2048, 2048
          %475 = vsyncadd [#allocation21], %s474
          %s476 = sshll.u32 [#allocation20], 4
          %s477 = int_to_ptr.vmem [resolvable:$true] %s476
          %482 = dma.hbm_to_vmem [thread:$0]  %s11, 2048, %s477, [#allocation21], 128, 128, 8
        $region56: #{tpu_custom_call.1} parent=11 // pred_fallthru
          _
        // Predicated region
        $region57: #{tpu_custom_call.1} parent=11 // pred_check
          %p483 = pneg %p309
        $region58: #{tpu_custom_call.1} parent=11 // pred_check_branch
          %485 = sbr.rel (%p483) target = $region60
        $region59: #{tpu_custom_call.1} parent=11 // pred_region
          %s487 = ssub.s32 16, 16
          %488 = vsyncadd [#allocation21], %s487
          %s490 = sshll.u32 [#allocation22], 4
          %s491 = int_to_ptr.vmem [resolvable:$true] %s490
          %493 = dma.hbm_to_vmem [thread:$0]  %s12, 16, %s491, [#allocation21]
        $region60: #{tpu_custom_call.1} parent=11 // pred_fallthru
          _
      $region12: #{tpu_custom_call.1} parent=5 // pred_fallthru
        _
      %p494 = scmp.lt.s32.totalorder %s31, 2
      // Predicated region
      $region61: #{tpu_custom_call.1} parent=5 // pred_check
        %p495 = pneg %p494
      $region62: #{tpu_custom_call.1} parent=5 // pred_check_branch
        %497 = sbr.rel (%p495) target = $region64
      $region63: #{tpu_custom_call.1} parent=5 // pred_region
        // Predicated region
        $region65: #{tpu_custom_call.1} parent=63 // pred_check
          %p498 = pneg %p51
        $region66: #{tpu_custom_call.1} parent=63 // pred_check_branch
          %500 = sbr.rel (%p498) target = $region68
        $region67: #{tpu_custom_call.1} parent=63 // pred_region
          %s501 = sand.u32 %s41, 1
          %s502 = scalar_lea.sflag [#allocation3], %s501
          %s503 = sand.u32 %s41, 1
          %s504 = smul.addr %s503, 192
          %s505 = scalar_lea.vmem [#allocation2], %s504
          %s506 = smul.u32 8, %s31
          %s508 = ssub.s32 3072, 3072
          %509 = vsyncadd %s502, %s508
          %s510 = smul.addr %s506, 3
          %s511 = smul.addr %s510, 128
          %s512 = scalar_lea.hbm %s0, %s511
          %s513 = sshll.u32 %s505, 4
          %s514 = int_to_ptr.vmem [resolvable:$true] %s513
          %519 = dma.hbm_to_vmem [thread:$0]  %s512, 3072, %s514, %s502, 128, 128, 8
        $region68: #{tpu_custom_call.1} parent=63 // pred_fallthru
          _
      $region64: #{tpu_custom_call.1} parent=5 // pred_fallthru
        _
      %p520 = scmp.le.s32.totalorder 1, %s31
      %p521 = scmp.lt.s32.totalorder %s31, 3
      %p522 = pnand %p520, %p521
      %p523 = pneg %p522
      // Predicated region
      $region69: #{tpu_custom_call.1} parent=5 // pred_check
        _
      $region70: #{tpu_custom_call.1} parent=5 // pred_check_branch
        %525 = sbr.rel (%p522) target = $region72
      $region71: #{tpu_custom_call.1} parent=5 // pred_region
        %s526 = ssub.s32 %s31, 1
        %s527 = sand.u32 %s44, 1
        %s528 = scalar_lea.sflag [#allocation3], %s527
        %s529 = sand.u32 %s44, 1
        %s530 = smul.addr %s529, 192
        %s531 = scalar_lea.vmem [#allocation2], %s530
        // Predicated region
        $region73: #{tpu_custom_call.1} parent=71 // pred_check
          %p532 = pneg %p57
        $region74: #{tpu_custom_call.1} parent=71 // pred_check_branch
          %534 = sbr.rel (%p532) target = $region76
        $region75: #{tpu_custom_call.1} parent=71 // pred_region
          %535 = dma.done %s528, 3072
        $region76: #{tpu_custom_call.1} parent=71 // pred_fallthru
          _
        // Predicated region
        $region77: #{tpu_custom_call.1} parent=71 // pred_check
          %p536 = pneg %p78
        $region78: #{tpu_custom_call.1} parent=71 // pred_check_branch
          %538 = sbr.rel (%p536) target = $region80
        $region79: #{tpu_custom_call.1} parent=71 // pred_region
          %539 = dma.done [#allocation6], 768
        $region80: #{tpu_custom_call.1} parent=71 // pred_fallthru
          _
        // Predicated region
        $region81: #{tpu_custom_call.1} parent=71 // pred_check
          %p540 = pneg %p99
        $region82: #{tpu_custom_call.1} parent=71 // pred_check_branch
          %542 = sbr.rel (%p540) target = $region84
        $region83: #{tpu_custom_call.1} parent=71 // pred_region
          %543 = dma.done [#allocation6], 16
        $region84: #{tpu_custom_call.1} parent=71 // pred_fallthru
          _
        // Predicated region
        $region85: #{tpu_custom_call.1} parent=71 // pred_check
          %p544 = pneg %p120
        $region86: #{tpu_custom_call.1} parent=71 // pred_check_branch
          %546 = sbr.rel (%p544) target = $region88
        $region87: #{tpu_custom_call.1} parent=71 // pred_region
          %547 = dma.done [#allocation9], 12288
        $region88: #{tpu_custom_call.1} parent=71 // pred_fallthru
          _
        // Predicated region
        $region89: #{tpu_custom_call.1} parent=71 // pred_check
          %p548 = pneg %p141
        $region90: #{tpu_custom_call.1} parent=71 // pred_check_branch
          %550 = sbr.rel (%p548) target = $region92
        $region91: #{tpu_custom_call.1} parent=71 // pred_region
          %551 = dma.done [#allocation9], 32
        $region92: #{tpu_custom_call.1} parent=71 // pred_fallthru
          _
        // Predicated region
        $region93: #{tpu_custom_call.1} parent=71 // pred_check
          %p552 = pneg %p162
        $region94: #{tpu_custom_call.1} parent=71 // pred_check_branch
          %554 = sbr.rel (%p552) target = $region96
        $region95: #{tpu_custom_call.1} parent=71 // pred_region
          %555 = dma.done [#allocation12], 49152
        $region96: #{tpu_custom_call.1} parent=71 // pred_fallthru
          _
        // Predicated region
        $region97: #{tpu_custom_call.1} parent=71 // pred_check
          %p556 = pneg %p183
        $region98: #{tpu_custom_call.1} parent=71 // pred_check_branch
          %558 = sbr.rel (%p556) target = $region100
        $region99: #{tpu_custom_call.1} parent=71 // pred_region
          %559 = dma.done [#allocation12], 64
        $region100: #{tpu_custom_call.1} parent=71 // pred_fallthru
          _
        // Predicated region
        $region101: #{tpu_custom_call.1} parent=71 // pred_check
          %p560 = pneg %p204
        $region102: #{tpu_custom_call.1} parent=71 // pred_check_branch
          %562 = sbr.rel (%p560) target = $region104
        $region103: #{tpu_custom_call.1} parent=71 // pred_region
          %563 = dma.done [#allocation15], 49152
        $region104: #{tpu_custom_call.1} parent=71 // pred_fallthru
          _
        // Predicated region
        $region105: #{tpu_custom_call.1} parent=71 // pred_check
          %p564 = pneg %p225
        $region106: #{tpu_custom_call.1} parent=71 // pred_check_branch
          %566 = sbr.rel (%p564) target = $region108
        $region107: #{tpu_custom_call.1} parent=71 // pred_region
          %567 = dma.done [#allocation15], 32
        $region108: #{tpu_custom_call.1} parent=71 // pred_fallthru
          _
        // Predicated region
        $region109: #{tpu_custom_call.1} parent=71 // pred_check
          %p568 = pneg %p246
        $region110: #{tpu_custom_call.1} parent=71 // pred_check_branch
          %570 = sbr.rel (%p568) target = $region112
        $region111: #{tpu_custom_call.1} parent=71 // pred_region
          %571 = dma.done [#allocation18], 4096
        $region112: #{tpu_custom_call.1} parent=71 // pred_fallthru
          _
        // Predicated region
        $region113: #{tpu_custom_call.1} parent=71 // pred_check
          %p572 = pneg %p267
        $region114: #{tpu_custom_call.1} parent=71 // pred_check_branch
          %574 = sbr.rel (%p572) target = $region116
        $region115: #{tpu_custom_call.1} parent=71 // pred_region
          %575 = dma.done [#allocation18], 16
        $region116: #{tpu_custom_call.1} parent=71 // pred_fallthru
          _
        // Predicated region
        $region117: #{tpu_custom_call.1} parent=71 // pred_check
          %p576 = pneg %p288
        $region118: #{tpu_custom_call.1} parent=71 // pred_check_branch
          %578 = sbr.rel (%p576) target = $region120
        $region119: #{tpu_custom_call.1} parent=71 // pred_region
          %579 = dma.done [#allocation21], 2048
        $region120: #{tpu_custom_call.1} parent=71 // pred_fallthru
          _
        // Predicated region
        $region121: #{tpu_custom_call.1} parent=71 // pred_check
          %p580 = pneg %p309
        $region122: #{tpu_custom_call.1} parent=71 // pred_check_branch
          %582 = sbr.rel (%p580) target = $region124
        $region123: #{tpu_custom_call.1} parent=71 // pred_region
          %583 = dma.done [#allocation21], 16
        $region124: #{tpu_custom_call.1} parent=71 // pred_fallthru
          _
        %s584 = sand.u32 %s44, 1
        %s585 = scalar_lea.sflag [#allocation3], %s584
        %s586 = sand.u32 %s44, 1
        %s587 = smul.addr %s586, 192
        %s588 = scalar_lea.vmem [#allocation2], %s587
        %p589 = pneg %p57
        %p590 = pneg %p54
        %p591 = pneg %p78
        %p592 = pneg %p75
        %p593 = pneg %p99
        %p594 = pneg %p96
        %p595 = pneg %p120
        %p596 = pneg %p117
        %p597 = pneg %p141
        %p598 = pneg %p138
        %p599 = pneg %p162
        %p600 = pneg %p159
        %p601 = pneg %p183
        %p602 = pneg %p180
        %p603 = pneg %p204
        %p604 = pneg %p201
        %p605 = pneg %p225
        %p606 = pneg %p222
        %p607 = pneg %p246
        %p608 = pneg %p243
        %p609 = pneg %p267
        %p610 = pneg %p264
        %p611 = pneg %p288
        %p612 = pneg %p285
        %p613 = pneg %p309
        %p614 = pneg %p306
        %p615 = pneg %p335
        %p616 = pneg %p332
        %s617 = sand.u32 %s322, 1
        %s618 = scalar_lea.sflag [#allocation4], %s617
        %s619 = sand.u32 %s322, 1
        %s620 = smul.addr %s619, 8
        %s621 = scalar_lea.vmem [#allocation23], %s620
        %s622 = smul.u32 8, %s36
        %v623 = vld [vmem:[%s531] sm:$0xff]
        %v624 = vld [vmem:[%s531 + $0x8] sm:$0xff]
        %v625 = vld [vmem:[%s531 + $0x10] sm:$0xff]
        %v626 = vld [vmem:[%s531 + $0x18] sm:$0xff]
        %v627 = vld [vmem:[%s531 + $0x20] sm:$0xff]
        %v628 = vld [vmem:[%s531 + $0x28] sm:$0xff]
        %v629 = vld [vmem:[%s531 + $0x30] sm:$0xff]
        %v630 = vld [vmem:[%s531 + $0x38] sm:$0xff]
        %v631 = vld [vmem:[%s531 + $0x40] sm:$0xff]
        %v632 = vld [vmem:[%s531 + $0x48] sm:$0xff]
        %v633 = vld [vmem:[%s531 + $0x50] sm:$0xff]
        %v634 = vld [vmem:[%s531 + $0x58] sm:$0xff]
        %v635 = vld [vmem:[%s531 + $0x60] sm:$0xff]
        %v636 = vld [vmem:[%s531 + $0x68] sm:$0xff]
        %v637 = vld [vmem:[%s531 + $0x70] sm:$0xff]
        %v638 = vld [vmem:[%s531 + $0x78] sm:$0xff]
        %v639 = vld [vmem:[%s531 + $0x80] sm:$0xff]
        %v640 = vld [vmem:[%s531 + $0x88] sm:$0xff]
        %v641 = vld [vmem:[%s531 + $0x90] sm:$0xff]
        %v642 = vld [vmem:[%s531 + $0x98] sm:$0xff]
        %v643 = vld [vmem:[%s531 + $0xa0] sm:$0xff]
        %v644 = vld [vmem:[%s531 + $0xa8] sm:$0xff]
        %v645 = vld [vmem:[%s531 + $0xb0] sm:$0xff]
        %v646 = vld [vmem:[%s531 + $0xb8] sm:$0xff]
        %v647 = vld [vmem:[#allocation5] sm:$0xff]
        %v648 = vld [vmem:[#allocation5 + $0x8] sm:$0xff]
        %v649 = vld [vmem:[#allocation5 + $0x10] sm:$0xff]
        %v650 = vld [vmem:[#allocation5 + $0x18] sm:$0xff]
        %v651 = vld [vmem:[#allocation5 + $0x20] sm:$0xff]
        %v652 = vld [vmem:[#allocation5 + $0x28] sm:$0x3]
        %v653 = vld [vmem:[#allocation7] sm:$0x1]
        %v655 = vlaneseq
        %v656 = vshrl.u32 %v655, 7
        %v657 = vsub.s32 0, %v656
        %v658 = vrot.slane %v653, %v657
        %vm660 = vcmask 343040
        %v662 = vsel %vm660, %v623, 0
        %v665 = vsel %vm660, %v624, 0
        %v668 = vsel %vm660, %v625, 0
        %v671 = vsel %vm660, %v626, 0
        %v674 = vsel %vm660, %v627, 0
        %v677 = vsel %vm660, %v628, 0
        %v680 = vsel %vm660, %v629, 0
        %v683 = vsel %vm660, %v630, 0
        %v686 = vsel %vm660, %v631, 0
        %v689 = vsel %vm660, %v632, 0
        %v692 = vsel %vm660, %v633, 0
        %v695 = vsel %vm660, %v634, 0
        %v698 = vsel %vm660, %v635, 0
        %v701 = vsel %vm660, %v636, 0
        %v704 = vsel %vm660, %v637, 0
        %v707 = vsel %vm660, %v638, 0
        %v710 = vsel %vm660, %v639, 0
        %v713 = vsel %vm660, %v640, 0
        %v716 = vsel %vm660, %v641, 0
        %v719 = vsel %vm660, %v642, 0
        %v722 = vsel %vm660, %v643, 0
        %v725 = vsel %vm660, %v644, 0
        %v728 = vsel %vm660, %v645, 0
        %v731 = vsel %vm660, %v646, 0
        %vm733 = vcmask 1041408
        %v735 = vsel %vm733, %v652, 0
        %737 = vmatprep.subr.mxu0 0.0
        %738 = vmatpush1.msra.mxu0 %v647
        %739 = vmatprep.subr.mxu0 0.0
        %740 = vmatpush1.msra.mxu0 %v648
        %741 = vmatprep.subr.mxu0 0.0
        %742 = vmatpush1.msra.mxu0 %v649
        %743 = vmatprep.subr.mxu0 0.0
        %744 = vmatpush1.msra.mxu0 %v650
        %745 = vmatprep.subr.mxu0 0.0
        %746 = vmatpush1.msra.mxu0 %v651
        %747 = vmatprep.subr.mxu0 0.0
        %748 = vmatpush1.msra.mxu0 %v735
        %749 = vmatprep.subr.mxu0 0.0
        %750 = vmatpush1.msra.mxu0 0.0
        %751 = vmatprep.subr.mxu0 0.0
        %752 = vmatpush1.msra.mxu0 0.0
        %753 = vmatprep.subr.mxu0 0.0
        %754 = vmatpush1.msra.mxu0 0.0
        %755 = vmatprep.subr.mxu0 0.0
        %756 = vmatpush1.msra.mxu0 0.0
        %757 = vmatprep.subr.mxu0 0.0
        %758 = vmatpush1.msra.mxu0 0.0
        %759 = vmatprep.subr.mxu0 0.0
        %760 = vmatpush1.msra.mxu0 0.0
        %761 = vmatprep.subr.mxu0 0.0
        %762 = vmatpush1.msra.mxu0 0.0
        %763 = vmatprep.subr.mxu0 0.0
        %764 = vmatpush1.msra.mxu0 0.0
        %765 = vmatprep.subr.mxu0 0.0
        %766 = vmatpush1.msra.mxu0 0.0
        %767 = vmatprep.subr.mxu0 0.0
        %768 = vmatpush1.msra.mxu0 0.0
        %769 = vmatprep.subr.mxu0 0.0
        %770 = vmatpush1.msra.mxu0 0.0
        %771 = vmatprep.subr.mxu0 0.0
        %772 = vmatpush1.msra.mxu0 0.0
        %773 = vmatprep.subr.mxu0 0.0
        %774 = vmatpush1.msra.mxu0 0.0
        %775 = vmatprep.subr.mxu0 0.0
        %776 = vmatpush1.msra.mxu0 0.0
        %777 = vmatprep.subr.mxu0 0.0
        %778 = vmatpush1.msra.mxu0 0.0
        %779 = vmatprep.subr.mxu0 0.0
        %780 = vmatpush1.msra.mxu0 0.0
        %781 = vmatprep.subr.mxu0 0.0
        %782 = vmatpush1.msra.mxu0 0.0
        %783 = vmatprep.subr.mxu0 0.0
        %784 = vmatpush1.msra.mxu0 0.0
        %785 = vmatprep.subr.mxu0 0.0
        %786 = vmatpush1.msra.mxu0 0.0
        %787 = vmatprep.subr.mxu0 0.0
        %788 = vmatpush1.msra.mxu0 0.0
        %789 = vmatprep.subr.mxu0 0.0
        %790 = vmatpush1.msra.mxu0 0.0
        %791 = vmatprep.subr.mxu0 0.0
        %792 = vmatpush1.msra.mxu0 0.0
        %793 = vmatprep.subr.mxu0 0.0
        %794 = vmatpush1.msra.mxu0 0.0
        %795 = vmatprep.subr.mxu0 0.0
        %796 = vmatpush1.msra.mxu0 0.0
        %797 = vmatprep.subr.mxu0 0.0
        %798 = vmatpush1.msra.mxu0 0.0
        %799 = vmatprep.subr.mxu0 0.0
        %800 = vmatpush1.msra.mxu0 0.0
        %801 = vmatprep.mubr.f32.mxu0 0.0
        %802 = vmatmul.mubr.f32.gmra.mrb[0].mxu0 %v662
        %v803 = vpop.f32.mrb[0].mxu0
        %v804 = vadd.f32 %v658, %v803
        %v805 = vpop.f32.mrb[0].mxu0
        %806 = vmatprep.mubr.f32.mxu0 0.0
        %807 = vmatmul.mubr.f32.gmra.mrb[0].mxu0 %v665
        %v808 = vpop.f32.mrb[0].mxu0
        %v809 = vadd.f32 %v658, %v808
        %v810 = vpop.f32.mrb[0].mxu0
        %811 = vmatprep.mubr.f32.mxu0 0.0
        %812 = vmatmul.mubr.f32.gmra.mrb[0].mxu0 %v668
        %v813 = vpop.f32.mrb[0].mxu0
        %v814 = vadd.f32 %v658, %v813
        %v815 = vpop.f32.mrb[0].mxu0
        %816 = vmatprep.mubr.f32.mxu0 0.0
        %817 = vmatmul.mubr.f32.gmra.mrb[0].mxu0 %v671
        %v818 = vpop.f32.mrb[0].mxu0
        %v819 = vadd.f32 %v658, %v818
        %v820 = vpop.f32.mrb[0].mxu0
        %821 = vmatprep.mubr.f32.mxu0 0.0
        %822 = vmatmul.mubr.f32.gmra.mrb[0].mxu0 %v674
        %v823 = vpop.f32.mrb[0].mxu0
        %v824 = vadd.f32 %v658, %v823
        %v825 = vpop.f32.mrb[0].mxu0
        %826 = vmatprep.mubr.f32.mxu0 0.0
        %827 = vmatmul.mubr.f32.gmra.mrb[0].mxu0 %v677
        %v828 = vpop.f32.mrb[0].mxu0
        %v829 = vadd.f32 %v658, %v828
        %v830 = vpop.f32.mrb[0].mxu0
        %831 = vmatprep.mubr.f32.mxu0 0.0
        %832 = vmatmul.mubr.f32.gmra.mrb[0].mxu0 %v680
        %v833 = vpop.f32.mrb[0].mxu0
        %v834 = vadd.f32 %v658, %v833
        %v835 = vpop.f32.mrb[0].mxu0
        %836 = vmatprep.mubr.f32.mxu0 0.0
        %837 = vmatmul.mubr.f32.gmra.mrb[0].mxu0 %v683
        %v838 = vpop.f32.mrb[0].mxu0
        %v839 = vadd.f32 %v658, %v838
        %v840 = vpop.f32.mrb[0].mxu0
        %841 = vmatprep.mubr.f32.mxu0 0.0
        %842 = vmatmul.mubr.f32.gmra.mrb[0].mxu0 %v686
        %v843 = vpop.f32.mrb[0].mxu0
        %v844 = vadd.f32 %v658, %v843
        %v845 = vpop.f32.mrb[0].mxu0
        %846 = vmatprep.mubr.f32.mxu0 0.0
        %847 = vmatmul.mubr.f32.gmra.mrb[0].mxu0 %v689
        %v848 = vpop.f32.mrb[0].mxu0
        %v849 = vadd.f32 %v658, %v848
        %v850 = vpop.f32.mrb[0].mxu0
        %851 = vmatprep.mubr.f32.mxu0 0.0
        %852 = vmatmul.mubr.f32.gmra.mrb[0].mxu0 %v692
        %v853 = vpop.f32.mrb[0].mxu0
        %v854 = vadd.f32 %v658, %v853
        %v855 = vpop.f32.mrb[0].mxu0
        %856 = vmatprep.mubr.f32.mxu0 0.0
        %857 = vmatmul.mubr.f32.gmra.mrb[0].mxu0 %v695
        %v858 = vpop.f32.mrb[0].mxu0
        %v859 = vadd.f32 %v658, %v858
        %v860 = vpop.f32.mrb[0].mxu0
        %861 = vmatprep.mubr.f32.mxu0 0.0
        %862 = vmatmul.mubr.f32.gmra.mrb[0].mxu0 %v698
        %v863 = vpop.f32.mrb[0].mxu0
        %v864 = vadd.f32 %v658, %v863
        %v865 = vpop.f32.mrb[0].mxu0
        %866 = vmatprep.mubr.f32.mxu0 0.0
        %867 = vmatmul.mubr.f32.gmra.mrb[0].mxu0 %v701
        %v868 = vpop.f32.mrb[0].mxu0
        %v869 = vadd.f32 %v658, %v868
        %v870 = vpop.f32.mrb[0].mxu0
        %871 = vmatprep.mubr.f32.mxu0 0.0
        %872 = vmatmul.mubr.f32.gmra.mrb[0].mxu0 %v704
        %v873 = vpop.f32.mrb[0].mxu0
        %v874 = vadd.f32 %v658, %v873
        %v875 = vpop.f32.mrb[0].mxu0
        %876 = vmatprep.mubr.f32.mxu0 0.0
        %877 = vmatmul.mubr.f32.gmra.mrb[0].mxu0 %v707
        %v878 = vpop.f32.mrb[0].mxu0
        %v879 = vadd.f32 %v658, %v878
        %v880 = vpop.f32.mrb[0].mxu0
        %881 = vmatprep.mubr.f32.mxu0 0.0
        %882 = vmatmul.mubr.f32.gmra.mrb[0].mxu0 %v710
        %v883 = vpop.f32.mrb[0].mxu0
        %v884 = vadd.f32 %v658, %v883
        %v885 = vpop.f32.mrb[0].mxu0
        %886 = vmatprep.mubr.f32.mxu0 0.0
        %887 = vmatmul.mubr.f32.gmra.mrb[0].mxu0 %v713
        %v888 = vpop.f32.mrb[0].mxu0
        %v889 = vadd.f32 %v658, %v888
        %v890 = vpop.f32.mrb[0].mxu0
        %891 = vmatprep.mubr.f32.mxu0 0.0
        %892 = vmatmul.mubr.f32.gmra.mrb[0].mxu0 %v716
        %v893 = vpop.f32.mrb[0].mxu0
        %v894 = vadd.f32 %v658, %v893
        %v895 = vpop.f32.mrb[0].mxu0
        %896 = vmatprep.mubr.f32.mxu0 0.0
        %897 = vmatmul.mubr.f32.gmra.mrb[0].mxu0 %v719
        %v898 = vpop.f32.mrb[0].mxu0
        %v899 = vadd.f32 %v658, %v898
        %v900 = vpop.f32.mrb[0].mxu0
        %901 = vmatprep.mubr.f32.mxu0 0.0
        %902 = vmatmul.mubr.f32.gmra.mrb[0].mxu0 %v722
        %v903 = vpop.f32.mrb[0].mxu0
        %v904 = vadd.f32 %v658, %v903
        %v905 = vpop.f32.mrb[0].mxu0
        %906 = vmatprep.mubr.f32.mxu0 0.0
        %907 = vmatmul.mubr.f32.gmra.mrb[0].mxu0 %v725
        %v908 = vpop.f32.mrb[0].mxu0
        %v909 = vadd.f32 %v658, %v908
        %v910 = vpop.f32.mrb[0].mxu0
        %911 = vmatprep.mubr.f32.mxu0 0.0
        %912 = vmatmul.mubr.f32.gmra.mrb[0].mxu0 %v728
        %v913 = vpop.f32.mrb[0].mxu0
        %v914 = vadd.f32 %v658, %v913
        %v915 = vpop.f32.mrb[0].mxu0
        %916 = vmatprep.mubr.f32.mxu0 0.0
        %917 = vmatmul.mubr.f32.gmra.mrb[0].mxu0 %v731
        %v918 = vpop.f32.mrb[0].mxu0
        %v919 = vadd.f32 %v658, %v918
        %v920 = vpop.f32.mrb[0].mxu0
        %921 = vdwg.mxu0
        %v922 = vmax.f32 %v804, 0.0
        %v923 = vmax.f32 %v809, 0.0
        %v924 = vmax.f32 %v814, 0.0
        %v925 = vmax.f32 %v819, 0.0
        %v926 = vmax.f32 %v824, 0.0
        %v927 = vmax.f32 %v829, 0.0
        %v928 = vmax.f32 %v834, 0.0
        %v929 = vmax.f32 %v839, 0.0
        %v930 = vmax.f32 %v844, 0.0
        %v931 = vmax.f32 %v849, 0.0
        %v932 = vmax.f32 %v854, 0.0
        %v933 = vmax.f32 %v859, 0.0
        %v934 = vmax.f32 %v864, 0.0
        %v935 = vmax.f32 %v869, 0.0
        %v936 = vmax.f32 %v874, 0.0
        %v937 = vmax.f32 %v879, 0.0
        %v938 = vmax.f32 %v884, 0.0
        %v939 = vmax.f32 %v889, 0.0
        %v940 = vmax.f32 %v894, 0.0
        %v941 = vmax.f32 %v899, 0.0
        %v942 = vmax.f32 %v904, 0.0
        %v943 = vmax.f32 %v909, 0.0
        %v944 = vmax.f32 %v914, 0.0
        %v945 = vmax.f32 %v919, 0.0
        %v970 = vcombine.high %v922, %v922
        %v972 = vunpack.c.l.s4 1983009808
        %v973 = vunpack.c.0.s8 %v972
        %v974 = vlaneseq
        %v975 = vshrl.u32 %v974, 7
        %v976 = vsub.s32 %v973, %v975
        %v977 = vrot.slane %v922, %v976
        %v979 = vunpack.c.l.s4 1983009808
        %v980 = vunpack.c.0.s8 %v979
        %v981 = vlaneseq
        %v982 = vshrl.u32 %v981, 7
        %v983 = vsub.s32 %v980, %v982
        %v984 = vrot.slane %v970, %v983
        %v985 = vcombine.high %v977, %v977
        %v986 = vcombine.high %v984, %v984
        %v987 = vcombine.high %v923, %v923
        %v989 = vunpack.c.l.s4 1983009808
        %v990 = vunpack.c.0.s8 %v989
        %v991 = vlaneseq
        %v992 = vshrl.u32 %v991, 7
        %v993 = vsub.s32 %v990, %v992
        %v994 = vrot.slane %v923, %v993
        %v996 = vunpack.c.l.s4 1983009808
        %v997 = vunpack.c.0.s8 %v996
        %v998 = vlaneseq
        %v999 = vshrl.u32 %v998, 7
        %v1000 = vsub.s32 %v997, %v999
        %v1001 = vrot.slane %v987, %v1000
        %v1002 = vcombine.high %v994, %v994
        %v1003 = vcombine.high %v1001, %v1001
        %v1004 = vcombine.high %v924, %v924
        %v1006 = vunpack.c.l.s4 1983009808
        %v1007 = vunpack.c.0.s8 %v1006
        %v1008 = vlaneseq
        %v1009 = vshrl.u32 %v1008, 7
        %v1010 = vsub.s32 %v1007, %v1009
        %v1011 = vrot.slane %v924, %v1010
        %v1013 = vunpack.c.l.s4 1983009808
        %v1014 = vunpack.c.0.s8 %v1013
        %v1015 = vlaneseq
        %v1016 = vshrl.u32 %v1015, 7
        %v1017 = vsub.s32 %v1014, %v1016
        %v1018 = vrot.slane %v1004, %v1017
        %v1019 = vcombine.high %v1011, %v1011
        %v1020 = vcombine.high %v1018, %v1018
        %v1021 = vcombine.high %v925, %v925
        %v1023 = vunpack.c.l.s4 1983009808
        %v1024 = vunpack.c.0.s8 %v1023
        %v1025 = vlaneseq
        %v1026 = vshrl.u32 %v1025, 7
        %v1027 = vsub.s32 %v1024, %v1026
        %v1028 = vrot.slane %v925, %v1027
        %v1030 = vunpack.c.l.s4 1983009808
        %v1031 = vunpack.c.0.s8 %v1030
        %v1032 = vlaneseq
        %v1033 = vshrl.u32 %v1032, 7
        %v1034 = vsub.s32 %v1031, %v1033
        %v1035 = vrot.slane %v1021, %v1034
        %v1036 = vcombine.high %v1028, %v1028
        %v1037 = vcombine.high %v1035, %v1035
        %v1038 = vcombine.high %v926, %v926
        %v1040 = vunpack.c.l.s4 1983009808
        %v1041 = vunpack.c.0.s8 %v1040
        %v1042 = vlaneseq
        %v1043 = vshrl.u32 %v1042, 7
        %v1044 = vsub.s32 %v1041, %v1043
        %v1045 = vrot.slane %v926, %v1044
        %v1047 = vunpack.c.l.s4 1983009808
        %v1048 = vunpack.c.0.s8 %v1047
        %v1049 = vlaneseq
        %v1050 = vshrl.u32 %v1049, 7
        %v1051 = vsub.s32 %v1048, %v1050
        %v1052 = vrot.slane %v1038, %v1051
        %v1053 = vcombine.high %v1045, %v1045
        %v1054 = vcombine.high %v1052, %v1052
        %v1055 = vcombine.high %v927, %v927
        %v1057 = vunpack.c.l.s4 1983009808
        %v1058 = vunpack.c.0.s8 %v1057
        %v1059 = vlaneseq
        %v1060 = vshrl.u32 %v1059, 7
        %v1061 = vsub.s32 %v1058, %v1060
        %v1062 = vrot.slane %v927, %v1061
        %v1064 = vunpack.c.l.s4 1983009808
        %v1065 = vunpack.c.0.s8 %v1064
        %v1066 = vlaneseq
        %v1067 = vshrl.u32 %v1066, 7
        %v1068 = vsub.s32 %v1065, %v1067
        %v1069 = vrot.slane %v1055, %v1068
        %v1070 = vcombine.high %v1062, %v1062
        %v1071 = vcombine.high %v1069, %v1069
        %v1072 = vcombine.high %v928, %v928
        %v1074 = vunpack.c.l.s4 1983009808
        %v1075 = vunpack.c.0.s8 %v1074
        %v1076 = vlaneseq
        %v1077 = vshrl.u32 %v1076, 7
        %v1078 = vsub.s32 %v1075, %v1077
        %v1079 = vrot.slane %v928, %v1078
        %v1081 = vunpack.c.l.s4 1983009808
        %v1082 = vunpack.c.0.s8 %v1081
        %v1083 = vlaneseq
        %v1084 = vshrl.u32 %v1083, 7
        %v1085 = vsub.s32 %v1082, %v1084
        %v1086 = vrot.slane %v1072, %v1085
        %v1087 = vcombine.high %v1079, %v1079
        %v1088 = vcombine.high %v1086, %v1086
        %v1089 = vcombine.high %v929, %v929
        %v1091 = vunpack.c.l.s4 1983009808
        %v1092 = vunpack.c.0.s8 %v1091
        %v1093 = vlaneseq
        %v1094 = vshrl.u32 %v1093, 7
        %v1095 = vsub.s32 %v1092, %v1094
        %v1096 = vrot.slane %v929, %v1095
        %v1098 = vunpack.c.l.s4 1983009808
        %v1099 = vunpack.c.0.s8 %v1098
        %v1100 = vlaneseq
        %v1101 = vshrl.u32 %v1100, 7
        %v1102 = vsub.s32 %v1099, %v1101
        %v1103 = vrot.slane %v1089, %v1102
        %v1104 = vcombine.high %v1096, %v1096
        %v1105 = vcombine.high %v1103, %v1103
        %v1106 = vcombine.high %v930, %v930
        %v1108 = vunpack.c.l.s4 1983009808
        %v1109 = vunpack.c.0.s8 %v1108
        %v1110 = vlaneseq
        %v1111 = vshrl.u32 %v1110, 7
        %v1112 = vsub.s32 %v1109, %v1111
        %v1113 = vrot.slane %v930, %v1112
        %v1115 = vunpack.c.l.s4 1983009808
        %v1116 = vunpack.c.0.s8 %v1115
        %v1117 = vlaneseq
        %v1118 = vshrl.u32 %v1117, 7
        %v1119 = vsub.s32 %v1116, %v1118
        %v1120 = vrot.slane %v1106, %v1119
        %v1121 = vcombine.high %v1113, %v1113
        %v1122 = vcombine.high %v1120, %v1120
        %v1123 = vcombine.high %v931, %v931
        %v1125 = vunpack.c.l.s4 1983009808
        %v1126 = vunpack.c.0.s8 %v1125
        %v1127 = vlaneseq
        %v1128 = vshrl.u32 %v1127, 7
        %v1129 = vsub.s32 %v1126, %v1128
        %v1130 = vrot.slane %v931, %v1129
        %v1132 = vunpack.c.l.s4 1983009808
        %v1133 = vunpack.c.0.s8 %v1132
        %v1134 = vlaneseq
        %v1135 = vshrl.u32 %v1134, 7
        %v1136 = vsub.s32 %v1133, %v1135
        %v1137 = vrot.slane %v1123, %v1136
        %v1138 = vcombine.high %v1130, %v1130
        %v1139 = vcombine.high %v1137, %v1137
        %v1140 = vcombine.high %v932, %v932
        %v1142 = vunpack.c.l.s4 1983009808
        %v1143 = vunpack.c.0.s8 %v1142
        %v1144 = vlaneseq
        %v1145 = vshrl.u32 %v1144, 7
        %v1146 = vsub.s32 %v1143, %v1145
        %v1147 = vrot.slane %v932, %v1146
        %v1149 = vunpack.c.l.s4 1983009808
        %v1150 = vunpack.c.0.s8 %v1149
        %v1151 = vlaneseq
        %v1152 = vshrl.u32 %v1151, 7
        %v1153 = vsub.s32 %v1150, %v1152
        %v1154 = vrot.slane %v1140, %v1153
        %v1155 = vcombine.high %v1147, %v1147
        %v1156 = vcombine.high %v1154, %v1154
        %v1157 = vcombine.high %v933, %v933
        %v1159 = vunpack.c.l.s4 1983009808
        %v1160 = vunpack.c.0.s8 %v1159
        %v1161 = vlaneseq
        %v1162 = vshrl.u32 %v1161, 7
        %v1163 = vsub.s32 %v1160, %v1162
        %v1164 = vrot.slane %v933, %v1163
        %v1166 = vunpack.c.l.s4 1983009808
        %v1167 = vunpack.c.0.s8 %v1166
        %v1168 = vlaneseq
        %v1169 = vshrl.u32 %v1168, 7
        %v1170 = vsub.s32 %v1167, %v1169
        %v1171 = vrot.slane %v1157, %v1170
        %v1172 = vcombine.high %v1164, %v1164
        %v1173 = vcombine.high %v1171, %v1171
        %v1174 = vcombine.high %v934, %v934
        %v1176 = vunpack.c.l.s4 1983009808
        %v1177 = vunpack.c.0.s8 %v1176
        %v1178 = vlaneseq
        %v1179 = vshrl.u32 %v1178, 7
        %v1180 = vsub.s32 %v1177, %v1179
        %v1181 = vrot.slane %v934, %v1180
        %v1183 = vunpack.c.l.s4 1983009808
        %v1184 = vunpack.c.0.s8 %v1183
        %v1185 = vlaneseq
        %v1186 = vshrl.u32 %v1185, 7
        %v1187 = vsub.s32 %v1184, %v1186
        %v1188 = vrot.slane %v1174, %v1187
        %v1189 = vcombine.high %v1181, %v1181
        %v1190 = vcombine.high %v1188, %v1188
        %v1191 = vcombine.high %v935, %v935
        %v1193 = vunpack.c.l.s4 1983009808
        %v1194 = vunpack.c.0.s8 %v1193
        %v1195 = vlaneseq
        %v1196 = vshrl.u32 %v1195, 7
        %v1197 = vsub.s32 %v1194, %v1196
        %v1198 = vrot.slane %v935, %v1197
        %v1200 = vunpack.c.l.s4 1983009808
        %v1201 = vunpack.c.0.s8 %v1200
        %v1202 = vlaneseq
        %v1203 = vshrl.u32 %v1202, 7
        %v1204 = vsub.s32 %v1201, %v1203
        %v1205 = vrot.slane %v1191, %v1204
        %v1206 = vcombine.high %v1198, %v1198
        %v1207 = vcombine.high %v1205, %v1205
        %v1208 = vcombine.high %v936, %v936
        %v1210 = vunpack.c.l.s4 1983009808
        %v1211 = vunpack.c.0.s8 %v1210
        %v1212 = vlaneseq
        %v1213 = vshrl.u32 %v1212, 7
        %v1214 = vsub.s32 %v1211, %v1213
        %v1215 = vrot.slane %v936, %v1214
        %v1217 = vunpack.c.l.s4 1983009808
        %v1218 = vunpack.c.0.s8 %v1217
        %v1219 = vlaneseq
        %v1220 = vshrl.u32 %v1219, 7
        %v1221 = vsub.s32 %v1218, %v1220
        %v1222 = vrot.slane %v1208, %v1221
        %v1223 = vcombine.high %v1215, %v1215
        %v1224 = vcombine.high %v1222, %v1222
        %v1225 = vcombine.high %v937, %v937
        %v1227 = vunpack.c.l.s4 1983009808
        %v1228 = vunpack.c.0.s8 %v1227
        %v1229 = vlaneseq
        %v1230 = vshrl.u32 %v1229, 7
        %v1231 = vsub.s32 %v1228, %v1230
        %v1232 = vrot.slane %v937, %v1231
        %v1234 = vunpack.c.l.s4 1983009808
        %v1235 = vunpack.c.0.s8 %v1234
        %v1236 = vlaneseq
        %v1237 = vshrl.u32 %v1236, 7
        %v1238 = vsub.s32 %v1235, %v1237
        %v1239 = vrot.slane %v1225, %v1238
        %v1240 = vcombine.high %v1232, %v1232
        %v1241 = vcombine.high %v1239, %v1239
        %v1242 = vcombine.high %v938, %v938
        %v1244 = vunpack.c.l.s4 1983009808
        %v1245 = vunpack.c.0.s8 %v1244
        %v1246 = vlaneseq
        %v1247 = vshrl.u32 %v1246, 7
        %v1248 = vsub.s32 %v1245, %v1247
        %v1249 = vrot.slane %v938, %v1248
        %v1251 = vunpack.c.l.s4 1983009808
        %v1252 = vunpack.c.0.s8 %v1251
        %v1253 = vlaneseq
        %v1254 = vshrl.u32 %v1253, 7
        %v1255 = vsub.s32 %v1252, %v1254
        %v1256 = vrot.slane %v1242, %v1255
        %v1257 = vcombine.high %v1249, %v1249
        %v1258 = vcombine.high %v1256, %v1256
        %v1259 = vcombine.high %v939, %v939
        %v1261 = vunpack.c.l.s4 1983009808
        %v1262 = vunpack.c.0.s8 %v1261
        %v1263 = vlaneseq
        %v1264 = vshrl.u32 %v1263, 7
        %v1265 = vsub.s32 %v1262, %v1264
        %v1266 = vrot.slane %v939, %v1265
        %v1268 = vunpack.c.l.s4 1983009808
        %v1269 = vunpack.c.0.s8 %v1268
        %v1270 = vlaneseq
        %v1271 = vshrl.u32 %v1270, 7
        %v1272 = vsub.s32 %v1269, %v1271
        %v1273 = vrot.slane %v1259, %v1272
        %v1274 = vcombine.high %v1266, %v1266
        %v1275 = vcombine.high %v1273, %v1273
        %v1276 = vcombine.high %v940, %v940
        %v1278 = vunpack.c.l.s4 1983009808
        %v1279 = vunpack.c.0.s8 %v1278
        %v1280 = vlaneseq
        %v1281 = vshrl.u32 %v1280, 7
        %v1282 = vsub.s32 %v1279, %v1281
        %v1283 = vrot.slane %v940, %v1282
        %v1285 = vunpack.c.l.s4 1983009808
        %v1286 = vunpack.c.0.s8 %v1285
        %v1287 = vlaneseq
        %v1288 = vshrl.u32 %v1287, 7
        %v1289 = vsub.s32 %v1286, %v1288
        %v1290 = vrot.slane %v1276, %v1289
        %v1291 = vcombine.high %v1283, %v1283
        %v1292 = vcombine.high %v1290, %v1290
        %v1293 = vcombine.high %v941, %v941
        %v1295 = vunpack.c.l.s4 1983009808
        %v1296 = vunpack.c.0.s8 %v1295
        %v1297 = vlaneseq
        %v1298 = vshrl.u32 %v1297, 7
        %v1299 = vsub.s32 %v1296, %v1298
        %v1300 = vrot.slane %v941, %v1299
        %v1302 = vunpack.c.l.s4 1983009808
        %v1303 = vunpack.c.0.s8 %v1302
        %v1304 = vlaneseq
        %v1305 = vshrl.u32 %v1304, 7
        %v1306 = vsub.s32 %v1303, %v1305
        %v1307 = vrot.slane %v1293, %v1306
        %v1308 = vcombine.high %v1300, %v1300
        %v1309 = vcombine.high %v1307, %v1307
        %v1310 = vcombine.high %v942, %v942
        %v1312 = vunpack.c.l.s4 1983009808
        %v1313 = vunpack.c.0.s8 %v1312
        %v1314 = vlaneseq
        %v1315 = vshrl.u32 %v1314, 7
        %v1316 = vsub.s32 %v1313, %v1315
        %v1317 = vrot.slane %v942, %v1316
        %v1319 = vunpack.c.l.s4 1983009808
        %v1320 = vunpack.c.0.s8 %v1319
        %v1321 = vlaneseq
        %v1322 = vshrl.u32 %v1321, 7
        %v1323 = vsub.s32 %v1320, %v1322
        %v1324 = vrot.slane %v1310, %v1323
        %v1325 = vcombine.high %v1317, %v1317
        %v1326 = vcombine.high %v1324, %v1324
        %v1327 = vcombine.high %v943, %v943
        %v1329 = vunpack.c.l.s4 1983009808
        %v1330 = vunpack.c.0.s8 %v1329
        %v1331 = vlaneseq
        %v1332 = vshrl.u32 %v1331, 7
        %v1333 = vsub.s32 %v1330, %v1332
        %v1334 = vrot.slane %v943, %v1333
        %v1336 = vunpack.c.l.s4 1983009808
        %v1337 = vunpack.c.0.s8 %v1336
        %v1338 = vlaneseq
        %v1339 = vshrl.u32 %v1338, 7
        %v1340 = vsub.s32 %v1337, %v1339
        %v1341 = vrot.slane %v1327, %v1340
        %v1342 = vcombine.high %v1334, %v1334
        %v1343 = vcombine.high %v1341, %v1341
        %v1344 = vcombine.high %v944, %v944
        %v1346 = vunpack.c.l.s4 1983009808
        %v1347 = vunpack.c.0.s8 %v1346
        %v1348 = vlaneseq
        %v1349 = vshrl.u32 %v1348, 7
        %v1350 = vsub.s32 %v1347, %v1349
        %v1351 = vrot.slane %v944, %v1350
        %v1353 = vunpack.c.l.s4 1983009808
        %v1354 = vunpack.c.0.s8 %v1353
        %v1355 = vlaneseq
        %v1356 = vshrl.u32 %v1355, 7
        %v1357 = vsub.s32 %v1354, %v1356
        %v1358 = vrot.slane %v1344, %v1357
        %v1359 = vcombine.high %v1351, %v1351
        %v1360 = vcombine.high %v1358, %v1358
        %v1361 = vcombine.high %v945, %v945
        %v1363 = vunpack.c.l.s4 1983009808
        %v1364 = vunpack.c.0.s8 %v1363
        %v1365 = vlaneseq
        %v1366 = vshrl.u32 %v1365, 7
        %v1367 = vsub.s32 %v1364, %v1366
        %v1368 = vrot.slane %v945, %v1367
        %v1370 = vunpack.c.l.s4 1983009808
        %v1371 = vunpack.c.0.s8 %v1370
        %v1372 = vlaneseq
        %v1373 = vshrl.u32 %v1372, 7
        %v1374 = vsub.s32 %v1371, %v1373
        %v1375 = vrot.slane %v1361, %v1374
        %v1376 = vcombine.high %v1368, %v1368
        %v1377 = vcombine.high %v1375, %v1375
        %v1474 = vsel %vm733, %v977, -inf
        %v1475 = vrot.slane %v1474, 4
        %v1476 = vmax.f32 %v1474, %v1475
        %v1477 = vrot.slane %v1476, 2
        %v1478 = vmax.f32 %v1476, %v1477
        %v1479 = vrot.slane %v1478, 1
        %v1480 = vmax.f32 %v1478, %v1479
        %v1481 = vsel %vm733, %v985, -inf
        %v1482 = vrot.slane %v1481, 4
        %v1483 = vmax.f32 %v1481, %v1482
        %v1484 = vrot.slane %v1483, 2
        %v1485 = vmax.f32 %v1483, %v1484
        %v1486 = vrot.slane %v1485, 1
        %v1487 = vmax.f32 %v1485, %v1486
        %v1488 = vsel %vm733, %v984, -inf
        %v1489 = vrot.slane %v1488, 4
        %v1490 = vmax.f32 %v1488, %v1489
        %v1491 = vrot.slane %v1490, 2
        %v1492 = vmax.f32 %v1490, %v1491
        %v1493 = vrot.slane %v1492, 1
        %v1494 = vmax.f32 %v1492, %v1493
        %v1495 = vsel %vm733, %v986, -inf
        %v1496 = vrot.slane %v1495, 4
        %v1497 = vmax.f32 %v1495, %v1496
        %v1498 = vrot.slane %v1497, 2
        %v1499 = vmax.f32 %v1497, %v1498
        %v1500 = vrot.slane %v1499, 1
        %v1501 = vmax.f32 %v1499, %v1500
        %v1502 = vsel %vm733, %v994, -inf
        %v1503 = vrot.slane %v1502, 4
        %v1504 = vmax.f32 %v1502, %v1503
        %v1505 = vrot.slane %v1504, 2
        %v1506 = vmax.f32 %v1504, %v1505
        %v1507 = vrot.slane %v1506, 1
        %v1508 = vmax.f32 %v1506, %v1507
        %v1509 = vsel %vm733, %v1002, -inf
        %v1510 = vrot.slane %v1509, 4
        %v1511 = vmax.f32 %v1509, %v1510
        %v1512 = vrot.slane %v1511, 2
        %v1513 = vmax.f32 %v1511, %v1512
        %v1514 = vrot.slane %v1513, 1
        %v1515 = vmax.f32 %v1513, %v1514
        %v1516 = vsel %vm733, %v1001, -inf
        %v1517 = vrot.slane %v1516, 4
        %v1518 = vmax.f32 %v1516, %v1517
        %v1519 = vrot.slane %v1518, 2
        %v1520 = vmax.f32 %v1518, %v1519
        %v1521 = vrot.slane %v1520, 1
        %v1522 = vmax.f32 %v1520, %v1521
        %v1523 = vsel %vm733, %v1003, -inf
        %v1524 = vrot.slane %v1523, 4
        %v1525 = vmax.f32 %v1523, %v1524
        %v1526 = vrot.slane %v1525, 2
        %v1527 = vmax.f32 %v1525, %v1526
        %v1528 = vrot.slane %v1527, 1
        %v1529 = vmax.f32 %v1527, %v1528
        %v1530 = vsel %vm733, %v1011, -inf
        %v1531 = vrot.slane %v1530, 4
        %v1532 = vmax.f32 %v1530, %v1531
        %v1533 = vrot.slane %v1532, 2
        %v1534 = vmax.f32 %v1532, %v1533
        %v1535 = vrot.slane %v1534, 1
        %v1536 = vmax.f32 %v1534, %v1535
        %v1537 = vsel %vm733, %v1019, -inf
        %v1538 = vrot.slane %v1537, 4
        %v1539 = vmax.f32 %v1537, %v1538
        %v1540 = vrot.slane %v1539, 2
        %v1541 = vmax.f32 %v1539, %v1540
        %v1542 = vrot.slane %v1541, 1
        %v1543 = vmax.f32 %v1541, %v1542
        %v1544 = vsel %vm733, %v1018, -inf
        %v1545 = vrot.slane %v1544, 4
        %v1546 = vmax.f32 %v1544, %v1545
        %v1547 = vrot.slane %v1546, 2
        %v1548 = vmax.f32 %v1546, %v1547
        %v1549 = vrot.slane %v1548, 1
        %v1550 = vmax.f32 %v1548, %v1549
        %v1551 = vsel %vm733, %v1020, -inf
        %v1552 = vrot.slane %v1551, 4
        %v1553 = vmax.f32 %v1551, %v1552
        %v1554 = vrot.slane %v1553, 2
        %v1555 = vmax.f32 %v1553, %v1554
        %v1556 = vrot.slane %v1555, 1
        %v1557 = vmax.f32 %v1555, %v1556
        %v1558 = vsel %vm733, %v1028, -inf
        %v1559 = vrot.slane %v1558, 4
        %v1560 = vmax.f32 %v1558, %v1559
        %v1561 = vrot.slane %v1560, 2
        %v1562 = vmax.f32 %v1560, %v1561
        %v1563 = vrot.slane %v1562, 1
        %v1564 = vmax.f32 %v1562, %v1563
        %v1565 = vsel %vm733, %v1036, -inf
        %v1566 = vrot.slane %v1565, 4
        %v1567 = vmax.f32 %v1565, %v1566
        %v1568 = vrot.slane %v1567, 2
        %v1569 = vmax.f32 %v1567, %v1568
        %v1570 = vrot.slane %v1569, 1
        %v1571 = vmax.f32 %v1569, %v1570
        %v1572 = vsel %vm733, %v1035, -inf
        %v1573 = vrot.slane %v1572, 4
        %v1574 = vmax.f32 %v1572, %v1573
        %v1575 = vrot.slane %v1574, 2
        %v1576 = vmax.f32 %v1574, %v1575
        %v1577 = vrot.slane %v1576, 1
        %v1578 = vmax.f32 %v1576, %v1577
        %v1579 = vsel %vm733, %v1037, -inf
        %v1580 = vrot.slane %v1579, 4
        %v1581 = vmax.f32 %v1579, %v1580
        %v1582 = vrot.slane %v1581, 2
        %v1583 = vmax.f32 %v1581, %v1582
        %v1584 = vrot.slane %v1583, 1
        %v1585 = vmax.f32 %v1583, %v1584
        %v1586 = vsel %vm733, %v1045, -inf
        %v1587 = vrot.slane %v1586, 4
        %v1588 = vmax.f32 %v1586, %v1587
        %v1589 = vrot.slane %v1588, 2
        %v1590 = vmax.f32 %v1588, %v1589
        %v1591 = vrot.slane %v1590, 1
        %v1592 = vmax.f32 %v1590, %v1591
        %v1593 = vsel %vm733, %v1053, -inf
        %v1594 = vrot.slane %v1593, 4
        %v1595 = vmax.f32 %v1593, %v1594
        %v1596 = vrot.slane %v1595, 2
        %v1597 = vmax.f32 %v1595, %v1596
        %v1598 = vrot.slane %v1597, 1
        %v1599 = vmax.f32 %v1597, %v1598
        %v1600 = vsel %vm733, %v1052, -inf
        %v1601 = vrot.slane %v1600, 4
        %v1602 = vmax.f32 %v1600, %v1601
        %v1603 = vrot.slane %v1602, 2
        %v1604 = vmax.f32 %v1602, %v1603
        %v1605 = vrot.slane %v1604, 1
        %v1606 = vmax.f32 %v1604, %v1605
        %v1607 = vsel %vm733, %v1054, -inf
        %v1608 = vrot.slane %v1607, 4
        %v1609 = vmax.f32 %v1607, %v1608
        %v1610 = vrot.slane %v1609, 2
        %v1611 = vmax.f32 %v1609, %v1610
        %v1612 = vrot.slane %v1611, 1
        %v1613 = vmax.f32 %v1611, %v1612
        %v1614 = vsel %vm733, %v1062, -inf
        %v1615 = vrot.slane %v1614, 4
        %v1616 = vmax.f32 %v1614, %v1615
        %v1617 = vrot.slane %v1616, 2
        %v1618 = vmax.f32 %v1616, %v1617
        %v1619 = vrot.slane %v1618, 1
        %v1620 = vmax.f32 %v1618, %v1619
        %v1621 = vsel %vm733, %v1070, -inf
        %v1622 = vrot.slane %v1621, 4
        %v1623 = vmax.f32 %v1621, %v1622
        %v1624 = vrot.slane %v1623, 2
        %v1625 = vmax.f32 %v1623, %v1624
        %v1626 = vrot.slane %v1625, 1
        %v1627 = vmax.f32 %v1625, %v1626
        %v1628 = vsel %vm733, %v1069, -inf
        %v1629 = vrot.slane %v1628, 4
        %v1630 = vmax.f32 %v1628, %v1629
        %v1631 = vrot.slane %v1630, 2
        %v1632 = vmax.f32 %v1630, %v1631
        %v1633 = vrot.slane %v1632, 1
        %v1634 = vmax.f32 %v1632, %v1633
        %v1635 = vsel %vm733, %v1071, -inf
        %v1636 = vrot.slane %v1635, 4
        %v1637 = vmax.f32 %v1635, %v1636
        %v1638 = vrot.slane %v1637, 2
        %v1639 = vmax.f32 %v1637, %v1638
        %v1640 = vrot.slane %v1639, 1
        %v1641 = vmax.f32 %v1639, %v1640
        %v1642 = vsel %vm733, %v1079, -inf
        %v1643 = vrot.slane %v1642, 4
        %v1644 = vmax.f32 %v1642, %v1643
        %v1645 = vrot.slane %v1644, 2
        %v1646 = vmax.f32 %v1644, %v1645
        %v1647 = vrot.slane %v1646, 1
        %v1648 = vmax.f32 %v1646, %v1647
        %v1649 = vsel %vm733, %v1087, -inf
        %v1650 = vrot.slane %v1649, 4
        %v1651 = vmax.f32 %v1649, %v1650
        %v1652 = vrot.slane %v1651, 2
        %v1653 = vmax.f32 %v1651, %v1652
        %v1654 = vrot.slane %v1653, 1
        %v1655 = vmax.f32 %v1653, %v1654
        %v1656 = vsel %vm733, %v1086, -inf
        %v1657 = vrot.slane %v1656, 4
        %v1658 = vmax.f32 %v1656, %v1657
        %v1659 = vrot.slane %v1658, 2
        %v1660 = vmax.f32 %v1658, %v1659
        %v1661 = vrot.slane %v1660, 1
        %v1662 = vmax.f32 %v1660, %v1661
        %v1663 = vsel %vm733, %v1088, -inf
        %v1664 = vrot.slane %v1663, 4
        %v1665 = vmax.f32 %v1663, %v1664
        %v1666 = vrot.slane %v1665, 2
        %v1667 = vmax.f32 %v1665, %v1666
        %v1668 = vrot.slane %v1667, 1
        %v1669 = vmax.f32 %v1667, %v1668
        %v1670 = vsel %vm733, %v1096, -inf
        %v1671 = vrot.slane %v1670, 4
        %v1672 = vmax.f32 %v1670, %v1671
        %v1673 = vrot.slane %v1672, 2
        %v1674 = vmax.f32 %v1672, %v1673
        %v1675 = vrot.slane %v1674, 1
        %v1676 = vmax.f32 %v1674, %v1675
        %v1677 = vsel %vm733, %v1104, -inf
        %v1678 = vrot.slane %v1677, 4
        %v1679 = vmax.f32 %v1677, %v1678
        %v1680 = vrot.slane %v1679, 2
        %v1681 = vmax.f32 %v1679, %v1680
        %v1682 = vrot.slane %v1681, 1
        %v1683 = vmax.f32 %v1681, %v1682
        %v1684 = vsel %vm733, %v1103, -inf
        %v1685 = vrot.slane %v1684, 4
        %v1686 = vmax.f32 %v1684, %v1685
        %v1687 = vrot.slane %v1686, 2
        %v1688 = vmax.f32 %v1686, %v1687
        %v1689 = vrot.slane %v1688, 1
        %v1690 = vmax.f32 %v1688, %v1689
        %v1691 = vsel %vm733, %v1105, -inf
        %v1692 = vrot.slane %v1691, 4
        %v1693 = vmax.f32 %v1691, %v1692
        %v1694 = vrot.slane %v1693, 2
        %v1695 = vmax.f32 %v1693, %v1694
        %v1696 = vrot.slane %v1695, 1
        %v1697 = vmax.f32 %v1695, %v1696
        %v1698 = vsel %vm733, %v1113, -inf
        %v1699 = vrot.slane %v1698, 4
        %v1700 = vmax.f32 %v1698, %v1699
        %v1701 = vrot.slane %v1700, 2
        %v1702 = vmax.f32 %v1700, %v1701
        %v1703 = vrot.slane %v1702, 1
        %v1704 = vmax.f32 %v1702, %v1703
        %v1705 = vsel %vm733, %v1121, -inf
        %v1706 = vrot.slane %v1705, 4
        %v1707 = vmax.f32 %v1705, %v1706
        %v1708 = vrot.slane %v1707, 2
        %v1709 = vmax.f32 %v1707, %v1708
        %v1710 = vrot.slane %v1709, 1
        %v1711 = vmax.f32 %v1709, %v1710
        %v1712 = vsel %vm733, %v1120, -inf
        %v1713 = vrot.slane %v1712, 4
        %v1714 = vmax.f32 %v1712, %v1713
        %v1715 = vrot.slane %v1714, 2
        %v1716 = vmax.f32 %v1714, %v1715
        %v1717 = vrot.slane %v1716, 1
        %v1718 = vmax.f32 %v1716, %v1717
        %v1719 = vsel %vm733, %v1122, -inf
        %v1720 = vrot.slane %v1719, 4
        %v1721 = vmax.f32 %v1719, %v1720
        %v1722 = vrot.slane %v1721, 2
        %v1723 = vmax.f32 %v1721, %v1722
        %v1724 = vrot.slane %v1723, 1
        %v1725 = vmax.f32 %v1723, %v1724
        %v1726 = vsel %vm733, %v1130, -inf
        %v1727 = vrot.slane %v1726, 4
        %v1728 = vmax.f32 %v1726, %v1727
        %v1729 = vrot.slane %v1728, 2
        %v1730 = vmax.f32 %v1728, %v1729
        %v1731 = vrot.slane %v1730, 1
        %v1732 = vmax.f32 %v1730, %v1731
        %v1733 = vsel %vm733, %v1138, -inf
        %v1734 = vrot.slane %v1733, 4
        %v1735 = vmax.f32 %v1733, %v1734
        %v1736 = vrot.slane %v1735, 2
        %v1737 = vmax.f32 %v1735, %v1736
        %v1738 = vrot.slane %v1737, 1
        %v1739 = vmax.f32 %v1737, %v1738
        %v1740 = vsel %vm733, %v1137, -inf
        %v1741 = vrot.slane %v1740, 4
        %v1742 = vmax.f32 %v1740, %v1741
        %v1743 = vrot.slane %v1742, 2
        %v1744 = vmax.f32 %v1742, %v1743
        %v1745 = vrot.slane %v1744, 1
        %v1746 = vmax.f32 %v1744, %v1745
        %v1747 = vsel %vm733, %v1139, -inf
        %v1748 = vrot.slane %v1747, 4
        %v1749 = vmax.f32 %v1747, %v1748
        %v1750 = vrot.slane %v1749, 2
        %v1751 = vmax.f32 %v1749, %v1750
        %v1752 = vrot.slane %v1751, 1
        %v1753 = vmax.f32 %v1751, %v1752
        %v1754 = vsel %vm733, %v1147, -inf
        %v1755 = vrot.slane %v1754, 4
        %v1756 = vmax.f32 %v1754, %v1755
        %v1757 = vrot.slane %v1756, 2
        %v1758 = vmax.f32 %v1756, %v1757
        %v1759 = vrot.slane %v1758, 1
        %v1760 = vmax.f32 %v1758, %v1759
        %v1761 = vsel %vm733, %v1155, -inf
        %v1762 = vrot.slane %v1761, 4
        %v1763 = vmax.f32 %v1761, %v1762
        %v1764 = vrot.slane %v1763, 2
        %v1765 = vmax.f32 %v1763, %v1764
        %v1766 = vrot.slane %v1765, 1
        %v1767 = vmax.f32 %v1765, %v1766
        %v1768 = vsel %vm733, %v1154, -inf
        %v1769 = vrot.slane %v1768, 4
        %v1770 = vmax.f32 %v1768, %v1769
        %v1771 = vrot.slane %v1770, 2
        %v1772 = vmax.f32 %v1770, %v1771
        %v1773 = vrot.slane %v1772, 1
        %v1774 = vmax.f32 %v1772, %v1773
        %v1775 = vsel %vm733, %v1156, -inf
        %v1776 = vrot.slane %v1775, 4
        %v1777 = vmax.f32 %v1775, %v1776
        %v1778 = vrot.slane %v1777, 2
        %v1779 = vmax.f32 %v1777, %v1778
        %v1780 = vrot.slane %v1779, 1
        %v1781 = vmax.f32 %v1779, %v1780
        %v1782 = vsel %vm733, %v1164, -inf
        %v1783 = vrot.slane %v1782, 4
        %v1784 = vmax.f32 %v1782, %v1783
        %v1785 = vrot.slane %v1784, 2
        %v1786 = vmax.f32 %v1784, %v1785
        %v1787 = vrot.slane %v1786, 1
        %v1788 = vmax.f32 %v1786, %v1787
        %v1789 = vsel %vm733, %v1172, -inf
        %v1790 = vrot.slane %v1789, 4
        %v1791 = vmax.f32 %v1789, %v1790
        %v1792 = vrot.slane %v1791, 2
        %v1793 = vmax.f32 %v1791, %v1792
        %v1794 = vrot.slane %v1793, 1
        %v1795 = vmax.f32 %v1793, %v1794
        %v1796 = vsel %vm733, %v1171, -inf
        %v1797 = vrot.slane %v1796, 4
        %v1798 = vmax.f32 %v1796, %v1797
        %v1799 = vrot.slane %v1798, 2
        %v1800 = vmax.f32 %v1798, %v1799
        %v1801 = vrot.slane %v1800, 1
        %v1802 = vmax.f32 %v1800, %v1801
        %v1803 = vsel %vm733, %v1173, -inf
        %v1804 = vrot.slane %v1803, 4
        %v1805 = vmax.f32 %v1803, %v1804
        %v1806 = vrot.slane %v1805, 2
        %v1807 = vmax.f32 %v1805, %v1806
        %v1808 = vrot.slane %v1807, 1
        %v1809 = vmax.f32 %v1807, %v1808
        %v1810 = vsel %vm733, %v1181, -inf
        %v1811 = vrot.slane %v1810, 4
        %v1812 = vmax.f32 %v1810, %v1811
        %v1813 = vrot.slane %v1812, 2
        %v1814 = vmax.f32 %v1812, %v1813
        %v1815 = vrot.slane %v1814, 1
        %v1816 = vmax.f32 %v1814, %v1815
        %v1817 = vsel %vm733, %v1189, -inf
        %v1818 = vrot.slane %v1817, 4
        %v1819 = vmax.f32 %v1817, %v1818
        %v1820 = vrot.slane %v1819, 2
        %v1821 = vmax.f32 %v1819, %v1820
        %v1822 = vrot.slane %v1821, 1
        %v1823 = vmax.f32 %v1821, %v1822
        %v1824 = vsel %vm733, %v1188, -inf
        %v1825 = vrot.slane %v1824, 4
        %v1826 = vmax.f32 %v1824, %v1825
        %v1827 = vrot.slane %v1826, 2
        %v1828 = vmax.f32 %v1826, %v1827
        %v1829 = vrot.slane %v1828, 1
        %v1830 = vmax.f32 %v1828, %v1829
        %v1831 = vsel %vm733, %v1190, -inf
        %v1832 = vrot.slane %v1831, 4
        %v1833 = vmax.f32 %v1831, %v1832
        %v1834 = vrot.slane %v1833, 2
        %v1835 = vmax.f32 %v1833, %v1834
        %v1836 = vrot.slane %v1835, 1
        %v1837 = vmax.f32 %v1835, %v1836
        %v1838 = vsel %vm733, %v1198, -inf
        %v1839 = vrot.slane %v1838, 4
        %v1840 = vmax.f32 %v1838, %v1839
        %v1841 = vrot.slane %v1840, 2
        %v1842 = vmax.f32 %v1840, %v1841
        %v1843 = vrot.slane %v1842, 1
        %v1844 = vmax.f32 %v1842, %v1843
        %v1845 = vsel %vm733, %v1206, -inf
        %v1846 = vrot.slane %v1845, 4
        %v1847 = vmax.f32 %v1845, %v1846
        %v1848 = vrot.slane %v1847, 2
        %v1849 = vmax.f32 %v1847, %v1848
        %v1850 = vrot.slane %v1849, 1
        %v1851 = vmax.f32 %v1849, %v1850
        %v1852 = vsel %vm733, %v1205, -inf
        %v1853 = vrot.slane %v1852, 4
        %v1854 = vmax.f32 %v1852, %v1853
        %v1855 = vrot.slane %v1854, 2
        %v1856 = vmax.f32 %v1854, %v1855
        %v1857 = vrot.slane %v1856, 1
        %v1858 = vmax.f32 %v1856, %v1857
        %v1859 = vsel %vm733, %v1207, -inf
        %v1860 = vrot.slane %v1859, 4
        %v1861 = vmax.f32 %v1859, %v1860
        %v1862 = vrot.slane %v1861, 2
        %v1863 = vmax.f32 %v1861, %v1862
        %v1864 = vrot.slane %v1863, 1
        %v1865 = vmax.f32 %v1863, %v1864
        %v1866 = vsel %vm733, %v1215, -inf
        %v1867 = vrot.slane %v1866, 4
        %v1868 = vmax.f32 %v1866, %v1867
        %v1869 = vrot.slane %v1868, 2
        %v1870 = vmax.f32 %v1868, %v1869
        %v1871 = vrot.slane %v1870, 1
        %v1872 = vmax.f32 %v1870, %v1871
        %v1873 = vsel %vm733, %v1223, -inf
        %v1874 = vrot.slane %v1873, 4
        %v1875 = vmax.f32 %v1873, %v1874
        %v1876 = vrot.slane %v1875, 2
        %v1877 = vmax.f32 %v1875, %v1876
        %v1878 = vrot.slane %v1877, 1
        %v1879 = vmax.f32 %v1877, %v1878
        %v1880 = vsel %vm733, %v1222, -inf
        %v1881 = vrot.slane %v1880, 4
        %v1882 = vmax.f32 %v1880, %v1881
        %v1883 = vrot.slane %v1882, 2
        %v1884 = vmax.f32 %v1882, %v1883
        %v1885 = vrot.slane %v1884, 1
        %v1886 = vmax.f32 %v1884, %v1885
        %v1887 = vsel %vm733, %v1224, -inf
        %v1888 = vrot.slane %v1887, 4
        %v1889 = vmax.f32 %v1887, %v1888
        %v1890 = vrot.slane %v1889, 2
        %v1891 = vmax.f32 %v1889, %v1890
        %v1892 = vrot.slane %v1891, 1
        %v1893 = vmax.f32 %v1891, %v1892
        %v1894 = vsel %vm733, %v1232, -inf
        %v1895 = vrot.slane %v1894, 4
        %v1896 = vmax.f32 %v1894, %v1895
        %v1897 = vrot.slane %v1896, 2
        %v1898 = vmax.f32 %v1896, %v1897
        %v1899 = vrot.slane %v1898, 1
        %v1900 = vmax.f32 %v1898, %v1899
        %v1901 = vsel %vm733, %v1240, -inf
        %v1902 = vrot.slane %v1901, 4
        %v1903 = vmax.f32 %v1901, %v1902
        %v1904 = vrot.slane %v1903, 2
        %v1905 = vmax.f32 %v1903, %v1904
        %v1906 = vrot.slane %v1905, 1
        %v1907 = vmax.f32 %v1905, %v1906
        %v1908 = vsel %vm733, %v1239, -inf
        %v1909 = vrot.slane %v1908, 4
        %v1910 = vmax.f32 %v1908, %v1909
        %v1911 = vrot.slane %v1910, 2
        %v1912 = vmax.f32 %v1910, %v1911
        %v1913 = vrot.slane %v1912, 1
        %v1914 = vmax.f32 %v1912, %v1913
        %v1915 = vsel %vm733, %v1241, -inf
        %v1916 = vrot.slane %v1915, 4
        %v1917 = vmax.f32 %v1915, %v1916
        %v1918 = vrot.slane %v1917, 2
        %v1919 = vmax.f32 %v1917, %v1918
        %v1920 = vrot.slane %v1919, 1
        %v1921 = vmax.f32 %v1919, %v1920
        %v1922 = vsel %vm733, %v1249, -inf
        %v1923 = vrot.slane %v1922, 4
        %v1924 = vmax.f32 %v1922, %v1923
        %v1925 = vrot.slane %v1924, 2
        %v1926 = vmax.f32 %v1924, %v1925
        %v1927 = vrot.slane %v1926, 1
        %v1928 = vmax.f32 %v1926, %v1927
        %v1929 = vsel %vm733, %v1257, -inf
        %v1930 = vrot.slane %v1929, 4
        %v1931 = vmax.f32 %v1929, %v1930
        %v1932 = vrot.slane %v1931, 2
        %v1933 = vmax.f32 %v1931, %v1932
        %v1934 = vrot.slane %v1933, 1
        %v1935 = vmax.f32 %v1933, %v1934
        %v1936 = vsel %vm733, %v1256, -inf
        %v1937 = vrot.slane %v1936, 4
        %v1938 = vmax.f32 %v1936, %v1937
        %v1939 = vrot.slane %v1938, 2
        %v1940 = vmax.f32 %v1938, %v1939
        %v1941 = vrot.slane %v1940, 1
        %v1942 = vmax.f32 %v1940, %v1941
        %v1943 = vsel %vm733, %v1258, -inf
        %v1944 = vrot.slane %v1943, 4
        %v1945 = vmax.f32 %v1943, %v1944
        %v1946 = vrot.slane %v1945, 2
        %v1947 = vmax.f32 %v1945, %v1946
        %v1948 = vrot.slane %v1947, 1
        %v1949 = vmax.f32 %v1947, %v1948
        %v1950 = vsel %vm733, %v1266, -inf
        %v1951 = vrot.slane %v1950, 4
        %v1952 = vmax.f32 %v1950, %v1951
        %v1953 = vrot.slane %v1952, 2
        %v1954 = vmax.f32 %v1952, %v1953
        %v1955 = vrot.slane %v1954, 1
        %v1956 = vmax.f32 %v1954, %v1955
        %v1957 = vsel %vm733, %v1274, -inf
        %v1958 = vrot.slane %v1957, 4
        %v1959 = vmax.f32 %v1957, %v1958
        %v1960 = vrot.slane %v1959, 2
        %v1961 = vmax.f32 %v1959, %v1960
        %v1962 = vrot.slane %v1961, 1
        %v1963 = vmax.f32 %v1961, %v1962
        %v1964 = vsel %vm733, %v1273, -inf
        %v1965 = vrot.slane %v1964, 4
        %v1966 = vmax.f32 %v1964, %v1965
        %v1967 = vrot.slane %v1966, 2
        %v1968 = vmax.f32 %v1966, %v1967
        %v1969 = vrot.slane %v1968, 1
        %v1970 = vmax.f32 %v1968, %v1969
        %v1971 = vsel %vm733, %v1275, -inf
        %v1972 = vrot.slane %v1971, 4
        %v1973 = vmax.f32 %v1971, %v1972
        %v1974 = vrot.slane %v1973, 2
        %v1975 = vmax.f32 %v1973, %v1974
        %v1976 = vrot.slane %v1975, 1
        %v1977 = vmax.f32 %v1975, %v1976
        %v1978 = vsel %vm733, %v1283, -inf
        %v1979 = vrot.slane %v1978, 4
        %v1980 = vmax.f32 %v1978, %v1979
        %v1981 = vrot.slane %v1980, 2
        %v1982 = vmax.f32 %v1980, %v1981
        %v1983 = vrot.slane %v1982, 1
        %v1984 = vmax.f32 %v1982, %v1983
        %v1985 = vsel %vm733, %v1291, -inf
        %v1986 = vrot.slane %v1985, 4
        %v1987 = vmax.f32 %v1985, %v1986
        %v1988 = vrot.slane %v1987, 2
        %v1989 = vmax.f32 %v1987, %v1988
        %v1990 = vrot.slane %v1989, 1
        %v1991 = vmax.f32 %v1989, %v1990
        %v1992 = vsel %vm733, %v1290, -inf
        %v1993 = vrot.slane %v1992, 4
        %v1994 = vmax.f32 %v1992, %v1993
        %v1995 = vrot.slane %v1994, 2
        %v1996 = vmax.f32 %v1994, %v1995
        %v1997 = vrot.slane %v1996, 1
        %v1998 = vmax.f32 %v1996, %v1997
        %v1999 = vsel %vm733, %v1292, -inf
        %v2000 = vrot.slane %v1999, 4
        %v2001 = vmax.f32 %v1999, %v2000
        %v2002 = vrot.slane %v2001, 2
        %v2003 = vmax.f32 %v2001, %v2002
        %v2004 = vrot.slane %v2003, 1
        %v2005 = vmax.f32 %v2003, %v2004
        %v2006 = vsel %vm733, %v1300, -inf
        %v2007 = vrot.slane %v2006, 4
        %v2008 = vmax.f32 %v2006, %v2007
        %v2009 = vrot.slane %v2008, 2
        %v2010 = vmax.f32 %v2008, %v2009
        %v2011 = vrot.slane %v2010, 1
        %v2012 = vmax.f32 %v2010, %v2011
        %v2013 = vsel %vm733, %v1308, -inf
        %v2014 = vrot.slane %v2013, 4
        %v2015 = vmax.f32 %v2013, %v2014
        %v2016 = vrot.slane %v2015, 2
        %v2017 = vmax.f32 %v2015, %v2016
        %v2018 = vrot.slane %v2017, 1
        %v2019 = vmax.f32 %v2017, %v2018
        %v2020 = vsel %vm733, %v1307, -inf
        %v2021 = vrot.slane %v2020, 4
        %v2022 = vmax.f32 %v2020, %v2021
        %v2023 = vrot.slane %v2022, 2
        %v2024 = vmax.f32 %v2022, %v2023
        %v2025 = vrot.slane %v2024, 1
        %v2026 = vmax.f32 %v2024, %v2025
        %v2027 = vsel %vm733, %v1309, -inf
        %v2028 = vrot.slane %v2027, 4
        %v2029 = vmax.f32 %v2027, %v2028
        %v2030 = vrot.slane %v2029, 2
        %v2031 = vmax.f32 %v2029, %v2030
        %v2032 = vrot.slane %v2031, 1
        %v2033 = vmax.f32 %v2031, %v2032
        %v2034 = vsel %vm733, %v1317, -inf
        %v2035 = vrot.slane %v2034, 4
        %v2036 = vmax.f32 %v2034, %v2035
        %v2037 = vrot.slane %v2036, 2
        %v2038 = vmax.f32 %v2036, %v2037
        %v2039 = vrot.slane %v2038, 1
        %v2040 = vmax.f32 %v2038, %v2039
        %v2041 = vsel %vm733, %v1325, -inf
        %v2042 = vrot.slane %v2041, 4
        %v2043 = vmax.f32 %v2041, %v2042
        %v2044 = vrot.slane %v2043, 2
        %v2045 = vmax.f32 %v2043, %v2044
        %v2046 = vrot.slane %v2045, 1
        %v2047 = vmax.f32 %v2045, %v2046
        %v2048 = vsel %vm733, %v1324, -inf
        %v2049 = vrot.slane %v2048, 4
        %v2050 = vmax.f32 %v2048, %v2049
        %v2051 = vrot.slane %v2050, 2
        %v2052 = vmax.f32 %v2050, %v2051
        %v2053 = vrot.slane %v2052, 1
        %v2054 = vmax.f32 %v2052, %v2053
        %v2055 = vsel %vm733, %v1326, -inf
        %v2056 = vrot.slane %v2055, 4
        %v2057 = vmax.f32 %v2055, %v2056
        %v2058 = vrot.slane %v2057, 2
        %v2059 = vmax.f32 %v2057, %v2058
        %v2060 = vrot.slane %v2059, 1
        %v2061 = vmax.f32 %v2059, %v2060
        %v2062 = vsel %vm733, %v1334, -inf
        %v2063 = vrot.slane %v2062, 4
        %v2064 = vmax.f32 %v2062, %v2063
        %v2065 = vrot.slane %v2064, 2
        %v2066 = vmax.f32 %v2064, %v2065
        %v2067 = vrot.slane %v2066, 1
        %v2068 = vmax.f32 %v2066, %v2067
        %v2069 = vsel %vm733, %v1342, -inf
        %v2070 = vrot.slane %v2069, 4
        %v2071 = vmax.f32 %v2069, %v2070
        %v2072 = vrot.slane %v2071, 2
        %v2073 = vmax.f32 %v2071, %v2072
        %v2074 = vrot.slane %v2073, 1
        %v2075 = vmax.f32 %v2073, %v2074
        %v2076 = vsel %vm733, %v1341, -inf
        %v2077 = vrot.slane %v2076, 4
        %v2078 = vmax.f32 %v2076, %v2077
        %v2079 = vrot.slane %v2078, 2
        %v2080 = vmax.f32 %v2078, %v2079
        %v2081 = vrot.slane %v2080, 1
        %v2082 = vmax.f32 %v2080, %v2081
        %v2083 = vsel %vm733, %v1343, -inf
        %v2084 = vrot.slane %v2083, 4
        %v2085 = vmax.f32 %v2083, %v2084
        %v2086 = vrot.slane %v2085, 2
        %v2087 = vmax.f32 %v2085, %v2086
        %v2088 = vrot.slane %v2087, 1
        %v2089 = vmax.f32 %v2087, %v2088
        %v2090 = vsel %vm733, %v1351, -inf
        %v2091 = vrot.slane %v2090, 4
        %v2092 = vmax.f32 %v2090, %v2091
        %v2093 = vrot.slane %v2092, 2
        %v2094 = vmax.f32 %v2092, %v2093
        %v2095 = vrot.slane %v2094, 1
        %v2096 = vmax.f32 %v2094, %v2095
        %v2097 = vsel %vm733, %v1359, -inf
        %v2098 = vrot.slane %v2097, 4
        %v2099 = vmax.f32 %v2097, %v2098
        %v2100 = vrot.slane %v2099, 2
        %v2101 = vmax.f32 %v2099, %v2100
        %v2102 = vrot.slane %v2101, 1
        %v2103 = vmax.f32 %v2101, %v2102
        %v2104 = vsel %vm733, %v1358, -inf
        %v2105 = vrot.slane %v2104, 4
        %v2106 = vmax.f32 %v2104, %v2105
        %v2107 = vrot.slane %v2106, 2
        %v2108 = vmax.f32 %v2106, %v2107
        %v2109 = vrot.slane %v2108, 1
        %v2110 = vmax.f32 %v2108, %v2109
        %v2111 = vsel %vm733, %v1360, -inf
        %v2112 = vrot.slane %v2111, 4
        %v2113 = vmax.f32 %v2111, %v2112
        %v2114 = vrot.slane %v2113, 2
        %v2115 = vmax.f32 %v2113, %v2114
        %v2116 = vrot.slane %v2115, 1
        %v2117 = vmax.f32 %v2115, %v2116
        %v2118 = vsel %vm733, %v1368, -inf
        %v2119 = vrot.slane %v2118, 4
        %v2120 = vmax.f32 %v2118, %v2119
        %v2121 = vrot.slane %v2120, 2
        %v2122 = vmax.f32 %v2120, %v2121
        %v2123 = vrot.slane %v2122, 1
        %v2124 = vmax.f32 %v2122, %v2123
        %v2125 = vsel %vm733, %v1376, -inf
        %v2126 = vrot.slane %v2125, 4
        %v2127 = vmax.f32 %v2125, %v2126
        %v2128 = vrot.slane %v2127, 2
        %v2129 = vmax.f32 %v2127, %v2128
        %v2130 = vrot.slane %v2129, 1
        %v2131 = vmax.f32 %v2129, %v2130
        %v2132 = vsel %vm733, %v1375, -inf
        %v2133 = vrot.slane %v2132, 4
        %v2134 = vmax.f32 %v2132, %v2133
        %v2135 = vrot.slane %v2134, 2
        %v2136 = vmax.f32 %v2134, %v2135
        %v2137 = vrot.slane %v2136, 1
        %v2138 = vmax.f32 %v2136, %v2137
        %v2139 = vsel %vm733, %v1377, -inf
        %v2140 = vrot.slane %v2139, 4
        %v2141 = vmax.f32 %v2139, %v2140
        %v2142 = vrot.slane %v2141, 2
        %v2143 = vmax.f32 %v2141, %v2142
        %v2144 = vrot.slane %v2143, 1
        %v2145 = vmax.f32 %v2143, %v2144
        %v2146 = vld [vmem:[#allocation10] sm:$0x3]
        %v2147 = vlaneseq
        %v2148 = vshrl.u32 %v2147, 7
        %v2149 = vadd.s32 %v2148, 8
        %v2150 = vadd.s32 %v2148, 16
        %v2151 = vadd.s32 %v2148, 24
        %v2152 = vadd.s32 %v2148, 32
        %v2153 = vadd.s32 %v2148, 40
        %v2154 = vadd.s32 %v2148, 48
        %v2155 = vadd.s32 %v2148, 56
        %v2156 = vadd.s32 %v2148, 64
        %v2157 = vadd.s32 %v2148, 72
        %v2158 = vadd.s32 %v2148, 80
        %v2159 = vadd.s32 %v2148, 88
        %vm2160 = vcmp.lt.s32.totalorder %v2148, 0
        %v2161 = vsub.s32 0, %v2148
        %v2162 = vsel %vm2160, %v2161, %v2148
        %v2163 = vmul.u32.u64.compose %v2162, 2863311531
        %v2164 = vextract.low.u32 %v2163
        %v2165 = vextract.high.u32 %v2163
        %v2166 = vshrl.u32 %v2165, 3
        %v2167 = vmul.u32 %v2166, 12
        %v2168 = vsub.s32 %v2162, %v2167
        %v2169 = vsub.s32 0, %v2168
        %v2170 = vsel %vm2160, %v2169, %v2168
        %vm2171 = vcmp.lt.s32.totalorder %v2149, 0
        %v2172 = vsub.s32 0, %v2149
        %v2173 = vsel %vm2171, %v2172, %v2149
        %v2174 = vmul.u32.u64.compose %v2173, 2863311531
        %v2175 = vextract.low.u32 %v2174
        %v2176 = vextract.high.u32 %v2174
        %v2177 = vshrl.u32 %v2176, 3
        %v2178 = vmul.u32 %v2177, 12
        %v2179 = vsub.s32 %v2173, %v2178
        %v2180 = vsub.s32 0, %v2179
        %v2181 = vsel %vm2171, %v2180, %v2179
        %vm2182 = vcmp.lt.s32.totalorder %v2150, 0
        %v2183 = vsub.s32 0, %v2150
        %v2184 = vsel %vm2182, %v2183, %v2150
        %v2185 = vmul.u32.u64.compose %v2184, 2863311531
        %v2186 = vextract.low.u32 %v2185
        %v2187 = vextract.high.u32 %v2185
        %v2188 = vshrl.u32 %v2187, 3
        %v2189 = vmul.u32 %v2188, 12
        %v2190 = vsub.s32 %v2184, %v2189
        %v2191 = vsub.s32 0, %v2190
        %v2192 = vsel %vm2182, %v2191, %v2190
        %vm2193 = vcmp.lt.s32.totalorder %v2151, 0
        %v2194 = vsub.s32 0, %v2151
        %v2195 = vsel %vm2193, %v2194, %v2151
        %v2196 = vmul.u32.u64.compose %v2195, 2863311531
        %v2197 = vextract.low.u32 %v2196
        %v2198 = vextract.high.u32 %v2196
        %v2199 = vshrl.u32 %v2198, 3
        %v2200 = vmul.u32 %v2199, 12
        %v2201 = vsub.s32 %v2195, %v2200
        %v2202 = vsub.s32 0, %v2201
        %v2203 = vsel %vm2193, %v2202, %v2201
        %vm2204 = vcmp.lt.s32.totalorder %v2152, 0
        %v2205 = vsub.s32 0, %v2152
        %v2206 = vsel %vm2204, %v2205, %v2152
        %v2207 = vmul.u32.u64.compose %v2206, 2863311531
        %v2208 = vextract.low.u32 %v2207
        %v2209 = vextract.high.u32 %v2207
        %v2210 = vshrl.u32 %v2209, 3
        %v2211 = vmul.u32 %v2210, 12
        %v2212 = vsub.s32 %v2206, %v2211
        %v2213 = vsub.s32 0, %v2212
        %v2214 = vsel %vm2204, %v2213, %v2212
        %vm2215 = vcmp.lt.s32.totalorder %v2153, 0
        %v2216 = vsub.s32 0, %v2153
        %v2217 = vsel %vm2215, %v2216, %v2153
        %v2218 = vmul.u32.u64.compose %v2217, 2863311531
        %v2219 = vextract.low.u32 %v2218
        %v2220 = vextract.high.u32 %v2218
        %v2221 = vshrl.u32 %v2220, 3
        %v2222 = vmul.u32 %v2221, 12
        %v2223 = vsub.s32 %v2217, %v2222
        %v2224 = vsub.s32 0, %v2223
        %v2225 = vsel %vm2215, %v2224, %v2223
        %vm2226 = vcmp.lt.s32.totalorder %v2154, 0
        %v2227 = vsub.s32 0, %v2154
        %v2228 = vsel %vm2226, %v2227, %v2154
        %v2229 = vmul.u32.u64.compose %v2228, 2863311531
        %v2230 = vextract.low.u32 %v2229
        %v2231 = vextract.high.u32 %v2229
        %v2232 = vshrl.u32 %v2231, 3
        %v2233 = vmul.u32 %v2232, 12
        %v2234 = vsub.s32 %v2228, %v2233
        %v2235 = vsub.s32 0, %v2234
        %v2236 = vsel %vm2226, %v2235, %v2234
        %vm2237 = vcmp.lt.s32.totalorder %v2155, 0
        %v2238 = vsub.s32 0, %v2155
        %v2239 = vsel %vm2237, %v2238, %v2155
        %v2240 = vmul.u32.u64.compose %v2239, 2863311531
        %v2241 = vextract.low.u32 %v2240
        %v2242 = vextract.high.u32 %v2240
        %v2243 = vshrl.u32 %v2242, 3
        %v2244 = vmul.u32 %v2243, 12
        %v2245 = vsub.s32 %v2239, %v2244
        %v2246 = vsub.s32 0, %v2245
        %v2247 = vsel %vm2237, %v2246, %v2245
        %vm2248 = vcmp.lt.s32.totalorder %v2156, 0
        %v2249 = vsub.s32 0, %v2156
        %v2250 = vsel %vm2248, %v2249, %v2156
        %v2251 = vmul.u32.u64.compose %v2250, 2863311531
        %v2252 = vextract.low.u32 %v2251
        %v2253 = vextract.high.u32 %v2251
        %v2254 = vshrl.u32 %v2253, 3
        %v2255 = vmul.u32 %v2254, 12
        %v2256 = vsub.s32 %v2250, %v2255
        %v2257 = vsub.s32 0, %v2256
        %v2258 = vsel %vm2248, %v2257, %v2256
        %vm2259 = vcmp.lt.s32.totalorder %v2157, 0
        %v2260 = vsub.s32 0, %v2157
        %v2261 = vsel %vm2259, %v2260, %v2157
        %v2262 = vmul.u32.u64.compose %v2261, 2863311531
        %v2263 = vextract.low.u32 %v2262
        %v2264 = vextract.high.u32 %v2262
        %v2265 = vshrl.u32 %v2264, 3
        %v2266 = vmul.u32 %v2265, 12
        %v2267 = vsub.s32 %v2261, %v2266
        %v2268 = vsub.s32 0, %v2267
        %v2269 = vsel %vm2259, %v2268, %v2267
        %vm2270 = vcmp.lt.s32.totalorder %v2158, 0
        %v2271 = vsub.s32 0, %v2158
        %v2272 = vsel %vm2270, %v2271, %v2158
        %v2273 = vmul.u32.u64.compose %v2272, 2863311531
        %v2274 = vextract.low.u32 %v2273
        %v2275 = vextract.high.u32 %v2273
        %v2276 = vshrl.u32 %v2275, 3
        %v2277 = vmul.u32 %v2276, 12
        %v2278 = vsub.s32 %v2272, %v2277
        %v2279 = vsub.s32 0, %v2278
        %v2280 = vsel %vm2270, %v2279, %v2278
        %vm2281 = vcmp.lt.s32.totalorder %v2159, 0
        %v2282 = vsub.s32 0, %v2159
        %v2283 = vsel %vm2281, %v2282, %v2159
        %v2284 = vmul.u32.u64.compose %v2283, 2863311531
        %v2285 = vextract.low.u32 %v2284
        %v2286 = vextract.high.u32 %v2284
        %v2287 = vshrl.u32 %v2286, 3
        %v2288 = vmul.u32 %v2287, 12
        %v2289 = vsub.s32 %v2283, %v2288
        %v2290 = vsub.s32 0, %v2289
        %v2291 = vsel %vm2281, %v2290, %v2289
        %vm2292 = vcmp.ne.s32.totalorder %v2170, 0
        %vm2293 = vcmp.ne.s32.totalorder %v2181, 0
        %vm2294 = vcmp.ne.s32.totalorder %v2192, 0
        %vm2295 = vcmp.ne.s32.totalorder %v2203, 0
        %vm2296 = vcmp.ne.s32.totalorder %v2214, 0
        %vm2297 = vcmp.ne.s32.totalorder %v2225, 0
        %vm2298 = vcmp.ne.s32.totalorder %v2236, 0
        %vm2299 = vcmp.ne.s32.totalorder %v2247, 0
        %vm2300 = vcmp.ne.s32.totalorder %v2258, 0
        %vm2301 = vcmp.ne.s32.totalorder %v2269, 0
        %vm2302 = vcmp.ne.s32.totalorder %v2280, 0
        %vm2303 = vcmp.ne.s32.totalorder %v2291, 0
        %vm2304 = vcmp.lt.s32.totalorder %v2170, 0
        %vm2305 = vcmp.lt.s32.totalorder %v2181, 0
        %vm2306 = vcmp.lt.s32.totalorder %v2192, 0
        %vm2307 = vcmp.lt.s32.totalorder %v2203, 0
        %vm2308 = vcmp.lt.s32.totalorder %v2214, 0
        %vm2309 = vcmp.lt.s32.totalorder %v2225, 0
        %vm2310 = vcmp.lt.s32.totalorder %v2236, 0
        %vm2311 = vcmp.lt.s32.totalorder %v2247, 0
        %vm2312 = vcmp.lt.s32.totalorder %v2258, 0
        %vm2313 = vcmp.lt.s32.totalorder %v2269, 0
        %vm2314 = vcmp.lt.s32.totalorder %v2280, 0
        %vm2315 = vcmp.lt.s32.totalorder %v2291, 0
        %vm2316 = vmand %vm2304, %vm2292
        %vm2317 = vmand %vm2305, %vm2293
        %vm2318 = vmand %vm2306, %vm2294
        %vm2319 = vmand %vm2307, %vm2295
        %vm2320 = vmand %vm2308, %vm2296
        %vm2321 = vmand %vm2309, %vm2297
        %vm2322 = vmand %vm2310, %vm2298
        %vm2323 = vmand %vm2311, %vm2299
        %vm2324 = vmand %vm2312, %vm2300
        %vm2325 = vmand %vm2313, %vm2301
        %vm2326 = vmand %vm2314, %vm2302
        %vm2327 = vmand %vm2315, %vm2303
        %v2328 = vadd.s32 %v2170, 12
        %v2329 = vadd.s32 %v2181, 12
        %v2330 = vadd.s32 %v2192, 12
        %v2331 = vadd.s32 %v2203, 12
        %v2332 = vadd.s32 %v2214, 12
        %v2333 = vadd.s32 %v2225, 12
        %v2334 = vadd.s32 %v2236, 12
        %v2335 = vadd.s32 %v2247, 12
        %v2336 = vadd.s32 %v2258, 12
        %v2337 = vadd.s32 %v2269, 12
        %v2338 = vadd.s32 %v2280, 12
        %v2339 = vadd.s32 %v2291, 12
        %v2340 = vsel %vm2316, %v2328, %v2170
        %v2341 = vsel %vm2317, %v2329, %v2181
        %v2342 = vsel %vm2318, %v2330, %v2192
        %v2343 = vsel %vm2319, %v2331, %v2203
        %v2344 = vsel %vm2320, %v2332, %v2214
        %v2345 = vsel %vm2321, %v2333, %v2225
        %v2346 = vsel %vm2322, %v2334, %v2236
        %v2347 = vsel %vm2323, %v2335, %v2247
        %v2348 = vsel %vm2324, %v2336, %v2258
        %v2349 = vsel %vm2325, %v2337, %v2269
        %v2350 = vsel %vm2326, %v2338, %v2280
        %v2351 = vsel %vm2327, %v2339, %v2291
        %vm2352 = vcmp.eq.s32.totalorder %v2340, 0
        %vm2353 = vcmp.eq.s32.totalorder %v2341, 0
        %vm2354 = vcmp.eq.s32.totalorder %v2342, 0
        %vm2355 = vcmp.eq.s32.totalorder %v2343, 0
        %vm2356 = vcmp.eq.s32.totalorder %v2344, 0
        %vm2357 = vcmp.eq.s32.totalorder %v2345, 0
        %vm2358 = vcmp.eq.s32.totalorder %v2346, 0
        %vm2359 = vcmp.eq.s32.totalorder %v2347, 0
        %vm2360 = vcmp.eq.s32.totalorder %v2348, 0
        %vm2361 = vcmp.eq.s32.totalorder %v2349, 0
        %vm2362 = vcmp.eq.s32.totalorder %v2350, 0
        %vm2363 = vcmp.eq.s32.totalorder %v2351, 0
        %vm2459 = vcmask 1042434
        %v2460 = vsel %vm2459, %v1487, %v1480
        %vm2461 = vcmask 1043459
        %v2462 = vsel %vm2461, %v1494, %v2460
        %vm2463 = vcmask 1044484
        %v2464 = vsel %vm2463, %v1501, %v2462
        %vm2465 = vcmask 1045509
        %v2466 = vsel %vm2465, %v1508, %v2464
        %vm2467 = vcmask 1046534
        %v2468 = vsel %vm2467, %v1515, %v2466
        %vm2469 = vcmask 1047559
        %v2470 = vsel %vm2469, %v1522, %v2468
        %vm2471 = vcmask 1041409
        %v2472 = vsel %vm2471, %v1536, %v1529
        %v2473 = vsel %vm2459, %v1543, %v2472
        %v2474 = vsel %vm2461, %v1550, %v2473
        %v2475 = vsel %vm2463, %v1557, %v2474
        %v2476 = vsel %vm2465, %v1564, %v2475
        %v2477 = vsel %vm2467, %v1571, %v2476
        %v2478 = vsel %vm2469, %v1578, %v2477
        %v2479 = vsel %vm2471, %v1592, %v1585
        %v2480 = vsel %vm2459, %v1599, %v2479
        %v2481 = vsel %vm2461, %v1606, %v2480
        %v2482 = vsel %vm2463, %v1613, %v2481
        %v2483 = vsel %vm2465, %v1620, %v2482
        %v2484 = vsel %vm2467, %v1627, %v2483
        %v2485 = vsel %vm2469, %v1634, %v2484
        %v2486 = vsel %vm2471, %v1648, %v1641
        %v2487 = vsel %vm2459, %v1655, %v2486
        %v2488 = vsel %vm2461, %v1662, %v2487
        %v2489 = vsel %vm2463, %v1669, %v2488
        %v2490 = vsel %vm2465, %v1676, %v2489
        %v2491 = vsel %vm2467, %v1683, %v2490
        %v2492 = vsel %vm2469, %v1690, %v2491
        %v2493 = vsel %vm2471, %v1704, %v1697
        %v2494 = vsel %vm2459, %v1711, %v2493
        %v2495 = vsel %vm2461, %v1718, %v2494
        %v2496 = vsel %vm2463, %v1725, %v2495
        %v2497 = vsel %vm2465, %v1732, %v2496
        %v2498 = vsel %vm2467, %v1739, %v2497
        %v2499 = vsel %vm2469, %v1746, %v2498
        %v2500 = vsel %vm2471, %v1760, %v1753
        %v2501 = vsel %vm2459, %v1767, %v2500
        %v2502 = vsel %vm2461, %v1774, %v2501
        %v2503 = vsel %vm2463, %v1781, %v2502
        %v2504 = vsel %vm2465, %v1788, %v2503
        %v2505 = vsel %vm2467, %v1795, %v2504
        %v2506 = vsel %vm2469, %v1802, %v2505
        %v2507 = vsel %vm2471, %v1816, %v1809
        %v2508 = vsel %vm2459, %v1823, %v2507
        %v2509 = vsel %vm2461, %v1830, %v2508
        %v2510 = vsel %vm2463, %v1837, %v2509
        %v2511 = vsel %vm2465, %v1844, %v2510
        %v2512 = vsel %vm2467, %v1851, %v2511
        %v2513 = vsel %vm2469, %v1858, %v2512
        %v2514 = vsel %vm2471, %v1872, %v1865
        %v2515 = vsel %vm2459, %v1879, %v2514
        %v2516 = vsel %vm2461, %v1886, %v2515
        %v2517 = vsel %vm2463, %v1893, %v2516
        %v2518 = vsel %vm2465, %v1900, %v2517
        %v2519 = vsel %vm2467, %v1907, %v2518
        %v2520 = vsel %vm2469, %v1914, %v2519
        %v2521 = vsel %vm2471, %v1928, %v1921
        %v2522 = vsel %vm2459, %v1935, %v2521
        %v2523 = vsel %vm2461, %v1942, %v2522
        %v2524 = vsel %vm2463, %v1949, %v2523
        %v2525 = vsel %vm2465, %v1956, %v2524
        %v2526 = vsel %vm2467, %v1963, %v2525
        %v2527 = vsel %vm2469, %v1970, %v2526
        %v2528 = vsel %vm2471, %v1984, %v1977
        %v2529 = vsel %vm2459, %v1991, %v2528
        %v2530 = vsel %vm2461, %v1998, %v2529
        %v2531 = vsel %vm2463, %v2005, %v2530
        %v2532 = vsel %vm2465, %v2012, %v2531
        %v2533 = vsel %vm2467, %v2019, %v2532
        %v2534 = vsel %vm2469, %v2026, %v2533
        %v2535 = vsel %vm2471, %v2040, %v2033
        %v2536 = vsel %vm2459, %v2047, %v2535
        %v2537 = vsel %vm2461, %v2054, %v2536
        %v2538 = vsel %vm2463, %v2061, %v2537
        %v2539 = vsel %vm2465, %v2068, %v2538
        %v2540 = vsel %vm2467, %v2075, %v2539
        %v2541 = vsel %vm2469, %v2082, %v2540
        %v2542 = vsel %vm2471, %v2096, %v2089
        %v2543 = vsel %vm2459, %v2103, %v2542
        %v2544 = vsel %vm2461, %v2110, %v2543
        %v2545 = vsel %vm2463, %v2117, %v2544
        %v2546 = vsel %vm2465, %v2124, %v2545
        %v2547 = vsel %vm2467, %v2131, %v2546
        %v2548 = vsel %vm2469, %v2138, %v2547
        %vm2561 = vcmask 1040384
        %v2562 = vsel %vm2561, 0.0, %v2470
        %v2563 = vsel %vm2352, 1, 0
        %v2564 = vsel %vm2353, 1, 0
        %v2565 = vsel %vm2354, 1, 0
        %v2566 = vsel %vm2355, 1, 0
        %v2567 = vsel %vm2356, 1, 0
        %v2568 = vsel %vm2357, 1, 0
        %v2569 = vsel %vm2358, 1, 0
        %v2570 = vsel %vm2359, 1, 0
        %v2571 = vsel %vm2360, 1, 0
        %v2572 = vsel %vm2361, 1, 0
        %v2573 = vsel %vm2362, 1, 0
        %v2574 = vsel %vm2363, 1, 0
        %vm2575 = vcmp.eq.s32.totalorder %v2563, 1
        %vm2576 = vcmp.eq.s32.totalorder %v2564, 1
        %vm2577 = vcmp.eq.s32.totalorder %v2565, 1
        %vm2578 = vcmp.eq.s32.totalorder %v2566, 1
        %vm2579 = vcmp.eq.s32.totalorder %v2567, 1
        %vm2580 = vcmp.eq.s32.totalorder %v2568, 1
        %vm2581 = vcmp.eq.s32.totalorder %v2569, 1
        %vm2582 = vcmp.eq.s32.totalorder %v2570, 1
        %vm2583 = vcmp.eq.s32.totalorder %v2571, 1
        %vm2584 = vcmp.eq.s32.totalorder %v2572, 1
        %vm2585 = vcmp.eq.s32.totalorder %v2573, 1
        %vm2586 = vcmp.eq.s32.totalorder %v2574, 1
        %v2587 = vsel %vm2575, 0.0, %v2562
        %v2588 = vsel %vm2576, 0.0, %v2478
        %v2589 = vsel %vm2577, 0.0, %v2485
        %v2590 = vsel %vm2578, 0.0, %v2492
        %v2591 = vsel %vm2579, 0.0, %v2499
        %v2592 = vsel %vm2580, 0.0, %v2506
        %v2593 = vsel %vm2581, 0.0, %v2513
        %v2594 = vsel %vm2582, 0.0, %v2520
        %v2595 = vsel %vm2583, 0.0, %v2527
        %v2596 = vsel %vm2584, 0.0, %v2534
        %v2597 = vsel %vm2585, 0.0, %v2541
        %v2598 = vsel %vm2586, 0.0, %v2548
        %vm2599 = vcmp.eq.s32.totalorder %v2340, 11
        %vm2600 = vcmp.eq.s32.totalorder %v2341, 11
        %vm2601 = vcmp.eq.s32.totalorder %v2342, 11
        %vm2602 = vcmp.eq.s32.totalorder %v2343, 11
        %vm2603 = vcmp.eq.s32.totalorder %v2344, 11
        %vm2604 = vcmp.eq.s32.totalorder %v2345, 11
        %vm2605 = vcmp.eq.s32.totalorder %v2346, 11
        %vm2606 = vcmp.eq.s32.totalorder %v2347, 11
        %vm2607 = vcmp.eq.s32.totalorder %v2348, 11
        %vm2608 = vcmp.eq.s32.totalorder %v2349, 11
        %vm2609 = vcmp.eq.s32.totalorder %v2350, 11
        %vm2610 = vcmp.eq.s32.totalorder %v2351, 11
        %v2612 = vsel %vm2471, %v1494, %v1487
        %v2613 = vsel %vm2459, %v1501, %v2612
        %v2614 = vsel %vm2461, %v1508, %v2613
        %v2615 = vsel %vm2463, %v1515, %v2614
        %v2616 = vsel %vm2465, %v1522, %v2615
        %v2617 = vsel %vm2467, %v1529, %v2616
        %v2618 = vsel %vm2469, %v1536, %v2617
        %v2619 = vsel %vm2471, %v1550, %v1543
        %v2620 = vsel %vm2459, %v1557, %v2619
        %v2621 = vsel %vm2461, %v1564, %v2620
        %v2622 = vsel %vm2463, %v1571, %v2621
        %v2623 = vsel %vm2465, %v1578, %v2622
        %v2624 = vsel %vm2467, %v1585, %v2623
        %v2625 = vsel %vm2469, %v1592, %v2624
        %v2626 = vsel %vm2471, %v1606, %v1599
        %v2627 = vsel %vm2459, %v1613, %v2626
        %v2628 = vsel %vm2461, %v1620, %v2627
        %v2629 = vsel %vm2463, %v1627, %v2628
        %v2630 = vsel %vm2465, %v1634, %v2629
        %v2631 = vsel %vm2467, %v1641, %v2630
        %v2632 = vsel %vm2469, %v1648, %v2631
        %v2633 = vsel %vm2471, %v1662, %v1655
        %v2634 = vsel %vm2459, %v1669, %v2633
        %v2635 = vsel %vm2461, %v1676, %v2634
        %v2636 = vsel %vm2463, %v1683, %v2635
        %v2637 = vsel %vm2465, %v1690, %v2636
        %v2638 = vsel %vm2467, %v1697, %v2637
        %v2639 = vsel %vm2469, %v1704, %v2638
        %v2640 = vsel %vm2471, %v1718, %v1711
        %v2641 = vsel %vm2459, %v1725, %v2640
        %v2642 = vsel %vm2461, %v1732, %v2641
        %v2643 = vsel %vm2463, %v1739, %v2642
        %v2644 = vsel %vm2465, %v1746, %v2643
        %v2645 = vsel %vm2467, %v1753, %v2644
        %v2646 = vsel %vm2469, %v1760, %v2645
        %v2647 = vsel %vm2471, %v1774, %v1767
        %v2648 = vsel %vm2459, %v1781, %v2647
        %v2649 = vsel %vm2461, %v1788, %v2648
        %v2650 = vsel %vm2463, %v1795, %v2649
        %v2651 = vsel %vm2465, %v1802, %v2650
        %v2652 = vsel %vm2467, %v1809, %v2651
        %v2653 = vsel %vm2469, %v1816, %v2652
        %v2654 = vsel %vm2471, %v1830, %v1823
        %v2655 = vsel %vm2459, %v1837, %v2654
        %v2656 = vsel %vm2461, %v1844, %v2655
        %v2657 = vsel %vm2463, %v1851, %v2656
        %v2658 = vsel %vm2465, %v1858, %v2657
        %v2659 = vsel %vm2467, %v1865, %v2658
        %v2660 = vsel %vm2469, %v1872, %v2659
        %v2661 = vsel %vm2471, %v1886, %v1879
        %v2662 = vsel %vm2459, %v1893, %v2661
        %v2663 = vsel %vm2461, %v1900, %v2662
        %v2664 = vsel %vm2463, %v1907, %v2663
        %v2665 = vsel %vm2465, %v1914, %v2664
        %v2666 = vsel %vm2467, %v1921, %v2665
        %v2667 = vsel %vm2469, %v1928, %v2666
        %v2668 = vsel %vm2471, %v1942, %v1935
        %v2669 = vsel %vm2459, %v1949, %v2668
        %v2670 = vsel %vm2461, %v1956, %v2669
        %v2671 = vsel %vm2463, %v1963, %v2670
        %v2672 = vsel %vm2465, %v1970, %v2671
        %v2673 = vsel %vm2467, %v1977, %v2672
        %v2674 = vsel %vm2469, %v1984, %v2673
        %v2675 = vsel %vm2471, %v1998, %v1991
        %v2676 = vsel %vm2459, %v2005, %v2675
        %v2677 = vsel %vm2461, %v2012, %v2676
        %v2678 = vsel %vm2463, %v2019, %v2677
        %v2679 = vsel %vm2465, %v2026, %v2678
        %v2680 = vsel %vm2467, %v2033, %v2679
        %v2681 = vsel %vm2469, %v2040, %v2680
        %v2682 = vsel %vm2471, %v2054, %v2047
        %v2683 = vsel %vm2459, %v2061, %v2682
        %v2684 = vsel %vm2461, %v2068, %v2683
        %v2685 = vsel %vm2463, %v2075, %v2684
        %v2686 = vsel %vm2465, %v2082, %v2685
        %v2687 = vsel %vm2467, %v2089, %v2686
        %v2688 = vsel %vm2469, %v2096, %v2687
        %v2689 = vsel %vm2471, %v2110, %v2103
        %v2690 = vsel %vm2459, %v2117, %v2689
        %v2691 = vsel %vm2461, %v2124, %v2690
        %v2692 = vsel %vm2463, %v2131, %v2691
        %v2693 = vsel %vm2465, %v2138, %v2692
        %v2694 = vsel %vm2467, %v2145, %v2693
        %vm2707 = vcmask 1046528
        %v2708 = vsel %vm2707, %v2694, 0.0
        %v2709 = vsel %vm2599, 1, 0
        %v2710 = vsel %vm2600, 1, 0
        %v2711 = vsel %vm2601, 1, 0
        %v2712 = vsel %vm2602, 1, 0
        %v2713 = vsel %vm2603, 1, 0
        %v2714 = vsel %vm2604, 1, 0
        %v2715 = vsel %vm2605, 1, 0
        %v2716 = vsel %vm2606, 1, 0
        %v2717 = vsel %vm2607, 1, 0
        %v2718 = vsel %vm2608, 1, 0
        %v2719 = vsel %vm2609, 1, 0
        %v2720 = vsel %vm2610, 1, 0
        %vm2721 = vcmp.eq.s32.totalorder %v2709, 1
        %vm2722 = vcmp.eq.s32.totalorder %v2710, 1
        %vm2723 = vcmp.eq.s32.totalorder %v2711, 1
        %vm2724 = vcmp.eq.s32.totalorder %v2712, 1
        %vm2725 = vcmp.eq.s32.totalorder %v2713, 1
        %vm2726 = vcmp.eq.s32.totalorder %v2714, 1
        %vm2727 = vcmp.eq.s32.totalorder %v2715, 1
        %vm2728 = vcmp.eq.s32.totalorder %v2716, 1
        %vm2729 = vcmp.eq.s32.totalorder %v2717, 1
        %vm2730 = vcmp.eq.s32.totalorder %v2718, 1
        %vm2731 = vcmp.eq.s32.totalorder %v2719, 1
        %vm2732 = vcmp.eq.s32.totalorder %v2720, 1
        %v2733 = vsel %vm2721, 0.0, %v2618
        %v2734 = vsel %vm2722, 0.0, %v2625
        %v2735 = vsel %vm2723, 0.0, %v2632
        %v2736 = vsel %vm2724, 0.0, %v2639
        %v2737 = vsel %vm2725, 0.0, %v2646
        %v2738 = vsel %vm2726, 0.0, %v2653
        %v2739 = vsel %vm2727, 0.0, %v2660
        %v2740 = vsel %vm2728, 0.0, %v2667
        %v2741 = vsel %vm2729, 0.0, %v2674
        %v2742 = vsel %vm2730, 0.0, %v2681
        %v2743 = vsel %vm2731, 0.0, %v2688
        %v2744 = vsel %vm2732, 0.0, %v2708
        %v2745 = vsel %vm2471, %v1487, %v1480
        %v2746 = vsel %vm2459, %v1494, %v2745
        %v2747 = vsel %vm2461, %v1501, %v2746
        %v2748 = vsel %vm2463, %v1508, %v2747
        %v2749 = vsel %vm2465, %v1515, %v2748
        %v2750 = vsel %vm2467, %v1522, %v2749
        %v2751 = vsel %vm2469, %v1529, %v2750
        %v2752 = vsel %vm2471, %v1543, %v1536
        %v2753 = vsel %vm2459, %v1550, %v2752
        %v2754 = vsel %vm2461, %v1557, %v2753
        %v2755 = vsel %vm2463, %v1564, %v2754
        %v2756 = vsel %vm2465, %v1571, %v2755
        %v2757 = vsel %vm2467, %v1578, %v2756
        %v2758 = vsel %vm2469, %v1585, %v2757
        %v2759 = vsel %vm2471, %v1599, %v1592
        %v2760 = vsel %vm2459, %v1606, %v2759
        %v2761 = vsel %vm2461, %v1613, %v2760
        %v2762 = vsel %vm2463, %v1620, %v2761
        %v2763 = vsel %vm2465, %v1627, %v2762
        %v2764 = vsel %vm2467, %v1634, %v2763
        %v2765 = vsel %vm2469, %v1641, %v2764
        %v2766 = vsel %vm2471, %v1655, %v1648
        %v2767 = vsel %vm2459, %v1662, %v2766
        %v2768 = vsel %vm2461, %v1669, %v2767
        %v2769 = vsel %vm2463, %v1676, %v2768
        %v2770 = vsel %vm2465, %v1683, %v2769
        %v2771 = vsel %vm2467, %v1690, %v2770
        %v2772 = vsel %vm2469, %v1697, %v2771
        %v2773 = vsel %vm2471, %v1711, %v1704
        %v2774 = vsel %vm2459, %v1718, %v2773
        %v2775 = vsel %vm2461, %v1725, %v2774
        %v2776 = vsel %vm2463, %v1732, %v2775
        %v2777 = vsel %vm2465, %v1739, %v2776
        %v2778 = vsel %vm2467, %v1746, %v2777
        %v2779 = vsel %vm2469, %v1753, %v2778
        %v2780 = vsel %vm2471, %v1767, %v1760
        %v2781 = vsel %vm2459, %v1774, %v2780
        %v2782 = vsel %vm2461, %v1781, %v2781
        %v2783 = vsel %vm2463, %v1788, %v2782
        %v2784 = vsel %vm2465, %v1795, %v2783
        %v2785 = vsel %vm2467, %v1802, %v2784
        %v2786 = vsel %vm2469, %v1809, %v2785
        %v2787 = vsel %vm2471, %v1823, %v1816
        %v2788 = vsel %vm2459, %v1830, %v2787
        %v2789 = vsel %vm2461, %v1837, %v2788
        %v2790 = vsel %vm2463, %v1844, %v2789
        %v2791 = vsel %vm2465, %v1851, %v2790
        %v2792 = vsel %vm2467, %v1858, %v2791
        %v2793 = vsel %vm2469, %v1865, %v2792
        %v2794 = vsel %vm2471, %v1879, %v1872
        %v2795 = vsel %vm2459, %v1886, %v2794
        %v2796 = vsel %vm2461, %v1893, %v2795
        %v2797 = vsel %vm2463, %v1900, %v2796
        %v2798 = vsel %vm2465, %v1907, %v2797
        %v2799 = vsel %vm2467, %v1914, %v2798
        %v2800 = vsel %vm2469, %v1921, %v2799
        %v2801 = vsel %vm2471, %v1935, %v1928
        %v2802 = vsel %vm2459, %v1942, %v2801
        %v2803 = vsel %vm2461, %v1949, %v2802
        %v2804 = vsel %vm2463, %v1956, %v2803
        %v2805 = vsel %vm2465, %v1963, %v2804
        %v2806 = vsel %vm2467, %v1970, %v2805
        %v2807 = vsel %vm2469, %v1977, %v2806
        %v2808 = vsel %vm2471, %v1991, %v1984
        %v2809 = vsel %vm2459, %v1998, %v2808
        %v2810 = vsel %vm2461, %v2005, %v2809
        %v2811 = vsel %vm2463, %v2012, %v2810
        %v2812 = vsel %vm2465, %v2019, %v2811
        %v2813 = vsel %vm2467, %v2026, %v2812
        %v2814 = vsel %vm2469, %v2033, %v2813
        %v2815 = vsel %vm2471, %v2047, %v2040
        %v2816 = vsel %vm2459, %v2054, %v2815
        %v2817 = vsel %vm2461, %v2061, %v2816
        %v2818 = vsel %vm2463, %v2068, %v2817
        %v2819 = vsel %vm2465, %v2075, %v2818
        %v2820 = vsel %vm2467, %v2082, %v2819
        %v2821 = vsel %vm2469, %v2089, %v2820
        %v2822 = vsel %vm2471, %v2103, %v2096
        %v2823 = vsel %vm2459, %v2110, %v2822
        %v2824 = vsel %vm2461, %v2117, %v2823
        %v2825 = vsel %vm2463, %v2124, %v2824
        %v2826 = vsel %vm2465, %v2131, %v2825
        %v2827 = vsel %vm2467, %v2138, %v2826
        %v2828 = vsel %vm2469, %v2145, %v2827
        %v2841 = vld [vmem:[#allocation8] sm:$0xff]
        %v2842 = vld [vmem:[#allocation8 + $0x8] sm:$0xff]
        %v2843 = vld [vmem:[#allocation8 + $0x10] sm:$0xff]
        %v2844 = vld [vmem:[#allocation8 + $0x18] sm:$0xff]
        %v2845 = vld [vmem:[#allocation8 + $0x20] sm:$0xff]
        %v2846 = vld [vmem:[#allocation8 + $0x28] sm:$0xff]
        %v2847 = vld [vmem:[#allocation8 + $0x30] sm:$0xff]
        %v2848 = vld [vmem:[#allocation8 + $0x38] sm:$0xff]
        %v2849 = vld [vmem:[#allocation8 + $0x40] sm:$0xff]
        %v2850 = vld [vmem:[#allocation8 + $0x48] sm:$0xff]
        %v2851 = vld [vmem:[#allocation8 + $0x50] sm:$0xff]
        %v2852 = vld [vmem:[#allocation8 + $0x58] sm:$0xff]
        %v2853 = vld [vmem:[#allocation8 + $0x60] sm:$0xff]
        %v2854 = vld [vmem:[#allocation8 + $0x68] sm:$0xff]
        %v2855 = vld [vmem:[#allocation8 + $0x70] sm:$0xff]
        %v2856 = vld [vmem:[#allocation8 + $0x78] sm:$0xff]
        %v2857 = vld [vmem:[#allocation8 + $0x80] sm:$0xff]
        %v2858 = vld [vmem:[#allocation8 + $0x88] sm:$0xff]
        %v2859 = vld [vmem:[#allocation8 + $0x90] sm:$0xff]
        %v2860 = vld [vmem:[#allocation8 + $0x98] sm:$0xff]
        %v2861 = vld [vmem:[#allocation8 + $0xa0] sm:$0xff]
        %v2862 = vld [vmem:[#allocation8 + $0xa8] sm:$0xff]
        %v2863 = vld [vmem:[#allocation8 + $0xb0] sm:$0xff]
        %v2864 = vld [vmem:[#allocation8 + $0xb8] sm:$0xff]
        %v2865 = vld [vmem:[#allocation8 + $0xc0] sm:$0xff]
        %v2866 = vld [vmem:[#allocation8 + $0xc8] sm:$0xff]
        %v2867 = vld [vmem:[#allocation8 + $0xd0] sm:$0xff]
        %v2868 = vld [vmem:[#allocation8 + $0xd8] sm:$0xff]
        %v2869 = vld [vmem:[#allocation8 + $0xe0] sm:$0xff]
        %v2870 = vld [vmem:[#allocation8 + $0xe8] sm:$0xff]
        %v2871 = vld [vmem:[#allocation8 + $0xf0] sm:$0xff]
        %v2872 = vld [vmem:[#allocation8 + $0xf8] sm:$0xff]
        %v2873 = vld [vmem:[#allocation8 + $0x100] sm:$0xff]
        %v2874 = vld [vmem:[#allocation8 + $0x108] sm:$0xff]
        %v2875 = vld [vmem:[#allocation8 + $0x110] sm:$0xff]
        %v2876 = vld [vmem:[#allocation8 + $0x118] sm:$0xff]
        %v2877 = vld [vmem:[#allocation8 + $0x120] sm:$0xff]
        %v2878 = vld [vmem:[#allocation8 + $0x128] sm:$0xff]
        %v2879 = vld [vmem:[#allocation8 + $0x130] sm:$0xff]
        %v2880 = vld [vmem:[#allocation8 + $0x138] sm:$0xff]
        %v2881 = vld [vmem:[#allocation8 + $0x140] sm:$0xff]
        %v2882 = vld [vmem:[#allocation8 + $0x148] sm:$0xff]
        %v2883 = vld [vmem:[#allocation8 + $0x150] sm:$0xff]
        %v2884 = vld [vmem:[#allocation8 + $0x158] sm:$0xff]
        %v2885 = vld [vmem:[#allocation8 + $0x160] sm:$0xff]
        %v2886 = vld [vmem:[#allocation8 + $0x168] sm:$0xff]
        %v2887 = vld [vmem:[#allocation8 + $0x170] sm:$0xff]
        %v2888 = vld [vmem:[#allocation8 + $0x178] sm:$0xff]
        %v2889 = vld [vmem:[#allocation8 + $0x180] sm:$0xff]
        %v2890 = vld [vmem:[#allocation8 + $0x188] sm:$0xff]
        %v2891 = vld [vmem:[#allocation8 + $0x190] sm:$0xff]
        %v2892 = vld [vmem:[#allocation8 + $0x198] sm:$0xff]
        %v2893 = vld [vmem:[#allocation8 + $0x1a0] sm:$0xff]
        %v2894 = vld [vmem:[#allocation8 + $0x1a8] sm:$0xff]
        %v2895 = vld [vmem:[#allocation8 + $0x1b0] sm:$0xff]
        %v2896 = vld [vmem:[#allocation8 + $0x1b8] sm:$0xff]
        %v2897 = vld [vmem:[#allocation8 + $0x1c0] sm:$0xff]
        %v2898 = vld [vmem:[#allocation8 + $0x1c8] sm:$0xff]
        %v2899 = vld [vmem:[#allocation8 + $0x1d0] sm:$0xff]
        %v2900 = vld [vmem:[#allocation8 + $0x1d8] sm:$0xff]
        %v2901 = vld [vmem:[#allocation8 + $0x1e0] sm:$0xff]
        %v2902 = vld [vmem:[#allocation8 + $0x1e8] sm:$0xff]
        %v2903 = vld [vmem:[#allocation8 + $0x1f0] sm:$0xff]
        %v2904 = vld [vmem:[#allocation8 + $0x1f8] sm:$0xff]
        %v2905 = vld [vmem:[#allocation8 + $0x200] sm:$0xff]
        %v2906 = vld [vmem:[#allocation8 + $0x208] sm:$0xff]
        %v2907 = vld [vmem:[#allocation8 + $0x210] sm:$0xff]
        %v2908 = vld [vmem:[#allocation8 + $0x218] sm:$0xff]
        %v2909 = vld [vmem:[#allocation8 + $0x220] sm:$0xff]
        %v2910 = vld [vmem:[#allocation8 + $0x228] sm:$0xff]
        %v2911 = vld [vmem:[#allocation8 + $0x230] sm:$0xff]
        %v2912 = vld [vmem:[#allocation8 + $0x238] sm:$0xff]
        %v2913 = vld [vmem:[#allocation8 + $0x240] sm:$0xff]
        %v2914 = vld [vmem:[#allocation8 + $0x248] sm:$0xff]
        %v2915 = vld [vmem:[#allocation8 + $0x250] sm:$0xff]
        %v2916 = vld [vmem:[#allocation8 + $0x258] sm:$0xff]
        %v2917 = vld [vmem:[#allocation8 + $0x260] sm:$0xff]
        %v2918 = vld [vmem:[#allocation8 + $0x268] sm:$0xff]
        %v2919 = vld [vmem:[#allocation8 + $0x270] sm:$0xff]
        %v2920 = vld [vmem:[#allocation8 + $0x278] sm:$0xff]
        %v2921 = vld [vmem:[#allocation8 + $0x280] sm:$0xff]
        %v2922 = vld [vmem:[#allocation8 + $0x288] sm:$0xff]
        %v2923 = vld [vmem:[#allocation8 + $0x290] sm:$0xff]
        %v2924 = vld [vmem:[#allocation8 + $0x298] sm:$0xff]
        %v2925 = vld [vmem:[#allocation8 + $0x2a0] sm:$0xff]
        %v2926 = vld [vmem:[#allocation8 + $0x2a8] sm:$0xff]
        %v2927 = vld [vmem:[#allocation8 + $0x2b0] sm:$0xff]
        %v2928 = vld [vmem:[#allocation8 + $0x2b8] sm:$0xff]
        %v2929 = vld [vmem:[#allocation8 + $0x2c0] sm:$0xff]
        %v2930 = vld [vmem:[#allocation8 + $0x2c8] sm:$0xff]
        %v2931 = vld [vmem:[#allocation8 + $0x2d0] sm:$0xff]
        %v2932 = vld [vmem:[#allocation8 + $0x2d8] sm:$0xff]
        %v2933 = vld [vmem:[#allocation8 + $0x2e0] sm:$0xff]
        %v2934 = vld [vmem:[#allocation8 + $0x2e8] sm:$0xff]
        %v2935 = vld [vmem:[#allocation8 + $0x2f0] sm:$0xff]
        %v2936 = vld [vmem:[#allocation8 + $0x2f8] sm:$0xff]
        %v2938 = vlaneseq
        %v2939 = vshrl.u32 %v2938, 7
        %v2940 = vsub.s32 0, %v2939
        %v2941 = vrot.slane %v2146, %v2940
        %v2942 = vlaneseq
        %v2943 = vshrl.u32 %v2942, 7
        %v2944 = vsub.s32 1, %v2943
        %v2945 = vrot.slane %v2146, %v2944
        %2948 = vmatprep.subr.mxu0 %v2842
        %2949 = vmatpush1.msra.mxu0 %v2841
        %2950 = vmatprep.subr.mxu0 %v2844
        %2951 = vmatpush1.msra.mxu0 %v2843
        %2952 = vmatprep.subr.mxu0 %v2846
        %2953 = vmatpush1.msra.mxu0 %v2845
        %2954 = vmatprep.subr.mxu0 %v2848
        %2955 = vmatpush1.msra.mxu0 %v2847
        %2956 = vmatprep.subr.mxu0 %v2850
        %2957 = vmatpush1.msra.mxu0 %v2849
        %2958 = vmatprep.subr.mxu0 %v2852
        %2959 = vmatpush1.msra.mxu0 %v2851
        %2960 = vmatprep.subr.mxu0 %v2854
        %2961 = vmatpush1.msra.mxu0 %v2853
        %2962 = vmatprep.subr.mxu0 %v2856
        %2963 = vmatpush1.msra.mxu0 %v2855
        %2964 = vmatprep.subr.mxu0 %v2858
        %2965 = vmatpush1.msra.mxu0 %v2857
        %2966 = vmatprep.subr.mxu0 %v2860
        %2967 = vmatpush1.msra.mxu0 %v2859
        %2968 = vmatprep.subr.mxu0 %v2862
        %2969 = vmatpush1.msra.mxu0 %v2861
        %2970 = vmatprep.subr.mxu0 %v2864
        %2971 = vmatpush1.msra.mxu0 %v2863
        %2972 = vmatprep.subr.mxu0 %v2866
        %2973 = vmatpush1.msra.mxu0 %v2865
        %2974 = vmatprep.subr.mxu0 %v2868
        %2975 = vmatpush1.msra.mxu0 %v2867
        %2976 = vmatprep.subr.mxu0 %v2870
        %2977 = vmatpush1.msra.mxu0 %v2869
        %2978 = vmatprep.subr.mxu0 %v2872
        %2979 = vmatpush1.msra.mxu0 %v2871
        %2980 = vmatprep.subr.mxu0 %v2874
        %2981 = vmatpush1.msra.mxu0 %v2873
        %2982 = vmatprep.subr.mxu0 %v2876
        %2983 = vmatpush1.msra.mxu0 %v2875
        %2984 = vmatprep.subr.mxu0 %v2878
        %2985 = vmatpush1.msra.mxu0 %v2877
        %2986 = vmatprep.subr.mxu0 %v2880
        %2987 = vmatpush1.msra.mxu0 %v2879
        %2988 = vmatprep.subr.mxu0 %v2882
        %2989 = vmatpush1.msra.mxu0 %v2881
        %2990 = vmatprep.subr.mxu0 %v2884
        %2991 = vmatpush1.msra.mxu0 %v2883
        %2992 = vmatprep.subr.mxu0 %v2886
        %2993 = vmatpush1.msra.mxu0 %v2885
        %2994 = vmatprep.subr.mxu0 %v2888
        %2995 = vmatpush1.msra.mxu0 %v2887
        %2996 = vmatprep.subr.mxu0 %v2890
        %2997 = vmatpush1.msra.mxu0 %v2889
        %2998 = vmatprep.subr.mxu0 %v2892
        %2999 = vmatpush1.msra.mxu0 %v2891
        %3000 = vmatprep.subr.mxu0 %v2894
        %3001 = vmatpush1.msra.mxu0 %v2893
        %3002 = vmatprep.subr.mxu0 %v2896
        %3003 = vmatpush1.msra.mxu0 %v2895
        %3004 = vmatprep.subr.mxu0 %v2898
        %3005 = vmatpush1.msra.mxu0 %v2897
        %3006 = vmatprep.subr.mxu0 %v2900
        %3007 = vmatpush1.msra.mxu0 %v2899
        %3008 = vmatprep.subr.mxu0 %v2902
        %3009 = vmatpush1.msra.mxu0 %v2901
        %3010 = vmatprep.subr.mxu0 %v2904
        %3011 = vmatpush1.msra.mxu0 %v2903
        %3012 = vmatprep.mubr.f32.mxu0 %v2751
        %3013 = vmatmul.mubr.f32.gmra.mrb[0].mxu0 %v2587
        %v3014 = vpop.f32.mrb[0].mxu0
        %v3015 = vadd.f32 %v2941, %v3014
        %v3016 = vpop.f32.mrb[0].mxu0
        %v3017 = vadd.f32 %v2945, %v3016
        %3018 = vmatprep.mubr.f32.mxu0 %v2758
        %3019 = vmatmul.mubr.f32.gmra.mrb[0].mxu0 %v2588
        %v3020 = vpop.f32.mrb[0].mxu0
        %v3021 = vadd.f32 %v2941, %v3020
        %v3022 = vpop.f32.mrb[0].mxu0
        %v3023 = vadd.f32 %v2945, %v3022
        %3024 = vmatprep.mubr.f32.mxu0 %v2765
        %3025 = vmatmul.mubr.f32.gmra.mrb[0].mxu0 %v2589
        %v3026 = vpop.f32.mrb[0].mxu0
        %v3027 = vadd.f32 %v2941, %v3026
        %v3028 = vpop.f32.mrb[0].mxu0
        %v3029 = vadd.f32 %v2945, %v3028
        %3030 = vmatprep.mubr.f32.mxu0 %v2772
        %3031 = vmatmul.mubr.f32.gmra.mrb[0].mxu0 %v2590
        %v3032 = vpop.f32.mrb[0].mxu0
        %v3033 = vadd.f32 %v2941, %v3032
        %v3034 = vpop.f32.mrb[0].mxu0
        %v3035 = vadd.f32 %v2945, %v3034
        %3036 = vmatprep.mubr.f32.mxu0 %v2779
        %3037 = vmatmul.mubr.f32.gmra.mrb[0].mxu0 %v2591
        %v3038 = vpop.f32.mrb[0].mxu0
        %v3039 = vadd.f32 %v2941, %v3038
        %v3040 = vpop.f32.mrb[0].mxu0
        %v3041 = vadd.f32 %v2945, %v3040
        %3042 = vmatprep.mubr.f32.mxu0 %v2786
        %3043 = vmatmul.mubr.f32.gmra.mrb[0].mxu0 %v2592
        %v3044 = vpop.f32.mrb[0].mxu0
        %v3045 = vadd.f32 %v2941, %v3044
        %v3046 = vpop.f32.mrb[0].mxu0
        %v3047 = vadd.f32 %v2945, %v3046
        %3048 = vmatprep.mubr.f32.mxu0 %v2793
        %3049 = vmatmul.mubr.f32.gmra.mrb[0].mxu0 %v2593
        %v3050 = vpop.f32.mrb[0].mxu0
        %v3051 = vadd.f32 %v2941, %v3050
        %v3052 = vpop.f32.mrb[0].mxu0
        %v3053 = vadd.f32 %v2945, %v3052
        %3054 = vmatprep.mubr.f32.mxu0 %v2800
        %3055 = vmatmul.mubr.f32.gmra.mrb[0].mxu0 %v2594
        %v3056 = vpop.f32.mrb[0].mxu0
        %v3057 = vadd.f32 %v2941, %v3056
        %v3058 = vpop.f32.mrb[0].mxu0
        %v3059 = vadd.f32 %v2945, %v3058
        %3060 = vmatprep.mubr.f32.mxu0 %v2807
        %3061 = vmatmul.mubr.f32.gmra.mrb[0].mxu0 %v2595
        %v3062 = vpop.f32.mrb[0].mxu0
        %v3063 = vadd.f32 %v2941, %v3062
        %v3064 = vpop.f32.mrb[0].mxu0
        %v3065 = vadd.f32 %v2945, %v3064
        %3066 = vmatprep.mubr.f32.mxu0 %v2814
        %3067 = vmatmul.mubr.f32.gmra.mrb[0].mxu0 %v2596
        %v3068 = vpop.f32.mrb[0].mxu0
        %v3069 = vadd.f32 %v2941, %v3068
        %v3070 = vpop.f32.mrb[0].mxu0
        %v3071 = vadd.f32 %v2945, %v3070
        %3072 = vmatprep.mubr.f32.mxu0 %v2821
        %3073 = vmatmul.mubr.f32.gmra.mrb[0].mxu0 %v2597
        %v3074 = vpop.f32.mrb[0].mxu0
        %v3075 = vadd.f32 %v2941, %v3074
        %v3076 = vpop.f32.mrb[0].mxu0
        %v3077 = vadd.f32 %v2945, %v3076
        %3078 = vmatprep.mubr.f32.mxu0 %v2828
        %3079 = vmatmul.mubr.f32.gmra.mrb[0].mxu0 %v2598
        %v3080 = vpop.f32.mrb[0].mxu0
        %v3081 = vadd.f32 %v2941, %v3080
        %v3082 = vpop.f32.mrb[0].mxu0
        %v3083 = vadd.f32 %v2945, %v3082
        %3084 = vdwg.mxu0
        %3085 = vmatprep.subr.mxu0 %v2906
        %3086 = vmatpush1.msra.mxu0 %v2905
        %3087 = vmatprep.subr.mxu0 %v2908
        %3088 = vmatpush1.msra.mxu0 %v2907
        %3089 = vmatprep.subr.mxu0 %v2910
        %3090 = vmatpush1.msra.mxu0 %v2909
        %3091 = vmatprep.subr.mxu0 %v2912
        %3092 = vmatpush1.msra.mxu0 %v2911
        %3093 = vmatprep.subr.mxu0 %v2914
        %3094 = vmatpush1.msra.mxu0 %v2913
        %3095 = vmatprep.subr.mxu0 %v2916
        %3096 = vmatpush1.msra.mxu0 %v2915
        %3097 = vmatprep.subr.mxu0 %v2918
        %3098 = vmatpush1.msra.mxu0 %v2917
        %3099 = vmatprep.subr.mxu0 %v2920
        %3100 = vmatpush1.msra.mxu0 %v2919
        %3101 = vmatprep.subr.mxu0 %v2922
        %3102 = vmatpush1.msra.mxu0 %v2921
        %3103 = vmatprep.subr.mxu0 %v2924
        %3104 = vmatpush1.msra.mxu0 %v2923
        %3105 = vmatprep.subr.mxu0 %v2926
        %3106 = vmatpush1.msra.mxu0 %v2925
        %3107 = vmatprep.subr.mxu0 %v2928
        %3108 = vmatpush1.msra.mxu0 %v2927
        %3109 = vmatprep.subr.mxu0 %v2930
        %3110 = vmatpush1.msra.mxu0 %v2929
        %3111 = vmatprep.subr.mxu0 %v2932
        %3112 = vmatpush1.msra.mxu0 %v2931
        %3113 = vmatprep.subr.mxu0 %v2934
        %3114 = vmatpush1.msra.mxu0 %v2933
        %3115 = vmatprep.subr.mxu0 %v2936
        %3116 = vmatpush1.msra.mxu0 %v2935
        %3117 = vmatprep.subr.mxu0 0.0
        %3118 = vmatpush1.msra.mxu0 0.0
        %3119 = vmatprep.subr.mxu0 0.0
        %3120 = vmatpush1.msra.mxu0 0.0
        %3121 = vmatprep.subr.mxu0 0.0
        %3122 = vmatpush1.msra.mxu0 0.0
        %3123 = vmatprep.subr.mxu0 0.0
        %3124 = vmatpush1.msra.mxu0 0.0
        %3125 = vmatprep.subr.mxu0 0.0
        %3126 = vmatpush1.msra.mxu0 0.0
        %3127 = vmatprep.subr.mxu0 0.0
        %3128 = vmatpush1.msra.mxu0 0.0
        %3129 = vmatprep.subr.mxu0 0.0
        %3130 = vmatpush1.msra.mxu0 0.0
        %3131 = vmatprep.subr.mxu0 0.0
        %3132 = vmatpush1.msra.mxu0 0.0
        %3133 = vmatprep.subr.mxu0 0.0
        %3134 = vmatpush1.msra.mxu0 0.0
        %3135 = vmatprep.subr.mxu0 0.0
        %3136 = vmatpush1.msra.mxu0 0.0
        %3137 = vmatprep.subr.mxu0 0.0
        %3138 = vmatpush1.msra.mxu0 0.0
        %3139 = vmatprep.subr.mxu0 0.0
        %3140 = vmatpush1.msra.mxu0 0.0
        %3141 = vmatprep.subr.mxu0 0.0
        %3142 = vmatpush1.msra.mxu0 0.0
        %3143 = vmatprep.subr.mxu0 0.0
        %3144 = vmatpush1.msra.mxu0 0.0
        %3145 = vmatprep.subr.mxu0 0.0
        %3146 = vmatpush1.msra.mxu0 0.0
        %3147 = vmatprep.subr.mxu0 0.0
        %3148 = vmatpush1.msra.mxu0 0.0
        %3149 = vmatprep.mubr.f32.mxu0 0.0
        %3150 = vmatmul.mubr.f32.gmra.mrb[0].mxu0 %v2733
        %v3151 = vpop.f32.mrb[0].mxu0
        %v3152 = vadd.f32 %v3015, %v3151
        %v3153 = vpop.f32.mrb[0].mxu0
        %v3154 = vadd.f32 %v3017, %v3153
        %3155 = vmatprep.mubr.f32.mxu0 0.0
        %3156 = vmatmul.mubr.f32.gmra.mrb[0].mxu0 %v2734
        %v3157 = vpop.f32.mrb[0].mxu0
        %v3158 = vadd.f32 %v3021, %v3157
        %v3159 = vpop.f32.mrb[0].mxu0
        %v3160 = vadd.f32 %v3023, %v3159
        %3161 = vmatprep.mubr.f32.mxu0 0.0
        %3162 = vmatmul.mubr.f32.gmra.mrb[0].mxu0 %v2735
        %v3163 = vpop.f32.mrb[0].mxu0
        %v3164 = vadd.f32 %v3027, %v3163
        %v3165 = vpop.f32.mrb[0].mxu0
        %v3166 = vadd.f32 %v3029, %v3165
        %3167 = vmatprep.mubr.f32.mxu0 0.0
        %3168 = vmatmul.mubr.f32.gmra.mrb[0].mxu0 %v2736
        %v3169 = vpop.f32.mrb[0].mxu0
        %v3170 = vadd.f32 %v3033, %v3169
        %v3171 = vpop.f32.mrb[0].mxu0
        %v3172 = vadd.f32 %v3035, %v3171
        %3173 = vmatprep.mubr.f32.mxu0 0.0
        %3174 = vmatmul.mubr.f32.gmra.mrb[0].mxu0 %v2737
        %v3175 = vpop.f32.mrb[0].mxu0
        %v3176 = vadd.f32 %v3039, %v3175
        %v3177 = vpop.f32.mrb[0].mxu0
        %v3178 = vadd.f32 %v3041, %v3177
        %3179 = vmatprep.mubr.f32.mxu0 0.0
        %3180 = vmatmul.mubr.f32.gmra.mrb[0].mxu0 %v2738
        %v3181 = vpop.f32.mrb[0].mxu0
        %v3182 = vadd.f32 %v3045, %v3181
        %v3183 = vpop.f32.mrb[0].mxu0
        %v3184 = vadd.f32 %v3047, %v3183
        %3185 = vmatprep.mubr.f32.mxu0 0.0
        %3186 = vmatmul.mubr.f32.gmra.mrb[0].mxu0 %v2739
        %v3187 = vpop.f32.mrb[0].mxu0
        %v3188 = vadd.f32 %v3051, %v3187
        %v3189 = vpop.f32.mrb[0].mxu0
        %v3190 = vadd.f32 %v3053, %v3189
        %3191 = vmatprep.mubr.f32.mxu0 0.0
        %3192 = vmatmul.mubr.f32.gmra.mrb[0].mxu0 %v2740
        %v3193 = vpop.f32.mrb[0].mxu0
        %v3194 = vadd.f32 %v3057, %v3193
        %v3195 = vpop.f32.mrb[0].mxu0
        %v3196 = vadd.f32 %v3059, %v3195
        %3197 = vmatprep.mubr.f32.mxu0 0.0
        %3198 = vmatmul.mubr.f32.gmra.mrb[0].mxu0 %v2741
        %v3199 = vpop.f32.mrb[0].mxu0
        %v3200 = vadd.f32 %v3063, %v3199
        %v3201 = vpop.f32.mrb[0].mxu0
        %v3202 = vadd.f32 %v3065, %v3201
        %3203 = vmatprep.mubr.f32.mxu0 0.0
        %3204 = vmatmul.mubr.f32.gmra.mrb[0].mxu0 %v2742
        %v3205 = vpop.f32.mrb[0].mxu0
        %v3206 = vadd.f32 %v3069, %v3205
        %v3207 = vpop.f32.mrb[0].mxu0
        %v3208 = vadd.f32 %v3071, %v3207
        %3209 = vmatprep.mubr.f32.mxu0 0.0
        %3210 = vmatmul.mubr.f32.gmra.mrb[0].mxu0 %v2743
        %v3211 = vpop.f32.mrb[0].mxu0
        %v3212 = vadd.f32 %v3075, %v3211
        %v3213 = vpop.f32.mrb[0].mxu0
        %v3214 = vadd.f32 %v3077, %v3213
        %3215 = vmatprep.mubr.f32.mxu0 0.0
        %3216 = vmatmul.mubr.f32.gmra.mrb[0].mxu0 %v2744
        %v3217 = vpop.f32.mrb[0].mxu0
        %v3218 = vadd.f32 %v3081, %v3217
        %v3219 = vpop.f32.mrb[0].mxu0
        %v3220 = vadd.f32 %v3083, %v3219
        %3221 = vdwg.mxu0
        %v3222 = vmax.f32 %v3152, 0.0
        %v3223 = vmax.f32 %v3154, 0.0
        %v3224 = vmax.f32 %v3158, 0.0
        %v3225 = vmax.f32 %v3160, 0.0
        %v3226 = vmax.f32 %v3164, 0.0
        %v3227 = vmax.f32 %v3166, 0.0
        %v3228 = vmax.f32 %v3170, 0.0
        %v3229 = vmax.f32 %v3172, 0.0
        %v3230 = vmax.f32 %v3176, 0.0
        %v3231 = vmax.f32 %v3178, 0.0
        %v3232 = vmax.f32 %v3182, 0.0
        %v3233 = vmax.f32 %v3184, 0.0
        %v3234 = vmax.f32 %v3188, 0.0
        %v3235 = vmax.f32 %v3190, 0.0
        %v3236 = vmax.f32 %v3194, 0.0
        %v3237 = vmax.f32 %v3196, 0.0
        %v3238 = vmax.f32 %v3200, 0.0
        %v3239 = vmax.f32 %v3202, 0.0
        %v3240 = vmax.f32 %v3206, 0.0
        %v3241 = vmax.f32 %v3208, 0.0
        %v3242 = vmax.f32 %v3212, 0.0
        %v3243 = vmax.f32 %v3214, 0.0
        %v3244 = vmax.f32 %v3218, 0.0
        %v3245 = vmax.f32 %v3220, 0.0
        %v3270 = vcombine.low %v3222, %v3223
        %v3271 = vcombine.high %v3222, %v3223
        %v3273 = vunpack.c.l.s4 1983009808
        %v3274 = vunpack.c.0.s8 %v3273
        %v3275 = vlaneseq
        %v3276 = vshrl.u32 %v3275, 7
        %v3277 = vsub.s32 %v3274, %v3276
        %v3278 = vrot.slane %v3270, %v3277
        %v3280 = vunpack.c.l.s4 1983009808
        %v3281 = vunpack.c.0.s8 %v3280
        %v3282 = vlaneseq
        %v3283 = vshrl.u32 %v3282, 7
        %v3284 = vsub.s32 %v3281, %v3283
        %v3285 = vrot.slane %v3271, %v3284
        %v3286 = vcombine.high %v3278, %v3278
        %v3287 = vcombine.high %v3285, %v3285
        %v3288 = vcombine.low %v3224, %v3225
        %v3289 = vcombine.high %v3224, %v3225
        %v3291 = vunpack.c.l.s4 1983009808
        %v3292 = vunpack.c.0.s8 %v3291
        %v3293 = vlaneseq
        %v3294 = vshrl.u32 %v3293, 7
        %v3295 = vsub.s32 %v3292, %v3294
        %v3296 = vrot.slane %v3288, %v3295
        %v3298 = vunpack.c.l.s4 1983009808
        %v3299 = vunpack.c.0.s8 %v3298
        %v3300 = vlaneseq
        %v3301 = vshrl.u32 %v3300, 7
        %v3302 = vsub.s32 %v3299, %v3301
        %v3303 = vrot.slane %v3289, %v3302
        %v3304 = vcombine.high %v3296, %v3296
        %v3305 = vcombine.high %v3303, %v3303
        %v3306 = vcombine.low %v3226, %v3227
        %v3307 = vcombine.high %v3226, %v3227
        %v3309 = vunpack.c.l.s4 1983009808
        %v3310 = vunpack.c.0.s8 %v3309
        %v3311 = vlaneseq
        %v3312 = vshrl.u32 %v3311, 7
        %v3313 = vsub.s32 %v3310, %v3312
        %v3314 = vrot.slane %v3306, %v3313
        %v3316 = vunpack.c.l.s4 1983009808
        %v3317 = vunpack.c.0.s8 %v3316
        %v3318 = vlaneseq
        %v3319 = vshrl.u32 %v3318, 7
        %v3320 = vsub.s32 %v3317, %v3319
        %v3321 = vrot.slane %v3307, %v3320
        %v3322 = vcombine.high %v3314, %v3314
        %v3323 = vcombine.high %v3321, %v3321
        %v3324 = vcombine.low %v3228, %v3229
        %v3325 = vcombine.high %v3228, %v3229
        %v3327 = vunpack.c.l.s4 1983009808
        %v3328 = vunpack.c.0.s8 %v3327
        %v3329 = vlaneseq
        %v3330 = vshrl.u32 %v3329, 7
        %v3331 = vsub.s32 %v3328, %v3330
        %v3332 = vrot.slane %v3324, %v3331
        %v3334 = vunpack.c.l.s4 1983009808
        %v3335 = vunpack.c.0.s8 %v3334
        %v3336 = vlaneseq
        %v3337 = vshrl.u32 %v3336, 7
        %v3338 = vsub.s32 %v3335, %v3337
        %v3339 = vrot.slane %v3325, %v3338
        %v3340 = vcombine.high %v3332, %v3332
        %v3341 = vcombine.high %v3339, %v3339
        %v3342 = vcombine.low %v3230, %v3231
        %v3343 = vcombine.high %v3230, %v3231
        %v3345 = vunpack.c.l.s4 1983009808
        %v3346 = vunpack.c.0.s8 %v3345
        %v3347 = vlaneseq
        %v3348 = vshrl.u32 %v3347, 7
        %v3349 = vsub.s32 %v3346, %v3348
        %v3350 = vrot.slane %v3342, %v3349
        %v3352 = vunpack.c.l.s4 1983009808
        %v3353 = vunpack.c.0.s8 %v3352
        %v3354 = vlaneseq
        %v3355 = vshrl.u32 %v3354, 7
        %v3356 = vsub.s32 %v3353, %v3355
        %v3357 = vrot.slane %v3343, %v3356
        %v3358 = vcombine.high %v3350, %v3350
        %v3359 = vcombine.high %v3357, %v3357
        %v3360 = vcombine.low %v3232, %v3233
        %v3361 = vcombine.high %v3232, %v3233
        %v3363 = vunpack.c.l.s4 1983009808
        %v3364 = vunpack.c.0.s8 %v3363
        %v3365 = vlaneseq
        %v3366 = vshrl.u32 %v3365, 7
        %v3367 = vsub.s32 %v3364, %v3366
        %v3368 = vrot.slane %v3360, %v3367
        %v3370 = vunpack.c.l.s4 1983009808
        %v3371 = vunpack.c.0.s8 %v3370
        %v3372 = vlaneseq
        %v3373 = vshrl.u32 %v3372, 7
        %v3374 = vsub.s32 %v3371, %v3373
        %v3375 = vrot.slane %v3361, %v3374
        %v3376 = vcombine.high %v3368, %v3368
        %v3377 = vcombine.high %v3375, %v3375
        %v3378 = vcombine.low %v3234, %v3235
        %v3379 = vcombine.high %v3234, %v3235
        %v3381 = vunpack.c.l.s4 1983009808
        %v3382 = vunpack.c.0.s8 %v3381
        %v3383 = vlaneseq
        %v3384 = vshrl.u32 %v3383, 7
        %v3385 = vsub.s32 %v3382, %v3384
        %v3386 = vrot.slane %v3378, %v3385
        %v3388 = vunpack.c.l.s4 1983009808
        %v3389 = vunpack.c.0.s8 %v3388
        %v3390 = vlaneseq
        %v3391 = vshrl.u32 %v3390, 7
        %v3392 = vsub.s32 %v3389, %v3391
        %v3393 = vrot.slane %v3379, %v3392
        %v3394 = vcombine.high %v3386, %v3386
        %v3395 = vcombine.high %v3393, %v3393
        %v3396 = vcombine.low %v3236, %v3237
        %v3397 = vcombine.high %v3236, %v3237
        %v3399 = vunpack.c.l.s4 1983009808
        %v3400 = vunpack.c.0.s8 %v3399
        %v3401 = vlaneseq
        %v3402 = vshrl.u32 %v3401, 7
        %v3403 = vsub.s32 %v3400, %v3402
        %v3404 = vrot.slane %v3396, %v3403
        %v3406 = vunpack.c.l.s4 1983009808
        %v3407 = vunpack.c.0.s8 %v3406
        %v3408 = vlaneseq
        %v3409 = vshrl.u32 %v3408, 7
        %v3410 = vsub.s32 %v3407, %v3409
        %v3411 = vrot.slane %v3397, %v3410
        %v3412 = vcombine.high %v3404, %v3404
        %v3413 = vcombine.high %v3411, %v3411
        %v3414 = vcombine.low %v3238, %v3239
        %v3415 = vcombine.high %v3238, %v3239
        %v3417 = vunpack.c.l.s4 1983009808
        %v3418 = vunpack.c.0.s8 %v3417
        %v3419 = vlaneseq
        %v3420 = vshrl.u32 %v3419, 7
        %v3421 = vsub.s32 %v3418, %v3420
        %v3422 = vrot.slane %v3414, %v3421
        %v3424 = vunpack.c.l.s4 1983009808
        %v3425 = vunpack.c.0.s8 %v3424
        %v3426 = vlaneseq
        %v3427 = vshrl.u32 %v3426, 7
        %v3428 = vsub.s32 %v3425, %v3427
        %v3429 = vrot.slane %v3415, %v3428
        %v3430 = vcombine.high %v3422, %v3422
        %v3431 = vcombine.high %v3429, %v3429
        %v3432 = vcombine.low %v3240, %v3241
        %v3433 = vcombine.high %v3240, %v3241
        %v3435 = vunpack.c.l.s4 1983009808
        %v3436 = vunpack.c.0.s8 %v3435
        %v3437 = vlaneseq
        %v3438 = vshrl.u32 %v3437, 7
        %v3439 = vsub.s32 %v3436, %v3438
        %v3440 = vrot.slane %v3432, %v3439
        %v3442 = vunpack.c.l.s4 1983009808
        %v3443 = vunpack.c.0.s8 %v3442
        %v3444 = vlaneseq
        %v3445 = vshrl.u32 %v3444, 7
        %v3446 = vsub.s32 %v3443, %v3445
        %v3447 = vrot.slane %v3433, %v3446
        %v3448 = vcombine.high %v3440, %v3440
        %v3449 = vcombine.high %v3447, %v3447
        %v3450 = vcombine.low %v3242, %v3243
        %v3451 = vcombine.high %v3242, %v3243
        %v3453 = vunpack.c.l.s4 1983009808
        %v3454 = vunpack.c.0.s8 %v3453
        %v3455 = vlaneseq
        %v3456 = vshrl.u32 %v3455, 7
        %v3457 = vsub.s32 %v3454, %v3456
        %v3458 = vrot.slane %v3450, %v3457
        %v3460 = vunpack.c.l.s4 1983009808
        %v3461 = vunpack.c.0.s8 %v3460
        %v3462 = vlaneseq
        %v3463 = vshrl.u32 %v3462, 7
        %v3464 = vsub.s32 %v3461, %v3463
        %v3465 = vrot.slane %v3451, %v3464
        %v3466 = vcombine.high %v3458, %v3458
        %v3467 = vcombine.high %v3465, %v3465
        %v3468 = vcombine.low %v3244, %v3245
        %v3469 = vcombine.high %v3244, %v3245
        %v3471 = vunpack.c.l.s4 1983009808
        %v3472 = vunpack.c.0.s8 %v3471
        %v3473 = vlaneseq
        %v3474 = vshrl.u32 %v3473, 7
        %v3475 = vsub.s32 %v3472, %v3474
        %v3476 = vrot.slane %v3468, %v3475
        %v3478 = vunpack.c.l.s4 1983009808
        %v3479 = vunpack.c.0.s8 %v3478
        %v3480 = vlaneseq
        %v3481 = vshrl.u32 %v3480, 7
        %v3482 = vsub.s32 %v3479, %v3481
        %v3483 = vrot.slane %v3469, %v3482
        %v3484 = vcombine.high %v3476, %v3476
        %v3485 = vcombine.high %v3483, %v3483
        %v3487 = vunpack.c.l.s4 1983009808
        %v3488 = vunpack.c.0.s8 %v3487
        %v3489 = vlaneseq
        %v3490 = vshrl.u32 %v3489, 7
        %v3491 = vsub.s32 %v3488, %v3490
        %v3492 = vrot.slane %v3278, %v3491
        %v3493 = vcombine.high %v3492, %v3492
        %v3495 = vunpack.c.l.s4 1983009808
        %v3496 = vunpack.c.0.s8 %v3495
        %v3497 = vlaneseq
        %v3498 = vshrl.u32 %v3497, 7
        %v3499 = vsub.s32 %v3496, %v3498
        %v3500 = vrot.slane %v3286, %v3499
        %v3501 = vcombine.high %v3500, %v3500
        %v3503 = vunpack.c.l.s4 1983009808
        %v3504 = vunpack.c.0.s8 %v3503
        %v3505 = vlaneseq
        %v3506 = vshrl.u32 %v3505, 7
        %v3507 = vsub.s32 %v3504, %v3506
        %v3508 = vrot.slane %v3285, %v3507
        %v3509 = vcombine.high %v3508, %v3508
        %v3511 = vunpack.c.l.s4 1983009808
        %v3512 = vunpack.c.0.s8 %v3511
        %v3513 = vlaneseq
        %v3514 = vshrl.u32 %v3513, 7
        %v3515 = vsub.s32 %v3512, %v3514
        %v3516 = vrot.slane %v3287, %v3515
        %v3517 = vcombine.high %v3516, %v3516
        %v3519 = vunpack.c.l.s4 1983009808
        %v3520 = vunpack.c.0.s8 %v3519
        %v3521 = vlaneseq
        %v3522 = vshrl.u32 %v3521, 7
        %v3523 = vsub.s32 %v3520, %v3522
        %v3524 = vrot.slane %v3296, %v3523
        %v3525 = vcombine.high %v3524, %v3524
        %v3527 = vunpack.c.l.s4 1983009808
        %v3528 = vunpack.c.0.s8 %v3527
        %v3529 = vlaneseq
        %v3530 = vshrl.u32 %v3529, 7
        %v3531 = vsub.s32 %v3528, %v3530
        %v3532 = vrot.slane %v3304, %v3531
        %v3533 = vcombine.high %v3532, %v3532
        %v3535 = vunpack.c.l.s4 1983009808
        %v3536 = vunpack.c.0.s8 %v3535
        %v3537 = vlaneseq
        %v3538 = vshrl.u32 %v3537, 7
        %v3539 = vsub.s32 %v3536, %v3538
        %v3540 = vrot.slane %v3303, %v3539
        %v3541 = vcombine.high %v3540, %v3540
        %v3543 = vunpack.c.l.s4 1983009808
        %v3544 = vunpack.c.0.s8 %v3543
        %v3545 = vlaneseq
        %v3546 = vshrl.u32 %v3545, 7
        %v3547 = vsub.s32 %v3544, %v3546
        %v3548 = vrot.slane %v3305, %v3547
        %v3549 = vcombine.high %v3548, %v3548
        %v3551 = vunpack.c.l.s4 1983009808
        %v3552 = vunpack.c.0.s8 %v3551
        %v3553 = vlaneseq
        %v3554 = vshrl.u32 %v3553, 7
        %v3555 = vsub.s32 %v3552, %v3554
        %v3556 = vrot.slane %v3314, %v3555
        %v3557 = vcombine.high %v3556, %v3556
        %v3559 = vunpack.c.l.s4 1983009808
        %v3560 = vunpack.c.0.s8 %v3559
        %v3561 = vlaneseq
        %v3562 = vshrl.u32 %v3561, 7
        %v3563 = vsub.s32 %v3560, %v3562
        %v3564 = vrot.slane %v3322, %v3563
        %v3565 = vcombine.high %v3564, %v3564
        %v3567 = vunpack.c.l.s4 1983009808
        %v3568 = vunpack.c.0.s8 %v3567
        %v3569 = vlaneseq
        %v3570 = vshrl.u32 %v3569, 7
        %v3571 = vsub.s32 %v3568, %v3570
        %v3572 = vrot.slane %v3321, %v3571
        %v3573 = vcombine.high %v3572, %v3572
        %v3575 = vunpack.c.l.s4 1983009808
        %v3576 = vunpack.c.0.s8 %v3575
        %v3577 = vlaneseq
        %v3578 = vshrl.u32 %v3577, 7
        %v3579 = vsub.s32 %v3576, %v3578
        %v3580 = vrot.slane %v3323, %v3579
        %v3581 = vcombine.high %v3580, %v3580
        %v3583 = vunpack.c.l.s4 1983009808
        %v3584 = vunpack.c.0.s8 %v3583
        %v3585 = vlaneseq
        %v3586 = vshrl.u32 %v3585, 7
        %v3587 = vsub.s32 %v3584, %v3586
        %v3588 = vrot.slane %v3332, %v3587
        %v3589 = vcombine.high %v3588, %v3588
        %v3591 = vunpack.c.l.s4 1983009808
        %v3592 = vunpack.c.0.s8 %v3591
        %v3593 = vlaneseq
        %v3594 = vshrl.u32 %v3593, 7
        %v3595 = vsub.s32 %v3592, %v3594
        %v3596 = vrot.slane %v3340, %v3595
        %v3597 = vcombine.high %v3596, %v3596
        %v3599 = vunpack.c.l.s4 1983009808
        %v3600 = vunpack.c.0.s8 %v3599
        %v3601 = vlaneseq
        %v3602 = vshrl.u32 %v3601, 7
        %v3603 = vsub.s32 %v3600, %v3602
        %v3604 = vrot.slane %v3339, %v3603
        %v3605 = vcombine.high %v3604, %v3604
        %v3607 = vunpack.c.l.s4 1983009808
        %v3608 = vunpack.c.0.s8 %v3607
        %v3609 = vlaneseq
        %v3610 = vshrl.u32 %v3609, 7
        %v3611 = vsub.s32 %v3608, %v3610
        %v3612 = vrot.slane %v3341, %v3611
        %v3613 = vcombine.high %v3612, %v3612
        %v3615 = vunpack.c.l.s4 1983009808
        %v3616 = vunpack.c.0.s8 %v3615
        %v3617 = vlaneseq
        %v3618 = vshrl.u32 %v3617, 7
        %v3619 = vsub.s32 %v3616, %v3618
        %v3620 = vrot.slane %v3350, %v3619
        %v3621 = vcombine.high %v3620, %v3620
        %v3623 = vunpack.c.l.s4 1983009808
        %v3624 = vunpack.c.0.s8 %v3623
        %v3625 = vlaneseq
        %v3626 = vshrl.u32 %v3625, 7
        %v3627 = vsub.s32 %v3624, %v3626
        %v3628 = vrot.slane %v3358, %v3627
        %v3629 = vcombine.high %v3628, %v3628
        %v3631 = vunpack.c.l.s4 1983009808
        %v3632 = vunpack.c.0.s8 %v3631
        %v3633 = vlaneseq
        %v3634 = vshrl.u32 %v3633, 7
        %v3635 = vsub.s32 %v3632, %v3634
        %v3636 = vrot.slane %v3357, %v3635
        %v3637 = vcombine.high %v3636, %v3636
        %v3639 = vunpack.c.l.s4 1983009808
        %v3640 = vunpack.c.0.s8 %v3639
        %v3641 = vlaneseq
        %v3642 = vshrl.u32 %v3641, 7
        %v3643 = vsub.s32 %v3640, %v3642
        %v3644 = vrot.slane %v3359, %v3643
        %v3645 = vcombine.high %v3644, %v3644
        %v3647 = vunpack.c.l.s4 1983009808
        %v3648 = vunpack.c.0.s8 %v3647
        %v3649 = vlaneseq
        %v3650 = vshrl.u32 %v3649, 7
        %v3651 = vsub.s32 %v3648, %v3650
        %v3652 = vrot.slane %v3368, %v3651
        %v3653 = vcombine.high %v3652, %v3652
        %v3655 = vunpack.c.l.s4 1983009808
        %v3656 = vunpack.c.0.s8 %v3655
        %v3657 = vlaneseq
        %v3658 = vshrl.u32 %v3657, 7
        %v3659 = vsub.s32 %v3656, %v3658
        %v3660 = vrot.slane %v3376, %v3659
        %v3661 = vcombine.high %v3660, %v3660
        %v3663 = vunpack.c.l.s4 1983009808
        %v3664 = vunpack.c.0.s8 %v3663
        %v3665 = vlaneseq
        %v3666 = vshrl.u32 %v3665, 7
        %v3667 = vsub.s32 %v3664, %v3666
        %v3668 = vrot.slane %v3375, %v3667
        %v3669 = vcombine.high %v3668, %v3668
        %v3671 = vunpack.c.l.s4 1983009808
        %v3672 = vunpack.c.0.s8 %v3671
        %v3673 = vlaneseq
        %v3674 = vshrl.u32 %v3673, 7
        %v3675 = vsub.s32 %v3672, %v3674
        %v3676 = vrot.slane %v3377, %v3675
        %v3677 = vcombine.high %v3676, %v3676
        %v3679 = vunpack.c.l.s4 1983009808
        %v3680 = vunpack.c.0.s8 %v3679
        %v3681 = vlaneseq
        %v3682 = vshrl.u32 %v3681, 7
        %v3683 = vsub.s32 %v3680, %v3682
        %v3684 = vrot.slane %v3386, %v3683
        %v3685 = vcombine.high %v3684, %v3684
        %v3687 = vunpack.c.l.s4 1983009808
        %v3688 = vunpack.c.0.s8 %v3687
        %v3689 = vlaneseq
        %v3690 = vshrl.u32 %v3689, 7
        %v3691 = vsub.s32 %v3688, %v3690
        %v3692 = vrot.slane %v3394, %v3691
        %v3693 = vcombine.high %v3692, %v3692
        %v3695 = vunpack.c.l.s4 1983009808
        %v3696 = vunpack.c.0.s8 %v3695
        %v3697 = vlaneseq
        %v3698 = vshrl.u32 %v3697, 7
        %v3699 = vsub.s32 %v3696, %v3698
        %v3700 = vrot.slane %v3393, %v3699
        %v3701 = vcombine.high %v3700, %v3700
        %v3703 = vunpack.c.l.s4 1983009808
        %v3704 = vunpack.c.0.s8 %v3703
        %v3705 = vlaneseq
        %v3706 = vshrl.u32 %v3705, 7
        %v3707 = vsub.s32 %v3704, %v3706
        %v3708 = vrot.slane %v3395, %v3707
        %v3709 = vcombine.high %v3708, %v3708
        %v3711 = vunpack.c.l.s4 1983009808
        %v3712 = vunpack.c.0.s8 %v3711
        %v3713 = vlaneseq
        %v3714 = vshrl.u32 %v3713, 7
        %v3715 = vsub.s32 %v3712, %v3714
        %v3716 = vrot.slane %v3404, %v3715
        %v3717 = vcombine.high %v3716, %v3716
        %v3719 = vunpack.c.l.s4 1983009808
        %v3720 = vunpack.c.0.s8 %v3719
        %v3721 = vlaneseq
        %v3722 = vshrl.u32 %v3721, 7
        %v3723 = vsub.s32 %v3720, %v3722
        %v3724 = vrot.slane %v3412, %v3723
        %v3725 = vcombine.high %v3724, %v3724
        %v3727 = vunpack.c.l.s4 1983009808
        %v3728 = vunpack.c.0.s8 %v3727
        %v3729 = vlaneseq
        %v3730 = vshrl.u32 %v3729, 7
        %v3731 = vsub.s32 %v3728, %v3730
        %v3732 = vrot.slane %v3411, %v3731
        %v3733 = vcombine.high %v3732, %v3732
        %v3735 = vunpack.c.l.s4 1983009808
        %v3736 = vunpack.c.0.s8 %v3735
        %v3737 = vlaneseq
        %v3738 = vshrl.u32 %v3737, 7
        %v3739 = vsub.s32 %v3736, %v3738
        %v3740 = vrot.slane %v3413, %v3739
        %v3741 = vcombine.high %v3740, %v3740
        %v3743 = vunpack.c.l.s4 1983009808
        %v3744 = vunpack.c.0.s8 %v3743
        %v3745 = vlaneseq
        %v3746 = vshrl.u32 %v3745, 7
        %v3747 = vsub.s32 %v3744, %v3746
        %v3748 = vrot.slane %v3422, %v3747
        %v3749 = vcombine.high %v3748, %v3748
        %v3751 = vunpack.c.l.s4 1983009808
        %v3752 = vunpack.c.0.s8 %v3751
        %v3753 = vlaneseq
        %v3754 = vshrl.u32 %v3753, 7
        %v3755 = vsub.s32 %v3752, %v3754
        %v3756 = vrot.slane %v3430, %v3755
        %v3757 = vcombine.high %v3756, %v3756
        %v3759 = vunpack.c.l.s4 1983009808
        %v3760 = vunpack.c.0.s8 %v3759
        %v3761 = vlaneseq
        %v3762 = vshrl.u32 %v3761, 7
        %v3763 = vsub.s32 %v3760, %v3762
        %v3764 = vrot.slane %v3429, %v3763
        %v3765 = vcombine.high %v3764, %v3764
        %v3767 = vunpack.c.l.s4 1983009808
        %v3768 = vunpack.c.0.s8 %v3767
        %v3769 = vlaneseq
        %v3770 = vshrl.u32 %v3769, 7
        %v3771 = vsub.s32 %v3768, %v3770
        %v3772 = vrot.slane %v3431, %v3771
        %v3773 = vcombine.high %v3772, %v3772
        %v3775 = vunpack.c.l.s4 1983009808
        %v3776 = vunpack.c.0.s8 %v3775
        %v3777 = vlaneseq
        %v3778 = vshrl.u32 %v3777, 7
        %v3779 = vsub.s32 %v3776, %v3778
        %v3780 = vrot.slane %v3440, %v3779
        %v3781 = vcombine.high %v3780, %v3780
        %v3783 = vunpack.c.l.s4 1983009808
        %v3784 = vunpack.c.0.s8 %v3783
        %v3785 = vlaneseq
        %v3786 = vshrl.u32 %v3785, 7
        %v3787 = vsub.s32 %v3784, %v3786
        %v3788 = vrot.slane %v3448, %v3787
        %v3789 = vcombine.high %v3788, %v3788
        %v3791 = vunpack.c.l.s4 1983009808
        %v3792 = vunpack.c.0.s8 %v3791
        %v3793 = vlaneseq
        %v3794 = vshrl.u32 %v3793, 7
        %v3795 = vsub.s32 %v3792, %v3794
        %v3796 = vrot.slane %v3447, %v3795
        %v3797 = vcombine.high %v3796, %v3796
        %v3799 = vunpack.c.l.s4 1983009808
        %v3800 = vunpack.c.0.s8 %v3799
        %v3801 = vlaneseq
        %v3802 = vshrl.u32 %v3801, 7
        %v3803 = vsub.s32 %v3800, %v3802
        %v3804 = vrot.slane %v3449, %v3803
        %v3805 = vcombine.high %v3804, %v3804
        %v3807 = vunpack.c.l.s4 1983009808
        %v3808 = vunpack.c.0.s8 %v3807
        %v3809 = vlaneseq
        %v3810 = vshrl.u32 %v3809, 7
        %v3811 = vsub.s32 %v3808, %v3810
        %v3812 = vrot.slane %v3458, %v3811
        %v3813 = vcombine.high %v3812, %v3812
        %v3815 = vunpack.c.l.s4 1983009808
        %v3816 = vunpack.c.0.s8 %v3815
        %v3817 = vlaneseq
        %v3818 = vshrl.u32 %v3817, 7
        %v3819 = vsub.s32 %v3816, %v3818
        %v3820 = vrot.slane %v3466, %v3819
        %v3821 = vcombine.high %v3820, %v3820
        %v3823 = vunpack.c.l.s4 1983009808
        %v3824 = vunpack.c.0.s8 %v3823
        %v3825 = vlaneseq
        %v3826 = vshrl.u32 %v3825, 7
        %v3827 = vsub.s32 %v3824, %v3826
        %v3828 = vrot.slane %v3465, %v3827
        %v3829 = vcombine.high %v3828, %v3828
        %v3831 = vunpack.c.l.s4 1983009808
        %v3832 = vunpack.c.0.s8 %v3831
        %v3833 = vlaneseq
        %v3834 = vshrl.u32 %v3833, 7
        %v3835 = vsub.s32 %v3832, %v3834
        %v3836 = vrot.slane %v3467, %v3835
        %v3837 = vcombine.high %v3836, %v3836
        %v3839 = vunpack.c.l.s4 1983009808
        %v3840 = vunpack.c.0.s8 %v3839
        %v3841 = vlaneseq
        %v3842 = vshrl.u32 %v3841, 7
        %v3843 = vsub.s32 %v3840, %v3842
        %v3844 = vrot.slane %v3476, %v3843
        %v3845 = vcombine.high %v3844, %v3844
        %v3847 = vunpack.c.l.s4 1983009808
        %v3848 = vunpack.c.0.s8 %v3847
        %v3849 = vlaneseq
        %v3850 = vshrl.u32 %v3849, 7
        %v3851 = vsub.s32 %v3848, %v3850
        %v3852 = vrot.slane %v3484, %v3851
        %v3853 = vcombine.high %v3852, %v3852
        %v3855 = vunpack.c.l.s4 1983009808
        %v3856 = vunpack.c.0.s8 %v3855
        %v3857 = vlaneseq
        %v3858 = vshrl.u32 %v3857, 7
        %v3859 = vsub.s32 %v3856, %v3858
        %v3860 = vrot.slane %v3483, %v3859
        %v3861 = vcombine.high %v3860, %v3860
        %v3863 = vunpack.c.l.s4 1983009808
        %v3864 = vunpack.c.0.s8 %v3863
        %v3865 = vlaneseq
        %v3866 = vshrl.u32 %v3865, 7
        %v3867 = vsub.s32 %v3864, %v3866
        %v3868 = vrot.slane %v3485, %v3867
        %v3869 = vcombine.high %v3868, %v3868
        %v3966 = vsel %vm733, %v3492, -inf
        %v3967 = vrot.slane %v3966, 4
        %v3968 = vmax.f32 %v3966, %v3967
        %v3969 = vrot.slane %v3968, 2
        %v3970 = vmax.f32 %v3968, %v3969
        %v3971 = vrot.slane %v3970, 1
        %v3972 = vmax.f32 %v3970, %v3971
        %v3973 = vsel %vm733, %v3493, -inf
        %v3974 = vrot.slane %v3973, 4
        %v3975 = vmax.f32 %v3973, %v3974
        %v3976 = vrot.slane %v3975, 2
        %v3977 = vmax.f32 %v3975, %v3976
        %v3978 = vrot.slane %v3977, 1
        %v3979 = vmax.f32 %v3977, %v3978
        %v3980 = vsel %vm733, %v3500, -inf
        %v3981 = vrot.slane %v3980, 4
        %v3982 = vmax.f32 %v3980, %v3981
        %v3983 = vrot.slane %v3982, 2
        %v3984 = vmax.f32 %v3982, %v3983
        %v3985 = vrot.slane %v3984, 1
        %v3986 = vmax.f32 %v3984, %v3985
        %v3987 = vsel %vm733, %v3501, -inf
        %v3988 = vrot.slane %v3987, 4
        %v3989 = vmax.f32 %v3987, %v3988
        %v3990 = vrot.slane %v3989, 2
        %v3991 = vmax.f32 %v3989, %v3990
        %v3992 = vrot.slane %v3991, 1
        %v3993 = vmax.f32 %v3991, %v3992
        %v3994 = vsel %vm733, %v3508, -inf
        %v3995 = vrot.slane %v3994, 4
        %v3996 = vmax.f32 %v3994, %v3995
        %v3997 = vrot.slane %v3996, 2
        %v3998 = vmax.f32 %v3996, %v3997
        %v3999 = vrot.slane %v3998, 1
        %v4000 = vmax.f32 %v3998, %v3999
        %v4001 = vsel %vm733, %v3509, -inf
        %v4002 = vrot.slane %v4001, 4
        %v4003 = vmax.f32 %v4001, %v4002
        %v4004 = vrot.slane %v4003, 2
        %v4005 = vmax.f32 %v4003, %v4004
        %v4006 = vrot.slane %v4005, 1
        %v4007 = vmax.f32 %v4005, %v4006
        %v4008 = vsel %vm733, %v3516, -inf
        %v4009 = vrot.slane %v4008, 4
        %v4010 = vmax.f32 %v4008, %v4009
        %v4011 = vrot.slane %v4010, 2
        %v4012 = vmax.f32 %v4010, %v4011
        %v4013 = vrot.slane %v4012, 1
        %v4014 = vmax.f32 %v4012, %v4013
        %v4015 = vsel %vm733, %v3517, -inf
        %v4016 = vrot.slane %v4015, 4
        %v4017 = vmax.f32 %v4015, %v4016
        %v4018 = vrot.slane %v4017, 2
        %v4019 = vmax.f32 %v4017, %v4018
        %v4020 = vrot.slane %v4019, 1
        %v4021 = vmax.f32 %v4019, %v4020
        %v4022 = vsel %vm733, %v3524, -inf
        %v4023 = vrot.slane %v4022, 4
        %v4024 = vmax.f32 %v4022, %v4023
        %v4025 = vrot.slane %v4024, 2
        %v4026 = vmax.f32 %v4024, %v4025
        %v4027 = vrot.slane %v4026, 1
        %v4028 = vmax.f32 %v4026, %v4027
        %v4029 = vsel %vm733, %v3525, -inf
        %v4030 = vrot.slane %v4029, 4
        %v4031 = vmax.f32 %v4029, %v4030
        %v4032 = vrot.slane %v4031, 2
        %v4033 = vmax.f32 %v4031, %v4032
        %v4034 = vrot.slane %v4033, 1
        %v4035 = vmax.f32 %v4033, %v4034
        %v4036 = vsel %vm733, %v3532, -inf
        %v4037 = vrot.slane %v4036, 4
        %v4038 = vmax.f32 %v4036, %v4037
        %v4039 = vrot.slane %v4038, 2
        %v4040 = vmax.f32 %v4038, %v4039
        %v4041 = vrot.slane %v4040, 1
        %v4042 = vmax.f32 %v4040, %v4041
        %v4043 = vsel %vm733, %v3533, -inf
        %v4044 = vrot.slane %v4043, 4
        %v4045 = vmax.f32 %v4043, %v4044
        %v4046 = vrot.slane %v4045, 2
        %v4047 = vmax.f32 %v4045, %v4046
        %v4048 = vrot.slane %v4047, 1
        %v4049 = vmax.f32 %v4047, %v4048
        %v4050 = vsel %vm733, %v3540, -inf
        %v4051 = vrot.slane %v4050, 4
        %v4052 = vmax.f32 %v4050, %v4051
        %v4053 = vrot.slane %v4052, 2
        %v4054 = vmax.f32 %v4052, %v4053
        %v4055 = vrot.slane %v4054, 1
        %v4056 = vmax.f32 %v4054, %v4055
        %v4057 = vsel %vm733, %v3541, -inf
        %v4058 = vrot.slane %v4057, 4
        %v4059 = vmax.f32 %v4057, %v4058
        %v4060 = vrot.slane %v4059, 2
        %v4061 = vmax.f32 %v4059, %v4060
        %v4062 = vrot.slane %v4061, 1
        %v4063 = vmax.f32 %v4061, %v4062
        %v4064 = vsel %vm733, %v3548, -inf
        %v4065 = vrot.slane %v4064, 4
        %v4066 = vmax.f32 %v4064, %v4065
        %v4067 = vrot.slane %v4066, 2
        %v4068 = vmax.f32 %v4066, %v4067
        %v4069 = vrot.slane %v4068, 1
        %v4070 = vmax.f32 %v4068, %v4069
        %v4071 = vsel %vm733, %v3549, -inf
        %v4072 = vrot.slane %v4071, 4
        %v4073 = vmax.f32 %v4071, %v4072
        %v4074 = vrot.slane %v4073, 2
        %v4075 = vmax.f32 %v4073, %v4074
        %v4076 = vrot.slane %v4075, 1
        %v4077 = vmax.f32 %v4075, %v4076
        %v4078 = vsel %vm733, %v3556, -inf
        %v4079 = vrot.slane %v4078, 4
        %v4080 = vmax.f32 %v4078, %v4079
        %v4081 = vrot.slane %v4080, 2
        %v4082 = vmax.f32 %v4080, %v4081
        %v4083 = vrot.slane %v4082, 1
        %v4084 = vmax.f32 %v4082, %v4083
        %v4085 = vsel %vm733, %v3557, -inf
        %v4086 = vrot.slane %v4085, 4
        %v4087 = vmax.f32 %v4085, %v4086
        %v4088 = vrot.slane %v4087, 2
        %v4089 = vmax.f32 %v4087, %v4088
        %v4090 = vrot.slane %v4089, 1
        %v4091 = vmax.f32 %v4089, %v4090
        %v4092 = vsel %vm733, %v3564, -inf
        %v4093 = vrot.slane %v4092, 4
        %v4094 = vmax.f32 %v4092, %v4093
        %v4095 = vrot.slane %v4094, 2
        %v4096 = vmax.f32 %v4094, %v4095
        %v4097 = vrot.slane %v4096, 1
        %v4098 = vmax.f32 %v4096, %v4097
        %v4099 = vsel %vm733, %v3565, -inf
        %v4100 = vrot.slane %v4099, 4
        %v4101 = vmax.f32 %v4099, %v4100
        %v4102 = vrot.slane %v4101, 2
        %v4103 = vmax.f32 %v4101, %v4102
        %v4104 = vrot.slane %v4103, 1
        %v4105 = vmax.f32 %v4103, %v4104
        %v4106 = vsel %vm733, %v3572, -inf
        %v4107 = vrot.slane %v4106, 4
        %v4108 = vmax.f32 %v4106, %v4107
        %v4109 = vrot.slane %v4108, 2
        %v4110 = vmax.f32 %v4108, %v4109
        %v4111 = vrot.slane %v4110, 1
        %v4112 = vmax.f32 %v4110, %v4111
        %v4113 = vsel %vm733, %v3573, -inf
        %v4114 = vrot.slane %v4113, 4
        %v4115 = vmax.f32 %v4113, %v4114
        %v4116 = vrot.slane %v4115, 2
        %v4117 = vmax.f32 %v4115, %v4116
        %v4118 = vrot.slane %v4117, 1
        %v4119 = vmax.f32 %v4117, %v4118
        %v4120 = vsel %vm733, %v3580, -inf
        %v4121 = vrot.slane %v4120, 4
        %v4122 = vmax.f32 %v4120, %v4121
        %v4123 = vrot.slane %v4122, 2
        %v4124 = vmax.f32 %v4122, %v4123
        %v4125 = vrot.slane %v4124, 1
        %v4126 = vmax.f32 %v4124, %v4125
        %v4127 = vsel %vm733, %v3581, -inf
        %v4128 = vrot.slane %v4127, 4
        %v4129 = vmax.f32 %v4127, %v4128
        %v4130 = vrot.slane %v4129, 2
        %v4131 = vmax.f32 %v4129, %v4130
        %v4132 = vrot.slane %v4131, 1
        %v4133 = vmax.f32 %v4131, %v4132
        %v4134 = vsel %vm733, %v3588, -inf
        %v4135 = vrot.slane %v4134, 4
        %v4136 = vmax.f32 %v4134, %v4135
        %v4137 = vrot.slane %v4136, 2
        %v4138 = vmax.f32 %v4136, %v4137
        %v4139 = vrot.slane %v4138, 1
        %v4140 = vmax.f32 %v4138, %v4139
        %v4141 = vsel %vm733, %v3589, -inf
        %v4142 = vrot.slane %v4141, 4
        %v4143 = vmax.f32 %v4141, %v4142
        %v4144 = vrot.slane %v4143, 2
        %v4145 = vmax.f32 %v4143, %v4144
        %v4146 = vrot.slane %v4145, 1
        %v4147 = vmax.f32 %v4145, %v4146
        %v4148 = vsel %vm733, %v3596, -inf
        %v4149 = vrot.slane %v4148, 4
        %v4150 = vmax.f32 %v4148, %v4149
        %v4151 = vrot.slane %v4150, 2
        %v4152 = vmax.f32 %v4150, %v4151
        %v4153 = vrot.slane %v4152, 1
        %v4154 = vmax.f32 %v4152, %v4153
        %v4155 = vsel %vm733, %v3597, -inf
        %v4156 = vrot.slane %v4155, 4
        %v4157 = vmax.f32 %v4155, %v4156
        %v4158 = vrot.slane %v4157, 2
        %v4159 = vmax.f32 %v4157, %v4158
        %v4160 = vrot.slane %v4159, 1
        %v4161 = vmax.f32 %v4159, %v4160
        %v4162 = vsel %vm733, %v3604, -inf
        %v4163 = vrot.slane %v4162, 4
        %v4164 = vmax.f32 %v4162, %v4163
        %v4165 = vrot.slane %v4164, 2
        %v4166 = vmax.f32 %v4164, %v4165
        %v4167 = vrot.slane %v4166, 1
        %v4168 = vmax.f32 %v4166, %v4167
        %v4169 = vsel %vm733, %v3605, -inf
        %v4170 = vrot.slane %v4169, 4
        %v4171 = vmax.f32 %v4169, %v4170
        %v4172 = vrot.slane %v4171, 2
        %v4173 = vmax.f32 %v4171, %v4172
        %v4174 = vrot.slane %v4173, 1
        %v4175 = vmax.f32 %v4173, %v4174
        %v4176 = vsel %vm733, %v3612, -inf
        %v4177 = vrot.slane %v4176, 4
        %v4178 = vmax.f32 %v4176, %v4177
        %v4179 = vrot.slane %v4178, 2
        %v4180 = vmax.f32 %v4178, %v4179
        %v4181 = vrot.slane %v4180, 1
        %v4182 = vmax.f32 %v4180, %v4181
        %v4183 = vsel %vm733, %v3613, -inf
        %v4184 = vrot.slane %v4183, 4
        %v4185 = vmax.f32 %v4183, %v4184
        %v4186 = vrot.slane %v4185, 2
        %v4187 = vmax.f32 %v4185, %v4186
        %v4188 = vrot.slane %v4187, 1
        %v4189 = vmax.f32 %v4187, %v4188
        %v4190 = vsel %vm733, %v3620, -inf
        %v4191 = vrot.slane %v4190, 4
        %v4192 = vmax.f32 %v4190, %v4191
        %v4193 = vrot.slane %v4192, 2
        %v4194 = vmax.f32 %v4192, %v4193
        %v4195 = vrot.slane %v4194, 1
        %v4196 = vmax.f32 %v4194, %v4195
        %v4197 = vsel %vm733, %v3621, -inf
        %v4198 = vrot.slane %v4197, 4
        %v4199 = vmax.f32 %v4197, %v4198
        %v4200 = vrot.slane %v4199, 2
        %v4201 = vmax.f32 %v4199, %v4200
        %v4202 = vrot.slane %v4201, 1
        %v4203 = vmax.f32 %v4201, %v4202
        %v4204 = vsel %vm733, %v3628, -inf
        %v4205 = vrot.slane %v4204, 4
        %v4206 = vmax.f32 %v4204, %v4205
        %v4207 = vrot.slane %v4206, 2
        %v4208 = vmax.f32 %v4206, %v4207
        %v4209 = vrot.slane %v4208, 1
        %v4210 = vmax.f32 %v4208, %v4209
        %v4211 = vsel %vm733, %v3629, -inf
        %v4212 = vrot.slane %v4211, 4
        %v4213 = vmax.f32 %v4211, %v4212
        %v4214 = vrot.slane %v4213, 2
        %v4215 = vmax.f32 %v4213, %v4214
        %v4216 = vrot.slane %v4215, 1
        %v4217 = vmax.f32 %v4215, %v4216
        %v4218 = vsel %vm733, %v3636, -inf
        %v4219 = vrot.slane %v4218, 4
        %v4220 = vmax.f32 %v4218, %v4219
        %v4221 = vrot.slane %v4220, 2
        %v4222 = vmax.f32 %v4220, %v4221
        %v4223 = vrot.slane %v4222, 1
        %v4224 = vmax.f32 %v4222, %v4223
        %v4225 = vsel %vm733, %v3637, -inf
        %v4226 = vrot.slane %v4225, 4
        %v4227 = vmax.f32 %v4225, %v4226
        %v4228 = vrot.slane %v4227, 2
        %v4229 = vmax.f32 %v4227, %v4228
        %v4230 = vrot.slane %v4229, 1
        %v4231 = vmax.f32 %v4229, %v4230
        %v4232 = vsel %vm733, %v3644, -inf
        %v4233 = vrot.slane %v4232, 4
        %v4234 = vmax.f32 %v4232, %v4233
        %v4235 = vrot.slane %v4234, 2
        %v4236 = vmax.f32 %v4234, %v4235
        %v4237 = vrot.slane %v4236, 1
        %v4238 = vmax.f32 %v4236, %v4237
        %v4239 = vsel %vm733, %v3645, -inf
        %v4240 = vrot.slane %v4239, 4
        %v4241 = vmax.f32 %v4239, %v4240
        %v4242 = vrot.slane %v4241, 2
        %v4243 = vmax.f32 %v4241, %v4242
        %v4244 = vrot.slane %v4243, 1
        %v4245 = vmax.f32 %v4243, %v4244
        %v4246 = vsel %vm733, %v3652, -inf
        %v4247 = vrot.slane %v4246, 4
        %v4248 = vmax.f32 %v4246, %v4247
        %v4249 = vrot.slane %v4248, 2
        %v4250 = vmax.f32 %v4248, %v4249
        %v4251 = vrot.slane %v4250, 1
        %v4252 = vmax.f32 %v4250, %v4251
        %v4253 = vsel %vm733, %v3653, -inf
        %v4254 = vrot.slane %v4253, 4
        %v4255 = vmax.f32 %v4253, %v4254
        %v4256 = vrot.slane %v4255, 2
        %v4257 = vmax.f32 %v4255, %v4256
        %v4258 = vrot.slane %v4257, 1
        %v4259 = vmax.f32 %v4257, %v4258
        %v4260 = vsel %vm733, %v3660, -inf
        %v4261 = vrot.slane %v4260, 4
        %v4262 = vmax.f32 %v4260, %v4261
        %v4263 = vrot.slane %v4262, 2
        %v4264 = vmax.f32 %v4262, %v4263
        %v4265 = vrot.slane %v4264, 1
        %v4266 = vmax.f32 %v4264, %v4265
        %v4267 = vsel %vm733, %v3661, -inf
        %v4268 = vrot.slane %v4267, 4
        %v4269 = vmax.f32 %v4267, %v4268
        %v4270 = vrot.slane %v4269, 2
        %v4271 = vmax.f32 %v4269, %v4270
        %v4272 = vrot.slane %v4271, 1
        %v4273 = vmax.f32 %v4271, %v4272
        %v4274 = vsel %vm733, %v3668, -inf
        %v4275 = vrot.slane %v4274, 4
        %v4276 = vmax.f32 %v4274, %v4275
        %v4277 = vrot.slane %v4276, 2
        %v4278 = vmax.f32 %v4276, %v4277
        %v4279 = vrot.slane %v4278, 1
        %v4280 = vmax.f32 %v4278, %v4279
        %v4281 = vsel %vm733, %v3669, -inf
        %v4282 = vrot.slane %v4281, 4
        %v4283 = vmax.f32 %v4281, %v4282
        %v4284 = vrot.slane %v4283, 2
        %v4285 = vmax.f32 %v4283, %v4284
        %v4286 = vrot.slane %v4285, 1
        %v4287 = vmax.f32 %v4285, %v4286
        %v4288 = vsel %vm733, %v3676, -inf
        %v4289 = vrot.slane %v4288, 4
        %v4290 = vmax.f32 %v4288, %v4289
        %v4291 = vrot.slane %v4290, 2
        %v4292 = vmax.f32 %v4290, %v4291
        %v4293 = vrot.slane %v4292, 1
        %v4294 = vmax.f32 %v4292, %v4293
        %v4295 = vsel %vm733, %v3677, -inf
        %v4296 = vrot.slane %v4295, 4
        %v4297 = vmax.f32 %v4295, %v4296
        %v4298 = vrot.slane %v4297, 2
        %v4299 = vmax.f32 %v4297, %v4298
        %v4300 = vrot.slane %v4299, 1
        %v4301 = vmax.f32 %v4299, %v4300
        %v4302 = vsel %vm733, %v3684, -inf
        %v4303 = vrot.slane %v4302, 4
        %v4304 = vmax.f32 %v4302, %v4303
        %v4305 = vrot.slane %v4304, 2
        %v4306 = vmax.f32 %v4304, %v4305
        %v4307 = vrot.slane %v4306, 1
        %v4308 = vmax.f32 %v4306, %v4307
        %v4309 = vsel %vm733, %v3685, -inf
        %v4310 = vrot.slane %v4309, 4
        %v4311 = vmax.f32 %v4309, %v4310
        %v4312 = vrot.slane %v4311, 2
        %v4313 = vmax.f32 %v4311, %v4312
        %v4314 = vrot.slane %v4313, 1
        %v4315 = vmax.f32 %v4313, %v4314
        %v4316 = vsel %vm733, %v3692, -inf
        %v4317 = vrot.slane %v4316, 4
        %v4318 = vmax.f32 %v4316, %v4317
        %v4319 = vrot.slane %v4318, 2
        %v4320 = vmax.f32 %v4318, %v4319
        %v4321 = vrot.slane %v4320, 1
        %v4322 = vmax.f32 %v4320, %v4321
        %v4323 = vsel %vm733, %v3693, -inf
        %v4324 = vrot.slane %v4323, 4
        %v4325 = vmax.f32 %v4323, %v4324
        %v4326 = vrot.slane %v4325, 2
        %v4327 = vmax.f32 %v4325, %v4326
        %v4328 = vrot.slane %v4327, 1
        %v4329 = vmax.f32 %v4327, %v4328
        %v4330 = vsel %vm733, %v3700, -inf
        %v4331 = vrot.slane %v4330, 4
        %v4332 = vmax.f32 %v4330, %v4331
        %v4333 = vrot.slane %v4332, 2
        %v4334 = vmax.f32 %v4332, %v4333
        %v4335 = vrot.slane %v4334, 1
        %v4336 = vmax.f32 %v4334, %v4335
        %v4337 = vsel %vm733, %v3701, -inf
        %v4338 = vrot.slane %v4337, 4
        %v4339 = vmax.f32 %v4337, %v4338
        %v4340 = vrot.slane %v4339, 2
        %v4341 = vmax.f32 %v4339, %v4340
        %v4342 = vrot.slane %v4341, 1
        %v4343 = vmax.f32 %v4341, %v4342
        %v4344 = vsel %vm733, %v3708, -inf
        %v4345 = vrot.slane %v4344, 4
        %v4346 = vmax.f32 %v4344, %v4345
        %v4347 = vrot.slane %v4346, 2
        %v4348 = vmax.f32 %v4346, %v4347
        %v4349 = vrot.slane %v4348, 1
        %v4350 = vmax.f32 %v4348, %v4349
        %v4351 = vsel %vm733, %v3709, -inf
        %v4352 = vrot.slane %v4351, 4
        %v4353 = vmax.f32 %v4351, %v4352
        %v4354 = vrot.slane %v4353, 2
        %v4355 = vmax.f32 %v4353, %v4354
        %v4356 = vrot.slane %v4355, 1
        %v4357 = vmax.f32 %v4355, %v4356
        %v4358 = vsel %vm733, %v3716, -inf
        %v4359 = vrot.slane %v4358, 4
        %v4360 = vmax.f32 %v4358, %v4359
        %v4361 = vrot.slane %v4360, 2
        %v4362 = vmax.f32 %v4360, %v4361
        %v4363 = vrot.slane %v4362, 1
        %v4364 = vmax.f32 %v4362, %v4363
        %v4365 = vsel %vm733, %v3717, -inf
        %v4366 = vrot.slane %v4365, 4
        %v4367 = vmax.f32 %v4365, %v4366
        %v4368 = vrot.slane %v4367, 2
        %v4369 = vmax.f32 %v4367, %v4368
        %v4370 = vrot.slane %v4369, 1
        %v4371 = vmax.f32 %v4369, %v4370
        %v4372 = vsel %vm733, %v3724, -inf
        %v4373 = vrot.slane %v4372, 4
        %v4374 = vmax.f32 %v4372, %v4373
        %v4375 = vrot.slane %v4374, 2
        %v4376 = vmax.f32 %v4374, %v4375
        %v4377 = vrot.slane %v4376, 1
        %v4378 = vmax.f32 %v4376, %v4377
        %v4379 = vsel %vm733, %v3725, -inf
        %v4380 = vrot.slane %v4379, 4
        %v4381 = vmax.f32 %v4379, %v4380
        %v4382 = vrot.slane %v4381, 2
        %v4383 = vmax.f32 %v4381, %v4382
        %v4384 = vrot.slane %v4383, 1
        %v4385 = vmax.f32 %v4383, %v4384
        %v4386 = vsel %vm733, %v3732, -inf
        %v4387 = vrot.slane %v4386, 4
        %v4388 = vmax.f32 %v4386, %v4387
        %v4389 = vrot.slane %v4388, 2
        %v4390 = vmax.f32 %v4388, %v4389
        %v4391 = vrot.slane %v4390, 1
        %v4392 = vmax.f32 %v4390, %v4391
        %v4393 = vsel %vm733, %v3733, -inf
        %v4394 = vrot.slane %v4393, 4
        %v4395 = vmax.f32 %v4393, %v4394
        %v4396 = vrot.slane %v4395, 2
        %v4397 = vmax.f32 %v4395, %v4396
        %v4398 = vrot.slane %v4397, 1
        %v4399 = vmax.f32 %v4397, %v4398
        %v4400 = vsel %vm733, %v3740, -inf
        %v4401 = vrot.slane %v4400, 4
        %v4402 = vmax.f32 %v4400, %v4401
        %v4403 = vrot.slane %v4402, 2
        %v4404 = vmax.f32 %v4402, %v4403
        %v4405 = vrot.slane %v4404, 1
        %v4406 = vmax.f32 %v4404, %v4405
        %v4407 = vsel %vm733, %v3741, -inf
        %v4408 = vrot.slane %v4407, 4
        %v4409 = vmax.f32 %v4407, %v4408
        %v4410 = vrot.slane %v4409, 2
        %v4411 = vmax.f32 %v4409, %v4410
        %v4412 = vrot.slane %v4411, 1
        %v4413 = vmax.f32 %v4411, %v4412
        %v4414 = vsel %vm733, %v3748, -inf
        %v4415 = vrot.slane %v4414, 4
        %v4416 = vmax.f32 %v4414, %v4415
        %v4417 = vrot.slane %v4416, 2
        %v4418 = vmax.f32 %v4416, %v4417
        %v4419 = vrot.slane %v4418, 1
        %v4420 = vmax.f32 %v4418, %v4419
        %v4421 = vsel %vm733, %v3749, -inf
        %v4422 = vrot.slane %v4421, 4
        %v4423 = vmax.f32 %v4421, %v4422
        %v4424 = vrot.slane %v4423, 2
        %v4425 = vmax.f32 %v4423, %v4424
        %v4426 = vrot.slane %v4425, 1
        %v4427 = vmax.f32 %v4425, %v4426
        %v4428 = vsel %vm733, %v3756, -inf
        %v4429 = vrot.slane %v4428, 4
        %v4430 = vmax.f32 %v4428, %v4429
        %v4431 = vrot.slane %v4430, 2
        %v4432 = vmax.f32 %v4430, %v4431
        %v4433 = vrot.slane %v4432, 1
        %v4434 = vmax.f32 %v4432, %v4433
        %v4435 = vsel %vm733, %v3757, -inf
        %v4436 = vrot.slane %v4435, 4
        %v4437 = vmax.f32 %v4435, %v4436
        %v4438 = vrot.slane %v4437, 2
        %v4439 = vmax.f32 %v4437, %v4438
        %v4440 = vrot.slane %v4439, 1
        %v4441 = vmax.f32 %v4439, %v4440
        %v4442 = vsel %vm733, %v3764, -inf
        %v4443 = vrot.slane %v4442, 4
        %v4444 = vmax.f32 %v4442, %v4443
        %v4445 = vrot.slane %v4444, 2
        %v4446 = vmax.f32 %v4444, %v4445
        %v4447 = vrot.slane %v4446, 1
        %v4448 = vmax.f32 %v4446, %v4447
        %v4449 = vsel %vm733, %v3765, -inf
        %v4450 = vrot.slane %v4449, 4
        %v4451 = vmax.f32 %v4449, %v4450
        %v4452 = vrot.slane %v4451, 2
        %v4453 = vmax.f32 %v4451, %v4452
        %v4454 = vrot.slane %v4453, 1
        %v4455 = vmax.f32 %v4453, %v4454
        %v4456 = vsel %vm733, %v3772, -inf
        %v4457 = vrot.slane %v4456, 4
        %v4458 = vmax.f32 %v4456, %v4457
        %v4459 = vrot.slane %v4458, 2
        %v4460 = vmax.f32 %v4458, %v4459
        %v4461 = vrot.slane %v4460, 1
        %v4462 = vmax.f32 %v4460, %v4461
        %v4463 = vsel %vm733, %v3773, -inf
        %v4464 = vrot.slane %v4463, 4
        %v4465 = vmax.f32 %v4463, %v4464
        %v4466 = vrot.slane %v4465, 2
        %v4467 = vmax.f32 %v4465, %v4466
        %v4468 = vrot.slane %v4467, 1
        %v4469 = vmax.f32 %v4467, %v4468
        %v4470 = vsel %vm733, %v3780, -inf
        %v4471 = vrot.slane %v4470, 4
        %v4472 = vmax.f32 %v4470, %v4471
        %v4473 = vrot.slane %v4472, 2
        %v4474 = vmax.f32 %v4472, %v4473
        %v4475 = vrot.slane %v4474, 1
        %v4476 = vmax.f32 %v4474, %v4475
        %v4477 = vsel %vm733, %v3781, -inf
        %v4478 = vrot.slane %v4477, 4
        %v4479 = vmax.f32 %v4477, %v4478
        %v4480 = vrot.slane %v4479, 2
        %v4481 = vmax.f32 %v4479, %v4480
        %v4482 = vrot.slane %v4481, 1
        %v4483 = vmax.f32 %v4481, %v4482
        %v4484 = vsel %vm733, %v3788, -inf
        %v4485 = vrot.slane %v4484, 4
        %v4486 = vmax.f32 %v4484, %v4485
        %v4487 = vrot.slane %v4486, 2
        %v4488 = vmax.f32 %v4486, %v4487
        %v4489 = vrot.slane %v4488, 1
        %v4490 = vmax.f32 %v4488, %v4489
        %v4491 = vsel %vm733, %v3789, -inf
        %v4492 = vrot.slane %v4491, 4
        %v4493 = vmax.f32 %v4491, %v4492
        %v4494 = vrot.slane %v4493, 2
        %v4495 = vmax.f32 %v4493, %v4494
        %v4496 = vrot.slane %v4495, 1
        %v4497 = vmax.f32 %v4495, %v4496
        %v4498 = vsel %vm733, %v3796, -inf
        %v4499 = vrot.slane %v4498, 4
        %v4500 = vmax.f32 %v4498, %v4499
        %v4501 = vrot.slane %v4500, 2
        %v4502 = vmax.f32 %v4500, %v4501
        %v4503 = vrot.slane %v4502, 1
        %v4504 = vmax.f32 %v4502, %v4503
        %v4505 = vsel %vm733, %v3797, -inf
        %v4506 = vrot.slane %v4505, 4
        %v4507 = vmax.f32 %v4505, %v4506
        %v4508 = vrot.slane %v4507, 2
        %v4509 = vmax.f32 %v4507, %v4508
        %v4510 = vrot.slane %v4509, 1
        %v4511 = vmax.f32 %v4509, %v4510
        %v4512 = vsel %vm733, %v3804, -inf
        %v4513 = vrot.slane %v4512, 4
        %v4514 = vmax.f32 %v4512, %v4513
        %v4515 = vrot.slane %v4514, 2
        %v4516 = vmax.f32 %v4514, %v4515
        %v4517 = vrot.slane %v4516, 1
        %v4518 = vmax.f32 %v4516, %v4517
        %v4519 = vsel %vm733, %v3805, -inf
        %v4520 = vrot.slane %v4519, 4
        %v4521 = vmax.f32 %v4519, %v4520
        %v4522 = vrot.slane %v4521, 2
        %v4523 = vmax.f32 %v4521, %v4522
        %v4524 = vrot.slane %v4523, 1
        %v4525 = vmax.f32 %v4523, %v4524
        %v4526 = vsel %vm733, %v3812, -inf
        %v4527 = vrot.slane %v4526, 4
        %v4528 = vmax.f32 %v4526, %v4527
        %v4529 = vrot.slane %v4528, 2
        %v4530 = vmax.f32 %v4528, %v4529
        %v4531 = vrot.slane %v4530, 1
        %v4532 = vmax.f32 %v4530, %v4531
        %v4533 = vsel %vm733, %v3813, -inf
        %v4534 = vrot.slane %v4533, 4
        %v4535 = vmax.f32 %v4533, %v4534
        %v4536 = vrot.slane %v4535, 2
        %v4537 = vmax.f32 %v4535, %v4536
        %v4538 = vrot.slane %v4537, 1
        %v4539 = vmax.f32 %v4537, %v4538
        %v4540 = vsel %vm733, %v3820, -inf
        %v4541 = vrot.slane %v4540, 4
        %v4542 = vmax.f32 %v4540, %v4541
        %v4543 = vrot.slane %v4542, 2
        %v4544 = vmax.f32 %v4542, %v4543
        %v4545 = vrot.slane %v4544, 1
        %v4546 = vmax.f32 %v4544, %v4545
        %v4547 = vsel %vm733, %v3821, -inf
        %v4548 = vrot.slane %v4547, 4
        %v4549 = vmax.f32 %v4547, %v4548
        %v4550 = vrot.slane %v4549, 2
        %v4551 = vmax.f32 %v4549, %v4550
        %v4552 = vrot.slane %v4551, 1
        %v4553 = vmax.f32 %v4551, %v4552
        %v4554 = vsel %vm733, %v3828, -inf
        %v4555 = vrot.slane %v4554, 4
        %v4556 = vmax.f32 %v4554, %v4555
        %v4557 = vrot.slane %v4556, 2
        %v4558 = vmax.f32 %v4556, %v4557
        %v4559 = vrot.slane %v4558, 1
        %v4560 = vmax.f32 %v4558, %v4559
        %v4561 = vsel %vm733, %v3829, -inf
        %v4562 = vrot.slane %v4561, 4
        %v4563 = vmax.f32 %v4561, %v4562
        %v4564 = vrot.slane %v4563, 2
        %v4565 = vmax.f32 %v4563, %v4564
        %v4566 = vrot.slane %v4565, 1
        %v4567 = vmax.f32 %v4565, %v4566
        %v4568 = vsel %vm733, %v3836, -inf
        %v4569 = vrot.slane %v4568, 4
        %v4570 = vmax.f32 %v4568, %v4569
        %v4571 = vrot.slane %v4570, 2
        %v4572 = vmax.f32 %v4570, %v4571
        %v4573 = vrot.slane %v4572, 1
        %v4574 = vmax.f32 %v4572, %v4573
        %v4575 = vsel %vm733, %v3837, -inf
        %v4576 = vrot.slane %v4575, 4
        %v4577 = vmax.f32 %v4575, %v4576
        %v4578 = vrot.slane %v4577, 2
        %v4579 = vmax.f32 %v4577, %v4578
        %v4580 = vrot.slane %v4579, 1
        %v4581 = vmax.f32 %v4579, %v4580
        %v4582 = vsel %vm733, %v3844, -inf
        %v4583 = vrot.slane %v4582, 4
        %v4584 = vmax.f32 %v4582, %v4583
        %v4585 = vrot.slane %v4584, 2
        %v4586 = vmax.f32 %v4584, %v4585
        %v4587 = vrot.slane %v4586, 1
        %v4588 = vmax.f32 %v4586, %v4587
        %v4589 = vsel %vm733, %v3845, -inf
        %v4590 = vrot.slane %v4589, 4
        %v4591 = vmax.f32 %v4589, %v4590
        %v4592 = vrot.slane %v4591, 2
        %v4593 = vmax.f32 %v4591, %v4592
        %v4594 = vrot.slane %v4593, 1
        %v4595 = vmax.f32 %v4593, %v4594
        %v4596 = vsel %vm733, %v3852, -inf
        %v4597 = vrot.slane %v4596, 4
        %v4598 = vmax.f32 %v4596, %v4597
        %v4599 = vrot.slane %v4598, 2
        %v4600 = vmax.f32 %v4598, %v4599
        %v4601 = vrot.slane %v4600, 1
        %v4602 = vmax.f32 %v4600, %v4601
        %v4603 = vsel %vm733, %v3853, -inf
        %v4604 = vrot.slane %v4603, 4
        %v4605 = vmax.f32 %v4603, %v4604
        %v4606 = vrot.slane %v4605, 2
        %v4607 = vmax.f32 %v4605, %v4606
        %v4608 = vrot.slane %v4607, 1
        %v4609 = vmax.f32 %v4607, %v4608
        %v4610 = vsel %vm733, %v3860, -inf
        %v4611 = vrot.slane %v4610, 4
        %v4612 = vmax.f32 %v4610, %v4611
        %v4613 = vrot.slane %v4612, 2
        %v4614 = vmax.f32 %v4612, %v4613
        %v4615 = vrot.slane %v4614, 1
        %v4616 = vmax.f32 %v4614, %v4615
        %v4617 = vsel %vm733, %v3861, -inf
        %v4618 = vrot.slane %v4617, 4
        %v4619 = vmax.f32 %v4617, %v4618
        %v4620 = vrot.slane %v4619, 2
        %v4621 = vmax.f32 %v4619, %v4620
        %v4622 = vrot.slane %v4621, 1
        %v4623 = vmax.f32 %v4621, %v4622
        %v4624 = vsel %vm733, %v3868, -inf
        %v4625 = vrot.slane %v4624, 4
        %v4626 = vmax.f32 %v4624, %v4625
        %v4627 = vrot.slane %v4626, 2
        %v4628 = vmax.f32 %v4626, %v4627
        %v4629 = vrot.slane %v4628, 1
        %v4630 = vmax.f32 %v4628, %v4629
        %v4631 = vsel %vm733, %v3869, -inf
        %v4632 = vrot.slane %v4631, 4
        %v4633 = vmax.f32 %v4631, %v4632
        %v4634 = vrot.slane %v4633, 2
        %v4635 = vmax.f32 %v4633, %v4634
        %v4636 = vrot.slane %v4635, 1
        %v4637 = vmax.f32 %v4635, %v4636
        %v4638 = vld [vmem:[#allocation13] sm:$0xf]
        %vm4639 = vcmp.lt.s32.totalorder %v2148, 0
        %v4640 = vsub.s32 0, %v2148
        %v4641 = vsel %vm4639, %v4640, %v2148
        %v4642 = vmul.u32.u64.compose %v4641, 2863311531
        %v4643 = vextract.low.u32 %v4642
        %v4644 = vextract.high.u32 %v4642
        %v4645 = vshrl.u32 %v4644, 2
        %v4646 = vmul.u32 %v4645, 6
        %v4647 = vsub.s32 %v4641, %v4646
        %v4648 = vsub.s32 0, %v4647
        %v4649 = vsel %vm4639, %v4648, %v4647
        %vm4650 = vcmp.lt.s32.totalorder %v2149, 0
        %v4651 = vsub.s32 0, %v2149
        %v4652 = vsel %vm4650, %v4651, %v2149
        %v4653 = vmul.u32.u64.compose %v4652, 2863311531
        %v4654 = vextract.low.u32 %v4653
        %v4655 = vextract.high.u32 %v4653
        %v4656 = vshrl.u32 %v4655, 2
        %v4657 = vmul.u32 %v4656, 6
        %v4658 = vsub.s32 %v4652, %v4657
        %v4659 = vsub.s32 0, %v4658
        %v4660 = vsel %vm4650, %v4659, %v4658
        %vm4661 = vcmp.lt.s32.totalorder %v2150, 0
        %v4662 = vsub.s32 0, %v2150
        %v4663 = vsel %vm4661, %v4662, %v2150
        %v4664 = vmul.u32.u64.compose %v4663, 2863311531
        %v4665 = vextract.low.u32 %v4664
        %v4666 = vextract.high.u32 %v4664
        %v4667 = vshrl.u32 %v4666, 2
        %v4668 = vmul.u32 %v4667, 6
        %v4669 = vsub.s32 %v4663, %v4668
        %v4670 = vsub.s32 0, %v4669
        %v4671 = vsel %vm4661, %v4670, %v4669
        %vm4672 = vcmp.lt.s32.totalorder %v2151, 0
        %v4673 = vsub.s32 0, %v2151
        %v4674 = vsel %vm4672, %v4673, %v2151
        %v4675 = vmul.u32.u64.compose %v4674, 2863311531
        %v4676 = vextract.low.u32 %v4675
        %v4677 = vextract.high.u32 %v4675
        %v4678 = vshrl.u32 %v4677, 2
        %v4679 = vmul.u32 %v4678, 6
        %v4680 = vsub.s32 %v4674, %v4679
        %v4681 = vsub.s32 0, %v4680
        %v4682 = vsel %vm4672, %v4681, %v4680
        %vm4683 = vcmp.lt.s32.totalorder %v2152, 0
        %v4684 = vsub.s32 0, %v2152
        %v4685 = vsel %vm4683, %v4684, %v2152
        %v4686 = vmul.u32.u64.compose %v4685, 2863311531
        %v4687 = vextract.low.u32 %v4686
        %v4688 = vextract.high.u32 %v4686
        %v4689 = vshrl.u32 %v4688, 2
        %v4690 = vmul.u32 %v4689, 6
        %v4691 = vsub.s32 %v4685, %v4690
        %v4692 = vsub.s32 0, %v4691
        %v4693 = vsel %vm4683, %v4692, %v4691
        %vm4694 = vcmp.lt.s32.totalorder %v2153, 0
        %v4695 = vsub.s32 0, %v2153
        %v4696 = vsel %vm4694, %v4695, %v2153
        %v4697 = vmul.u32.u64.compose %v4696, 2863311531
        %v4698 = vextract.low.u32 %v4697
        %v4699 = vextract.high.u32 %v4697
        %v4700 = vshrl.u32 %v4699, 2
        %v4701 = vmul.u32 %v4700, 6
        %v4702 = vsub.s32 %v4696, %v4701
        %v4703 = vsub.s32 0, %v4702
        %v4704 = vsel %vm4694, %v4703, %v4702
        %vm4705 = vcmp.ne.s32.totalorder %v4649, 0
        %vm4706 = vcmp.ne.s32.totalorder %v4660, 0
        %vm4707 = vcmp.ne.s32.totalorder %v4671, 0
        %vm4708 = vcmp.ne.s32.totalorder %v4682, 0
        %vm4709 = vcmp.ne.s32.totalorder %v4693, 0
        %vm4710 = vcmp.ne.s32.totalorder %v4704, 0
        %vm4711 = vcmp.lt.s32.totalorder %v4649, 0
        %vm4712 = vcmp.lt.s32.totalorder %v4660, 0
        %vm4713 = vcmp.lt.s32.totalorder %v4671, 0
        %vm4714 = vcmp.lt.s32.totalorder %v4682, 0
        %vm4715 = vcmp.lt.s32.totalorder %v4693, 0
        %vm4716 = vcmp.lt.s32.totalorder %v4704, 0
        %vm4717 = vmand %vm4711, %vm4705
        %vm4718 = vmand %vm4712, %vm4706
        %vm4719 = vmand %vm4713, %vm4707
        %vm4720 = vmand %vm4714, %vm4708
        %vm4721 = vmand %vm4715, %vm4709
        %vm4722 = vmand %vm4716, %vm4710
        %v4723 = vadd.s32 %v4649, 6
        %v4724 = vadd.s32 %v4660, 6
        %v4725 = vadd.s32 %v4671, 6
        %v4726 = vadd.s32 %v4682, 6
        %v4727 = vadd.s32 %v4693, 6
        %v4728 = vadd.s32 %v4704, 6
        %v4729 = vsel %vm4717, %v4723, %v4649
        %v4730 = vsel %vm4718, %v4724, %v4660
        %v4731 = vsel %vm4719, %v4725, %v4671
        %v4732 = vsel %vm4720, %v4726, %v4682
        %v4733 = vsel %vm4721, %v4727, %v4693
        %v4734 = vsel %vm4722, %v4728, %v4704
        %vm4735 = vcmp.eq.s32.totalorder %v4729, 0
        %vm4736 = vcmp.eq.s32.totalorder %v4730, 0
        %vm4737 = vcmp.eq.s32.totalorder %v4731, 0
        %vm4738 = vcmp.eq.s32.totalorder %v4732, 0
        %vm4739 = vcmp.eq.s32.totalorder %v4733, 0
        %vm4740 = vcmp.eq.s32.totalorder %v4734, 0
        %v4835 = vsel %vm2459, %v3986, %v3972
        %v4836 = vsel %vm2461, %v4000, %v4835
        %v4837 = vsel %vm2463, %v4014, %v4836
        %v4838 = vsel %vm2465, %v4028, %v4837
        %v4839 = vsel %vm2467, %v4042, %v4838
        %v4840 = vsel %vm2469, %v4056, %v4839
        %v4841 = vsel %vm2459, %v3993, %v3979
        %v4842 = vsel %vm2461, %v4007, %v4841
        %v4843 = vsel %vm2463, %v4021, %v4842
        %v4844 = vsel %vm2465, %v4035, %v4843
        %v4845 = vsel %vm2467, %v4049, %v4844
        %v4846 = vsel %vm2469, %v4063, %v4845
        %v4847 = vsel %vm2471, %v4084, %v4070
        %v4848 = vsel %vm2459, %v4098, %v4847
        %v4849 = vsel %vm2461, %v4112, %v4848
        %v4850 = vsel %vm2463, %v4126, %v4849
        %v4851 = vsel %vm2465, %v4140, %v4850
        %v4852 = vsel %vm2467, %v4154, %v4851
        %v4853 = vsel %vm2469, %v4168, %v4852
        %v4854 = vsel %vm2471, %v4091, %v4077
        %v4855 = vsel %vm2459, %v4105, %v4854
        %v4856 = vsel %vm2461, %v4119, %v4855
        %v4857 = vsel %vm2463, %v4133, %v4856
        %v4858 = vsel %vm2465, %v4147, %v4857
        %v4859 = vsel %vm2467, %v4161, %v4858
        %v4860 = vsel %vm2469, %v4175, %v4859
        %v4861 = vsel %vm2471, %v4196, %v4182
        %v4862 = vsel %vm2459, %v4210, %v4861
        %v4863 = vsel %vm2461, %v4224, %v4862
        %v4864 = vsel %vm2463, %v4238, %v4863
        %v4865 = vsel %vm2465, %v4252, %v4864
        %v4866 = vsel %vm2467, %v4266, %v4865
        %v4867 = vsel %vm2469, %v4280, %v4866
        %v4868 = vsel %vm2471, %v4203, %v4189
        %v4869 = vsel %vm2459, %v4217, %v4868
        %v4870 = vsel %vm2461, %v4231, %v4869
        %v4871 = vsel %vm2463, %v4245, %v4870
        %v4872 = vsel %vm2465, %v4259, %v4871
        %v4873 = vsel %vm2467, %v4273, %v4872
        %v4874 = vsel %vm2469, %v4287, %v4873
        %v4875 = vsel %vm2471, %v4308, %v4294
        %v4876 = vsel %vm2459, %v4322, %v4875
        %v4877 = vsel %vm2461, %v4336, %v4876
        %v4878 = vsel %vm2463, %v4350, %v4877
        %v4879 = vsel %vm2465, %v4364, %v4878
        %v4880 = vsel %vm2467, %v4378, %v4879
        %v4881 = vsel %vm2469, %v4392, %v4880
        %v4882 = vsel %vm2471, %v4315, %v4301
        %v4883 = vsel %vm2459, %v4329, %v4882
        %v4884 = vsel %vm2461, %v4343, %v4883
        %v4885 = vsel %vm2463, %v4357, %v4884
        %v4886 = vsel %vm2465, %v4371, %v4885
        %v4887 = vsel %vm2467, %v4385, %v4886
        %v4888 = vsel %vm2469, %v4399, %v4887
        %v4889 = vsel %vm2471, %v4420, %v4406
        %v4890 = vsel %vm2459, %v4434, %v4889
        %v4891 = vsel %vm2461, %v4448, %v4890
        %v4892 = vsel %vm2463, %v4462, %v4891
        %v4893 = vsel %vm2465, %v4476, %v4892
        %v4894 = vsel %vm2467, %v4490, %v4893
        %v4895 = vsel %vm2469, %v4504, %v4894
        %v4896 = vsel %vm2471, %v4427, %v4413
        %v4897 = vsel %vm2459, %v4441, %v4896
        %v4898 = vsel %vm2461, %v4455, %v4897
        %v4899 = vsel %vm2463, %v4469, %v4898
        %v4900 = vsel %vm2465, %v4483, %v4899
        %v4901 = vsel %vm2467, %v4497, %v4900
        %v4902 = vsel %vm2469, %v4511, %v4901
        %v4903 = vsel %vm2471, %v4532, %v4518
        %v4904 = vsel %vm2459, %v4546, %v4903
        %v4905 = vsel %vm2461, %v4560, %v4904
        %v4906 = vsel %vm2463, %v4574, %v4905
        %v4907 = vsel %vm2465, %v4588, %v4906
        %v4908 = vsel %vm2467, %v4602, %v4907
        %v4909 = vsel %vm2469, %v4616, %v4908
        %v4910 = vsel %vm2471, %v4539, %v4525
        %v4911 = vsel %vm2459, %v4553, %v4910
        %v4912 = vsel %vm2461, %v4567, %v4911
        %v4913 = vsel %vm2463, %v4581, %v4912
        %v4914 = vsel %vm2465, %v4595, %v4913
        %v4915 = vsel %vm2467, %v4609, %v4914
        %v4916 = vsel %vm2469, %v4623, %v4915
        %v4929 = vsel %vm2561, 0.0, %v4840
        %v4930 = vsel %vm2561, 0.0, %v4846
        %v4931 = vsel %vm4735, 1, 0
        %v4932 = vsel %vm4736, 1, 0
        %v4933 = vsel %vm4737, 1, 0
        %v4934 = vsel %vm4738, 1, 0
        %v4935 = vsel %vm4739, 1, 0
        %v4936 = vsel %vm4740, 1, 0
        %vm4937 = vcmp.eq.s32.totalorder %v4931, 1
        %vm4938 = vcmp.eq.s32.totalorder %v4932, 1
        %vm4939 = vcmp.eq.s32.totalorder %v4933, 1
        %vm4940 = vcmp.eq.s32.totalorder %v4934, 1
        %vm4941 = vcmp.eq.s32.totalorder %v4935, 1
        %vm4942 = vcmp.eq.s32.totalorder %v4936, 1
        %v4943 = vsel %vm4937, 0.0, %v4929
        %v4944 = vsel %vm4937, 0.0, %v4930
        %v4945 = vsel %vm4938, 0.0, %v4853
        %v4946 = vsel %vm4938, 0.0, %v4860
        %v4947 = vsel %vm4939, 0.0, %v4867
        %v4948 = vsel %vm4939, 0.0, %v4874
        %v4949 = vsel %vm4940, 0.0, %v4881
        %v4950 = vsel %vm4940, 0.0, %v4888
        %v4951 = vsel %vm4941, 0.0, %v4895
        %v4952 = vsel %vm4941, 0.0, %v4902
        %v4953 = vsel %vm4942, 0.0, %v4909
        %v4954 = vsel %vm4942, 0.0, %v4916
        %vm4955 = vcmp.eq.s32.totalorder %v4729, 5
        %vm4956 = vcmp.eq.s32.totalorder %v4730, 5
        %vm4957 = vcmp.eq.s32.totalorder %v4731, 5
        %vm4958 = vcmp.eq.s32.totalorder %v4732, 5
        %vm4959 = vcmp.eq.s32.totalorder %v4733, 5
        %vm4960 = vcmp.eq.s32.totalorder %v4734, 5
        %v4963 = vsel %vm2471, %v4000, %v3986
        %v4964 = vsel %vm2459, %v4014, %v4963
        %v4965 = vsel %vm2461, %v4028, %v4964
        %v4966 = vsel %vm2463, %v4042, %v4965
        %v4967 = vsel %vm2465, %v4056, %v4966
        %v4968 = vsel %vm2467, %v4070, %v4967
        %v4969 = vsel %vm2469, %v4084, %v4968
        %v4970 = vsel %vm2471, %v4007, %v3993
        %v4971 = vsel %vm2459, %v4021, %v4970
        %v4972 = vsel %vm2461, %v4035, %v4971
        %v4973 = vsel %vm2463, %v4049, %v4972
        %v4974 = vsel %vm2465, %v4063, %v4973
        %v4975 = vsel %vm2467, %v4077, %v4974
        %v4976 = vsel %vm2469, %v4091, %v4975
        %v4977 = vsel %vm2471, %v4112, %v4098
        %v4978 = vsel %vm2459, %v4126, %v4977
        %v4979 = vsel %vm2461, %v4140, %v4978
        %v4980 = vsel %vm2463, %v4154, %v4979
        %v4981 = vsel %vm2465, %v4168, %v4980
        %v4982 = vsel %vm2467, %v4182, %v4981
        %v4983 = vsel %vm2469, %v4196, %v4982
        %v4984 = vsel %vm2471, %v4119, %v4105
        %v4985 = vsel %vm2459, %v4133, %v4984
        %v4986 = vsel %vm2461, %v4147, %v4985
        %v4987 = vsel %vm2463, %v4161, %v4986
        %v4988 = vsel %vm2465, %v4175, %v4987
        %v4989 = vsel %vm2467, %v4189, %v4988
        %v4990 = vsel %vm2469, %v4203, %v4989
        %v4991 = vsel %vm2471, %v4224, %v4210
        %v4992 = vsel %vm2459, %v4238, %v4991
        %v4993 = vsel %vm2461, %v4252, %v4992
        %v4994 = vsel %vm2463, %v4266, %v4993
        %v4995 = vsel %vm2465, %v4280, %v4994
        %v4996 = vsel %vm2467, %v4294, %v4995
        %v4997 = vsel %vm2469, %v4308, %v4996
        %v4998 = vsel %vm2471, %v4231, %v4217
        %v4999 = vsel %vm2459, %v4245, %v4998
        %v5000 = vsel %vm2461, %v4259, %v4999
        %v5001 = vsel %vm2463, %v4273, %v5000
        %v5002 = vsel %vm2465, %v4287, %v5001
        %v5003 = vsel %vm2467, %v4301, %v5002
        %v5004 = vsel %vm2469, %v4315, %v5003
        %v5005 = vsel %vm2471, %v4336, %v4322
        %v5006 = vsel %vm2459, %v4350, %v5005
        %v5007 = vsel %vm2461, %v4364, %v5006
        %v5008 = vsel %vm2463, %v4378, %v5007
        %v5009 = vsel %vm2465, %v4392, %v5008
        %v5010 = vsel %vm2467, %v4406, %v5009
        %v5011 = vsel %vm2469, %v4420, %v5010
        %v5012 = vsel %vm2471, %v4343, %v4329
        %v5013 = vsel %vm2459, %v4357, %v5012
        %v5014 = vsel %vm2461, %v4371, %v5013
        %v5015 = vsel %vm2463, %v4385, %v5014
        %v5016 = vsel %vm2465, %v4399, %v5015
        %v5017 = vsel %vm2467, %v4413, %v5016
        %v5018 = vsel %vm2469, %v4427, %v5017
        %v5019 = vsel %vm2471, %v4448, %v4434
        %v5020 = vsel %vm2459, %v4462, %v5019
        %v5021 = vsel %vm2461, %v4476, %v5020
        %v5022 = vsel %vm2463, %v4490, %v5021
        %v5023 = vsel %vm2465, %v4504, %v5022
        %v5024 = vsel %vm2467, %v4518, %v5023
        %v5025 = vsel %vm2469, %v4532, %v5024
        %v5026 = vsel %vm2471, %v4455, %v4441
        %v5027 = vsel %vm2459, %v4469, %v5026
        %v5028 = vsel %vm2461, %v4483, %v5027
        %v5029 = vsel %vm2463, %v4497, %v5028
        %v5030 = vsel %vm2465, %v4511, %v5029
        %v5031 = vsel %vm2467, %v4525, %v5030
        %v5032 = vsel %vm2469, %v4539, %v5031
        %v5033 = vsel %vm2471, %v4560, %v4546
        %v5034 = vsel %vm2459, %v4574, %v5033
        %v5035 = vsel %vm2461, %v4588, %v5034
        %v5036 = vsel %vm2463, %v4602, %v5035
        %v5037 = vsel %vm2465, %v4616, %v5036
        %v5038 = vsel %vm2467, %v4630, %v5037
        %v5039 = vsel %vm2471, %v4567, %v4553
        %v5040 = vsel %vm2459, %v4581, %v5039
        %v5041 = vsel %vm2461, %v4595, %v5040
        %v5042 = vsel %vm2463, %v4609, %v5041
        %v5043 = vsel %vm2465, %v4623, %v5042
        %v5044 = vsel %vm2467, %v4637, %v5043
        %v5057 = vsel %vm2707, %v5038, 0.0
        %v5058 = vsel %vm2707, %v5044, 0.0
        %v5059 = vsel %vm4955, 1, 0
        %v5060 = vsel %vm4956, 1, 0
        %v5061 = vsel %vm4957, 1, 0
        %v5062 = vsel %vm4958, 1, 0
        %v5063 = vsel %vm4959, 1, 0
        %v5064 = vsel %vm4960, 1, 0
        %vm5065 = vcmp.eq.s32.totalorder %v5059, 1
        %vm5066 = vcmp.eq.s32.totalorder %v5060, 1
        %vm5067 = vcmp.eq.s32.totalorder %v5061, 1
        %vm5068 = vcmp.eq.s32.totalorder %v5062, 1
        %vm5069 = vcmp.eq.s32.totalorder %v5063, 1
        %vm5070 = vcmp.eq.s32.totalorder %v5064, 1
        %v5071 = vsel %vm5065, 0.0, %v4969
        %v5072 = vsel %vm5065, 0.0, %v4976
        %v5073 = vsel %vm5066, 0.0, %v4983
        %v5074 = vsel %vm5066, 0.0, %v4990
        %v5075 = vsel %vm5067, 0.0, %v4997
        %v5076 = vsel %vm5067, 0.0, %v5004
        %v5077 = vsel %vm5068, 0.0, %v5011
        %v5078 = vsel %vm5068, 0.0, %v5018
        %v5079 = vsel %vm5069, 0.0, %v5025
        %v5080 = vsel %vm5069, 0.0, %v5032
        %v5081 = vsel %vm5070, 0.0, %v5057
        %v5082 = vsel %vm5070, 0.0, %v5058
        %v5083 = vsel %vm2471, %v3986, %v3972
        %v5084 = vsel %vm2459, %v4000, %v5083
        %v5085 = vsel %vm2461, %v4014, %v5084
        %v5086 = vsel %vm2463, %v4028, %v5085
        %v5087 = vsel %vm2465, %v4042, %v5086
        %v5088 = vsel %vm2467, %v4056, %v5087
        %v5089 = vsel %vm2469, %v4070, %v5088
        %v5090 = vsel %vm2471, %v3993, %v3979
        %v5091 = vsel %vm2459, %v4007, %v5090
        %v5092 = vsel %vm2461, %v4021, %v5091
        %v5093 = vsel %vm2463, %v4035, %v5092
        %v5094 = vsel %vm2465, %v4049, %v5093
        %v5095 = vsel %vm2467, %v4063, %v5094
        %v5096 = vsel %vm2469, %v4077, %v5095
        %v5097 = vsel %vm2471, %v4098, %v4084
        %v5098 = vsel %vm2459, %v4112, %v5097
        %v5099 = vsel %vm2461, %v4126, %v5098
        %v5100 = vsel %vm2463, %v4140, %v5099
        %v5101 = vsel %vm2465, %v4154, %v5100
        %v5102 = vsel %vm2467, %v4168, %v5101
        %v5103 = vsel %vm2469, %v4182, %v5102
        %v5104 = vsel %vm2471, %v4105, %v4091
        %v5105 = vsel %vm2459, %v4119, %v5104
        %v5106 = vsel %vm2461, %v4133, %v5105
        %v5107 = vsel %vm2463, %v4147, %v5106
        %v5108 = vsel %vm2465, %v4161, %v5107
        %v5109 = vsel %vm2467, %v4175, %v5108
        %v5110 = vsel %vm2469, %v4189, %v5109
        %v5111 = vsel %vm2471, %v4210, %v4196
        %v5112 = vsel %vm2459, %v4224, %v5111
        %v5113 = vsel %vm2461, %v4238, %v5112
        %v5114 = vsel %vm2463, %v4252, %v5113
        %v5115 = vsel %vm2465, %v4266, %v5114
        %v5116 = vsel %vm2467, %v4280, %v5115
        %v5117 = vsel %vm2469, %v4294, %v5116
        %v5118 = vsel %vm2471, %v4217, %v4203
        %v5119 = vsel %vm2459, %v4231, %v5118
        %v5120 = vsel %vm2461, %v4245, %v5119
        %v5121 = vsel %vm2463, %v4259, %v5120
        %v5122 = vsel %vm2465, %v4273, %v5121
        %v5123 = vsel %vm2467, %v4287, %v5122
        %v5124 = vsel %vm2469, %v4301, %v5123
        %v5125 = vsel %vm2471, %v4322, %v4308
        %v5126 = vsel %vm2459, %v4336, %v5125
        %v5127 = vsel %vm2461, %v4350, %v5126
        %v5128 = vsel %vm2463, %v4364, %v5127
        %v5129 = vsel %vm2465, %v4378, %v5128
        %v5130 = vsel %vm2467, %v4392, %v5129
        %v5131 = vsel %vm2469, %v4406, %v5130
        %v5132 = vsel %vm2471, %v4329, %v4315
        %v5133 = vsel %vm2459, %v4343, %v5132
        %v5134 = vsel %vm2461, %v4357, %v5133
        %v5135 = vsel %vm2463, %v4371, %v5134
        %v5136 = vsel %vm2465, %v4385, %v5135
        %v5137 = vsel %vm2467, %v4399, %v5136
        %v5138 = vsel %vm2469, %v4413, %v5137
        %v5139 = vsel %vm2471, %v4434, %v4420
        %v5140 = vsel %vm2459, %v4448, %v5139
        %v5141 = vsel %vm2461, %v4462, %v5140
        %v5142 = vsel %vm2463, %v4476, %v5141
        %v5143 = vsel %vm2465, %v4490, %v5142
        %v5144 = vsel %vm2467, %v4504, %v5143
        %v5145 = vsel %vm2469, %v4518, %v5144
        %v5146 = vsel %vm2471, %v4441, %v4427
        %v5147 = vsel %vm2459, %v4455, %v5146
        %v5148 = vsel %vm2461, %v4469, %v5147
        %v5149 = vsel %vm2463, %v4483, %v5148
        %v5150 = vsel %vm2465, %v4497, %v5149
        %v5151 = vsel %vm2467, %v4511, %v5150
        %v5152 = vsel %vm2469, %v4525, %v5151
        %v5153 = vsel %vm2471, %v4546, %v4532
        %v5154 = vsel %vm2459, %v4560, %v5153
        %v5155 = vsel %vm2461, %v4574, %v5154
        %v5156 = vsel %vm2463, %v4588, %v5155
        %v5157 = vsel %vm2465, %v4602, %v5156
        %v5158 = vsel %vm2467, %v4616, %v5157
        %v5159 = vsel %vm2469, %v4630, %v5158
        %v5160 = vsel %vm2471, %v4553, %v4539
        %v5161 = vsel %vm2459, %v4567, %v5160
        %v5162 = vsel %vm2461, %v4581, %v5161
        %v5163 = vsel %vm2463, %v4595, %v5162
        %v5164 = vsel %vm2465, %v4609, %v5163
        %v5165 = vsel %vm2467, %v4623, %v5164
        %v5166 = vsel %vm2469, %v4637, %v5165
        %v5179 = vld [vmem:[#allocation11] sm:$0xff]
        %v5180 = vld [vmem:[#allocation11 + $0x8] sm:$0xff]
        %v5181 = vld [vmem:[#allocation11 + $0x10] sm:$0xff]
        %v5182 = vld [vmem:[#allocation11 + $0x18] sm:$0xff]
        %v5183 = vld [vmem:[#allocation11 + $0x20] sm:$0xff]
        %v5184 = vld [vmem:[#allocation11 + $0x28] sm:$0xff]
        %v5185 = vld [vmem:[#allocation11 + $0x30] sm:$0xff]
        %v5186 = vld [vmem:[#allocation11 + $0x38] sm:$0xff]
        %v5187 = vld [vmem:[#allocation11 + $0x40] sm:$0xff]
        %v5188 = vld [vmem:[#allocation11 + $0x48] sm:$0xff]
        %v5189 = vld [vmem:[#allocation11 + $0x50] sm:$0xff]
        %v5190 = vld [vmem:[#allocation11 + $0x58] sm:$0xff]
        %v5191 = vld [vmem:[#allocation11 + $0x60] sm:$0xff]
        %v5192 = vld [vmem:[#allocation11 + $0x68] sm:$0xff]
        %v5193 = vld [vmem:[#allocation11 + $0x70] sm:$0xff]
        %v5194 = vld [vmem:[#allocation11 + $0x78] sm:$0xff]
        %v5195 = vld [vmem:[#allocation11 + $0x80] sm:$0xff]
        %v5196 = vld [vmem:[#allocation11 + $0x88] sm:$0xff]
        %v5197 = vld [vmem:[#allocation11 + $0x90] sm:$0xff]
        %v5198 = vld [vmem:[#allocation11 + $0x98] sm:$0xff]
        %v5199 = vld [vmem:[#allocation11 + $0xa0] sm:$0xff]
        %v5200 = vld [vmem:[#allocation11 + $0xa8] sm:$0xff]
        %v5201 = vld [vmem:[#allocation11 + $0xb0] sm:$0xff]
        %v5202 = vld [vmem:[#allocation11 + $0xb8] sm:$0xff]
        %v5203 = vld [vmem:[#allocation11 + $0xc0] sm:$0xff]
        %v5204 = vld [vmem:[#allocation11 + $0xc8] sm:$0xff]
        %v5205 = vld [vmem:[#allocation11 + $0xd0] sm:$0xff]
        %v5206 = vld [vmem:[#allocation11 + $0xd8] sm:$0xff]
        %v5207 = vld [vmem:[#allocation11 + $0xe0] sm:$0xff]
        %v5208 = vld [vmem:[#allocation11 + $0xe8] sm:$0xff]
        %v5209 = vld [vmem:[#allocation11 + $0xf0] sm:$0xff]
        %v5210 = vld [vmem:[#allocation11 + $0xf8] sm:$0xff]
        %v5211 = vld [vmem:[#allocation11 + $0x100] sm:$0xff]
        %v5212 = vld [vmem:[#allocation11 + $0x108] sm:$0xff]
        %v5213 = vld [vmem:[#allocation11 + $0x110] sm:$0xff]
        %v5214 = vld [vmem:[#allocation11 + $0x118] sm:$0xff]
        %v5215 = vld [vmem:[#allocation11 + $0x120] sm:$0xff]
        %v5216 = vld [vmem:[#allocation11 + $0x128] sm:$0xff]
        %v5217 = vld [vmem:[#allocation11 + $0x130] sm:$0xff]
        %v5218 = vld [vmem:[#allocation11 + $0x138] sm:$0xff]
        %v5219 = vld [vmem:[#allocation11 + $0x140] sm:$0xff]
        %v5220 = vld [vmem:[#allocation11 + $0x148] sm:$0xff]
        %v5221 = vld [vmem:[#allocation11 + $0x150] sm:$0xff]
        %v5222 = vld [vmem:[#allocation11 + $0x158] sm:$0xff]
        %v5223 = vld [vmem:[#allocation11 + $0x160] sm:$0xff]
        %v5224 = vld [vmem:[#allocation11 + $0x168] sm:$0xff]
        %v5225 = vld [vmem:[#allocation11 + $0x170] sm:$0xff]
        %v5226 = vld [vmem:[#allocation11 + $0x178] sm:$0xff]
        %v5227 = vld [vmem:[#allocation11 + $0x180] sm:$0xff]
        %v5228 = vld [vmem:[#allocation11 + $0x188] sm:$0xff]
        %v5229 = vld [vmem:[#allocation11 + $0x190] sm:$0xff]
        %v5230 = vld [vmem:[#allocation11 + $0x198] sm:$0xff]
        %v5231 = vld [vmem:[#allocation11 + $0x1a0] sm:$0xff]
        %v5232 = vld [vmem:[#allocation11 + $0x1a8] sm:$0xff]
        %v5233 = vld [vmem:[#allocation11 + $0x1b0] sm:$0xff]
        %v5234 = vld [vmem:[#allocation11 + $0x1b8] sm:$0xff]
        %v5235 = vld [vmem:[#allocation11 + $0x1c0] sm:$0xff]
        %v5236 = vld [vmem:[#allocation11 + $0x1c8] sm:$0xff]
        %v5237 = vld [vmem:[#allocation11 + $0x1d0] sm:$0xff]
        %v5238 = vld [vmem:[#allocation11 + $0x1d8] sm:$0xff]
        %v5239 = vld [vmem:[#allocation11 + $0x1e0] sm:$0xff]
        %v5240 = vld [vmem:[#allocation11 + $0x1e8] sm:$0xff]
        %v5241 = vld [vmem:[#allocation11 + $0x1f0] sm:$0xff]
        %v5242 = vld [vmem:[#allocation11 + $0x1f8] sm:$0xff]
        %v5243 = vld [vmem:[#allocation11 + $0x200] sm:$0xff]
        %v5244 = vld [vmem:[#allocation11 + $0x208] sm:$0xff]
        %v5245 = vld [vmem:[#allocation11 + $0x210] sm:$0xff]
        %v5246 = vld [vmem:[#allocation11 + $0x218] sm:$0xff]
        %v5247 = vld [vmem:[#allocation11 + $0x220] sm:$0xff]
        %v5248 = vld [vmem:[#allocation11 + $0x228] sm:$0xff]
        %v5249 = vld [vmem:[#allocation11 + $0x230] sm:$0xff]
        %v5250 = vld [vmem:[#allocation11 + $0x238] sm:$0xff]
        %v5251 = vld [vmem:[#allocation11 + $0x240] sm:$0xff]
        %v5252 = vld [vmem:[#allocation11 + $0x248] sm:$0xff]
        %v5253 = vld [vmem:[#allocation11 + $0x250] sm:$0xff]
        %v5254 = vld [vmem:[#allocation11 + $0x258] sm:$0xff]
        %v5255 = vld [vmem:[#allocation11 + $0x260] sm:$0xff]
        %v5256 = vld [vmem:[#allocation11 + $0x268] sm:$0xff]
        %v5257 = vld [vmem:[#allocation11 + $0x270] sm:$0xff]
        %v5258 = vld [vmem:[#allocation11 + $0x278] sm:$0xff]
        %v5259 = vld [vmem:[#allocation11 + $0x280] sm:$0xff]
        %v5260 = vld [vmem:[#allocation11 + $0x288] sm:$0xff]
        %v5261 = vld [vmem:[#allocation11 + $0x290] sm:$0xff]
        %v5262 = vld [vmem:[#allocation11 + $0x298] sm:$0xff]
        %v5263 = vld [vmem:[#allocation11 + $0x2a0] sm:$0xff]
        %v5264 = vld [vmem:[#allocation11 + $0x2a8] sm:$0xff]
        %v5265 = vld [vmem:[#allocation11 + $0x2b0] sm:$0xff]
        %v5266 = vld [vmem:[#allocation11 + $0x2b8] sm:$0xff]
        %v5267 = vld [vmem:[#allocation11 + $0x2c0] sm:$0xff]
        %v5268 = vld [vmem:[#allocation11 + $0x2c8] sm:$0xff]
        %v5269 = vld [vmem:[#allocation11 + $0x2d0] sm:$0xff]
        %v5270 = vld [vmem:[#allocation11 + $0x2d8] sm:$0xff]
        %v5271 = vld [vmem:[#allocation11 + $0x2e0] sm:$0xff]
        %v5272 = vld [vmem:[#allocation11 + $0x2e8] sm:$0xff]
        %v5273 = vld [vmem:[#allocation11 + $0x2f0] sm:$0xff]
        %v5274 = vld [vmem:[#allocation11 + $0x2f8] sm:$0xff]
        %v5275 = vld [vmem:[#allocation11 + $0x300] sm:$0xff]
        %v5276 = vld [vmem:[#allocation11 + $0x308] sm:$0xff]
        %v5277 = vld [vmem:[#allocation11 + $0x310] sm:$0xff]
        %v5278 = vld [vmem:[#allocation11 + $0x318] sm:$0xff]
        %v5279 = vld [vmem:[#allocation11 + $0x320] sm:$0xff]
        %v5280 = vld [vmem:[#allocation11 + $0x328] sm:$0xff]
        %v5281 = vld [vmem:[#allocation11 + $0x330] sm:$0xff]
        %v5282 = vld [vmem:[#allocation11 + $0x338] sm:$0xff]
        %v5283 = vld [vmem:[#allocation11 + $0x340] sm:$0xff]
        %v5284 = vld [vmem:[#allocation11 + $0x348] sm:$0xff]
        %v5285 = vld [vmem:[#allocation11 + $0x350] sm:$0xff]
        %v5286 = vld [vmem:[#allocation11 + $0x358] sm:$0xff]
        %v5287 = vld [vmem:[#allocation11 + $0x360] sm:$0xff]
        %v5288 = vld [vmem:[#allocation11 + $0x368] sm:$0xff]
        %v5289 = vld [vmem:[#allocation11 + $0x370] sm:$0xff]
        %v5290 = vld [vmem:[#allocation11 + $0x378] sm:$0xff]
        %v5291 = vld [vmem:[#allocation11 + $0x380] sm:$0xff]
        %v5292 = vld [vmem:[#allocation11 + $0x388] sm:$0xff]
        %v5293 = vld [vmem:[#allocation11 + $0x390] sm:$0xff]
        %v5294 = vld [vmem:[#allocation11 + $0x398] sm:$0xff]
        %v5295 = vld [vmem:[#allocation11 + $0x3a0] sm:$0xff]
        %v5296 = vld [vmem:[#allocation11 + $0x3a8] sm:$0xff]
        %v5297 = vld [vmem:[#allocation11 + $0x3b0] sm:$0xff]
        %v5298 = vld [vmem:[#allocation11 + $0x3b8] sm:$0xff]
        %v5299 = vld [vmem:[#allocation11 + $0x3c0] sm:$0xff]
        %v5300 = vld [vmem:[#allocation11 + $0x3c8] sm:$0xff]
        %v5301 = vld [vmem:[#allocation11 + $0x3d0] sm:$0xff]
        %v5302 = vld [vmem:[#allocation11 + $0x3d8] sm:$0xff]
        %v5303 = vld [vmem:[#allocation11 + $0x3e0] sm:$0xff]
        %v5304 = vld [vmem:[#allocation11 + $0x3e8] sm:$0xff]
        %v5305 = vld [vmem:[#allocation11 + $0x3f0] sm:$0xff]
        %v5306 = vld [vmem:[#allocation11 + $0x3f8] sm:$0xff]
        %v5307 = vld [vmem:[#allocation11 + $0x400] sm:$0xff]
        %v5308 = vld [vmem:[#allocation11 + $0x408] sm:$0xff]
        %v5309 = vld [vmem:[#allocation11 + $0x410] sm:$0xff]
        %v5310 = vld [vmem:[#allocation11 + $0x418] sm:$0xff]
        %v5311 = vld [vmem:[#allocation11 + $0x420] sm:$0xff]
        %v5312 = vld [vmem:[#allocation11 + $0x428] sm:$0xff]
        %v5313 = vld [vmem:[#allocation11 + $0x430] sm:$0xff]
        %v5314 = vld [vmem:[#allocation11 + $0x438] sm:$0xff]
        %v5315 = vld [vmem:[#allocation11 + $0x440] sm:$0xff]
        %v5316 = vld [vmem:[#allocation11 + $0x448] sm:$0xff]
        %v5317 = vld [vmem:[#allocation11 + $0x450] sm:$0xff]
        %v5318 = vld [vmem:[#allocation11 + $0x458] sm:$0xff]
        %v5319 = vld [vmem:[#allocation11 + $0x460] sm:$0xff]
        %v5320 = vld [vmem:[#allocation11 + $0x468] sm:$0xff]
        %v5321 = vld [vmem:[#allocation11 + $0x470] sm:$0xff]
        %v5322 = vld [vmem:[#allocation11 + $0x478] sm:$0xff]
        %v5323 = vld [vmem:[#allocation11 + $0x480] sm:$0xff]
        %v5324 = vld [vmem:[#allocation11 + $0x488] sm:$0xff]
        %v5325 = vld [vmem:[#allocation11 + $0x490] sm:$0xff]
        %v5326 = vld [vmem:[#allocation11 + $0x498] sm:$0xff]
        %v5327 = vld [vmem:[#allocation11 + $0x4a0] sm:$0xff]
        %v5328 = vld [vmem:[#allocation11 + $0x4a8] sm:$0xff]
        %v5329 = vld [vmem:[#allocation11 + $0x4b0] sm:$0xff]
        %v5330 = vld [vmem:[#allocation11 + $0x4b8] sm:$0xff]
        %v5331 = vld [vmem:[#allocation11 + $0x4c0] sm:$0xff]
        %v5332 = vld [vmem:[#allocation11 + $0x4c8] sm:$0xff]
        %v5333 = vld [vmem:[#allocation11 + $0x4d0] sm:$0xff]
        %v5334 = vld [vmem:[#allocation11 + $0x4d8] sm:$0xff]
        %v5335 = vld [vmem:[#allocation11 + $0x4e0] sm:$0xff]
        %v5336 = vld [vmem:[#allocation11 + $0x4e8] sm:$0xff]
        %v5337 = vld [vmem:[#allocation11 + $0x4f0] sm:$0xff]
        %v5338 = vld [vmem:[#allocation11 + $0x4f8] sm:$0xff]
        %v5339 = vld [vmem:[#allocation11 + $0x500] sm:$0xff]
        %v5340 = vld [vmem:[#allocation11 + $0x508] sm:$0xff]
        %v5341 = vld [vmem:[#allocation11 + $0x510] sm:$0xff]
        %v5342 = vld [vmem:[#allocation11 + $0x518] sm:$0xff]
        %v5343 = vld [vmem:[#allocation11 + $0x520] sm:$0xff]
        %v5344 = vld [vmem:[#allocation11 + $0x528] sm:$0xff]
        %v5345 = vld [vmem:[#allocation11 + $0x530] sm:$0xff]
        %v5346 = vld [vmem:[#allocation11 + $0x538] sm:$0xff]
        %v5347 = vld [vmem:[#allocation11 + $0x540] sm:$0xff]
        %v5348 = vld [vmem:[#allocation11 + $0x548] sm:$0xff]
        %v5349 = vld [vmem:[#allocation11 + $0x550] sm:$0xff]
        %v5350 = vld [vmem:[#allocation11 + $0x558] sm:$0xff]
        %v5351 = vld [vmem:[#allocation11 + $0x560] sm:$0xff]
        %v5352 = vld [vmem:[#allocation11 + $0x568] sm:$0xff]
        %v5353 = vld [vmem:[#allocation11 + $0x570] sm:$0xff]
        %v5354 = vld [vmem:[#allocation11 + $0x578] sm:$0xff]
        %v5355 = vld [vmem:[#allocation11 + $0x580] sm:$0xff]
        %v5356 = vld [vmem:[#allocation11 + $0x588] sm:$0xff]
        %v5357 = vld [vmem:[#allocation11 + $0x590] sm:$0xff]
        %v5358 = vld [vmem:[#allocation11 + $0x598] sm:$0xff]
        %v5359 = vld [vmem:[#allocation11 + $0x5a0] sm:$0xff]
        %v5360 = vld [vmem:[#allocation11 + $0x5a8] sm:$0xff]
        %v5361 = vld [vmem:[#allocation11 + $0x5b0] sm:$0xff]
        %v5362 = vld [vmem:[#allocation11 + $0x5b8] sm:$0xff]
        %v5363 = vld [vmem:[#allocation11 + $0x5c0] sm:$0xff]
        %v5364 = vld [vmem:[#allocation11 + $0x5c8] sm:$0xff]
        %v5365 = vld [vmem:[#allocation11 + $0x5d0] sm:$0xff]
        %v5366 = vld [vmem:[#allocation11 + $0x5d8] sm:$0xff]
        %v5367 = vld [vmem:[#allocation11 + $0x5e0] sm:$0xff]
        %v5368 = vld [vmem:[#allocation11 + $0x5e8] sm:$0xff]
        %v5369 = vld [vmem:[#allocation11 + $0x5f0] sm:$0xff]
        %v5370 = vld [vmem:[#allocation11 + $0x5f8] sm:$0xff]
        %v5371 = vld [vmem:[#allocation11 + $0x600] sm:$0xff]
        %v5372 = vld [vmem:[#allocation11 + $0x608] sm:$0xff]
        %v5373 = vld [vmem:[#allocation11 + $0x610] sm:$0xff]
        %v5374 = vld [vmem:[#allocation11 + $0x618] sm:$0xff]
        %v5375 = vld [vmem:[#allocation11 + $0x620] sm:$0xff]
        %v5376 = vld [vmem:[#allocation11 + $0x628] sm:$0xff]
        %v5377 = vld [vmem:[#allocation11 + $0x630] sm:$0xff]
        %v5378 = vld [vmem:[#allocation11 + $0x638] sm:$0xff]
        %v5379 = vld [vmem:[#allocation11 + $0x640] sm:$0xff]
        %v5380 = vld [vmem:[#allocation11 + $0x648] sm:$0xff]
        %v5381 = vld [vmem:[#allocation11 + $0x650] sm:$0xff]
        %v5382 = vld [vmem:[#allocation11 + $0x658] sm:$0xff]
        %v5383 = vld [vmem:[#allocation11 + $0x660] sm:$0xff]
        %v5384 = vld [vmem:[#allocation11 + $0x668] sm:$0xff]
        %v5385 = vld [vmem:[#allocation11 + $0x670] sm:$0xff]
        %v5386 = vld [vmem:[#allocation11 + $0x678] sm:$0xff]
        %v5387 = vld [vmem:[#allocation11 + $0x680] sm:$0xff]
        %v5388 = vld [vmem:[#allocation11 + $0x688] sm:$0xff]
        %v5389 = vld [vmem:[#allocation11 + $0x690] sm:$0xff]
        %v5390 = vld [vmem:[#allocation11 + $0x698] sm:$0xff]
        %v5391 = vld [vmem:[#allocation11 + $0x6a0] sm:$0xff]
        %v5392 = vld [vmem:[#allocation11 + $0x6a8] sm:$0xff]
        %v5393 = vld [vmem:[#allocation11 + $0x6b0] sm:$0xff]
        %v5394 = vld [vmem:[#allocation11 + $0x6b8] sm:$0xff]
        %v5395 = vld [vmem:[#allocation11 + $0x6c0] sm:$0xff]
        %v5396 = vld [vmem:[#allocation11 + $0x6c8] sm:$0xff]
        %v5397 = vld [vmem:[#allocation11 + $0x6d0] sm:$0xff]
        %v5398 = vld [vmem:[#allocation11 + $0x6d8] sm:$0xff]
        %v5399 = vld [vmem:[#allocation11 + $0x6e0] sm:$0xff]
        %v5400 = vld [vmem:[#allocation11 + $0x6e8] sm:$0xff]
        %v5401 = vld [vmem:[#allocation11 + $0x6f0] sm:$0xff]
        %v5402 = vld [vmem:[#allocation11 + $0x6f8] sm:$0xff]
        %v5403 = vld [vmem:[#allocation11 + $0x700] sm:$0xff]
        %v5404 = vld [vmem:[#allocation11 + $0x708] sm:$0xff]
        %v5405 = vld [vmem:[#allocation11 + $0x710] sm:$0xff]
        %v5406 = vld [vmem:[#allocation11 + $0x718] sm:$0xff]
        %v5407 = vld [vmem:[#allocation11 + $0x720] sm:$0xff]
        %v5408 = vld [vmem:[#allocation11 + $0x728] sm:$0xff]
        %v5409 = vld [vmem:[#allocation11 + $0x730] sm:$0xff]
        %v5410 = vld [vmem:[#allocation11 + $0x738] sm:$0xff]
        %v5411 = vld [vmem:[#allocation11 + $0x740] sm:$0xff]
        %v5412 = vld [vmem:[#allocation11 + $0x748] sm:$0xff]
        %v5413 = vld [vmem:[#allocation11 + $0x750] sm:$0xff]
        %v5414 = vld [vmem:[#allocation11 + $0x758] sm:$0xff]
        %v5415 = vld [vmem:[#allocation11 + $0x760] sm:$0xff]
        %v5416 = vld [vmem:[#allocation11 + $0x768] sm:$0xff]
        %v5417 = vld [vmem:[#allocation11 + $0x770] sm:$0xff]
        %v5418 = vld [vmem:[#allocation11 + $0x778] sm:$0xff]
        %v5419 = vld [vmem:[#allocation11 + $0x780] sm:$0xff]
        %v5420 = vld [vmem:[#allocation11 + $0x788] sm:$0xff]
        %v5421 = vld [vmem:[#allocation11 + $0x790] sm:$0xff]
        %v5422 = vld [vmem:[#allocation11 + $0x798] sm:$0xff]
        %v5423 = vld [vmem:[#allocation11 + $0x7a0] sm:$0xff]
        %v5424 = vld [vmem:[#allocation11 + $0x7a8] sm:$0xff]
        %v5425 = vld [vmem:[#allocation11 + $0x7b0] sm:$0xff]
        %v5426 = vld [vmem:[#allocation11 + $0x7b8] sm:$0xff]
        %v5427 = vld [vmem:[#allocation11 + $0x7c0] sm:$0xff]
        %v5428 = vld [vmem:[#allocation11 + $0x7c8] sm:$0xff]
        %v5429 = vld [vmem:[#allocation11 + $0x7d0] sm:$0xff]
        %v5430 = vld [vmem:[#allocation11 + $0x7d8] sm:$0xff]
        %v5431 = vld [vmem:[#allocation11 + $0x7e0] sm:$0xff]
        %v5432 = vld [vmem:[#allocation11 + $0x7e8] sm:$0xff]
        %v5433 = vld [vmem:[#allocation11 + $0x7f0] sm:$0xff]
        %v5434 = vld [vmem:[#allocation11 + $0x7f8] sm:$0xff]
        %v5435 = vld [vmem:[#allocation11 + $0x800] sm:$0xff]
        %v5436 = vld [vmem:[#allocation11 + $0x808] sm:$0xff]
        %v5437 = vld [vmem:[#allocation11 + $0x810] sm:$0xff]
        %v5438 = vld [vmem:[#allocation11 + $0x818] sm:$0xff]
        %v5439 = vld [vmem:[#allocation11 + $0x820] sm:$0xff]
        %v5440 = vld [vmem:[#allocation11 + $0x828] sm:$0xff]
        %v5441 = vld [vmem:[#allocation11 + $0x830] sm:$0xff]
        %v5442 = vld [vmem:[#allocation11 + $0x838] sm:$0xff]
        %v5443 = vld [vmem:[#allocation11 + $0x840] sm:$0xff]
        %v5444 = vld [vmem:[#allocation11 + $0x848] sm:$0xff]
        %v5445 = vld [vmem:[#allocation11 + $0x850] sm:$0xff]
        %v5446 = vld [vmem:[#allocation11 + $0x858] sm:$0xff]
        %v5447 = vld [vmem:[#allocation11 + $0x860] sm:$0xff]
        %v5448 = vld [vmem:[#allocation11 + $0x868] sm:$0xff]
        %v5449 = vld [vmem:[#allocation11 + $0x870] sm:$0xff]
        %v5450 = vld [vmem:[#allocation11 + $0x878] sm:$0xff]
        %v5451 = vld [vmem:[#allocation11 + $0x880] sm:$0xff]
        %v5452 = vld [vmem:[#allocation11 + $0x888] sm:$0xff]
        %v5453 = vld [vmem:[#allocation11 + $0x890] sm:$0xff]
        %v5454 = vld [vmem:[#allocation11 + $0x898] sm:$0xff]
        %v5455 = vld [vmem:[#allocation11 + $0x8a0] sm:$0xff]
        %v5456 = vld [vmem:[#allocation11 + $0x8a8] sm:$0xff]
        %v5457 = vld [vmem:[#allocation11 + $0x8b0] sm:$0xff]
        %v5458 = vld [vmem:[#allocation11 + $0x8b8] sm:$0xff]
        %v5459 = vld [vmem:[#allocation11 + $0x8c0] sm:$0xff]
        %v5460 = vld [vmem:[#allocation11 + $0x8c8] sm:$0xff]
        %v5461 = vld [vmem:[#allocation11 + $0x8d0] sm:$0xff]
        %v5462 = vld [vmem:[#allocation11 + $0x8d8] sm:$0xff]
        %v5463 = vld [vmem:[#allocation11 + $0x8e0] sm:$0xff]
        %v5464 = vld [vmem:[#allocation11 + $0x8e8] sm:$0xff]
        %v5465 = vld [vmem:[#allocation11 + $0x8f0] sm:$0xff]
        %v5466 = vld [vmem:[#allocation11 + $0x8f8] sm:$0xff]
        %v5467 = vld [vmem:[#allocation11 + $0x900] sm:$0xff]
        %v5468 = vld [vmem:[#allocation11 + $0x908] sm:$0xff]
        %v5469 = vld [vmem:[#allocation11 + $0x910] sm:$0xff]
        %v5470 = vld [vmem:[#allocation11 + $0x918] sm:$0xff]
        %v5471 = vld [vmem:[#allocation11 + $0x920] sm:$0xff]
        %v5472 = vld [vmem:[#allocation11 + $0x928] sm:$0xff]
        %v5473 = vld [vmem:[#allocation11 + $0x930] sm:$0xff]
        %v5474 = vld [vmem:[#allocation11 + $0x938] sm:$0xff]
        %v5475 = vld [vmem:[#allocation11 + $0x940] sm:$0xff]
        %v5476 = vld [vmem:[#allocation11 + $0x948] sm:$0xff]
        %v5477 = vld [vmem:[#allocation11 + $0x950] sm:$0xff]
        %v5478 = vld [vmem:[#allocation11 + $0x958] sm:$0xff]
        %v5479 = vld [vmem:[#allocation11 + $0x960] sm:$0xff]
        %v5480 = vld [vmem:[#allocation11 + $0x968] sm:$0xff]
        %v5481 = vld [vmem:[#allocation11 + $0x970] sm:$0xff]
        %v5482 = vld [vmem:[#allocation11 + $0x978] sm:$0xff]
        %v5483 = vld [vmem:[#allocation11 + $0x980] sm:$0xff]
        %v5484 = vld [vmem:[#allocation11 + $0x988] sm:$0xff]
        %v5485 = vld [vmem:[#allocation11 + $0x990] sm:$0xff]
        %v5486 = vld [vmem:[#allocation11 + $0x998] sm:$0xff]
        %v5487 = vld [vmem:[#allocation11 + $0x9a0] sm:$0xff]
        %v5488 = vld [vmem:[#allocation11 + $0x9a8] sm:$0xff]
        %v5489 = vld [vmem:[#allocation11 + $0x9b0] sm:$0xff]
        %v5490 = vld [vmem:[#allocation11 + $0x9b8] sm:$0xff]
        %v5491 = vld [vmem:[#allocation11 + $0x9c0] sm:$0xff]
        %v5492 = vld [vmem:[#allocation11 + $0x9c8] sm:$0xff]
        %v5493 = vld [vmem:[#allocation11 + $0x9d0] sm:$0xff]
        %v5494 = vld [vmem:[#allocation11 + $0x9d8] sm:$0xff]
        %v5495 = vld [vmem:[#allocation11 + $0x9e0] sm:$0xff]
        %v5496 = vld [vmem:[#allocation11 + $0x9e8] sm:$0xff]
        %v5497 = vld [vmem:[#allocation11 + $0x9f0] sm:$0xff]
        %v5498 = vld [vmem:[#allocation11 + $0x9f8] sm:$0xff]
        %v5499 = vld [vmem:[#allocation11 + $0xa00] sm:$0xff]
        %v5500 = vld [vmem:[#allocation11 + $0xa08] sm:$0xff]
        %v5501 = vld [vmem:[#allocation11 + $0xa10] sm:$0xff]
        %v5502 = vld [vmem:[#allocation11 + $0xa18] sm:$0xff]
        %v5503 = vld [vmem:[#allocation11 + $0xa20] sm:$0xff]
        %v5504 = vld [vmem:[#allocation11 + $0xa28] sm:$0xff]
        %v5505 = vld [vmem:[#allocation11 + $0xa30] sm:$0xff]
        %v5506 = vld [vmem:[#allocation11 + $0xa38] sm:$0xff]
        %v5507 = vld [vmem:[#allocation11 + $0xa40] sm:$0xff]
        %v5508 = vld [vmem:[#allocation11 + $0xa48] sm:$0xff]
        %v5509 = vld [vmem:[#allocation11 + $0xa50] sm:$0xff]
        %v5510 = vld [vmem:[#allocation11 + $0xa58] sm:$0xff]
        %v5511 = vld [vmem:[#allocation11 + $0xa60] sm:$0xff]
        %v5512 = vld [vmem:[#allocation11 + $0xa68] sm:$0xff]
        %v5513 = vld [vmem:[#allocation11 + $0xa70] sm:$0xff]
        %v5514 = vld [vmem:[#allocation11 + $0xa78] sm:$0xff]
        %v5515 = vld [vmem:[#allocation11 + $0xa80] sm:$0xff]
        %v5516 = vld [vmem:[#allocation11 + $0xa88] sm:$0xff]
        %v5517 = vld [vmem:[#allocation11 + $0xa90] sm:$0xff]
        %v5518 = vld [vmem:[#allocation11 + $0xa98] sm:$0xff]
        %v5519 = vld [vmem:[#allocation11 + $0xaa0] sm:$0xff]
        %v5520 = vld [vmem:[#allocation11 + $0xaa8] sm:$0xff]
        %v5521 = vld [vmem:[#allocation11 + $0xab0] sm:$0xff]
        %v5522 = vld [vmem:[#allocation11 + $0xab8] sm:$0xff]
        %v5523 = vld [vmem:[#allocation11 + $0xac0] sm:$0xff]
        %v5524 = vld [vmem:[#allocation11 + $0xac8] sm:$0xff]
        %v5525 = vld [vmem:[#allocation11 + $0xad0] sm:$0xff]
        %v5526 = vld [vmem:[#allocation11 + $0xad8] sm:$0xff]
        %v5527 = vld [vmem:[#allocation11 + $0xae0] sm:$0xff]
        %v5528 = vld [vmem:[#allocation11 + $0xae8] sm:$0xff]
        %v5529 = vld [vmem:[#allocation11 + $0xaf0] sm:$0xff]
        %v5530 = vld [vmem:[#allocation11 + $0xaf8] sm:$0xff]
        %v5531 = vld [vmem:[#allocation11 + $0xb00] sm:$0xff]
        %v5532 = vld [vmem:[#allocation11 + $0xb08] sm:$0xff]
        %v5533 = vld [vmem:[#allocation11 + $0xb10] sm:$0xff]
        %v5534 = vld [vmem:[#allocation11 + $0xb18] sm:$0xff]
        %v5535 = vld [vmem:[#allocation11 + $0xb20] sm:$0xff]
        %v5536 = vld [vmem:[#allocation11 + $0xb28] sm:$0xff]
        %v5537 = vld [vmem:[#allocation11 + $0xb30] sm:$0xff]
        %v5538 = vld [vmem:[#allocation11 + $0xb38] sm:$0xff]
        %v5539 = vld [vmem:[#allocation11 + $0xb40] sm:$0xff]
        %v5540 = vld [vmem:[#allocation11 + $0xb48] sm:$0xff]
        %v5541 = vld [vmem:[#allocation11 + $0xb50] sm:$0xff]
        %v5542 = vld [vmem:[#allocation11 + $0xb58] sm:$0xff]
        %v5543 = vld [vmem:[#allocation11 + $0xb60] sm:$0xff]
        %v5544 = vld [vmem:[#allocation11 + $0xb68] sm:$0xff]
        %v5545 = vld [vmem:[#allocation11 + $0xb70] sm:$0xff]
        %v5546 = vld [vmem:[#allocation11 + $0xb78] sm:$0xff]
        %v5547 = vld [vmem:[#allocation11 + $0xb80] sm:$0xff]
        %v5548 = vld [vmem:[#allocation11 + $0xb88] sm:$0xff]
        %v5549 = vld [vmem:[#allocation11 + $0xb90] sm:$0xff]
        %v5550 = vld [vmem:[#allocation11 + $0xb98] sm:$0xff]
        %v5551 = vld [vmem:[#allocation11 + $0xba0] sm:$0xff]
        %v5552 = vld [vmem:[#allocation11 + $0xba8] sm:$0xff]
        %v5553 = vld [vmem:[#allocation11 + $0xbb0] sm:$0xff]
        %v5554 = vld [vmem:[#allocation11 + $0xbb8] sm:$0xff]
        %v5555 = vld [vmem:[#allocation11 + $0xbc0] sm:$0xff]
        %v5556 = vld [vmem:[#allocation11 + $0xbc8] sm:$0xff]
        %v5557 = vld [vmem:[#allocation11 + $0xbd0] sm:$0xff]
        %v5558 = vld [vmem:[#allocation11 + $0xbd8] sm:$0xff]
        %v5559 = vld [vmem:[#allocation11 + $0xbe0] sm:$0xff]
        %v5560 = vld [vmem:[#allocation11 + $0xbe8] sm:$0xff]
        %v5561 = vld [vmem:[#allocation11 + $0xbf0] sm:$0xff]
        %v5562 = vld [vmem:[#allocation11 + $0xbf8] sm:$0xff]
        %v5564 = vlaneseq
        %v5565 = vshrl.u32 %v5564, 7
        %v5566 = vsub.s32 0, %v5565
        %v5567 = vrot.slane %v4638, %v5566
        %v5568 = vlaneseq
        %v5569 = vshrl.u32 %v5568, 7
        %v5570 = vsub.s32 1, %v5569
        %v5571 = vrot.slane %v4638, %v5570
        %v5572 = vlaneseq
        %v5573 = vshrl.u32 %v5572, 7
        %v5574 = vsub.s32 2, %v5573
        %v5575 = vrot.slane %v4638, %v5574
        %v5576 = vlaneseq
        %v5577 = vshrl.u32 %v5576, 7
        %v5578 = vsub.s32 3, %v5577
        %v5579 = vrot.slane %v4638, %v5578
        %5584 = vmatprep.subr.mxu0 %v5180
        %5585 = vmatpush1.msra.mxu0 %v5179
        %5586 = vmatprep.subr.mxu0 %v5184
        %5587 = vmatpush1.msra.mxu0 %v5183
        %5588 = vmatprep.subr.mxu0 %v5188
        %5589 = vmatpush1.msra.mxu0 %v5187
        %5590 = vmatprep.subr.mxu0 %v5192
        %5591 = vmatpush1.msra.mxu0 %v5191
        %5592 = vmatprep.subr.mxu0 %v5196
        %5593 = vmatpush1.msra.mxu0 %v5195
        %5594 = vmatprep.subr.mxu0 %v5200
        %5595 = vmatpush1.msra.mxu0 %v5199
        %5596 = vmatprep.subr.mxu0 %v5204
        %5597 = vmatpush1.msra.mxu0 %v5203
        %5598 = vmatprep.subr.mxu0 %v5208
        %5599 = vmatpush1.msra.mxu0 %v5207
        %5600 = vmatprep.subr.mxu0 %v5212
        %5601 = vmatpush1.msra.mxu0 %v5211
        %5602 = vmatprep.subr.mxu0 %v5216
        %5603 = vmatpush1.msra.mxu0 %v5215
        %5604 = vmatprep.subr.mxu0 %v5220
        %5605 = vmatpush1.msra.mxu0 %v5219
        %5606 = vmatprep.subr.mxu0 %v5224
        %5607 = vmatpush1.msra.mxu0 %v5223
        %5608 = vmatprep.subr.mxu0 %v5228
        %5609 = vmatpush1.msra.mxu0 %v5227
        %5610 = vmatprep.subr.mxu0 %v5232
        %5611 = vmatpush1.msra.mxu0 %v5231
        %5612 = vmatprep.subr.mxu0 %v5236
        %5613 = vmatpush1.msra.mxu0 %v5235
        %5614 = vmatprep.subr.mxu0 %v5240
        %5615 = vmatpush1.msra.mxu0 %v5239
        %5616 = vmatprep.subr.mxu0 %v5244
        %5617 = vmatpush1.msra.mxu0 %v5243
        %5618 = vmatprep.subr.mxu0 %v5248
        %5619 = vmatpush1.msra.mxu0 %v5247
        %5620 = vmatprep.subr.mxu0 %v5252
        %5621 = vmatpush1.msra.mxu0 %v5251
        %5622 = vmatprep.subr.mxu0 %v5256
        %5623 = vmatpush1.msra.mxu0 %v5255
        %5624 = vmatprep.subr.mxu0 %v5260
        %5625 = vmatpush1.msra.mxu0 %v5259
        %5626 = vmatprep.subr.mxu0 %v5264
        %5627 = vmatpush1.msra.mxu0 %v5263
        %5628 = vmatprep.subr.mxu0 %v5268
        %5629 = vmatpush1.msra.mxu0 %v5267
        %5630 = vmatprep.subr.mxu0 %v5272
        %5631 = vmatpush1.msra.mxu0 %v5271
        %5632 = vmatprep.subr.mxu0 %v5276
        %5633 = vmatpush1.msra.mxu0 %v5275
        %5634 = vmatprep.subr.mxu0 %v5280
        %5635 = vmatpush1.msra.mxu0 %v5279
        %5636 = vmatprep.subr.mxu0 %v5284
        %5637 = vmatpush1.msra.mxu0 %v5283
        %5638 = vmatprep.subr.mxu0 %v5288
        %5639 = vmatpush1.msra.mxu0 %v5287
        %5640 = vmatprep.subr.mxu0 %v5292
        %5641 = vmatpush1.msra.mxu0 %v5291
        %5642 = vmatprep.subr.mxu0 %v5296
        %5643 = vmatpush1.msra.mxu0 %v5295
        %5644 = vmatprep.subr.mxu0 %v5300
        %5645 = vmatpush1.msra.mxu0 %v5299
        %5646 = vmatprep.subr.mxu0 %v5304
        %5647 = vmatpush1.msra.mxu0 %v5303
        %5648 = vmatprep.mubr.f32.mxu0 %v4944
        %5649 = vmatmul.mubr.f32.gmra.mrb[0].mxu0 %v4943
        %v5650 = vpop.f32.mrb[0].mxu0
        %v5651 = vadd.f32 %v5567, %v5650
        %v5652 = vpop.f32.mrb[0].mxu0
        %v5653 = vadd.f32 %v5571, %v5652
        %5654 = vmatprep.mubr.f32.mxu0 %v4946
        %5655 = vmatmul.mubr.f32.gmra.mrb[0].mxu0 %v4945
        %v5656 = vpop.f32.mrb[0].mxu0
        %v5657 = vadd.f32 %v5567, %v5656
        %v5658 = vpop.f32.mrb[0].mxu0
        %v5659 = vadd.f32 %v5571, %v5658
        %5660 = vmatprep.mubr.f32.mxu0 %v4948
        %5661 = vmatmul.mubr.f32.gmra.mrb[0].mxu0 %v4947
        %v5662 = vpop.f32.mrb[0].mxu0
        %v5663 = vadd.f32 %v5567, %v5662
        %v5664 = vpop.f32.mrb[0].mxu0
        %v5665 = vadd.f32 %v5571, %v5664
        %5666 = vmatprep.mubr.f32.mxu0 %v4950
        %5667 = vmatmul.mubr.f32.gmra.mrb[0].mxu0 %v4949
        %v5668 = vpop.f32.mrb[0].mxu0
        %v5669 = vadd.f32 %v5567, %v5668
        %v5670 = vpop.f32.mrb[0].mxu0
        %v5671 = vadd.f32 %v5571, %v5670
        %5672 = vmatprep.mubr.f32.mxu0 %v4952
        %5673 = vmatmul.mubr.f32.gmra.mrb[0].mxu0 %v4951
        %v5674 = vpop.f32.mrb[0].mxu0
        %v5675 = vadd.f32 %v5567, %v5674
        %v5676 = vpop.f32.mrb[0].mxu0
        %v5677 = vadd.f32 %v5571, %v5676
        %5678 = vmatprep.mubr.f32.mxu0 %v4954
        %5679 = vmatmul.mubr.f32.gmra.mrb[0].mxu0 %v4953
        %v5680 = vpop.f32.mrb[0].mxu0
        %v5681 = vadd.f32 %v5567, %v5680
        %v5682 = vpop.f32.mrb[0].mxu0
        %v5683 = vadd.f32 %v5571, %v5682
        %5684 = vdwg.mxu0
        %5685 = vmatprep.subr.mxu0 %v5308
        %5686 = vmatpush1.msra.mxu0 %v5307
        %5687 = vmatprep.subr.mxu0 %v5312
        %5688 = vmatpush1.msra.mxu0 %v5311
        %5689 = vmatprep.subr.mxu0 %v5316
        %5690 = vmatpush1.msra.mxu0 %v5315
        %5691 = vmatprep.subr.mxu0 %v5320
        %5692 = vmatpush1.msra.mxu0 %v5319
        %5693 = vmatprep.subr.mxu0 %v5324
        %5694 = vmatpush1.msra.mxu0 %v5323
        %5695 = vmatprep.subr.mxu0 %v5328
        %5696 = vmatpush1.msra.mxu0 %v5327
        %5697 = vmatprep.subr.mxu0 %v5332
        %5698 = vmatpush1.msra.mxu0 %v5331
        %5699 = vmatprep.subr.mxu0 %v5336
        %5700 = vmatpush1.msra.mxu0 %v5335
        %5701 = vmatprep.subr.mxu0 %v5340
        %5702 = vmatpush1.msra.mxu0 %v5339
        %5703 = vmatprep.subr.mxu0 %v5344
        %5704 = vmatpush1.msra.mxu0 %v5343
        %5705 = vmatprep.subr.mxu0 %v5348
        %5706 = vmatpush1.msra.mxu0 %v5347
        %5707 = vmatprep.subr.mxu0 %v5352
        %5708 = vmatpush1.msra.mxu0 %v5351
        %5709 = vmatprep.subr.mxu0 %v5356
        %5710 = vmatpush1.msra.mxu0 %v5355
        %5711 = vmatprep.subr.mxu0 %v5360
        %5712 = vmatpush1.msra.mxu0 %v5359
        %5713 = vmatprep.subr.mxu0 %v5364
        %5714 = vmatpush1.msra.mxu0 %v5363
        %5715 = vmatprep.subr.mxu0 %v5368
        %5716 = vmatpush1.msra.mxu0 %v5367
        %5717 = vmatprep.subr.mxu0 %v5372
        %5718 = vmatpush1.msra.mxu0 %v5371
        %5719 = vmatprep.subr.mxu0 %v5376
        %5720 = vmatpush1.msra.mxu0 %v5375
        %5721 = vmatprep.subr.mxu0 %v5380
        %5722 = vmatpush1.msra.mxu0 %v5379
        %5723 = vmatprep.subr.mxu0 %v5384
        %5724 = vmatpush1.msra.mxu0 %v5383
        %5725 = vmatprep.subr.mxu0 %v5388
        %5726 = vmatpush1.msra.mxu0 %v5387
        %5727 = vmatprep.subr.mxu0 %v5392
        %5728 = vmatpush1.msra.mxu0 %v5391
        %5729 = vmatprep.subr.mxu0 %v5396
        %5730 = vmatpush1.msra.mxu0 %v5395
        %5731 = vmatprep.subr.mxu0 %v5400
        %5732 = vmatpush1.msra.mxu0 %v5399
        %5733 = vmatprep.subr.mxu0 %v5404
        %5734 = vmatpush1.msra.mxu0 %v5403
        %5735 = vmatprep.subr.mxu0 %v5408
        %5736 = vmatpush1.msra.mxu0 %v5407
        %5737 = vmatprep.subr.mxu0 %v5412
        %5738 = vmatpush1.msra.mxu0 %v5411
        %5739 = vmatprep.subr.mxu0 %v5416
        %5740 = vmatpush1.msra.mxu0 %v5415
        %5741 = vmatprep.subr.mxu0 %v5420
        %5742 = vmatpush1.msra.mxu0 %v5419
        %5743 = vmatprep.subr.mxu0 %v5424
        %5744 = vmatpush1.msra.mxu0 %v5423
        %5745 = vmatprep.subr.mxu0 %v5428
        %5746 = vmatpush1.msra.mxu0 %v5427
        %5747 = vmatprep.subr.mxu0 %v5432
        %5748 = vmatpush1.msra.mxu0 %v5431
        %5749 = vmatprep.mubr.f32.mxu0 %v5096
        %5750 = vmatmul.mubr.f32.gmra.mrb[0].mxu0 %v5089
        %v5751 = vpop.f32.mrb[0].mxu0
        %v5752 = vadd.f32 %v5651, %v5751
        %v5753 = vpop.f32.mrb[0].mxu0
        %v5754 = vadd.f32 %v5653, %v5753
        %5755 = vmatprep.mubr.f32.mxu0 %v5110
        %5756 = vmatmul.mubr.f32.gmra.mrb[0].mxu0 %v5103
        %v5757 = vpop.f32.mrb[0].mxu0
        %v5758 = vadd.f32 %v5657, %v5757
        %v5759 = vpop.f32.mrb[0].mxu0
        %v5760 = vadd.f32 %v5659, %v5759
        %5761 = vmatprep.mubr.f32.mxu0 %v5124
        %5762 = vmatmul.mubr.f32.gmra.mrb[0].mxu0 %v5117
        %v5763 = vpop.f32.mrb[0].mxu0
        %v5764 = vadd.f32 %v5663, %v5763
        %v5765 = vpop.f32.mrb[0].mxu0
        %v5766 = vadd.f32 %v5665, %v5765
        %5767 = vmatprep.mubr.f32.mxu0 %v5138
        %5768 = vmatmul.mubr.f32.gmra.mrb[0].mxu0 %v5131
        %v5769 = vpop.f32.mrb[0].mxu0
        %v5770 = vadd.f32 %v5669, %v5769
        %v5771 = vpop.f32.mrb[0].mxu0
        %v5772 = vadd.f32 %v5671, %v5771
        %5773 = vmatprep.mubr.f32.mxu0 %v5152
        %5774 = vmatmul.mubr.f32.gmra.mrb[0].mxu0 %v5145
        %v5775 = vpop.f32.mrb[0].mxu0
        %v5776 = vadd.f32 %v5675, %v5775
        %v5777 = vpop.f32.mrb[0].mxu0
        %v5778 = vadd.f32 %v5677, %v5777
        %5779 = vmatprep.mubr.f32.mxu0 %v5166
        %5780 = vmatmul.mubr.f32.gmra.mrb[0].mxu0 %v5159
        %v5781 = vpop.f32.mrb[0].mxu0
        %v5782 = vadd.f32 %v5681, %v5781
        %v5783 = vpop.f32.mrb[0].mxu0
        %v5784 = vadd.f32 %v5683, %v5783
        %5785 = vdwg.mxu0
        %5786 = vmatprep.subr.mxu0 %v5436
        %5787 = vmatpush1.msra.mxu0 %v5435
        %5788 = vmatprep.subr.mxu0 %v5440
        %5789 = vmatpush1.msra.mxu0 %v5439
        %5790 = vmatprep.subr.mxu0 %v5444
        %5791 = vmatpush1.msra.mxu0 %v5443
        %5792 = vmatprep.subr.mxu0 %v5448
        %5793 = vmatpush1.msra.mxu0 %v5447
        %5794 = vmatprep.subr.mxu0 %v5452
        %5795 = vmatpush1.msra.mxu0 %v5451
        %5796 = vmatprep.subr.mxu0 %v5456
        %5797 = vmatpush1.msra.mxu0 %v5455
        %5798 = vmatprep.subr.mxu0 %v5460
        %5799 = vmatpush1.msra.mxu0 %v5459
        %5800 = vmatprep.subr.mxu0 %v5464
        %5801 = vmatpush1.msra.mxu0 %v5463
        %5802 = vmatprep.subr.mxu0 %v5468
        %5803 = vmatpush1.msra.mxu0 %v5467
        %5804 = vmatprep.subr.mxu0 %v5472
        %5805 = vmatpush1.msra.mxu0 %v5471
        %5806 = vmatprep.subr.mxu0 %v5476
        %5807 = vmatpush1.msra.mxu0 %v5475
        %5808 = vmatprep.subr.mxu0 %v5480
        %5809 = vmatpush1.msra.mxu0 %v5479
        %5810 = vmatprep.subr.mxu0 %v5484
        %5811 = vmatpush1.msra.mxu0 %v5483
        %5812 = vmatprep.subr.mxu0 %v5488
        %5813 = vmatpush1.msra.mxu0 %v5487
        %5814 = vmatprep.subr.mxu0 %v5492
        %5815 = vmatpush1.msra.mxu0 %v5491
        %5816 = vmatprep.subr.mxu0 %v5496
        %5817 = vmatpush1.msra.mxu0 %v5495
        %5818 = vmatprep.subr.mxu0 %v5500
        %5819 = vmatpush1.msra.mxu0 %v5499
        %5820 = vmatprep.subr.mxu0 %v5504
        %5821 = vmatpush1.msra.mxu0 %v5503
        %5822 = vmatprep.subr.mxu0 %v5508
        %5823 = vmatpush1.msra.mxu0 %v5507
        %5824 = vmatprep.subr.mxu0 %v5512
        %5825 = vmatpush1.msra.mxu0 %v5511
        %5826 = vmatprep.subr.mxu0 %v5516
        %5827 = vmatpush1.msra.mxu0 %v5515
        %5828 = vmatprep.subr.mxu0 %v5520
        %5829 = vmatpush1.msra.mxu0 %v5519
        %5830 = vmatprep.subr.mxu0 %v5524
        %5831 = vmatpush1.msra.mxu0 %v5523
        %5832 = vmatprep.subr.mxu0 %v5528
        %5833 = vmatpush1.msra.mxu0 %v5527
        %5834 = vmatprep.subr.mxu0 %v5532
        %5835 = vmatpush1.msra.mxu0 %v5531
        %5836 = vmatprep.subr.mxu0 %v5536
        %5837 = vmatpush1.msra.mxu0 %v5535
        %5838 = vmatprep.subr.mxu0 %v5540
        %5839 = vmatpush1.msra.mxu0 %v5539
        %5840 = vmatprep.subr.mxu0 %v5544
        %5841 = vmatpush1.msra.mxu0 %v5543
        %5842 = vmatprep.subr.mxu0 %v5548
        %5843 = vmatpush1.msra.mxu0 %v5547
        %5844 = vmatprep.subr.mxu0 %v5552
        %5845 = vmatpush1.msra.mxu0 %v5551
        %5846 = vmatprep.subr.mxu0 %v5556
        %5847 = vmatpush1.msra.mxu0 %v5555
        %5848 = vmatprep.subr.mxu0 %v5560
        %5849 = vmatpush1.msra.mxu0 %v5559
        %5850 = vmatprep.mubr.f32.mxu0 %v5072
        %5851 = vmatmul.mubr.f32.gmra.mrb[0].mxu0 %v5071
        %v5852 = vpop.f32.mrb[0].mxu0
        %v5853 = vadd.f32 %v5752, %v5852
        %v5854 = vpop.f32.mrb[0].mxu0
        %v5855 = vadd.f32 %v5754, %v5854
        %5856 = vmatprep.mubr.f32.mxu0 %v5074
        %5857 = vmatmul.mubr.f32.gmra.mrb[0].mxu0 %v5073
        %v5858 = vpop.f32.mrb[0].mxu0
        %v5859 = vadd.f32 %v5758, %v5858
        %v5860 = vpop.f32.mrb[0].mxu0
        %v5861 = vadd.f32 %v5760, %v5860
        %5862 = vmatprep.mubr.f32.mxu0 %v5076
        %5863 = vmatmul.mubr.f32.gmra.mrb[0].mxu0 %v5075
        %v5864 = vpop.f32.mrb[0].mxu0
        %v5865 = vadd.f32 %v5764, %v5864
        %v5866 = vpop.f32.mrb[0].mxu0
        %v5867 = vadd.f32 %v5766, %v5866
        %5868 = vmatprep.mubr.f32.mxu0 %v5078
        %5869 = vmatmul.mubr.f32.gmra.mrb[0].mxu0 %v5077
        %v5870 = vpop.f32.mrb[0].mxu0
        %v5871 = vadd.f32 %v5770, %v5870
        %v5872 = vpop.f32.mrb[0].mxu0
        %v5873 = vadd.f32 %v5772, %v5872
        %5874 = vmatprep.mubr.f32.mxu0 %v5080
        %5875 = vmatmul.mubr.f32.gmra.mrb[0].mxu0 %v5079
        %v5876 = vpop.f32.mrb[0].mxu0
        %v5877 = vadd.f32 %v5776, %v5876
        %v5878 = vpop.f32.mrb[0].mxu0
        %v5879 = vadd.f32 %v5778, %v5878
        %5880 = vmatprep.mubr.f32.mxu0 %v5082
        %5881 = vmatmul.mubr.f32.gmra.mrb[0].mxu0 %v5081
        %v5882 = vpop.f32.mrb[0].mxu0
        %v5883 = vadd.f32 %v5782, %v5882
        %v5884 = vpop.f32.mrb[0].mxu0
        %v5885 = vadd.f32 %v5784, %v5884
        %5886 = vdwg.mxu0
        %5887 = vmatprep.subr.mxu0 %v5182
        %5888 = vmatpush1.msra.mxu0 %v5181
        %5889 = vmatprep.subr.mxu0 %v5186
        %5890 = vmatpush1.msra.mxu0 %v5185
        %5891 = vmatprep.subr.mxu0 %v5190
        %5892 = vmatpush1.msra.mxu0 %v5189
        %5893 = vmatprep.subr.mxu0 %v5194
        %5894 = vmatpush1.msra.mxu0 %v5193
        %5895 = vmatprep.subr.mxu0 %v5198
        %5896 = vmatpush1.msra.mxu0 %v5197
        %5897 = vmatprep.subr.mxu0 %v5202
        %5898 = vmatpush1.msra.mxu0 %v5201
        %5899 = vmatprep.subr.mxu0 %v5206
        %5900 = vmatpush1.msra.mxu0 %v5205
        %5901 = vmatprep.subr.mxu0 %v5210
        %5902 = vmatpush1.msra.mxu0 %v5209
        %5903 = vmatprep.subr.mxu0 %v5214
        %5904 = vmatpush1.msra.mxu0 %v5213
        %5905 = vmatprep.subr.mxu0 %v5218
        %5906 = vmatpush1.msra.mxu0 %v5217
        %5907 = vmatprep.subr.mxu0 %v5222
        %5908 = vmatpush1.msra.mxu0 %v5221
        %5909 = vmatprep.subr.mxu0 %v5226
        %5910 = vmatpush1.msra.mxu0 %v5225
        %5911 = vmatprep.subr.mxu0 %v5230
        %5912 = vmatpush1.msra.mxu0 %v5229
        %5913 = vmatprep.subr.mxu0 %v5234
        %5914 = vmatpush1.msra.mxu0 %v5233
        %5915 = vmatprep.subr.mxu0 %v5238
        %5916 = vmatpush1.msra.mxu0 %v5237
        %5917 = vmatprep.subr.mxu0 %v5242
        %5918 = vmatpush1.msra.mxu0 %v5241
        %5919 = vmatprep.subr.mxu0 %v5246
        %5920 = vmatpush1.msra.mxu0 %v5245
        %5921 = vmatprep.subr.mxu0 %v5250
        %5922 = vmatpush1.msra.mxu0 %v5249
        %5923 = vmatprep.subr.mxu0 %v5254
        %5924 = vmatpush1.msra.mxu0 %v5253
        %5925 = vmatprep.subr.mxu0 %v5258
        %5926 = vmatpush1.msra.mxu0 %v5257
        %5927 = vmatprep.subr.mxu0 %v5262
        %5928 = vmatpush1.msra.mxu0 %v5261
        %5929 = vmatprep.subr.mxu0 %v5266
        %5930 = vmatpush1.msra.mxu0 %v5265
        %5931 = vmatprep.subr.mxu0 %v5270
        %5932 = vmatpush1.msra.mxu0 %v5269
        %5933 = vmatprep.subr.mxu0 %v5274
        %5934 = vmatpush1.msra.mxu0 %v5273
        %5935 = vmatprep.subr.mxu0 %v5278
        %5936 = vmatpush1.msra.mxu0 %v5277
        %5937 = vmatprep.subr.mxu0 %v5282
        %5938 = vmatpush1.msra.mxu0 %v5281
        %5939 = vmatprep.subr.mxu0 %v5286
        %5940 = vmatpush1.msra.mxu0 %v5285
        %5941 = vmatprep.subr.mxu0 %v5290
        %5942 = vmatpush1.msra.mxu0 %v5289
        %5943 = vmatprep.subr.mxu0 %v5294
        %5944 = vmatpush1.msra.mxu0 %v5293
        %5945 = vmatprep.subr.mxu0 %v5298
        %5946 = vmatpush1.msra.mxu0 %v5297
        %5947 = vmatprep.subr.mxu0 %v5302
        %5948 = vmatpush1.msra.mxu0 %v5301
        %5949 = vmatprep.subr.mxu0 %v5306
        %5950 = vmatpush1.msra.mxu0 %v5305
        %5951 = vmatprep.mubr.f32.mxu0 %v4944
        %5952 = vmatmul.mubr.f32.gmra.mrb[0].mxu0 %v4943
        %v5953 = vpop.f32.mrb[0].mxu0
        %v5954 = vadd.f32 %v5575, %v5953
        %v5955 = vpop.f32.mrb[0].mxu0
        %v5956 = vadd.f32 %v5579, %v5955
        %5957 = vmatprep.mubr.f32.mxu0 %v4946
        %5958 = vmatmul.mubr.f32.gmra.mrb[0].mxu0 %v4945
        %v5959 = vpop.f32.mrb[0].mxu0
        %v5960 = vadd.f32 %v5575, %v5959
        %v5961 = vpop.f32.mrb[0].mxu0
        %v5962 = vadd.f32 %v5579, %v5961
        %5963 = vmatprep.mubr.f32.mxu0 %v4948
        %5964 = vmatmul.mubr.f32.gmra.mrb[0].mxu0 %v4947
        %v5965 = vpop.f32.mrb[0].mxu0
        %v5966 = vadd.f32 %v5575, %v5965
        %v5967 = vpop.f32.mrb[0].mxu0
        %v5968 = vadd.f32 %v5579, %v5967
        %5969 = vmatprep.mubr.f32.mxu0 %v4950
        %5970 = vmatmul.mubr.f32.gmra.mrb[0].mxu0 %v4949
        %v5971 = vpop.f32.mrb[0].mxu0
        %v5972 = vadd.f32 %v5575, %v5971
        %v5973 = vpop.f32.mrb[0].mxu0
        %v5974 = vadd.f32 %v5579, %v5973
        %5975 = vmatprep.mubr.f32.mxu0 %v4952
        %5976 = vmatmul.mubr.f32.gmra.mrb[0].mxu0 %v4951
        %v5977 = vpop.f32.mrb[0].mxu0
        %v5978 = vadd.f32 %v5575, %v5977
        %v5979 = vpop.f32.mrb[0].mxu0
        %v5980 = vadd.f32 %v5579, %v5979
        %5981 = vmatprep.mubr.f32.mxu0 %v4954
        %5982 = vmatmul.mubr.f32.gmra.mrb[0].mxu0 %v4953
        %v5983 = vpop.f32.mrb[0].mxu0
        %v5984 = vadd.f32 %v5575, %v5983
        %v5985 = vpop.f32.mrb[0].mxu0
        %v5986 = vadd.f32 %v5579, %v5985
        %5987 = vdwg.mxu0
        %5988 = vmatprep.subr.mxu0 %v5310
        %5989 = vmatpush1.msra.mxu0 %v5309
        %5990 = vmatprep.subr.mxu0 %v5314
        %5991 = vmatpush1.msra.mxu0 %v5313
        %5992 = vmatprep.subr.mxu0 %v5318
        %5993 = vmatpush1.msra.mxu0 %v5317
        %5994 = vmatprep.subr.mxu0 %v5322
        %5995 = vmatpush1.msra.mxu0 %v5321
        %5996 = vmatprep.subr.mxu0 %v5326
        %5997 = vmatpush1.msra.mxu0 %v5325
        %5998 = vmatprep.subr.mxu0 %v5330
        %5999 = vmatpush1.msra.mxu0 %v5329
        %6000 = vmatprep.subr.mxu0 %v5334
        %6001 = vmatpush1.msra.mxu0 %v5333
        %6002 = vmatprep.subr.mxu0 %v5338
        %6003 = vmatpush1.msra.mxu0 %v5337
        %6004 = vmatprep.subr.mxu0 %v5342
        %6005 = vmatpush1.msra.mxu0 %v5341
        %6006 = vmatprep.subr.mxu0 %v5346
        %6007 = vmatpush1.msra.mxu0 %v5345
        %6008 = vmatprep.subr.mxu0 %v5350
        %6009 = vmatpush1.msra.mxu0 %v5349
        %6010 = vmatprep.subr.mxu0 %v5354
        %6011 = vmatpush1.msra.mxu0 %v5353
        %6012 = vmatprep.subr.mxu0 %v5358
        %6013 = vmatpush1.msra.mxu0 %v5357
        %6014 = vmatprep.subr.mxu0 %v5362
        %6015 = vmatpush1.msra.mxu0 %v5361
        %6016 = vmatprep.subr.mxu0 %v5366
        %6017 = vmatpush1.msra.mxu0 %v5365
        %6018 = vmatprep.subr.mxu0 %v5370
        %6019 = vmatpush1.msra.mxu0 %v5369
        %6020 = vmatprep.subr.mxu0 %v5374
        %6021 = vmatpush1.msra.mxu0 %v5373
        %6022 = vmatprep.subr.mxu0 %v5378
        %6023 = vmatpush1.msra.mxu0 %v5377
        %6024 = vmatprep.subr.mxu0 %v5382
        %6025 = vmatpush1.msra.mxu0 %v5381
        %6026 = vmatprep.subr.mxu0 %v5386
        %6027 = vmatpush1.msra.mxu0 %v5385
        %6028 = vmatprep.subr.mxu0 %v5390
        %6029 = vmatpush1.msra.mxu0 %v5389
        %6030 = vmatprep.subr.mxu0 %v5394
        %6031 = vmatpush1.msra.mxu0 %v5393
        %6032 = vmatprep.subr.mxu0 %v5398
        %6033 = vmatpush1.msra.mxu0 %v5397
        %6034 = vmatprep.subr.mxu0 %v5402
        %6035 = vmatpush1.msra.mxu0 %v5401
        %6036 = vmatprep.subr.mxu0 %v5406
        %6037 = vmatpush1.msra.mxu0 %v5405
        %6038 = vmatprep.subr.mxu0 %v5410
        %6039 = vmatpush1.msra.mxu0 %v5409
        %6040 = vmatprep.subr.mxu0 %v5414
        %6041 = vmatpush1.msra.mxu0 %v5413
        %6042 = vmatprep.subr.mxu0 %v5418
        %6043 = vmatpush1.msra.mxu0 %v5417
        %6044 = vmatprep.subr.mxu0 %v5422
        %6045 = vmatpush1.msra.mxu0 %v5421
        %6046 = vmatprep.subr.mxu0 %v5426
        %6047 = vmatpush1.msra.mxu0 %v5425
        %6048 = vmatprep.subr.mxu0 %v5430
        %6049 = vmatpush1.msra.mxu0 %v5429
        %6050 = vmatprep.subr.mxu0 %v5434
        %6051 = vmatpush1.msra.mxu0 %v5433
        %6052 = vmatprep.mubr.f32.mxu0 %v5096
        %6053 = vmatmul.mubr.f32.gmra.mrb[0].mxu0 %v5089
        %v6054 = vpop.f32.mrb[0].mxu0
        %v6055 = vadd.f32 %v5954, %v6054
        %v6056 = vpop.f32.mrb[0].mxu0
        %v6057 = vadd.f32 %v5956, %v6056
        %6058 = vmatprep.mubr.f32.mxu0 %v5110
        %6059 = vmatmul.mubr.f32.gmra.mrb[0].mxu0 %v5103
        %v6060 = vpop.f32.mrb[0].mxu0
        %v6061 = vadd.f32 %v5960, %v6060
        %v6062 = vpop.f32.mrb[0].mxu0
        %v6063 = vadd.f32 %v5962, %v6062
        %6064 = vmatprep.mubr.f32.mxu0 %v5124
        %6065 = vmatmul.mubr.f32.gmra.mrb[0].mxu0 %v5117
        %v6066 = vpop.f32.mrb[0].mxu0
        %v6067 = vadd.f32 %v5966, %v6066
        %v6068 = vpop.f32.mrb[0].mxu0
        %v6069 = vadd.f32 %v5968, %v6068
        %6070 = vmatprep.mubr.f32.mxu0 %v5138
        %6071 = vmatmul.mubr.f32.gmra.mrb[0].mxu0 %v5131
        %v6072 = vpop.f32.mrb[0].mxu0
        %v6073 = vadd.f32 %v5972, %v6072
        %v6074 = vpop.f32.mrb[0].mxu0
        %v6075 = vadd.f32 %v5974, %v6074
        %6076 = vmatprep.mubr.f32.mxu0 %v5152
        %6077 = vmatmul.mubr.f32.gmra.mrb[0].mxu0 %v5145
        %v6078 = vpop.f32.mrb[0].mxu0
        %v6079 = vadd.f32 %v5978, %v6078
        %v6080 = vpop.f32.mrb[0].mxu0
        %v6081 = vadd.f32 %v5980, %v6080
        %6082 = vmatprep.mubr.f32.mxu0 %v5166
        %6083 = vmatmul.mubr.f32.gmra.mrb[0].mxu0 %v5159
        %v6084 = vpop.f32.mrb[0].mxu0
        %v6085 = vadd.f32 %v5984, %v6084
        %v6086 = vpop.f32.mrb[0].mxu0
        %v6087 = vadd.f32 %v5986, %v6086
        %6088 = vdwg.mxu0
        %6089 = vmatprep.subr.mxu0 %v5438
        %6090 = vmatpush1.msra.mxu0 %v5437
        %6091 = vmatprep.subr.mxu0 %v5442
        %6092 = vmatpush1.msra.mxu0 %v5441
        %6093 = vmatprep.subr.mxu0 %v5446
        %6094 = vmatpush1.msra.mxu0 %v5445
        %6095 = vmatprep.subr.mxu0 %v5450
        %6096 = vmatpush1.msra.mxu0 %v5449
        %6097 = vmatprep.subr.mxu0 %v5454
        %6098 = vmatpush1.msra.mxu0 %v5453
        %6099 = vmatprep.subr.mxu0 %v5458
        %6100 = vmatpush1.msra.mxu0 %v5457
        %6101 = vmatprep.subr.mxu0 %v5462
        %6102 = vmatpush1.msra.mxu0 %v5461
        %6103 = vmatprep.subr.mxu0 %v5466
        %6104 = vmatpush1.msra.mxu0 %v5465
        %6105 = vmatprep.subr.mxu0 %v5470
        %6106 = vmatpush1.msra.mxu0 %v5469
        %6107 = vmatprep.subr.mxu0 %v5474
        %6108 = vmatpush1.msra.mxu0 %v5473
        %6109 = vmatprep.subr.mxu0 %v5478
        %6110 = vmatpush1.msra.mxu0 %v5477
        %6111 = vmatprep.subr.mxu0 %v5482
        %6112 = vmatpush1.msra.mxu0 %v5481
        %6113 = vmatprep.subr.mxu0 %v5486
        %6114 = vmatpush1.msra.mxu0 %v5485
        %6115 = vmatprep.subr.mxu0 %v5490
        %6116 = vmatpush1.msra.mxu0 %v5489
        %6117 = vmatprep.subr.mxu0 %v5494
        %6118 = vmatpush1.msra.mxu0 %v5493
        %6119 = vmatprep.subr.mxu0 %v5498
        %6120 = vmatpush1.msra.mxu0 %v5497
        %6121 = vmatprep.subr.mxu0 %v5502
        %6122 = vmatpush1.msra.mxu0 %v5501
        %6123 = vmatprep.subr.mxu0 %v5506
        %6124 = vmatpush1.msra.mxu0 %v5505
        %6125 = vmatprep.subr.mxu0 %v5510
        %6126 = vmatpush1.msra.mxu0 %v5509
        %6127 = vmatprep.subr.mxu0 %v5514
        %6128 = vmatpush1.msra.mxu0 %v5513
        %6129 = vmatprep.subr.mxu0 %v5518
        %6130 = vmatpush1.msra.mxu0 %v5517
        %6131 = vmatprep.subr.mxu0 %v5522
        %6132 = vmatpush1.msra.mxu0 %v5521
        %6133 = vmatprep.subr.mxu0 %v5526
        %6134 = vmatpush1.msra.mxu0 %v5525
        %6135 = vmatprep.subr.mxu0 %v5530
        %6136 = vmatpush1.msra.mxu0 %v5529
        %6137 = vmatprep.subr.mxu0 %v5534
        %6138 = vmatpush1.msra.mxu0 %v5533
        %6139 = vmatprep.subr.mxu0 %v5538
        %6140 = vmatpush1.msra.mxu0 %v5537
        %6141 = vmatprep.subr.mxu0 %v5542
        %6142 = vmatpush1.msra.mxu0 %v5541
        %6143 = vmatprep.subr.mxu0 %v5546
        %6144 = vmatpush1.msra.mxu0 %v5545
        %6145 = vmatprep.subr.mxu0 %v5550
        %6146 = vmatpush1.msra.mxu0 %v5549
        %6147 = vmatprep.subr.mxu0 %v5554
        %6148 = vmatpush1.msra.mxu0 %v5553
        %6149 = vmatprep.subr.mxu0 %v5558
        %6150 = vmatpush1.msra.mxu0 %v5557
        %6151 = vmatprep.subr.mxu0 %v5562
        %6152 = vmatpush1.msra.mxu0 %v5561
        %6153 = vmatprep.mubr.f32.mxu0 %v5072
        %6154 = vmatmul.mubr.f32.gmra.mrb[0].mxu0 %v5071
        %v6155 = vpop.f32.mrb[0].mxu0
        %v6156 = vadd.f32 %v6055, %v6155
        %v6157 = vpop.f32.mrb[0].mxu0
        %v6158 = vadd.f32 %v6057, %v6157
        %6159 = vmatprep.mubr.f32.mxu0 %v5074
        %6160 = vmatmul.mubr.f32.gmra.mrb[0].mxu0 %v5073
        %v6161 = vpop.f32.mrb[0].mxu0
        %v6162 = vadd.f32 %v6061, %v6161
        %v6163 = vpop.f32.mrb[0].mxu0
        %v6164 = vadd.f32 %v6063, %v6163
        %6165 = vmatprep.mubr.f32.mxu0 %v5076
        %6166 = vmatmul.mubr.f32.gmra.mrb[0].mxu0 %v5075
        %v6167 = vpop.f32.mrb[0].mxu0
        %v6168 = vadd.f32 %v6067, %v6167
        %v6169 = vpop.f32.mrb[0].mxu0
        %v6170 = vadd.f32 %v6069, %v6169
        %6171 = vmatprep.mubr.f32.mxu0 %v5078
        %6172 = vmatmul.mubr.f32.gmra.mrb[0].mxu0 %v5077
        %v6173 = vpop.f32.mrb[0].mxu0
        %v6174 = vadd.f32 %v6073, %v6173
        %v6175 = vpop.f32.mrb[0].mxu0
        %v6176 = vadd.f32 %v6075, %v6175
        %6177 = vmatprep.mubr.f32.mxu0 %v5080
        %6178 = vmatmul.mubr.f32.gmra.mrb[0].mxu0 %v5079
        %v6179 = vpop.f32.mrb[0].mxu0
        %v6180 = vadd.f32 %v6079, %v6179
        %v6181 = vpop.f32.mrb[0].mxu0
        %v6182 = vadd.f32 %v6081, %v6181
        %6183 = vmatprep.mubr.f32.mxu0 %v5082
        %6184 = vmatmul.mubr.f32.gmra.mrb[0].mxu0 %v5081
        %v6185 = vpop.f32.mrb[0].mxu0
        %v6186 = vadd.f32 %v6085, %v6185
        %v6187 = vpop.f32.mrb[0].mxu0
        %v6188 = vadd.f32 %v6087, %v6187
        %6189 = vdwg.mxu0
        %v6190 = vmax.f32 %v5853, 0.0
        %v6191 = vmax.f32 %v5855, 0.0
        %v6192 = vmax.f32 %v6156, 0.0
        %v6193 = vmax.f32 %v6158, 0.0
        %v6194 = vmax.f32 %v5859, 0.0
        %v6195 = vmax.f32 %v5861, 0.0
        %v6196 = vmax.f32 %v6162, 0.0
        %v6197 = vmax.f32 %v6164, 0.0
        %v6198 = vmax.f32 %v5865, 0.0
        %v6199 = vmax.f32 %v5867, 0.0
        %v6200 = vmax.f32 %v6168, 0.0
        %v6201 = vmax.f32 %v6170, 0.0
        %v6202 = vmax.f32 %v5871, 0.0
        %v6203 = vmax.f32 %v5873, 0.0
        %v6204 = vmax.f32 %v6174, 0.0
        %v6205 = vmax.f32 %v6176, 0.0
        %v6206 = vmax.f32 %v5877, 0.0
        %v6207 = vmax.f32 %v5879, 0.0
        %v6208 = vmax.f32 %v6180, 0.0
        %v6209 = vmax.f32 %v6182, 0.0
        %v6210 = vmax.f32 %v5883, 0.0
        %v6211 = vmax.f32 %v5885, 0.0
        %v6212 = vmax.f32 %v6186, 0.0
        %v6213 = vmax.f32 %v6188, 0.0
        %v6238 = vcombine.low %v6190, %v6191
        %v6239 = vcombine.high %v6190, %v6191
        %v6240 = vcombine.low %v6192, %v6193
        %v6241 = vcombine.high %v6192, %v6193
        %v6243 = vunpack.c.l.s4 1983009808
        %v6244 = vunpack.c.0.s8 %v6243
        %v6245 = vlaneseq
        %v6246 = vshrl.u32 %v6245, 7
        %v6247 = vsub.s32 %v6244, %v6246
        %v6248 = vrot.slane %v6238, %v6247
        %v6250 = vunpack.c.l.s4 1983009808
        %v6251 = vunpack.c.0.s8 %v6250
        %v6252 = vlaneseq
        %v6253 = vshrl.u32 %v6252, 7
        %v6254 = vsub.s32 %v6251, %v6253
        %v6255 = vrot.slane %v6239, %v6254
        %v6257 = vunpack.c.l.s4 1983009808
        %v6258 = vunpack.c.0.s8 %v6257
        %v6259 = vlaneseq
        %v6260 = vshrl.u32 %v6259, 7
        %v6261 = vsub.s32 %v6258, %v6260
        %v6262 = vrot.slane %v6240, %v6261
        %v6264 = vunpack.c.l.s4 1983009808
        %v6265 = vunpack.c.0.s8 %v6264
        %v6266 = vlaneseq
        %v6267 = vshrl.u32 %v6266, 7
        %v6268 = vsub.s32 %v6265, %v6267
        %v6269 = vrot.slane %v6241, %v6268
        %v6270 = vcombine.low %v6248, %v6262
        %v6271 = vcombine.high %v6248, %v6262
        %v6272 = vcombine.low %v6255, %v6269
        %v6273 = vcombine.high %v6255, %v6269
        %v6274 = vcombine.low %v6194, %v6195
        %v6275 = vcombine.high %v6194, %v6195
        %v6276 = vcombine.low %v6196, %v6197
        %v6277 = vcombine.high %v6196, %v6197
        %v6279 = vunpack.c.l.s4 1983009808
        %v6280 = vunpack.c.0.s8 %v6279
        %v6281 = vlaneseq
        %v6282 = vshrl.u32 %v6281, 7
        %v6283 = vsub.s32 %v6280, %v6282
        %v6284 = vrot.slane %v6274, %v6283
        %v6286 = vunpack.c.l.s4 1983009808
        %v6287 = vunpack.c.0.s8 %v6286
        %v6288 = vlaneseq
        %v6289 = vshrl.u32 %v6288, 7
        %v6290 = vsub.s32 %v6287, %v6289
        %v6291 = vrot.slane %v6275, %v6290
        %v6293 = vunpack.c.l.s4 1983009808
        %v6294 = vunpack.c.0.s8 %v6293
        %v6295 = vlaneseq
        %v6296 = vshrl.u32 %v6295, 7
        %v6297 = vsub.s32 %v6294, %v6296
        %v6298 = vrot.slane %v6276, %v6297
        %v6300 = vunpack.c.l.s4 1983009808
        %v6301 = vunpack.c.0.s8 %v6300
        %v6302 = vlaneseq
        %v6303 = vshrl.u32 %v6302, 7
        %v6304 = vsub.s32 %v6301, %v6303
        %v6305 = vrot.slane %v6277, %v6304
        %v6306 = vcombine.low %v6284, %v6298
        %v6307 = vcombine.high %v6284, %v6298
        %v6308 = vcombine.low %v6291, %v6305
        %v6309 = vcombine.high %v6291, %v6305
        %v6310 = vcombine.low %v6198, %v6199
        %v6311 = vcombine.high %v6198, %v6199
        %v6312 = vcombine.low %v6200, %v6201
        %v6313 = vcombine.high %v6200, %v6201
        %v6315 = vunpack.c.l.s4 1983009808
        %v6316 = vunpack.c.0.s8 %v6315
        %v6317 = vlaneseq
        %v6318 = vshrl.u32 %v6317, 7
        %v6319 = vsub.s32 %v6316, %v6318
        %v6320 = vrot.slane %v6310, %v6319
        %v6322 = vunpack.c.l.s4 1983009808
        %v6323 = vunpack.c.0.s8 %v6322
        %v6324 = vlaneseq
        %v6325 = vshrl.u32 %v6324, 7
        %v6326 = vsub.s32 %v6323, %v6325
        %v6327 = vrot.slane %v6311, %v6326
        %v6329 = vunpack.c.l.s4 1983009808
        %v6330 = vunpack.c.0.s8 %v6329
        %v6331 = vlaneseq
        %v6332 = vshrl.u32 %v6331, 7
        %v6333 = vsub.s32 %v6330, %v6332
        %v6334 = vrot.slane %v6312, %v6333
        %v6336 = vunpack.c.l.s4 1983009808
        %v6337 = vunpack.c.0.s8 %v6336
        %v6338 = vlaneseq
        %v6339 = vshrl.u32 %v6338, 7
        %v6340 = vsub.s32 %v6337, %v6339
        %v6341 = vrot.slane %v6313, %v6340
        %v6342 = vcombine.low %v6320, %v6334
        %v6343 = vcombine.high %v6320, %v6334
        %v6344 = vcombine.low %v6327, %v6341
        %v6345 = vcombine.high %v6327, %v6341
        %v6346 = vcombine.low %v6202, %v6203
        %v6347 = vcombine.high %v6202, %v6203
        %v6348 = vcombine.low %v6204, %v6205
        %v6349 = vcombine.high %v6204, %v6205
        %v6351 = vunpack.c.l.s4 1983009808
        %v6352 = vunpack.c.0.s8 %v6351
        %v6353 = vlaneseq
        %v6354 = vshrl.u32 %v6353, 7
        %v6355 = vsub.s32 %v6352, %v6354
        %v6356 = vrot.slane %v6346, %v6355
        %v6358 = vunpack.c.l.s4 1983009808
        %v6359 = vunpack.c.0.s8 %v6358
        %v6360 = vlaneseq
        %v6361 = vshrl.u32 %v6360, 7
        %v6362 = vsub.s32 %v6359, %v6361
        %v6363 = vrot.slane %v6347, %v6362
        %v6365 = vunpack.c.l.s4 1983009808
        %v6366 = vunpack.c.0.s8 %v6365
        %v6367 = vlaneseq
        %v6368 = vshrl.u32 %v6367, 7
        %v6369 = vsub.s32 %v6366, %v6368
        %v6370 = vrot.slane %v6348, %v6369
        %v6372 = vunpack.c.l.s4 1983009808
        %v6373 = vunpack.c.0.s8 %v6372
        %v6374 = vlaneseq
        %v6375 = vshrl.u32 %v6374, 7
        %v6376 = vsub.s32 %v6373, %v6375
        %v6377 = vrot.slane %v6349, %v6376
        %v6378 = vcombine.low %v6356, %v6370
        %v6379 = vcombine.high %v6356, %v6370
        %v6380 = vcombine.low %v6363, %v6377
        %v6381 = vcombine.high %v6363, %v6377
        %v6382 = vcombine.low %v6206, %v6207
        %v6383 = vcombine.high %v6206, %v6207
        %v6384 = vcombine.low %v6208, %v6209
        %v6385 = vcombine.high %v6208, %v6209
        %v6387 = vunpack.c.l.s4 1983009808
        %v6388 = vunpack.c.0.s8 %v6387
        %v6389 = vlaneseq
        %v6390 = vshrl.u32 %v6389, 7
        %v6391 = vsub.s32 %v6388, %v6390
        %v6392 = vrot.slane %v6382, %v6391
        %v6394 = vunpack.c.l.s4 1983009808
        %v6395 = vunpack.c.0.s8 %v6394
        %v6396 = vlaneseq
        %v6397 = vshrl.u32 %v6396, 7
        %v6398 = vsub.s32 %v6395, %v6397
        %v6399 = vrot.slane %v6383, %v6398
        %v6401 = vunpack.c.l.s4 1983009808
        %v6402 = vunpack.c.0.s8 %v6401
        %v6403 = vlaneseq
        %v6404 = vshrl.u32 %v6403, 7
        %v6405 = vsub.s32 %v6402, %v6404
        %v6406 = vrot.slane %v6384, %v6405
        %v6408 = vunpack.c.l.s4 1983009808
        %v6409 = vunpack.c.0.s8 %v6408
        %v6410 = vlaneseq
        %v6411 = vshrl.u32 %v6410, 7
        %v6412 = vsub.s32 %v6409, %v6411
        %v6413 = vrot.slane %v6385, %v6412
        %v6414 = vcombine.low %v6392, %v6406
        %v6415 = vcombine.high %v6392, %v6406
        %v6416 = vcombine.low %v6399, %v6413
        %v6417 = vcombine.high %v6399, %v6413
        %v6418 = vcombine.low %v6210, %v6211
        %v6419 = vcombine.high %v6210, %v6211
        %v6420 = vcombine.low %v6212, %v6213
        %v6421 = vcombine.high %v6212, %v6213
        %v6423 = vunpack.c.l.s4 1983009808
        %v6424 = vunpack.c.0.s8 %v6423
        %v6425 = vlaneseq
        %v6426 = vshrl.u32 %v6425, 7
        %v6427 = vsub.s32 %v6424, %v6426
        %v6428 = vrot.slane %v6418, %v6427
        %v6430 = vunpack.c.l.s4 1983009808
        %v6431 = vunpack.c.0.s8 %v6430
        %v6432 = vlaneseq
        %v6433 = vshrl.u32 %v6432, 7
        %v6434 = vsub.s32 %v6431, %v6433
        %v6435 = vrot.slane %v6419, %v6434
        %v6437 = vunpack.c.l.s4 1983009808
        %v6438 = vunpack.c.0.s8 %v6437
        %v6439 = vlaneseq
        %v6440 = vshrl.u32 %v6439, 7
        %v6441 = vsub.s32 %v6438, %v6440
        %v6442 = vrot.slane %v6420, %v6441
        %v6444 = vunpack.c.l.s4 1983009808
        %v6445 = vunpack.c.0.s8 %v6444
        %v6446 = vlaneseq
        %v6447 = vshrl.u32 %v6446, 7
        %v6448 = vsub.s32 %v6445, %v6447
        %v6449 = vrot.slane %v6421, %v6448
        %v6450 = vcombine.low %v6428, %v6442
        %v6451 = vcombine.high %v6428, %v6442
        %v6452 = vcombine.low %v6435, %v6449
        %v6453 = vcombine.high %v6435, %v6449
        %v6454 = vcombine.high %v6270, %v6270
        %v6456 = vunpack.c.l.s4 1983009808
        %v6457 = vunpack.c.0.s8 %v6456
        %v6458 = vlaneseq
        %v6459 = vshrl.u32 %v6458, 7
        %v6460 = vsub.s32 %v6457, %v6459
        %v6461 = vrot.slane %v6270, %v6460
        %v6463 = vunpack.c.l.s4 1983009808
        %v6464 = vunpack.c.0.s8 %v6463
        %v6465 = vlaneseq
        %v6466 = vshrl.u32 %v6465, 7
        %v6467 = vsub.s32 %v6464, %v6466
        %v6468 = vrot.slane %v6454, %v6467
        %v6469 = vcombine.high %v6461, %v6461
        %v6470 = vcombine.high %v6468, %v6468
        %v6471 = vcombine.high %v6271, %v6271
        %v6473 = vunpack.c.l.s4 1983009808
        %v6474 = vunpack.c.0.s8 %v6473
        %v6475 = vlaneseq
        %v6476 = vshrl.u32 %v6475, 7
        %v6477 = vsub.s32 %v6474, %v6476
        %v6478 = vrot.slane %v6271, %v6477
        %v6480 = vunpack.c.l.s4 1983009808
        %v6481 = vunpack.c.0.s8 %v6480
        %v6482 = vlaneseq
        %v6483 = vshrl.u32 %v6482, 7
        %v6484 = vsub.s32 %v6481, %v6483
        %v6485 = vrot.slane %v6471, %v6484
        %v6486 = vcombine.high %v6478, %v6478
        %v6487 = vcombine.high %v6485, %v6485
        %v6488 = vcombine.high %v6272, %v6272
        %v6490 = vunpack.c.l.s4 1983009808
        %v6491 = vunpack.c.0.s8 %v6490
        %v6492 = vlaneseq
        %v6493 = vshrl.u32 %v6492, 7
        %v6494 = vsub.s32 %v6491, %v6493
        %v6495 = vrot.slane %v6272, %v6494
        %v6497 = vunpack.c.l.s4 1983009808
        %v6498 = vunpack.c.0.s8 %v6497
        %v6499 = vlaneseq
        %v6500 = vshrl.u32 %v6499, 7
        %v6501 = vsub.s32 %v6498, %v6500
        %v6502 = vrot.slane %v6488, %v6501
        %v6503 = vcombine.high %v6495, %v6495
        %v6504 = vcombine.high %v6502, %v6502
        %v6505 = vcombine.high %v6273, %v6273
        %v6507 = vunpack.c.l.s4 1983009808
        %v6508 = vunpack.c.0.s8 %v6507
        %v6509 = vlaneseq
        %v6510 = vshrl.u32 %v6509, 7
        %v6511 = vsub.s32 %v6508, %v6510
        %v6512 = vrot.slane %v6273, %v6511
        %v6514 = vunpack.c.l.s4 1983009808
        %v6515 = vunpack.c.0.s8 %v6514
        %v6516 = vlaneseq
        %v6517 = vshrl.u32 %v6516, 7
        %v6518 = vsub.s32 %v6515, %v6517
        %v6519 = vrot.slane %v6505, %v6518
        %v6520 = vcombine.high %v6512, %v6512
        %v6521 = vcombine.high %v6519, %v6519
        %v6522 = vcombine.high %v6306, %v6306
        %v6524 = vunpack.c.l.s4 1983009808
        %v6525 = vunpack.c.0.s8 %v6524
        %v6526 = vlaneseq
        %v6527 = vshrl.u32 %v6526, 7
        %v6528 = vsub.s32 %v6525, %v6527
        %v6529 = vrot.slane %v6306, %v6528
        %v6531 = vunpack.c.l.s4 1983009808
        %v6532 = vunpack.c.0.s8 %v6531
        %v6533 = vlaneseq
        %v6534 = vshrl.u32 %v6533, 7
        %v6535 = vsub.s32 %v6532, %v6534
        %v6536 = vrot.slane %v6522, %v6535
        %v6537 = vcombine.high %v6529, %v6529
        %v6538 = vcombine.high %v6536, %v6536
        %v6539 = vcombine.high %v6307, %v6307
        %v6541 = vunpack.c.l.s4 1983009808
        %v6542 = vunpack.c.0.s8 %v6541
        %v6543 = vlaneseq
        %v6544 = vshrl.u32 %v6543, 7
        %v6545 = vsub.s32 %v6542, %v6544
        %v6546 = vrot.slane %v6307, %v6545
        %v6548 = vunpack.c.l.s4 1983009808
        %v6549 = vunpack.c.0.s8 %v6548
        %v6550 = vlaneseq
        %v6551 = vshrl.u32 %v6550, 7
        %v6552 = vsub.s32 %v6549, %v6551
        %v6553 = vrot.slane %v6539, %v6552
        %v6554 = vcombine.high %v6546, %v6546
        %v6555 = vcombine.high %v6553, %v6553
        %v6556 = vcombine.high %v6308, %v6308
        %v6558 = vunpack.c.l.s4 1983009808
        %v6559 = vunpack.c.0.s8 %v6558
        %v6560 = vlaneseq
        %v6561 = vshrl.u32 %v6560, 7
        %v6562 = vsub.s32 %v6559, %v6561
        %v6563 = vrot.slane %v6308, %v6562
        %v6565 = vunpack.c.l.s4 1983009808
        %v6566 = vunpack.c.0.s8 %v6565
        %v6567 = vlaneseq
        %v6568 = vshrl.u32 %v6567, 7
        %v6569 = vsub.s32 %v6566, %v6568
        %v6570 = vrot.slane %v6556, %v6569
        %v6571 = vcombine.high %v6563, %v6563
        %v6572 = vcombine.high %v6570, %v6570
        %v6573 = vcombine.high %v6309, %v6309
        %v6575 = vunpack.c.l.s4 1983009808
        %v6576 = vunpack.c.0.s8 %v6575
        %v6577 = vlaneseq
        %v6578 = vshrl.u32 %v6577, 7
        %v6579 = vsub.s32 %v6576, %v6578
        %v6580 = vrot.slane %v6309, %v6579
        %v6582 = vunpack.c.l.s4 1983009808
        %v6583 = vunpack.c.0.s8 %v6582
        %v6584 = vlaneseq
        %v6585 = vshrl.u32 %v6584, 7
        %v6586 = vsub.s32 %v6583, %v6585
        %v6587 = vrot.slane %v6573, %v6586
        %v6588 = vcombine.high %v6580, %v6580
        %v6589 = vcombine.high %v6587, %v6587
        %v6590 = vcombine.high %v6342, %v6342
        %v6592 = vunpack.c.l.s4 1983009808
        %v6593 = vunpack.c.0.s8 %v6592
        %v6594 = vlaneseq
        %v6595 = vshrl.u32 %v6594, 7
        %v6596 = vsub.s32 %v6593, %v6595
        %v6597 = vrot.slane %v6342, %v6596
        %v6599 = vunpack.c.l.s4 1983009808
        %v6600 = vunpack.c.0.s8 %v6599
        %v6601 = vlaneseq
        %v6602 = vshrl.u32 %v6601, 7
        %v6603 = vsub.s32 %v6600, %v6602
        %v6604 = vrot.slane %v6590, %v6603
        %v6605 = vcombine.high %v6597, %v6597
        %v6606 = vcombine.high %v6604, %v6604
        %v6607 = vcombine.high %v6343, %v6343
        %v6609 = vunpack.c.l.s4 1983009808
        %v6610 = vunpack.c.0.s8 %v6609
        %v6611 = vlaneseq
        %v6612 = vshrl.u32 %v6611, 7
        %v6613 = vsub.s32 %v6610, %v6612
        %v6614 = vrot.slane %v6343, %v6613
        %v6616 = vunpack.c.l.s4 1983009808
        %v6617 = vunpack.c.0.s8 %v6616
        %v6618 = vlaneseq
        %v6619 = vshrl.u32 %v6618, 7
        %v6620 = vsub.s32 %v6617, %v6619
        %v6621 = vrot.slane %v6607, %v6620
        %v6622 = vcombine.high %v6614, %v6614
        %v6623 = vcombine.high %v6621, %v6621
        %v6624 = vcombine.high %v6344, %v6344
        %v6626 = vunpack.c.l.s4 1983009808
        %v6627 = vunpack.c.0.s8 %v6626
        %v6628 = vlaneseq
        %v6629 = vshrl.u32 %v6628, 7
        %v6630 = vsub.s32 %v6627, %v6629
        %v6631 = vrot.slane %v6344, %v6630
        %v6633 = vunpack.c.l.s4 1983009808
        %v6634 = vunpack.c.0.s8 %v6633
        %v6635 = vlaneseq
        %v6636 = vshrl.u32 %v6635, 7
        %v6637 = vsub.s32 %v6634, %v6636
        %v6638 = vrot.slane %v6624, %v6637
        %v6639 = vcombine.high %v6631, %v6631
        %v6640 = vcombine.high %v6638, %v6638
        %v6641 = vcombine.high %v6345, %v6345
        %v6643 = vunpack.c.l.s4 1983009808
        %v6644 = vunpack.c.0.s8 %v6643
        %v6645 = vlaneseq
        %v6646 = vshrl.u32 %v6645, 7
        %v6647 = vsub.s32 %v6644, %v6646
        %v6648 = vrot.slane %v6345, %v6647
        %v6650 = vunpack.c.l.s4 1983009808
        %v6651 = vunpack.c.0.s8 %v6650
        %v6652 = vlaneseq
        %v6653 = vshrl.u32 %v6652, 7
        %v6654 = vsub.s32 %v6651, %v6653
        %v6655 = vrot.slane %v6641, %v6654
        %v6656 = vcombine.high %v6648, %v6648
        %v6657 = vcombine.high %v6655, %v6655
        %v6658 = vcombine.high %v6378, %v6378
        %v6660 = vunpack.c.l.s4 1983009808
        %v6661 = vunpack.c.0.s8 %v6660
        %v6662 = vlaneseq
        %v6663 = vshrl.u32 %v6662, 7
        %v6664 = vsub.s32 %v6661, %v6663
        %v6665 = vrot.slane %v6378, %v6664
        %v6667 = vunpack.c.l.s4 1983009808
        %v6668 = vunpack.c.0.s8 %v6667
        %v6669 = vlaneseq
        %v6670 = vshrl.u32 %v6669, 7
        %v6671 = vsub.s32 %v6668, %v6670
        %v6672 = vrot.slane %v6658, %v6671
        %v6673 = vcombine.high %v6665, %v6665
        %v6674 = vcombine.high %v6672, %v6672
        %v6675 = vcombine.high %v6379, %v6379
        %v6677 = vunpack.c.l.s4 1983009808
        %v6678 = vunpack.c.0.s8 %v6677
        %v6679 = vlaneseq
        %v6680 = vshrl.u32 %v6679, 7
        %v6681 = vsub.s32 %v6678, %v6680
        %v6682 = vrot.slane %v6379, %v6681
        %v6684 = vunpack.c.l.s4 1983009808
        %v6685 = vunpack.c.0.s8 %v6684
        %v6686 = vlaneseq
        %v6687 = vshrl.u32 %v6686, 7
        %v6688 = vsub.s32 %v6685, %v6687
        %v6689 = vrot.slane %v6675, %v6688
        %v6690 = vcombine.high %v6682, %v6682
        %v6691 = vcombine.high %v6689, %v6689
        %v6692 = vcombine.high %v6380, %v6380
        %v6694 = vunpack.c.l.s4 1983009808
        %v6695 = vunpack.c.0.s8 %v6694
        %v6696 = vlaneseq
        %v6697 = vshrl.u32 %v6696, 7
        %v6698 = vsub.s32 %v6695, %v6697
        %v6699 = vrot.slane %v6380, %v6698
        %v6701 = vunpack.c.l.s4 1983009808
        %v6702 = vunpack.c.0.s8 %v6701
        %v6703 = vlaneseq
        %v6704 = vshrl.u32 %v6703, 7
        %v6705 = vsub.s32 %v6702, %v6704
        %v6706 = vrot.slane %v6692, %v6705
        %v6707 = vcombine.high %v6699, %v6699
        %v6708 = vcombine.high %v6706, %v6706
        %v6709 = vcombine.high %v6381, %v6381
        %v6711 = vunpack.c.l.s4 1983009808
        %v6712 = vunpack.c.0.s8 %v6711
        %v6713 = vlaneseq
        %v6714 = vshrl.u32 %v6713, 7
        %v6715 = vsub.s32 %v6712, %v6714
        %v6716 = vrot.slane %v6381, %v6715
        %v6718 = vunpack.c.l.s4 1983009808
        %v6719 = vunpack.c.0.s8 %v6718
        %v6720 = vlaneseq
        %v6721 = vshrl.u32 %v6720, 7
        %v6722 = vsub.s32 %v6719, %v6721
        %v6723 = vrot.slane %v6709, %v6722
        %v6724 = vcombine.high %v6716, %v6716
        %v6725 = vcombine.high %v6723, %v6723
        %v6726 = vcombine.high %v6414, %v6414
        %v6728 = vunpack.c.l.s4 1983009808
        %v6729 = vunpack.c.0.s8 %v6728
        %v6730 = vlaneseq
        %v6731 = vshrl.u32 %v6730, 7
        %v6732 = vsub.s32 %v6729, %v6731
        %v6733 = vrot.slane %v6414, %v6732
        %v6735 = vunpack.c.l.s4 1983009808
        %v6736 = vunpack.c.0.s8 %v6735
        %v6737 = vlaneseq
        %v6738 = vshrl.u32 %v6737, 7
        %v6739 = vsub.s32 %v6736, %v6738
        %v6740 = vrot.slane %v6726, %v6739
        %v6741 = vcombine.high %v6733, %v6733
        %v6742 = vcombine.high %v6740, %v6740
        %v6743 = vcombine.high %v6415, %v6415
        %v6745 = vunpack.c.l.s4 1983009808
        %v6746 = vunpack.c.0.s8 %v6745
        %v6747 = vlaneseq
        %v6748 = vshrl.u32 %v6747, 7
        %v6749 = vsub.s32 %v6746, %v6748
        %v6750 = vrot.slane %v6415, %v6749
        %v6752 = vunpack.c.l.s4 1983009808
        %v6753 = vunpack.c.0.s8 %v6752
        %v6754 = vlaneseq
        %v6755 = vshrl.u32 %v6754, 7
        %v6756 = vsub.s32 %v6753, %v6755
        %v6757 = vrot.slane %v6743, %v6756
        %v6758 = vcombine.high %v6750, %v6750
        %v6759 = vcombine.high %v6757, %v6757
        %v6760 = vcombine.high %v6416, %v6416
        %v6762 = vunpack.c.l.s4 1983009808
        %v6763 = vunpack.c.0.s8 %v6762
        %v6764 = vlaneseq
        %v6765 = vshrl.u32 %v6764, 7
        %v6766 = vsub.s32 %v6763, %v6765
        %v6767 = vrot.slane %v6416, %v6766
        %v6769 = vunpack.c.l.s4 1983009808
        %v6770 = vunpack.c.0.s8 %v6769
        %v6771 = vlaneseq
        %v6772 = vshrl.u32 %v6771, 7
        %v6773 = vsub.s32 %v6770, %v6772
        %v6774 = vrot.slane %v6760, %v6773
        %v6775 = vcombine.high %v6767, %v6767
        %v6776 = vcombine.high %v6774, %v6774
        %v6777 = vcombine.high %v6417, %v6417
        %v6779 = vunpack.c.l.s4 1983009808
        %v6780 = vunpack.c.0.s8 %v6779
        %v6781 = vlaneseq
        %v6782 = vshrl.u32 %v6781, 7
        %v6783 = vsub.s32 %v6780, %v6782
        %v6784 = vrot.slane %v6417, %v6783
        %v6786 = vunpack.c.l.s4 1983009808
        %v6787 = vunpack.c.0.s8 %v6786
        %v6788 = vlaneseq
        %v6789 = vshrl.u32 %v6788, 7
        %v6790 = vsub.s32 %v6787, %v6789
        %v6791 = vrot.slane %v6777, %v6790
        %v6792 = vcombine.high %v6784, %v6784
        %v6793 = vcombine.high %v6791, %v6791
        %v6794 = vcombine.high %v6450, %v6450
        %v6796 = vunpack.c.l.s4 1983009808
        %v6797 = vunpack.c.0.s8 %v6796
        %v6798 = vlaneseq
        %v6799 = vshrl.u32 %v6798, 7
        %v6800 = vsub.s32 %v6797, %v6799
        %v6801 = vrot.slane %v6450, %v6800
        %v6803 = vunpack.c.l.s4 1983009808
        %v6804 = vunpack.c.0.s8 %v6803
        %v6805 = vlaneseq
        %v6806 = vshrl.u32 %v6805, 7
        %v6807 = vsub.s32 %v6804, %v6806
        %v6808 = vrot.slane %v6794, %v6807
        %v6809 = vcombine.high %v6801, %v6801
        %v6810 = vcombine.high %v6808, %v6808
        %v6811 = vcombine.high %v6451, %v6451
        %v6813 = vunpack.c.l.s4 1983009808
        %v6814 = vunpack.c.0.s8 %v6813
        %v6815 = vlaneseq
        %v6816 = vshrl.u32 %v6815, 7
        %v6817 = vsub.s32 %v6814, %v6816
        %v6818 = vrot.slane %v6451, %v6817
        %v6820 = vunpack.c.l.s4 1983009808
        %v6821 = vunpack.c.0.s8 %v6820
        %v6822 = vlaneseq
        %v6823 = vshrl.u32 %v6822, 7
        %v6824 = vsub.s32 %v6821, %v6823
        %v6825 = vrot.slane %v6811, %v6824
        %v6826 = vcombine.high %v6818, %v6818
        %v6827 = vcombine.high %v6825, %v6825
        %v6828 = vcombine.high %v6452, %v6452
        %v6830 = vunpack.c.l.s4 1983009808
        %v6831 = vunpack.c.0.s8 %v6830
        %v6832 = vlaneseq
        %v6833 = vshrl.u32 %v6832, 7
        %v6834 = vsub.s32 %v6831, %v6833
        %v6835 = vrot.slane %v6452, %v6834
        %v6837 = vunpack.c.l.s4 1983009808
        %v6838 = vunpack.c.0.s8 %v6837
        %v6839 = vlaneseq
        %v6840 = vshrl.u32 %v6839, 7
        %v6841 = vsub.s32 %v6838, %v6840
        %v6842 = vrot.slane %v6828, %v6841
        %v6843 = vcombine.high %v6835, %v6835
        %v6844 = vcombine.high %v6842, %v6842
        %v6845 = vcombine.high %v6453, %v6453
        %v6847 = vunpack.c.l.s4 1983009808
        %v6848 = vunpack.c.0.s8 %v6847
        %v6849 = vlaneseq
        %v6850 = vshrl.u32 %v6849, 7
        %v6851 = vsub.s32 %v6848, %v6850
        %v6852 = vrot.slane %v6453, %v6851
        %v6854 = vunpack.c.l.s4 1983009808
        %v6855 = vunpack.c.0.s8 %v6854
        %v6856 = vlaneseq
        %v6857 = vshrl.u32 %v6856, 7
        %v6858 = vsub.s32 %v6855, %v6857
        %v6859 = vrot.slane %v6845, %v6858
        %v6860 = vcombine.high %v6852, %v6852
        %v6861 = vcombine.high %v6859, %v6859
        %v6958 = vsel %vm733, %v6461, -inf
        %v6959 = vrot.slane %v6958, 4
        %v6960 = vmax.f32 %v6958, %v6959
        %v6961 = vrot.slane %v6960, 2
        %v6962 = vmax.f32 %v6960, %v6961
        %v6963 = vrot.slane %v6962, 1
        %v6964 = vmax.f32 %v6962, %v6963
        %v6965 = vsel %vm733, %v6469, -inf
        %v6966 = vrot.slane %v6965, 4
        %v6967 = vmax.f32 %v6965, %v6966
        %v6968 = vrot.slane %v6967, 2
        %v6969 = vmax.f32 %v6967, %v6968
        %v6970 = vrot.slane %v6969, 1
        %v6971 = vmax.f32 %v6969, %v6970
        %v6972 = vsel %vm733, %v6468, -inf
        %v6973 = vrot.slane %v6972, 4
        %v6974 = vmax.f32 %v6972, %v6973
        %v6975 = vrot.slane %v6974, 2
        %v6976 = vmax.f32 %v6974, %v6975
        %v6977 = vrot.slane %v6976, 1
        %v6978 = vmax.f32 %v6976, %v6977
        %v6979 = vsel %vm733, %v6470, -inf
        %v6980 = vrot.slane %v6979, 4
        %v6981 = vmax.f32 %v6979, %v6980
        %v6982 = vrot.slane %v6981, 2
        %v6983 = vmax.f32 %v6981, %v6982
        %v6984 = vrot.slane %v6983, 1
        %v6985 = vmax.f32 %v6983, %v6984
        %v6986 = vsel %vm733, %v6478, -inf
        %v6987 = vrot.slane %v6986, 4
        %v6988 = vmax.f32 %v6986, %v6987
        %v6989 = vrot.slane %v6988, 2
        %v6990 = vmax.f32 %v6988, %v6989
        %v6991 = vrot.slane %v6990, 1
        %v6992 = vmax.f32 %v6990, %v6991
        %v6993 = vsel %vm733, %v6486, -inf
        %v6994 = vrot.slane %v6993, 4
        %v6995 = vmax.f32 %v6993, %v6994
        %v6996 = vrot.slane %v6995, 2
        %v6997 = vmax.f32 %v6995, %v6996
        %v6998 = vrot.slane %v6997, 1
        %v6999 = vmax.f32 %v6997, %v6998
        %v7000 = vsel %vm733, %v6485, -inf
        %v7001 = vrot.slane %v7000, 4
        %v7002 = vmax.f32 %v7000, %v7001
        %v7003 = vrot.slane %v7002, 2
        %v7004 = vmax.f32 %v7002, %v7003
        %v7005 = vrot.slane %v7004, 1
        %v7006 = vmax.f32 %v7004, %v7005
        %v7007 = vsel %vm733, %v6487, -inf
        %v7008 = vrot.slane %v7007, 4
        %v7009 = vmax.f32 %v7007, %v7008
        %v7010 = vrot.slane %v7009, 2
        %v7011 = vmax.f32 %v7009, %v7010
        %v7012 = vrot.slane %v7011, 1
        %v7013 = vmax.f32 %v7011, %v7012
        %v7014 = vsel %vm733, %v6495, -inf
        %v7015 = vrot.slane %v7014, 4
        %v7016 = vmax.f32 %v7014, %v7015
        %v7017 = vrot.slane %v7016, 2
        %v7018 = vmax.f32 %v7016, %v7017
        %v7019 = vrot.slane %v7018, 1
        %v7020 = vmax.f32 %v7018, %v7019
        %v7021 = vsel %vm733, %v6503, -inf
        %v7022 = vrot.slane %v7021, 4
        %v7023 = vmax.f32 %v7021, %v7022
        %v7024 = vrot.slane %v7023, 2
        %v7025 = vmax.f32 %v7023, %v7024
        %v7026 = vrot.slane %v7025, 1
        %v7027 = vmax.f32 %v7025, %v7026
        %v7028 = vsel %vm733, %v6502, -inf
        %v7029 = vrot.slane %v7028, 4
        %v7030 = vmax.f32 %v7028, %v7029
        %v7031 = vrot.slane %v7030, 2
        %v7032 = vmax.f32 %v7030, %v7031
        %v7033 = vrot.slane %v7032, 1
        %v7034 = vmax.f32 %v7032, %v7033
        %v7035 = vsel %vm733, %v6504, -inf
        %v7036 = vrot.slane %v7035, 4
        %v7037 = vmax.f32 %v7035, %v7036
        %v7038 = vrot.slane %v7037, 2
        %v7039 = vmax.f32 %v7037, %v7038
        %v7040 = vrot.slane %v7039, 1
        %v7041 = vmax.f32 %v7039, %v7040
        %v7042 = vsel %vm733, %v6512, -inf
        %v7043 = vrot.slane %v7042, 4
        %v7044 = vmax.f32 %v7042, %v7043
        %v7045 = vrot.slane %v7044, 2
        %v7046 = vmax.f32 %v7044, %v7045
        %v7047 = vrot.slane %v7046, 1
        %v7048 = vmax.f32 %v7046, %v7047
        %v7049 = vsel %vm733, %v6520, -inf
        %v7050 = vrot.slane %v7049, 4
        %v7051 = vmax.f32 %v7049, %v7050
        %v7052 = vrot.slane %v7051, 2
        %v7053 = vmax.f32 %v7051, %v7052
        %v7054 = vrot.slane %v7053, 1
        %v7055 = vmax.f32 %v7053, %v7054
        %v7056 = vsel %vm733, %v6519, -inf
        %v7057 = vrot.slane %v7056, 4
        %v7058 = vmax.f32 %v7056, %v7057
        %v7059 = vrot.slane %v7058, 2
        %v7060 = vmax.f32 %v7058, %v7059
        %v7061 = vrot.slane %v7060, 1
        %v7062 = vmax.f32 %v7060, %v7061
        %v7063 = vsel %vm733, %v6521, -inf
        %v7064 = vrot.slane %v7063, 4
        %v7065 = vmax.f32 %v7063, %v7064
        %v7066 = vrot.slane %v7065, 2
        %v7067 = vmax.f32 %v7065, %v7066
        %v7068 = vrot.slane %v7067, 1
        %v7069 = vmax.f32 %v7067, %v7068
        %v7070 = vsel %vm733, %v6529, -inf
        %v7071 = vrot.slane %v7070, 4
        %v7072 = vmax.f32 %v7070, %v7071
        %v7073 = vrot.slane %v7072, 2
        %v7074 = vmax.f32 %v7072, %v7073
        %v7075 = vrot.slane %v7074, 1
        %v7076 = vmax.f32 %v7074, %v7075
        %v7077 = vsel %vm733, %v6537, -inf
        %v7078 = vrot.slane %v7077, 4
        %v7079 = vmax.f32 %v7077, %v7078
        %v7080 = vrot.slane %v7079, 2
        %v7081 = vmax.f32 %v7079, %v7080
        %v7082 = vrot.slane %v7081, 1
        %v7083 = vmax.f32 %v7081, %v7082
        %v7084 = vsel %vm733, %v6536, -inf
        %v7085 = vrot.slane %v7084, 4
        %v7086 = vmax.f32 %v7084, %v7085
        %v7087 = vrot.slane %v7086, 2
        %v7088 = vmax.f32 %v7086, %v7087
        %v7089 = vrot.slane %v7088, 1
        %v7090 = vmax.f32 %v7088, %v7089
        %v7091 = vsel %vm733, %v6538, -inf
        %v7092 = vrot.slane %v7091, 4
        %v7093 = vmax.f32 %v7091, %v7092
        %v7094 = vrot.slane %v7093, 2
        %v7095 = vmax.f32 %v7093, %v7094
        %v7096 = vrot.slane %v7095, 1
        %v7097 = vmax.f32 %v7095, %v7096
        %v7098 = vsel %vm733, %v6546, -inf
        %v7099 = vrot.slane %v7098, 4
        %v7100 = vmax.f32 %v7098, %v7099
        %v7101 = vrot.slane %v7100, 2
        %v7102 = vmax.f32 %v7100, %v7101
        %v7103 = vrot.slane %v7102, 1
        %v7104 = vmax.f32 %v7102, %v7103
        %v7105 = vsel %vm733, %v6554, -inf
        %v7106 = vrot.slane %v7105, 4
        %v7107 = vmax.f32 %v7105, %v7106
        %v7108 = vrot.slane %v7107, 2
        %v7109 = vmax.f32 %v7107, %v7108
        %v7110 = vrot.slane %v7109, 1
        %v7111 = vmax.f32 %v7109, %v7110
        %v7112 = vsel %vm733, %v6553, -inf
        %v7113 = vrot.slane %v7112, 4
        %v7114 = vmax.f32 %v7112, %v7113
        %v7115 = vrot.slane %v7114, 2
        %v7116 = vmax.f32 %v7114, %v7115
        %v7117 = vrot.slane %v7116, 1
        %v7118 = vmax.f32 %v7116, %v7117
        %v7119 = vsel %vm733, %v6555, -inf
        %v7120 = vrot.slane %v7119, 4
        %v7121 = vmax.f32 %v7119, %v7120
        %v7122 = vrot.slane %v7121, 2
        %v7123 = vmax.f32 %v7121, %v7122
        %v7124 = vrot.slane %v7123, 1
        %v7125 = vmax.f32 %v7123, %v7124
        %v7126 = vsel %vm733, %v6563, -inf
        %v7127 = vrot.slane %v7126, 4
        %v7128 = vmax.f32 %v7126, %v7127
        %v7129 = vrot.slane %v7128, 2
        %v7130 = vmax.f32 %v7128, %v7129
        %v7131 = vrot.slane %v7130, 1
        %v7132 = vmax.f32 %v7130, %v7131
        %v7133 = vsel %vm733, %v6571, -inf
        %v7134 = vrot.slane %v7133, 4
        %v7135 = vmax.f32 %v7133, %v7134
        %v7136 = vrot.slane %v7135, 2
        %v7137 = vmax.f32 %v7135, %v7136
        %v7138 = vrot.slane %v7137, 1
        %v7139 = vmax.f32 %v7137, %v7138
        %v7140 = vsel %vm733, %v6570, -inf
        %v7141 = vrot.slane %v7140, 4
        %v7142 = vmax.f32 %v7140, %v7141
        %v7143 = vrot.slane %v7142, 2
        %v7144 = vmax.f32 %v7142, %v7143
        %v7145 = vrot.slane %v7144, 1
        %v7146 = vmax.f32 %v7144, %v7145
        %v7147 = vsel %vm733, %v6572, -inf
        %v7148 = vrot.slane %v7147, 4
        %v7149 = vmax.f32 %v7147, %v7148
        %v7150 = vrot.slane %v7149, 2
        %v7151 = vmax.f32 %v7149, %v7150
        %v7152 = vrot.slane %v7151, 1
        %v7153 = vmax.f32 %v7151, %v7152
        %v7154 = vsel %vm733, %v6580, -inf
        %v7155 = vrot.slane %v7154, 4
        %v7156 = vmax.f32 %v7154, %v7155
        %v7157 = vrot.slane %v7156, 2
        %v7158 = vmax.f32 %v7156, %v7157
        %v7159 = vrot.slane %v7158, 1
        %v7160 = vmax.f32 %v7158, %v7159
        %v7161 = vsel %vm733, %v6588, -inf
        %v7162 = vrot.slane %v7161, 4
        %v7163 = vmax.f32 %v7161, %v7162
        %v7164 = vrot.slane %v7163, 2
        %v7165 = vmax.f32 %v7163, %v7164
        %v7166 = vrot.slane %v7165, 1
        %v7167 = vmax.f32 %v7165, %v7166
        %v7168 = vsel %vm733, %v6587, -inf
        %v7169 = vrot.slane %v7168, 4
        %v7170 = vmax.f32 %v7168, %v7169
        %v7171 = vrot.slane %v7170, 2
        %v7172 = vmax.f32 %v7170, %v7171
        %v7173 = vrot.slane %v7172, 1
        %v7174 = vmax.f32 %v7172, %v7173
        %v7175 = vsel %vm733, %v6589, -inf
        %v7176 = vrot.slane %v7175, 4
        %v7177 = vmax.f32 %v7175, %v7176
        %v7178 = vrot.slane %v7177, 2
        %v7179 = vmax.f32 %v7177, %v7178
        %v7180 = vrot.slane %v7179, 1
        %v7181 = vmax.f32 %v7179, %v7180
        %v7182 = vsel %vm733, %v6597, -inf
        %v7183 = vrot.slane %v7182, 4
        %v7184 = vmax.f32 %v7182, %v7183
        %v7185 = vrot.slane %v7184, 2
        %v7186 = vmax.f32 %v7184, %v7185
        %v7187 = vrot.slane %v7186, 1
        %v7188 = vmax.f32 %v7186, %v7187
        %v7189 = vsel %vm733, %v6605, -inf
        %v7190 = vrot.slane %v7189, 4
        %v7191 = vmax.f32 %v7189, %v7190
        %v7192 = vrot.slane %v7191, 2
        %v7193 = vmax.f32 %v7191, %v7192
        %v7194 = vrot.slane %v7193, 1
        %v7195 = vmax.f32 %v7193, %v7194
        %v7196 = vsel %vm733, %v6604, -inf
        %v7197 = vrot.slane %v7196, 4
        %v7198 = vmax.f32 %v7196, %v7197
        %v7199 = vrot.slane %v7198, 2
        %v7200 = vmax.f32 %v7198, %v7199
        %v7201 = vrot.slane %v7200, 1
        %v7202 = vmax.f32 %v7200, %v7201
        %v7203 = vsel %vm733, %v6606, -inf
        %v7204 = vrot.slane %v7203, 4
        %v7205 = vmax.f32 %v7203, %v7204
        %v7206 = vrot.slane %v7205, 2
        %v7207 = vmax.f32 %v7205, %v7206
        %v7208 = vrot.slane %v7207, 1
        %v7209 = vmax.f32 %v7207, %v7208
        %v7210 = vsel %vm733, %v6614, -inf
        %v7211 = vrot.slane %v7210, 4
        %v7212 = vmax.f32 %v7210, %v7211
        %v7213 = vrot.slane %v7212, 2
        %v7214 = vmax.f32 %v7212, %v7213
        %v7215 = vrot.slane %v7214, 1
        %v7216 = vmax.f32 %v7214, %v7215
        %v7217 = vsel %vm733, %v6622, -inf
        %v7218 = vrot.slane %v7217, 4
        %v7219 = vmax.f32 %v7217, %v7218
        %v7220 = vrot.slane %v7219, 2
        %v7221 = vmax.f32 %v7219, %v7220
        %v7222 = vrot.slane %v7221, 1
        %v7223 = vmax.f32 %v7221, %v7222
        %v7224 = vsel %vm733, %v6621, -inf
        %v7225 = vrot.slane %v7224, 4
        %v7226 = vmax.f32 %v7224, %v7225
        %v7227 = vrot.slane %v7226, 2
        %v7228 = vmax.f32 %v7226, %v7227
        %v7229 = vrot.slane %v7228, 1
        %v7230 = vmax.f32 %v7228, %v7229
        %v7231 = vsel %vm733, %v6623, -inf
        %v7232 = vrot.slane %v7231, 4
        %v7233 = vmax.f32 %v7231, %v7232
        %v7234 = vrot.slane %v7233, 2
        %v7235 = vmax.f32 %v7233, %v7234
        %v7236 = vrot.slane %v7235, 1
        %v7237 = vmax.f32 %v7235, %v7236
        %v7238 = vsel %vm733, %v6631, -inf
        %v7239 = vrot.slane %v7238, 4
        %v7240 = vmax.f32 %v7238, %v7239
        %v7241 = vrot.slane %v7240, 2
        %v7242 = vmax.f32 %v7240, %v7241
        %v7243 = vrot.slane %v7242, 1
        %v7244 = vmax.f32 %v7242, %v7243
        %v7245 = vsel %vm733, %v6639, -inf
        %v7246 = vrot.slane %v7245, 4
        %v7247 = vmax.f32 %v7245, %v7246
        %v7248 = vrot.slane %v7247, 2
        %v7249 = vmax.f32 %v7247, %v7248
        %v7250 = vrot.slane %v7249, 1
        %v7251 = vmax.f32 %v7249, %v7250
        %v7252 = vsel %vm733, %v6638, -inf
        %v7253 = vrot.slane %v7252, 4
        %v7254 = vmax.f32 %v7252, %v7253
        %v7255 = vrot.slane %v7254, 2
        %v7256 = vmax.f32 %v7254, %v7255
        %v7257 = vrot.slane %v7256, 1
        %v7258 = vmax.f32 %v7256, %v7257
        %v7259 = vsel %vm733, %v6640, -inf
        %v7260 = vrot.slane %v7259, 4
        %v7261 = vmax.f32 %v7259, %v7260
        %v7262 = vrot.slane %v7261, 2
        %v7263 = vmax.f32 %v7261, %v7262
        %v7264 = vrot.slane %v7263, 1
        %v7265 = vmax.f32 %v7263, %v7264
        %v7266 = vsel %vm733, %v6648, -inf
        %v7267 = vrot.slane %v7266, 4
        %v7268 = vmax.f32 %v7266, %v7267
        %v7269 = vrot.slane %v7268, 2
        %v7270 = vmax.f32 %v7268, %v7269
        %v7271 = vrot.slane %v7270, 1
        %v7272 = vmax.f32 %v7270, %v7271
        %v7273 = vsel %vm733, %v6656, -inf
        %v7274 = vrot.slane %v7273, 4
        %v7275 = vmax.f32 %v7273, %v7274
        %v7276 = vrot.slane %v7275, 2
        %v7277 = vmax.f32 %v7275, %v7276
        %v7278 = vrot.slane %v7277, 1
        %v7279 = vmax.f32 %v7277, %v7278
        %v7280 = vsel %vm733, %v6655, -inf
        %v7281 = vrot.slane %v7280, 4
        %v7282 = vmax.f32 %v7280, %v7281
        %v7283 = vrot.slane %v7282, 2
        %v7284 = vmax.f32 %v7282, %v7283
        %v7285 = vrot.slane %v7284, 1
        %v7286 = vmax.f32 %v7284, %v7285
        %v7287 = vsel %vm733, %v6657, -inf
        %v7288 = vrot.slane %v7287, 4
        %v7289 = vmax.f32 %v7287, %v7288
        %v7290 = vrot.slane %v7289, 2
        %v7291 = vmax.f32 %v7289, %v7290
        %v7292 = vrot.slane %v7291, 1
        %v7293 = vmax.f32 %v7291, %v7292
        %v7294 = vsel %vm733, %v6665, -inf
        %v7295 = vrot.slane %v7294, 4
        %v7296 = vmax.f32 %v7294, %v7295
        %v7297 = vrot.slane %v7296, 2
        %v7298 = vmax.f32 %v7296, %v7297
        %v7299 = vrot.slane %v7298, 1
        %v7300 = vmax.f32 %v7298, %v7299
        %v7301 = vsel %vm733, %v6673, -inf
        %v7302 = vrot.slane %v7301, 4
        %v7303 = vmax.f32 %v7301, %v7302
        %v7304 = vrot.slane %v7303, 2
        %v7305 = vmax.f32 %v7303, %v7304
        %v7306 = vrot.slane %v7305, 1
        %v7307 = vmax.f32 %v7305, %v7306
        %v7308 = vsel %vm733, %v6672, -inf
        %v7309 = vrot.slane %v7308, 4
        %v7310 = vmax.f32 %v7308, %v7309
        %v7311 = vrot.slane %v7310, 2
        %v7312 = vmax.f32 %v7310, %v7311
        %v7313 = vrot.slane %v7312, 1
        %v7314 = vmax.f32 %v7312, %v7313
        %v7315 = vsel %vm733, %v6674, -inf
        %v7316 = vrot.slane %v7315, 4
        %v7317 = vmax.f32 %v7315, %v7316
        %v7318 = vrot.slane %v7317, 2
        %v7319 = vmax.f32 %v7317, %v7318
        %v7320 = vrot.slane %v7319, 1
        %v7321 = vmax.f32 %v7319, %v7320
        %v7322 = vsel %vm733, %v6682, -inf
        %v7323 = vrot.slane %v7322, 4
        %v7324 = vmax.f32 %v7322, %v7323
        %v7325 = vrot.slane %v7324, 2
        %v7326 = vmax.f32 %v7324, %v7325
        %v7327 = vrot.slane %v7326, 1
        %v7328 = vmax.f32 %v7326, %v7327
        %v7329 = vsel %vm733, %v6690, -inf
        %v7330 = vrot.slane %v7329, 4
        %v7331 = vmax.f32 %v7329, %v7330
        %v7332 = vrot.slane %v7331, 2
        %v7333 = vmax.f32 %v7331, %v7332
        %v7334 = vrot.slane %v7333, 1
        %v7335 = vmax.f32 %v7333, %v7334
        %v7336 = vsel %vm733, %v6689, -inf
        %v7337 = vrot.slane %v7336, 4
        %v7338 = vmax.f32 %v7336, %v7337
        %v7339 = vrot.slane %v7338, 2
        %v7340 = vmax.f32 %v7338, %v7339
        %v7341 = vrot.slane %v7340, 1
        %v7342 = vmax.f32 %v7340, %v7341
        %v7343 = vsel %vm733, %v6691, -inf
        %v7344 = vrot.slane %v7343, 4
        %v7345 = vmax.f32 %v7343, %v7344
        %v7346 = vrot.slane %v7345, 2
        %v7347 = vmax.f32 %v7345, %v7346
        %v7348 = vrot.slane %v7347, 1
        %v7349 = vmax.f32 %v7347, %v7348
        %v7350 = vsel %vm733, %v6699, -inf
        %v7351 = vrot.slane %v7350, 4
        %v7352 = vmax.f32 %v7350, %v7351
        %v7353 = vrot.slane %v7352, 2
        %v7354 = vmax.f32 %v7352, %v7353
        %v7355 = vrot.slane %v7354, 1
        %v7356 = vmax.f32 %v7354, %v7355
        %v7357 = vsel %vm733, %v6707, -inf
        %v7358 = vrot.slane %v7357, 4
        %v7359 = vmax.f32 %v7357, %v7358
        %v7360 = vrot.slane %v7359, 2
        %v7361 = vmax.f32 %v7359, %v7360
        %v7362 = vrot.slane %v7361, 1
        %v7363 = vmax.f32 %v7361, %v7362
        %v7364 = vsel %vm733, %v6706, -inf
        %v7365 = vrot.slane %v7364, 4
        %v7366 = vmax.f32 %v7364, %v7365
        %v7367 = vrot.slane %v7366, 2
        %v7368 = vmax.f32 %v7366, %v7367
        %v7369 = vrot.slane %v7368, 1
        %v7370 = vmax.f32 %v7368, %v7369
        %v7371 = vsel %vm733, %v6708, -inf
        %v7372 = vrot.slane %v7371, 4
        %v7373 = vmax.f32 %v7371, %v7372
        %v7374 = vrot.slane %v7373, 2
        %v7375 = vmax.f32 %v7373, %v7374
        %v7376 = vrot.slane %v7375, 1
        %v7377 = vmax.f32 %v7375, %v7376
        %v7378 = vsel %vm733, %v6716, -inf
        %v7379 = vrot.slane %v7378, 4
        %v7380 = vmax.f32 %v7378, %v7379
        %v7381 = vrot.slane %v7380, 2
        %v7382 = vmax.f32 %v7380, %v7381
        %v7383 = vrot.slane %v7382, 1
        %v7384 = vmax.f32 %v7382, %v7383
        %v7385 = vsel %vm733, %v6724, -inf
        %v7386 = vrot.slane %v7385, 4
        %v7387 = vmax.f32 %v7385, %v7386
        %v7388 = vrot.slane %v7387, 2
        %v7389 = vmax.f32 %v7387, %v7388
        %v7390 = vrot.slane %v7389, 1
        %v7391 = vmax.f32 %v7389, %v7390
        %v7392 = vsel %vm733, %v6723, -inf
        %v7393 = vrot.slane %v7392, 4
        %v7394 = vmax.f32 %v7392, %v7393
        %v7395 = vrot.slane %v7394, 2
        %v7396 = vmax.f32 %v7394, %v7395
        %v7397 = vrot.slane %v7396, 1
        %v7398 = vmax.f32 %v7396, %v7397
        %v7399 = vsel %vm733, %v6725, -inf
        %v7400 = vrot.slane %v7399, 4
        %v7401 = vmax.f32 %v7399, %v7400
        %v7402 = vrot.slane %v7401, 2
        %v7403 = vmax.f32 %v7401, %v7402
        %v7404 = vrot.slane %v7403, 1
        %v7405 = vmax.f32 %v7403, %v7404
        %v7406 = vsel %vm733, %v6733, -inf
        %v7407 = vrot.slane %v7406, 4
        %v7408 = vmax.f32 %v7406, %v7407
        %v7409 = vrot.slane %v7408, 2
        %v7410 = vmax.f32 %v7408, %v7409
        %v7411 = vrot.slane %v7410, 1
        %v7412 = vmax.f32 %v7410, %v7411
        %v7413 = vsel %vm733, %v6741, -inf
        %v7414 = vrot.slane %v7413, 4
        %v7415 = vmax.f32 %v7413, %v7414
        %v7416 = vrot.slane %v7415, 2
        %v7417 = vmax.f32 %v7415, %v7416
        %v7418 = vrot.slane %v7417, 1
        %v7419 = vmax.f32 %v7417, %v7418
        %v7420 = vsel %vm733, %v6740, -inf
        %v7421 = vrot.slane %v7420, 4
        %v7422 = vmax.f32 %v7420, %v7421
        %v7423 = vrot.slane %v7422, 2
        %v7424 = vmax.f32 %v7422, %v7423
        %v7425 = vrot.slane %v7424, 1
        %v7426 = vmax.f32 %v7424, %v7425
        %v7427 = vsel %vm733, %v6742, -inf
        %v7428 = vrot.slane %v7427, 4
        %v7429 = vmax.f32 %v7427, %v7428
        %v7430 = vrot.slane %v7429, 2
        %v7431 = vmax.f32 %v7429, %v7430
        %v7432 = vrot.slane %v7431, 1
        %v7433 = vmax.f32 %v7431, %v7432
        %v7434 = vsel %vm733, %v6750, -inf
        %v7435 = vrot.slane %v7434, 4
        %v7436 = vmax.f32 %v7434, %v7435
        %v7437 = vrot.slane %v7436, 2
        %v7438 = vmax.f32 %v7436, %v7437
        %v7439 = vrot.slane %v7438, 1
        %v7440 = vmax.f32 %v7438, %v7439
        %v7441 = vsel %vm733, %v6758, -inf
        %v7442 = vrot.slane %v7441, 4
        %v7443 = vmax.f32 %v7441, %v7442
        %v7444 = vrot.slane %v7443, 2
        %v7445 = vmax.f32 %v7443, %v7444
        %v7446 = vrot.slane %v7445, 1
        %v7447 = vmax.f32 %v7445, %v7446
        %v7448 = vsel %vm733, %v6757, -inf
        %v7449 = vrot.slane %v7448, 4
        %v7450 = vmax.f32 %v7448, %v7449
        %v7451 = vrot.slane %v7450, 2
        %v7452 = vmax.f32 %v7450, %v7451
        %v7453 = vrot.slane %v7452, 1
        %v7454 = vmax.f32 %v7452, %v7453
        %v7455 = vsel %vm733, %v6759, -inf
        %v7456 = vrot.slane %v7455, 4
        %v7457 = vmax.f32 %v7455, %v7456
        %v7458 = vrot.slane %v7457, 2
        %v7459 = vmax.f32 %v7457, %v7458
        %v7460 = vrot.slane %v7459, 1
        %v7461 = vmax.f32 %v7459, %v7460
        %v7462 = vsel %vm733, %v6767, -inf
        %v7463 = vrot.slane %v7462, 4
        %v7464 = vmax.f32 %v7462, %v7463
        %v7465 = vrot.slane %v7464, 2
        %v7466 = vmax.f32 %v7464, %v7465
        %v7467 = vrot.slane %v7466, 1
        %v7468 = vmax.f32 %v7466, %v7467
        %v7469 = vsel %vm733, %v6775, -inf
        %v7470 = vrot.slane %v7469, 4
        %v7471 = vmax.f32 %v7469, %v7470
        %v7472 = vrot.slane %v7471, 2
        %v7473 = vmax.f32 %v7471, %v7472
        %v7474 = vrot.slane %v7473, 1
        %v7475 = vmax.f32 %v7473, %v7474
        %v7476 = vsel %vm733, %v6774, -inf
        %v7477 = vrot.slane %v7476, 4
        %v7478 = vmax.f32 %v7476, %v7477
        %v7479 = vrot.slane %v7478, 2
        %v7480 = vmax.f32 %v7478, %v7479
        %v7481 = vrot.slane %v7480, 1
        %v7482 = vmax.f32 %v7480, %v7481
        %v7483 = vsel %vm733, %v6776, -inf
        %v7484 = vrot.slane %v7483, 4
        %v7485 = vmax.f32 %v7483, %v7484
        %v7486 = vrot.slane %v7485, 2
        %v7487 = vmax.f32 %v7485, %v7486
        %v7488 = vrot.slane %v7487, 1
        %v7489 = vmax.f32 %v7487, %v7488
        %v7490 = vsel %vm733, %v6784, -inf
        %v7491 = vrot.slane %v7490, 4
        %v7492 = vmax.f32 %v7490, %v7491
        %v7493 = vrot.slane %v7492, 2
        %v7494 = vmax.f32 %v7492, %v7493
        %v7495 = vrot.slane %v7494, 1
        %v7496 = vmax.f32 %v7494, %v7495
        %v7497 = vsel %vm733, %v6792, -inf
        %v7498 = vrot.slane %v7497, 4
        %v7499 = vmax.f32 %v7497, %v7498
        %v7500 = vrot.slane %v7499, 2
        %v7501 = vmax.f32 %v7499, %v7500
        %v7502 = vrot.slane %v7501, 1
        %v7503 = vmax.f32 %v7501, %v7502
        %v7504 = vsel %vm733, %v6791, -inf
        %v7505 = vrot.slane %v7504, 4
        %v7506 = vmax.f32 %v7504, %v7505
        %v7507 = vrot.slane %v7506, 2
        %v7508 = vmax.f32 %v7506, %v7507
        %v7509 = vrot.slane %v7508, 1
        %v7510 = vmax.f32 %v7508, %v7509
        %v7511 = vsel %vm733, %v6793, -inf
        %v7512 = vrot.slane %v7511, 4
        %v7513 = vmax.f32 %v7511, %v7512
        %v7514 = vrot.slane %v7513, 2
        %v7515 = vmax.f32 %v7513, %v7514
        %v7516 = vrot.slane %v7515, 1
        %v7517 = vmax.f32 %v7515, %v7516
        %v7518 = vsel %vm733, %v6801, -inf
        %v7519 = vrot.slane %v7518, 4
        %v7520 = vmax.f32 %v7518, %v7519
        %v7521 = vrot.slane %v7520, 2
        %v7522 = vmax.f32 %v7520, %v7521
        %v7523 = vrot.slane %v7522, 1
        %v7524 = vmax.f32 %v7522, %v7523
        %v7525 = vsel %vm733, %v6809, -inf
        %v7526 = vrot.slane %v7525, 4
        %v7527 = vmax.f32 %v7525, %v7526
        %v7528 = vrot.slane %v7527, 2
        %v7529 = vmax.f32 %v7527, %v7528
        %v7530 = vrot.slane %v7529, 1
        %v7531 = vmax.f32 %v7529, %v7530
        %v7532 = vsel %vm733, %v6808, -inf
        %v7533 = vrot.slane %v7532, 4
        %v7534 = vmax.f32 %v7532, %v7533
        %v7535 = vrot.slane %v7534, 2
        %v7536 = vmax.f32 %v7534, %v7535
        %v7537 = vrot.slane %v7536, 1
        %v7538 = vmax.f32 %v7536, %v7537
        %v7539 = vsel %vm733, %v6810, -inf
        %v7540 = vrot.slane %v7539, 4
        %v7541 = vmax.f32 %v7539, %v7540
        %v7542 = vrot.slane %v7541, 2
        %v7543 = vmax.f32 %v7541, %v7542
        %v7544 = vrot.slane %v7543, 1
        %v7545 = vmax.f32 %v7543, %v7544
        %v7546 = vsel %vm733, %v6818, -inf
        %v7547 = vrot.slane %v7546, 4
        %v7548 = vmax.f32 %v7546, %v7547
        %v7549 = vrot.slane %v7548, 2
        %v7550 = vmax.f32 %v7548, %v7549
        %v7551 = vrot.slane %v7550, 1
        %v7552 = vmax.f32 %v7550, %v7551
        %v7553 = vsel %vm733, %v6826, -inf
        %v7554 = vrot.slane %v7553, 4
        %v7555 = vmax.f32 %v7553, %v7554
        %v7556 = vrot.slane %v7555, 2
        %v7557 = vmax.f32 %v7555, %v7556
        %v7558 = vrot.slane %v7557, 1
        %v7559 = vmax.f32 %v7557, %v7558
        %v7560 = vsel %vm733, %v6825, -inf
        %v7561 = vrot.slane %v7560, 4
        %v7562 = vmax.f32 %v7560, %v7561
        %v7563 = vrot.slane %v7562, 2
        %v7564 = vmax.f32 %v7562, %v7563
        %v7565 = vrot.slane %v7564, 1
        %v7566 = vmax.f32 %v7564, %v7565
        %v7567 = vsel %vm733, %v6827, -inf
        %v7568 = vrot.slane %v7567, 4
        %v7569 = vmax.f32 %v7567, %v7568
        %v7570 = vrot.slane %v7569, 2
        %v7571 = vmax.f32 %v7569, %v7570
        %v7572 = vrot.slane %v7571, 1
        %v7573 = vmax.f32 %v7571, %v7572
        %v7574 = vsel %vm733, %v6835, -inf
        %v7575 = vrot.slane %v7574, 4
        %v7576 = vmax.f32 %v7574, %v7575
        %v7577 = vrot.slane %v7576, 2
        %v7578 = vmax.f32 %v7576, %v7577
        %v7579 = vrot.slane %v7578, 1
        %v7580 = vmax.f32 %v7578, %v7579
        %v7581 = vsel %vm733, %v6843, -inf
        %v7582 = vrot.slane %v7581, 4
        %v7583 = vmax.f32 %v7581, %v7582
        %v7584 = vrot.slane %v7583, 2
        %v7585 = vmax.f32 %v7583, %v7584
        %v7586 = vrot.slane %v7585, 1
        %v7587 = vmax.f32 %v7585, %v7586
        %v7588 = vsel %vm733, %v6842, -inf
        %v7589 = vrot.slane %v7588, 4
        %v7590 = vmax.f32 %v7588, %v7589
        %v7591 = vrot.slane %v7590, 2
        %v7592 = vmax.f32 %v7590, %v7591
        %v7593 = vrot.slane %v7592, 1
        %v7594 = vmax.f32 %v7592, %v7593
        %v7595 = vsel %vm733, %v6844, -inf
        %v7596 = vrot.slane %v7595, 4
        %v7597 = vmax.f32 %v7595, %v7596
        %v7598 = vrot.slane %v7597, 2
        %v7599 = vmax.f32 %v7597, %v7598
        %v7600 = vrot.slane %v7599, 1
        %v7601 = vmax.f32 %v7599, %v7600
        %v7602 = vsel %vm733, %v6852, -inf
        %v7603 = vrot.slane %v7602, 4
        %v7604 = vmax.f32 %v7602, %v7603
        %v7605 = vrot.slane %v7604, 2
        %v7606 = vmax.f32 %v7604, %v7605
        %v7607 = vrot.slane %v7606, 1
        %v7608 = vmax.f32 %v7606, %v7607
        %v7609 = vsel %vm733, %v6860, -inf
        %v7610 = vrot.slane %v7609, 4
        %v7611 = vmax.f32 %v7609, %v7610
        %v7612 = vrot.slane %v7611, 2
        %v7613 = vmax.f32 %v7611, %v7612
        %v7614 = vrot.slane %v7613, 1
        %v7615 = vmax.f32 %v7613, %v7614
        %v7616 = vsel %vm733, %v6859, -inf
        %v7617 = vrot.slane %v7616, 4
        %v7618 = vmax.f32 %v7616, %v7617
        %v7619 = vrot.slane %v7618, 2
        %v7620 = vmax.f32 %v7618, %v7619
        %v7621 = vrot.slane %v7620, 1
        %v7622 = vmax.f32 %v7620, %v7621
        %v7623 = vsel %vm733, %v6861, -inf
        %v7624 = vrot.slane %v7623, 4
        %v7625 = vmax.f32 %v7623, %v7624
        %v7626 = vrot.slane %v7625, 2
        %v7627 = vmax.f32 %v7625, %v7626
        %v7628 = vrot.slane %v7627, 1
        %v7629 = vmax.f32 %v7627, %v7628
        %v7662 = vsel %vm2471, %v7048, %v6964
        %v7663 = vsel %vm2459, %v7132, %v7662
        %v7664 = vsel %vm2461, %v7216, %v7663
        %v7665 = vsel %vm2463, %v7300, %v7664
        %v7666 = vsel %vm2465, %v7384, %v7665
        %v7667 = vsel %vm2467, %v7468, %v7666
        %v7668 = vsel %vm2469, %v7552, %v7667
        %v7669 = vsel %vm2471, %v7055, %v6971
        %v7670 = vsel %vm2459, %v7139, %v7669
        %v7671 = vsel %vm2461, %v7223, %v7670
        %v7672 = vsel %vm2463, %v7307, %v7671
        %v7673 = vsel %vm2465, %v7391, %v7672
        %v7674 = vsel %vm2467, %v7475, %v7673
        %v7675 = vsel %vm2469, %v7559, %v7674
        %v7676 = vsel %vm2471, %v7062, %v6978
        %v7677 = vsel %vm2459, %v7146, %v7676
        %v7678 = vsel %vm2461, %v7230, %v7677
        %v7679 = vsel %vm2463, %v7314, %v7678
        %v7680 = vsel %vm2465, %v7398, %v7679
        %v7681 = vsel %vm2467, %v7482, %v7680
        %v7682 = vsel %vm2469, %v7566, %v7681
        %v7683 = vsel %vm2471, %v7069, %v6985
        %v7684 = vsel %vm2459, %v7153, %v7683
        %v7685 = vsel %vm2461, %v7237, %v7684
        %v7686 = vsel %vm2463, %v7321, %v7685
        %v7687 = vsel %vm2465, %v7405, %v7686
        %v7688 = vsel %vm2467, %v7489, %v7687
        %v7689 = vsel %vm2469, %v7573, %v7688
        %v7726 = vsel %vm2471, %v7076, %v6992
        %v7727 = vsel %vm2459, %v7160, %v7726
        %v7728 = vsel %vm2461, %v7244, %v7727
        %v7729 = vsel %vm2463, %v7328, %v7728
        %v7730 = vsel %vm2465, %v7412, %v7729
        %v7731 = vsel %vm2467, %v7496, %v7730
        %v7732 = vsel %vm2469, %v7580, %v7731
        %v7733 = vsel %vm2471, %v7083, %v6999
        %v7734 = vsel %vm2459, %v7167, %v7733
        %v7735 = vsel %vm2461, %v7251, %v7734
        %v7736 = vsel %vm2463, %v7335, %v7735
        %v7737 = vsel %vm2465, %v7419, %v7736
        %v7738 = vsel %vm2467, %v7503, %v7737
        %v7739 = vsel %vm2469, %v7587, %v7738
        %v7740 = vsel %vm2471, %v7090, %v7006
        %v7741 = vsel %vm2459, %v7174, %v7740
        %v7742 = vsel %vm2461, %v7258, %v7741
        %v7743 = vsel %vm2463, %v7342, %v7742
        %v7744 = vsel %vm2465, %v7426, %v7743
        %v7745 = vsel %vm2467, %v7510, %v7744
        %v7746 = vsel %vm2469, %v7594, %v7745
        %v7747 = vsel %vm2471, %v7097, %v7013
        %v7748 = vsel %vm2459, %v7181, %v7747
        %v7749 = vsel %vm2461, %v7265, %v7748
        %v7750 = vsel %vm2463, %v7349, %v7749
        %v7751 = vsel %vm2465, %v7433, %v7750
        %v7752 = vsel %vm2467, %v7517, %v7751
        %v7753 = vsel %vm2469, %v7601, %v7752
        %v7790 = vsel %vm2471, %v7104, %v7020
        %v7791 = vsel %vm2459, %v7188, %v7790
        %v7792 = vsel %vm2461, %v7272, %v7791
        %v7793 = vsel %vm2463, %v7356, %v7792
        %v7794 = vsel %vm2465, %v7440, %v7793
        %v7795 = vsel %vm2467, %v7524, %v7794
        %v7796 = vsel %vm2469, %v7608, %v7795
        %v7797 = vsel %vm2471, %v7111, %v7027
        %v7798 = vsel %vm2459, %v7195, %v7797
        %v7799 = vsel %vm2461, %v7279, %v7798
        %v7800 = vsel %vm2463, %v7363, %v7799
        %v7801 = vsel %vm2465, %v7447, %v7800
        %v7802 = vsel %vm2467, %v7531, %v7801
        %v7803 = vsel %vm2469, %v7615, %v7802
        %v7804 = vsel %vm2471, %v7118, %v7034
        %v7805 = vsel %vm2459, %v7202, %v7804
        %v7806 = vsel %vm2461, %v7286, %v7805
        %v7807 = vsel %vm2463, %v7370, %v7806
        %v7808 = vsel %vm2465, %v7454, %v7807
        %v7809 = vsel %vm2467, %v7538, %v7808
        %v7810 = vsel %vm2469, %v7622, %v7809
        %v7811 = vsel %vm2471, %v7125, %v7041
        %v7812 = vsel %vm2459, %v7209, %v7811
        %v7813 = vsel %vm2461, %v7293, %v7812
        %v7814 = vsel %vm2463, %v7377, %v7813
        %v7815 = vsel %vm2465, %v7461, %v7814
        %v7816 = vsel %vm2467, %v7545, %v7815
        %v7817 = vsel %vm2469, %v7629, %v7816
        %v7822 = vld [vmem:[#allocation14] sm:$0xff]
        %v7823 = vld [vmem:[#allocation14 + $0x8] sm:$0xff]
        %v7824 = vld [vmem:[#allocation14 + $0x10] sm:$0xff]
        %v7825 = vld [vmem:[#allocation14 + $0x18] sm:$0xff]
        %v7826 = vld [vmem:[#allocation14 + $0x20] sm:$0xff]
        %v7827 = vld [vmem:[#allocation14 + $0x28] sm:$0xff]
        %v7828 = vld [vmem:[#allocation14 + $0x30] sm:$0xff]
        %v7829 = vld [vmem:[#allocation14 + $0x38] sm:$0xff]
        %v7830 = vld [vmem:[#allocation14 + $0x40] sm:$0xff]
        %v7831 = vld [vmem:[#allocation14 + $0x48] sm:$0xff]
        %v7832 = vld [vmem:[#allocation14 + $0x50] sm:$0xff]
        %v7833 = vld [vmem:[#allocation14 + $0x58] sm:$0xff]
        %v7834 = vld [vmem:[#allocation14 + $0x60] sm:$0xff]
        %v7835 = vld [vmem:[#allocation14 + $0x68] sm:$0xff]
        %v7836 = vld [vmem:[#allocation14 + $0x70] sm:$0xff]
        %v7837 = vld [vmem:[#allocation14 + $0x78] sm:$0xff]
        %v7838 = vld [vmem:[#allocation14 + $0x80] sm:$0xff]
        %v7839 = vld [vmem:[#allocation14 + $0x88] sm:$0xff]
        %v7840 = vld [vmem:[#allocation14 + $0x90] sm:$0xff]
        %v7841 = vld [vmem:[#allocation14 + $0x98] sm:$0xff]
        %v7842 = vld [vmem:[#allocation14 + $0xa0] sm:$0xff]
        %v7843 = vld [vmem:[#allocation14 + $0xa8] sm:$0xff]
        %v7844 = vld [vmem:[#allocation14 + $0xb0] sm:$0xff]
        %v7845 = vld [vmem:[#allocation14 + $0xb8] sm:$0xff]
        %v7846 = vld [vmem:[#allocation14 + $0xc0] sm:$0xff]
        %v7847 = vld [vmem:[#allocation14 + $0xc8] sm:$0xff]
        %v7848 = vld [vmem:[#allocation14 + $0xd0] sm:$0xff]
        %v7849 = vld [vmem:[#allocation14 + $0xd8] sm:$0xff]
        %v7850 = vld [vmem:[#allocation14 + $0xe0] sm:$0xff]
        %v7851 = vld [vmem:[#allocation14 + $0xe8] sm:$0xff]
        %v7852 = vld [vmem:[#allocation14 + $0xf0] sm:$0xff]
        %v7853 = vld [vmem:[#allocation14 + $0xf8] sm:$0xff]
        %v7854 = vld [vmem:[#allocation14 + $0x100] sm:$0xff]
        %v7855 = vld [vmem:[#allocation14 + $0x108] sm:$0xff]
        %v7856 = vld [vmem:[#allocation14 + $0x110] sm:$0xff]
        %v7857 = vld [vmem:[#allocation14 + $0x118] sm:$0xff]
        %v7858 = vld [vmem:[#allocation14 + $0x120] sm:$0xff]
        %v7859 = vld [vmem:[#allocation14 + $0x128] sm:$0xff]
        %v7860 = vld [vmem:[#allocation14 + $0x130] sm:$0xff]
        %v7861 = vld [vmem:[#allocation14 + $0x138] sm:$0xff]
        %v7862 = vld [vmem:[#allocation14 + $0x140] sm:$0xff]
        %v7863 = vld [vmem:[#allocation14 + $0x148] sm:$0xff]
        %v7864 = vld [vmem:[#allocation14 + $0x150] sm:$0xff]
        %v7865 = vld [vmem:[#allocation14 + $0x158] sm:$0xff]
        %v7866 = vld [vmem:[#allocation14 + $0x160] sm:$0xff]
        %v7867 = vld [vmem:[#allocation14 + $0x168] sm:$0xff]
        %v7868 = vld [vmem:[#allocation14 + $0x170] sm:$0xff]
        %v7869 = vld [vmem:[#allocation14 + $0x178] sm:$0xff]
        %v7870 = vld [vmem:[#allocation14 + $0x180] sm:$0xff]
        %v7871 = vld [vmem:[#allocation14 + $0x188] sm:$0xff]
        %v7872 = vld [vmem:[#allocation14 + $0x190] sm:$0xff]
        %v7873 = vld [vmem:[#allocation14 + $0x198] sm:$0xff]
        %v7874 = vld [vmem:[#allocation14 + $0x1a0] sm:$0xff]
        %v7875 = vld [vmem:[#allocation14 + $0x1a8] sm:$0xff]
        %v7876 = vld [vmem:[#allocation14 + $0x1b0] sm:$0xff]
        %v7877 = vld [vmem:[#allocation14 + $0x1b8] sm:$0xff]
        %v7878 = vld [vmem:[#allocation14 + $0x1c0] sm:$0xff]
        %v7879 = vld [vmem:[#allocation14 + $0x1c8] sm:$0xff]
        %v7880 = vld [vmem:[#allocation14 + $0x1d0] sm:$0xff]
        %v7881 = vld [vmem:[#allocation14 + $0x1d8] sm:$0xff]
        %v7882 = vld [vmem:[#allocation14 + $0x1e0] sm:$0xff]
        %v7883 = vld [vmem:[#allocation14 + $0x1e8] sm:$0xff]
        %v7884 = vld [vmem:[#allocation14 + $0x1f0] sm:$0xff]
        %v7885 = vld [vmem:[#allocation14 + $0x1f8] sm:$0xff]
        %v7886 = vld [vmem:[#allocation14 + $0x200] sm:$0xff]
        %v7887 = vld [vmem:[#allocation14 + $0x208] sm:$0xff]
        %v7888 = vld [vmem:[#allocation14 + $0x210] sm:$0xff]
        %v7889 = vld [vmem:[#allocation14 + $0x218] sm:$0xff]
        %v7890 = vld [vmem:[#allocation14 + $0x220] sm:$0xff]
        %v7891 = vld [vmem:[#allocation14 + $0x228] sm:$0xff]
        %v7892 = vld [vmem:[#allocation14 + $0x230] sm:$0xff]
        %v7893 = vld [vmem:[#allocation14 + $0x238] sm:$0xff]
        %v7894 = vld [vmem:[#allocation14 + $0x240] sm:$0xff]
        %v7895 = vld [vmem:[#allocation14 + $0x248] sm:$0xff]
        %v7896 = vld [vmem:[#allocation14 + $0x250] sm:$0xff]
        %v7897 = vld [vmem:[#allocation14 + $0x258] sm:$0xff]
        %v7898 = vld [vmem:[#allocation14 + $0x260] sm:$0xff]
        %v7899 = vld [vmem:[#allocation14 + $0x268] sm:$0xff]
        %v7900 = vld [vmem:[#allocation14 + $0x270] sm:$0xff]
        %v7901 = vld [vmem:[#allocation14 + $0x278] sm:$0xff]
        %v7902 = vld [vmem:[#allocation14 + $0x280] sm:$0xff]
        %v7903 = vld [vmem:[#allocation14 + $0x288] sm:$0xff]
        %v7904 = vld [vmem:[#allocation14 + $0x290] sm:$0xff]
        %v7905 = vld [vmem:[#allocation14 + $0x298] sm:$0xff]
        %v7906 = vld [vmem:[#allocation14 + $0x2a0] sm:$0xff]
        %v7907 = vld [vmem:[#allocation14 + $0x2a8] sm:$0xff]
        %v7908 = vld [vmem:[#allocation14 + $0x2b0] sm:$0xff]
        %v7909 = vld [vmem:[#allocation14 + $0x2b8] sm:$0xff]
        %v7910 = vld [vmem:[#allocation14 + $0x2c0] sm:$0xff]
        %v7911 = vld [vmem:[#allocation14 + $0x2c8] sm:$0xff]
        %v7912 = vld [vmem:[#allocation14 + $0x2d0] sm:$0xff]
        %v7913 = vld [vmem:[#allocation14 + $0x2d8] sm:$0xff]
        %v7914 = vld [vmem:[#allocation14 + $0x2e0] sm:$0xff]
        %v7915 = vld [vmem:[#allocation14 + $0x2e8] sm:$0xff]
        %v7916 = vld [vmem:[#allocation14 + $0x2f0] sm:$0xff]
        %v7917 = vld [vmem:[#allocation14 + $0x2f8] sm:$0xff]
        %v7918 = vld [vmem:[#allocation14 + $0x300] sm:$0xff]
        %v7919 = vld [vmem:[#allocation14 + $0x308] sm:$0xff]
        %v7920 = vld [vmem:[#allocation14 + $0x310] sm:$0xff]
        %v7921 = vld [vmem:[#allocation14 + $0x318] sm:$0xff]
        %v7922 = vld [vmem:[#allocation14 + $0x320] sm:$0xff]
        %v7923 = vld [vmem:[#allocation14 + $0x328] sm:$0xff]
        %v7924 = vld [vmem:[#allocation14 + $0x330] sm:$0xff]
        %v7925 = vld [vmem:[#allocation14 + $0x338] sm:$0xff]
        %v7926 = vld [vmem:[#allocation14 + $0x340] sm:$0xff]
        %v7927 = vld [vmem:[#allocation14 + $0x348] sm:$0xff]
        %v7928 = vld [vmem:[#allocation14 + $0x350] sm:$0xff]
        %v7929 = vld [vmem:[#allocation14 + $0x358] sm:$0xff]
        %v7930 = vld [vmem:[#allocation14 + $0x360] sm:$0xff]
        %v7931 = vld [vmem:[#allocation14 + $0x368] sm:$0xff]
        %v7932 = vld [vmem:[#allocation14 + $0x370] sm:$0xff]
        %v7933 = vld [vmem:[#allocation14 + $0x378] sm:$0xff]
        %v7934 = vld [vmem:[#allocation14 + $0x380] sm:$0xff]
        %v7935 = vld [vmem:[#allocation14 + $0x388] sm:$0xff]
        %v7936 = vld [vmem:[#allocation14 + $0x390] sm:$0xff]
        %v7937 = vld [vmem:[#allocation14 + $0x398] sm:$0xff]
        %v7938 = vld [vmem:[#allocation14 + $0x3a0] sm:$0xff]
        %v7939 = vld [vmem:[#allocation14 + $0x3a8] sm:$0xff]
        %v7940 = vld [vmem:[#allocation14 + $0x3b0] sm:$0xff]
        %v7941 = vld [vmem:[#allocation14 + $0x3b8] sm:$0xff]
        %v7942 = vld [vmem:[#allocation14 + $0x3c0] sm:$0xff]
        %v7943 = vld [vmem:[#allocation14 + $0x3c8] sm:$0xff]
        %v7944 = vld [vmem:[#allocation14 + $0x3d0] sm:$0xff]
        %v7945 = vld [vmem:[#allocation14 + $0x3d8] sm:$0xff]
        %v7946 = vld [vmem:[#allocation14 + $0x3e0] sm:$0xff]
        %v7947 = vld [vmem:[#allocation14 + $0x3e8] sm:$0xff]
        %v7948 = vld [vmem:[#allocation14 + $0x3f0] sm:$0xff]
        %v7949 = vld [vmem:[#allocation14 + $0x3f8] sm:$0xff]
        %v7950 = vld [vmem:[#allocation14 + $0x400] sm:$0xff]
        %v7951 = vld [vmem:[#allocation14 + $0x408] sm:$0xff]
        %v7952 = vld [vmem:[#allocation14 + $0x410] sm:$0xff]
        %v7953 = vld [vmem:[#allocation14 + $0x418] sm:$0xff]
        %v7954 = vld [vmem:[#allocation14 + $0x420] sm:$0xff]
        %v7955 = vld [vmem:[#allocation14 + $0x428] sm:$0xff]
        %v7956 = vld [vmem:[#allocation14 + $0x430] sm:$0xff]
        %v7957 = vld [vmem:[#allocation14 + $0x438] sm:$0xff]
        %v7958 = vld [vmem:[#allocation14 + $0x440] sm:$0xff]
        %v7959 = vld [vmem:[#allocation14 + $0x448] sm:$0xff]
        %v7960 = vld [vmem:[#allocation14 + $0x450] sm:$0xff]
        %v7961 = vld [vmem:[#allocation14 + $0x458] sm:$0xff]
        %v7962 = vld [vmem:[#allocation14 + $0x460] sm:$0xff]
        %v7963 = vld [vmem:[#allocation14 + $0x468] sm:$0xff]
        %v7964 = vld [vmem:[#allocation14 + $0x470] sm:$0xff]
        %v7965 = vld [vmem:[#allocation14 + $0x478] sm:$0xff]
        %v7966 = vld [vmem:[#allocation14 + $0x480] sm:$0xff]
        %v7967 = vld [vmem:[#allocation14 + $0x488] sm:$0xff]
        %v7968 = vld [vmem:[#allocation14 + $0x490] sm:$0xff]
        %v7969 = vld [vmem:[#allocation14 + $0x498] sm:$0xff]
        %v7970 = vld [vmem:[#allocation14 + $0x4a0] sm:$0xff]
        %v7971 = vld [vmem:[#allocation14 + $0x4a8] sm:$0xff]
        %v7972 = vld [vmem:[#allocation14 + $0x4b0] sm:$0xff]
        %v7973 = vld [vmem:[#allocation14 + $0x4b8] sm:$0xff]
        %v7974 = vld [vmem:[#allocation14 + $0x4c0] sm:$0xff]
        %v7975 = vld [vmem:[#allocation14 + $0x4c8] sm:$0xff]
        %v7976 = vld [vmem:[#allocation14 + $0x4d0] sm:$0xff]
        %v7977 = vld [vmem:[#allocation14 + $0x4d8] sm:$0xff]
        %v7978 = vld [vmem:[#allocation14 + $0x4e0] sm:$0xff]
        %v7979 = vld [vmem:[#allocation14 + $0x4e8] sm:$0xff]
        %v7980 = vld [vmem:[#allocation14 + $0x4f0] sm:$0xff]
        %v7981 = vld [vmem:[#allocation14 + $0x4f8] sm:$0xff]
        %v7982 = vld [vmem:[#allocation14 + $0x500] sm:$0xff]
        %v7983 = vld [vmem:[#allocation14 + $0x508] sm:$0xff]
        %v7984 = vld [vmem:[#allocation14 + $0x510] sm:$0xff]
        %v7985 = vld [vmem:[#allocation14 + $0x518] sm:$0xff]
        %v7986 = vld [vmem:[#allocation14 + $0x520] sm:$0xff]
        %v7987 = vld [vmem:[#allocation14 + $0x528] sm:$0xff]
        %v7988 = vld [vmem:[#allocation14 + $0x530] sm:$0xff]
        %v7989 = vld [vmem:[#allocation14 + $0x538] sm:$0xff]
        %v7990 = vld [vmem:[#allocation14 + $0x540] sm:$0xff]
        %v7991 = vld [vmem:[#allocation14 + $0x548] sm:$0xff]
        %v7992 = vld [vmem:[#allocation14 + $0x550] sm:$0xff]
        %v7993 = vld [vmem:[#allocation14 + $0x558] sm:$0xff]
        %v7994 = vld [vmem:[#allocation14 + $0x560] sm:$0xff]
        %v7995 = vld [vmem:[#allocation14 + $0x568] sm:$0xff]
        %v7996 = vld [vmem:[#allocation14 + $0x570] sm:$0xff]
        %v7997 = vld [vmem:[#allocation14 + $0x578] sm:$0xff]
        %v7998 = vld [vmem:[#allocation14 + $0x580] sm:$0xff]
        %v7999 = vld [vmem:[#allocation14 + $0x588] sm:$0xff]
        %v8000 = vld [vmem:[#allocation14 + $0x590] sm:$0xff]
        %v8001 = vld [vmem:[#allocation14 + $0x598] sm:$0xff]
        %v8002 = vld [vmem:[#allocation14 + $0x5a0] sm:$0xff]
        %v8003 = vld [vmem:[#allocation14 + $0x5a8] sm:$0xff]
        %v8004 = vld [vmem:[#allocation14 + $0x5b0] sm:$0xff]
        %v8005 = vld [vmem:[#allocation14 + $0x5b8] sm:$0xff]
        %v8006 = vld [vmem:[#allocation14 + $0x5c0] sm:$0xff]
        %v8007 = vld [vmem:[#allocation14 + $0x5c8] sm:$0xff]
        %v8008 = vld [vmem:[#allocation14 + $0x5d0] sm:$0xff]
        %v8009 = vld [vmem:[#allocation14 + $0x5d8] sm:$0xff]
        %v8010 = vld [vmem:[#allocation14 + $0x5e0] sm:$0xff]
        %v8011 = vld [vmem:[#allocation14 + $0x5e8] sm:$0xff]
        %v8012 = vld [vmem:[#allocation14 + $0x5f0] sm:$0xff]
        %v8013 = vld [vmem:[#allocation14 + $0x5f8] sm:$0xff]
        %v8014 = vld [vmem:[#allocation14 + $0x600] sm:$0xff]
        %v8015 = vld [vmem:[#allocation14 + $0x608] sm:$0xff]
        %v8016 = vld [vmem:[#allocation14 + $0x610] sm:$0xff]
        %v8017 = vld [vmem:[#allocation14 + $0x618] sm:$0xff]
        %v8018 = vld [vmem:[#allocation14 + $0x620] sm:$0xff]
        %v8019 = vld [vmem:[#allocation14 + $0x628] sm:$0xff]
        %v8020 = vld [vmem:[#allocation14 + $0x630] sm:$0xff]
        %v8021 = vld [vmem:[#allocation14 + $0x638] sm:$0xff]
        %v8022 = vld [vmem:[#allocation14 + $0x640] sm:$0xff]
        %v8023 = vld [vmem:[#allocation14 + $0x648] sm:$0xff]
        %v8024 = vld [vmem:[#allocation14 + $0x650] sm:$0xff]
        %v8025 = vld [vmem:[#allocation14 + $0x658] sm:$0xff]
        %v8026 = vld [vmem:[#allocation14 + $0x660] sm:$0xff]
        %v8027 = vld [vmem:[#allocation14 + $0x668] sm:$0xff]
        %v8028 = vld [vmem:[#allocation14 + $0x670] sm:$0xff]
        %v8029 = vld [vmem:[#allocation14 + $0x678] sm:$0xff]
        %v8030 = vld [vmem:[#allocation14 + $0x680] sm:$0xff]
        %v8031 = vld [vmem:[#allocation14 + $0x688] sm:$0xff]
        %v8032 = vld [vmem:[#allocation14 + $0x690] sm:$0xff]
        %v8033 = vld [vmem:[#allocation14 + $0x698] sm:$0xff]
        %v8034 = vld [vmem:[#allocation14 + $0x6a0] sm:$0xff]
        %v8035 = vld [vmem:[#allocation14 + $0x6a8] sm:$0xff]
        %v8036 = vld [vmem:[#allocation14 + $0x6b0] sm:$0xff]
        %v8037 = vld [vmem:[#allocation14 + $0x6b8] sm:$0xff]
        %v8038 = vld [vmem:[#allocation14 + $0x6c0] sm:$0xff]
        %v8039 = vld [vmem:[#allocation14 + $0x6c8] sm:$0xff]
        %v8040 = vld [vmem:[#allocation14 + $0x6d0] sm:$0xff]
        %v8041 = vld [vmem:[#allocation14 + $0x6d8] sm:$0xff]
        %v8042 = vld [vmem:[#allocation14 + $0x6e0] sm:$0xff]
        %v8043 = vld [vmem:[#allocation14 + $0x6e8] sm:$0xff]
        %v8044 = vld [vmem:[#allocation14 + $0x6f0] sm:$0xff]
        %v8045 = vld [vmem:[#allocation14 + $0x6f8] sm:$0xff]
        %v8046 = vld [vmem:[#allocation14 + $0x700] sm:$0xff]
        %v8047 = vld [vmem:[#allocation14 + $0x708] sm:$0xff]
        %v8048 = vld [vmem:[#allocation14 + $0x710] sm:$0xff]
        %v8049 = vld [vmem:[#allocation14 + $0x718] sm:$0xff]
        %v8050 = vld [vmem:[#allocation14 + $0x720] sm:$0xff]
        %v8051 = vld [vmem:[#allocation14 + $0x728] sm:$0xff]
        %v8052 = vld [vmem:[#allocation14 + $0x730] sm:$0xff]
        %v8053 = vld [vmem:[#allocation14 + $0x738] sm:$0xff]
        %v8054 = vld [vmem:[#allocation14 + $0x740] sm:$0xff]
        %v8055 = vld [vmem:[#allocation14 + $0x748] sm:$0xff]
        %v8056 = vld [vmem:[#allocation14 + $0x750] sm:$0xff]
        %v8057 = vld [vmem:[#allocation14 + $0x758] sm:$0xff]
        %v8058 = vld [vmem:[#allocation14 + $0x760] sm:$0xff]
        %v8059 = vld [vmem:[#allocation14 + $0x768] sm:$0xff]
        %v8060 = vld [vmem:[#allocation14 + $0x770] sm:$0xff]
        %v8061 = vld [vmem:[#allocation14 + $0x778] sm:$0xff]
        %v8062 = vld [vmem:[#allocation14 + $0x780] sm:$0xff]
        %v8063 = vld [vmem:[#allocation14 + $0x788] sm:$0xff]
        %v8064 = vld [vmem:[#allocation14 + $0x790] sm:$0xff]
        %v8065 = vld [vmem:[#allocation14 + $0x798] sm:$0xff]
        %v8066 = vld [vmem:[#allocation14 + $0x7a0] sm:$0xff]
        %v8067 = vld [vmem:[#allocation14 + $0x7a8] sm:$0xff]
        %v8068 = vld [vmem:[#allocation14 + $0x7b0] sm:$0xff]
        %v8069 = vld [vmem:[#allocation14 + $0x7b8] sm:$0xff]
        %v8070 = vld [vmem:[#allocation14 + $0x7c0] sm:$0xff]
        %v8071 = vld [vmem:[#allocation14 + $0x7c8] sm:$0xff]
        %v8072 = vld [vmem:[#allocation14 + $0x7d0] sm:$0xff]
        %v8073 = vld [vmem:[#allocation14 + $0x7d8] sm:$0xff]
        %v8074 = vld [vmem:[#allocation14 + $0x7e0] sm:$0xff]
        %v8075 = vld [vmem:[#allocation14 + $0x7e8] sm:$0xff]
        %v8076 = vld [vmem:[#allocation14 + $0x7f0] sm:$0xff]
        %v8077 = vld [vmem:[#allocation14 + $0x7f8] sm:$0xff]
        %v8078 = vld [vmem:[#allocation14 + $0x800] sm:$0xff]
        %v8079 = vld [vmem:[#allocation14 + $0x808] sm:$0xff]
        %v8080 = vld [vmem:[#allocation14 + $0x810] sm:$0xff]
        %v8081 = vld [vmem:[#allocation14 + $0x818] sm:$0xff]
        %v8082 = vld [vmem:[#allocation14 + $0x820] sm:$0xff]
        %v8083 = vld [vmem:[#allocation14 + $0x828] sm:$0xff]
        %v8084 = vld [vmem:[#allocation14 + $0x830] sm:$0xff]
        %v8085 = vld [vmem:[#allocation14 + $0x838] sm:$0xff]
        %v8086 = vld [vmem:[#allocation14 + $0x840] sm:$0xff]
        %v8087 = vld [vmem:[#allocation14 + $0x848] sm:$0xff]
        %v8088 = vld [vmem:[#allocation14 + $0x850] sm:$0xff]
        %v8089 = vld [vmem:[#allocation14 + $0x858] sm:$0xff]
        %v8090 = vld [vmem:[#allocation14 + $0x860] sm:$0xff]
        %v8091 = vld [vmem:[#allocation14 + $0x868] sm:$0xff]
        %v8092 = vld [vmem:[#allocation14 + $0x870] sm:$0xff]
        %v8093 = vld [vmem:[#allocation14 + $0x878] sm:$0xff]
        %v8094 = vld [vmem:[#allocation14 + $0x880] sm:$0xff]
        %v8095 = vld [vmem:[#allocation14 + $0x888] sm:$0xff]
        %v8096 = vld [vmem:[#allocation14 + $0x890] sm:$0xff]
        %v8097 = vld [vmem:[#allocation14 + $0x898] sm:$0xff]
        %v8098 = vld [vmem:[#allocation14 + $0x8a0] sm:$0xff]
        %v8099 = vld [vmem:[#allocation14 + $0x8a8] sm:$0xff]
        %v8100 = vld [vmem:[#allocation14 + $0x8b0] sm:$0xff]
        %v8101 = vld [vmem:[#allocation14 + $0x8b8] sm:$0xff]
        %v8102 = vld [vmem:[#allocation14 + $0x8c0] sm:$0xff]
        %v8103 = vld [vmem:[#allocation14 + $0x8c8] sm:$0xff]
        %v8104 = vld [vmem:[#allocation14 + $0x8d0] sm:$0xff]
        %v8105 = vld [vmem:[#allocation14 + $0x8d8] sm:$0xff]
        %v8106 = vld [vmem:[#allocation14 + $0x8e0] sm:$0xff]
        %v8107 = vld [vmem:[#allocation14 + $0x8e8] sm:$0xff]
        %v8108 = vld [vmem:[#allocation14 + $0x8f0] sm:$0xff]
        %v8109 = vld [vmem:[#allocation14 + $0x8f8] sm:$0xff]
        %v8110 = vld [vmem:[#allocation14 + $0x900] sm:$0xff]
        %v8111 = vld [vmem:[#allocation14 + $0x908] sm:$0xff]
        %v8112 = vld [vmem:[#allocation14 + $0x910] sm:$0xff]
        %v8113 = vld [vmem:[#allocation14 + $0x918] sm:$0xff]
        %v8114 = vld [vmem:[#allocation14 + $0x920] sm:$0xff]
        %v8115 = vld [vmem:[#allocation14 + $0x928] sm:$0xff]
        %v8116 = vld [vmem:[#allocation14 + $0x930] sm:$0xff]
        %v8117 = vld [vmem:[#allocation14 + $0x938] sm:$0xff]
        %v8118 = vld [vmem:[#allocation14 + $0x940] sm:$0xff]
        %v8119 = vld [vmem:[#allocation14 + $0x948] sm:$0xff]
        %v8120 = vld [vmem:[#allocation14 + $0x950] sm:$0xff]
        %v8121 = vld [vmem:[#allocation14 + $0x958] sm:$0xff]
        %v8122 = vld [vmem:[#allocation14 + $0x960] sm:$0xff]
        %v8123 = vld [vmem:[#allocation14 + $0x968] sm:$0xff]
        %v8124 = vld [vmem:[#allocation14 + $0x970] sm:$0xff]
        %v8125 = vld [vmem:[#allocation14 + $0x978] sm:$0xff]
        %v8126 = vld [vmem:[#allocation14 + $0x980] sm:$0xff]
        %v8127 = vld [vmem:[#allocation14 + $0x988] sm:$0xff]
        %v8128 = vld [vmem:[#allocation14 + $0x990] sm:$0xff]
        %v8129 = vld [vmem:[#allocation14 + $0x998] sm:$0xff]
        %v8130 = vld [vmem:[#allocation14 + $0x9a0] sm:$0xff]
        %v8131 = vld [vmem:[#allocation14 + $0x9a8] sm:$0xff]
        %v8132 = vld [vmem:[#allocation14 + $0x9b0] sm:$0xff]
        %v8133 = vld [vmem:[#allocation14 + $0x9b8] sm:$0xff]
        %v8134 = vld [vmem:[#allocation14 + $0x9c0] sm:$0xff]
        %v8135 = vld [vmem:[#allocation14 + $0x9c8] sm:$0xff]
        %v8136 = vld [vmem:[#allocation14 + $0x9d0] sm:$0xff]
        %v8137 = vld [vmem:[#allocation14 + $0x9d8] sm:$0xff]
        %v8138 = vld [vmem:[#allocation14 + $0x9e0] sm:$0xff]
        %v8139 = vld [vmem:[#allocation14 + $0x9e8] sm:$0xff]
        %v8140 = vld [vmem:[#allocation14 + $0x9f0] sm:$0xff]
        %v8141 = vld [vmem:[#allocation14 + $0x9f8] sm:$0xff]
        %v8142 = vld [vmem:[#allocation14 + $0xa00] sm:$0xff]
        %v8143 = vld [vmem:[#allocation14 + $0xa08] sm:$0xff]
        %v8144 = vld [vmem:[#allocation14 + $0xa10] sm:$0xff]
        %v8145 = vld [vmem:[#allocation14 + $0xa18] sm:$0xff]
        %v8146 = vld [vmem:[#allocation14 + $0xa20] sm:$0xff]
        %v8147 = vld [vmem:[#allocation14 + $0xa28] sm:$0xff]
        %v8148 = vld [vmem:[#allocation14 + $0xa30] sm:$0xff]
        %v8149 = vld [vmem:[#allocation14 + $0xa38] sm:$0xff]
        %v8150 = vld [vmem:[#allocation14 + $0xa40] sm:$0xff]
        %v8151 = vld [vmem:[#allocation14 + $0xa48] sm:$0xff]
        %v8152 = vld [vmem:[#allocation14 + $0xa50] sm:$0xff]
        %v8153 = vld [vmem:[#allocation14 + $0xa58] sm:$0xff]
        %v8154 = vld [vmem:[#allocation14 + $0xa60] sm:$0xff]
        %v8155 = vld [vmem:[#allocation14 + $0xa68] sm:$0xff]
        %v8156 = vld [vmem:[#allocation14 + $0xa70] sm:$0xff]
        %v8157 = vld [vmem:[#allocation14 + $0xa78] sm:$0xff]
        %v8158 = vld [vmem:[#allocation14 + $0xa80] sm:$0xff]
        %v8159 = vld [vmem:[#allocation14 + $0xa88] sm:$0xff]
        %v8160 = vld [vmem:[#allocation14 + $0xa90] sm:$0xff]
        %v8161 = vld [vmem:[#allocation14 + $0xa98] sm:$0xff]
        %v8162 = vld [vmem:[#allocation14 + $0xaa0] sm:$0xff]
        %v8163 = vld [vmem:[#allocation14 + $0xaa8] sm:$0xff]
        %v8164 = vld [vmem:[#allocation14 + $0xab0] sm:$0xff]
        %v8165 = vld [vmem:[#allocation14 + $0xab8] sm:$0xff]
        %v8166 = vld [vmem:[#allocation14 + $0xac0] sm:$0xff]
        %v8167 = vld [vmem:[#allocation14 + $0xac8] sm:$0xff]
        %v8168 = vld [vmem:[#allocation14 + $0xad0] sm:$0xff]
        %v8169 = vld [vmem:[#allocation14 + $0xad8] sm:$0xff]
        %v8170 = vld [vmem:[#allocation14 + $0xae0] sm:$0xff]
        %v8171 = vld [vmem:[#allocation14 + $0xae8] sm:$0xff]
        %v8172 = vld [vmem:[#allocation14 + $0xaf0] sm:$0xff]
        %v8173 = vld [vmem:[#allocation14 + $0xaf8] sm:$0xff]
        %v8174 = vld [vmem:[#allocation14 + $0xb00] sm:$0xff]
        %v8175 = vld [vmem:[#allocation14 + $0xb08] sm:$0xff]
        %v8176 = vld [vmem:[#allocation14 + $0xb10] sm:$0xff]
        %v8177 = vld [vmem:[#allocation14 + $0xb18] sm:$0xff]
        %v8178 = vld [vmem:[#allocation14 + $0xb20] sm:$0xff]
        %v8179 = vld [vmem:[#allocation14 + $0xb28] sm:$0xff]
        %v8180 = vld [vmem:[#allocation14 + $0xb30] sm:$0xff]
        %v8181 = vld [vmem:[#allocation14 + $0xb38] sm:$0xff]
        %v8182 = vld [vmem:[#allocation14 + $0xb40] sm:$0xff]
        %v8183 = vld [vmem:[#allocation14 + $0xb48] sm:$0xff]
        %v8184 = vld [vmem:[#allocation14 + $0xb50] sm:$0xff]
        %v8185 = vld [vmem:[#allocation14 + $0xb58] sm:$0xff]
        %v8186 = vld [vmem:[#allocation14 + $0xb60] sm:$0xff]
        %v8187 = vld [vmem:[#allocation14 + $0xb68] sm:$0xff]
        %v8188 = vld [vmem:[#allocation14 + $0xb70] sm:$0xff]
        %v8189 = vld [vmem:[#allocation14 + $0xb78] sm:$0xff]
        %v8190 = vld [vmem:[#allocation14 + $0xb80] sm:$0xff]
        %v8191 = vld [vmem:[#allocation14 + $0xb88] sm:$0xff]
        %v8192 = vld [vmem:[#allocation14 + $0xb90] sm:$0xff]
        %v8193 = vld [vmem:[#allocation14 + $0xb98] sm:$0xff]
        %v8194 = vld [vmem:[#allocation14 + $0xba0] sm:$0xff]
        %v8195 = vld [vmem:[#allocation14 + $0xba8] sm:$0xff]
        %v8196 = vld [vmem:[#allocation14 + $0xbb0] sm:$0xff]
        %v8197 = vld [vmem:[#allocation14 + $0xbb8] sm:$0xff]
        %v8198 = vld [vmem:[#allocation14 + $0xbc0] sm:$0xff]
        %v8199 = vld [vmem:[#allocation14 + $0xbc8] sm:$0xff]
        %v8200 = vld [vmem:[#allocation14 + $0xbd0] sm:$0xff]
        %v8201 = vld [vmem:[#allocation14 + $0xbd8] sm:$0xff]
        %v8202 = vld [vmem:[#allocation14 + $0xbe0] sm:$0xff]
        %v8203 = vld [vmem:[#allocation14 + $0xbe8] sm:$0xff]
        %v8204 = vld [vmem:[#allocation14 + $0xbf0] sm:$0xff]
        %v8205 = vld [vmem:[#allocation14 + $0xbf8] sm:$0xff]
        %v8206 = vld [vmem:[#allocation16] sm:$0x3]
        %v8208 = vlaneseq
        %v8209 = vshrl.u32 %v8208, 7
        %v8210 = vsub.s32 0, %v8209
        %v8211 = vrot.slane %v8206, %v8210
        %v8212 = vlaneseq
        %v8213 = vshrl.u32 %v8212, 7
        %v8214 = vsub.s32 1, %v8213
        %v8215 = vrot.slane %v8206, %v8214
        %8218 = vmatprep.subr.mxu0 %v7823
        %8219 = vmatpush1.msra.mxu0 %v7822
        %8220 = vmatprep.subr.mxu0 %v7825
        %8221 = vmatpush1.msra.mxu0 %v7824
        %8222 = vmatprep.subr.mxu0 %v7827
        %8223 = vmatpush1.msra.mxu0 %v7826
        %8224 = vmatprep.subr.mxu0 %v7829
        %8225 = vmatpush1.msra.mxu0 %v7828
        %8226 = vmatprep.subr.mxu0 %v7831
        %8227 = vmatpush1.msra.mxu0 %v7830
        %8228 = vmatprep.subr.mxu0 %v7833
        %8229 = vmatpush1.msra.mxu0 %v7832
        %8230 = vmatprep.subr.mxu0 %v7835
        %8231 = vmatpush1.msra.mxu0 %v7834
        %8232 = vmatprep.subr.mxu0 %v7837
        %8233 = vmatpush1.msra.mxu0 %v7836
        %8234 = vmatprep.subr.mxu0 %v7839
        %8235 = vmatpush1.msra.mxu0 %v7838
        %8236 = vmatprep.subr.mxu0 %v7841
        %8237 = vmatpush1.msra.mxu0 %v7840
        %8238 = vmatprep.subr.mxu0 %v7843
        %8239 = vmatpush1.msra.mxu0 %v7842
        %8240 = vmatprep.subr.mxu0 %v7845
        %8241 = vmatpush1.msra.mxu0 %v7844
        %8242 = vmatprep.subr.mxu0 %v7847
        %8243 = vmatpush1.msra.mxu0 %v7846
        %8244 = vmatprep.subr.mxu0 %v7849
        %8245 = vmatpush1.msra.mxu0 %v7848
        %8246 = vmatprep.subr.mxu0 %v7851
        %8247 = vmatpush1.msra.mxu0 %v7850
        %8248 = vmatprep.subr.mxu0 %v7853
        %8249 = vmatpush1.msra.mxu0 %v7852
        %8250 = vmatprep.subr.mxu0 %v7855
        %8251 = vmatpush1.msra.mxu0 %v7854
        %8252 = vmatprep.subr.mxu0 %v7857
        %8253 = vmatpush1.msra.mxu0 %v7856
        %8254 = vmatprep.subr.mxu0 %v7859
        %8255 = vmatpush1.msra.mxu0 %v7858
        %8256 = vmatprep.subr.mxu0 %v7861
        %8257 = vmatpush1.msra.mxu0 %v7860
        %8258 = vmatprep.subr.mxu0 %v7863
        %8259 = vmatpush1.msra.mxu0 %v7862
        %8260 = vmatprep.subr.mxu0 %v7865
        %8261 = vmatpush1.msra.mxu0 %v7864
        %8262 = vmatprep.subr.mxu0 %v7867
        %8263 = vmatpush1.msra.mxu0 %v7866
        %8264 = vmatprep.subr.mxu0 %v7869
        %8265 = vmatpush1.msra.mxu0 %v7868
        %8266 = vmatprep.subr.mxu0 %v7871
        %8267 = vmatpush1.msra.mxu0 %v7870
        %8268 = vmatprep.subr.mxu0 %v7873
        %8269 = vmatpush1.msra.mxu0 %v7872
        %8270 = vmatprep.subr.mxu0 %v7875
        %8271 = vmatpush1.msra.mxu0 %v7874
        %8272 = vmatprep.subr.mxu0 %v7877
        %8273 = vmatpush1.msra.mxu0 %v7876
        %8274 = vmatprep.subr.mxu0 %v7879
        %8275 = vmatpush1.msra.mxu0 %v7878
        %8276 = vmatprep.subr.mxu0 %v7881
        %8277 = vmatpush1.msra.mxu0 %v7880
        %8278 = vmatprep.subr.mxu0 %v7883
        %8279 = vmatpush1.msra.mxu0 %v7882
        %8280 = vmatprep.subr.mxu0 %v7885
        %8281 = vmatpush1.msra.mxu0 %v7884
        %8282 = vmatprep.mubr.f32.mxu0 %v7675
        %8283 = vmatmul.mubr.f32.gmra.mrb[0].mxu0 %v7668
        %v8284 = vpop.f32.mrb[0].mxu0
        %v8285 = vadd.f32 %v8211, %v8284
        %v8286 = vpop.f32.mrb[0].mxu0
        %v8287 = vadd.f32 %v8215, %v8286
        %8288 = vdwg.mxu0
        %8289 = vmatprep.subr.mxu0 %v7887
        %8290 = vmatpush1.msra.mxu0 %v7886
        %8291 = vmatprep.subr.mxu0 %v7889
        %8292 = vmatpush1.msra.mxu0 %v7888
        %8293 = vmatprep.subr.mxu0 %v7891
        %8294 = vmatpush1.msra.mxu0 %v7890
        %8295 = vmatprep.subr.mxu0 %v7893
        %8296 = vmatpush1.msra.mxu0 %v7892
        %8297 = vmatprep.subr.mxu0 %v7895
        %8298 = vmatpush1.msra.mxu0 %v7894
        %8299 = vmatprep.subr.mxu0 %v7897
        %8300 = vmatpush1.msra.mxu0 %v7896
        %8301 = vmatprep.subr.mxu0 %v7899
        %8302 = vmatpush1.msra.mxu0 %v7898
        %8303 = vmatprep.subr.mxu0 %v7901
        %8304 = vmatpush1.msra.mxu0 %v7900
        %8305 = vmatprep.subr.mxu0 %v7903
        %8306 = vmatpush1.msra.mxu0 %v7902
        %8307 = vmatprep.subr.mxu0 %v7905
        %8308 = vmatpush1.msra.mxu0 %v7904
        %8309 = vmatprep.subr.mxu0 %v7907
        %8310 = vmatpush1.msra.mxu0 %v7906
        %8311 = vmatprep.subr.mxu0 %v7909
        %8312 = vmatpush1.msra.mxu0 %v7908
        %8313 = vmatprep.subr.mxu0 %v7911
        %8314 = vmatpush1.msra.mxu0 %v7910
        %8315 = vmatprep.subr.mxu0 %v7913
        %8316 = vmatpush1.msra.mxu0 %v7912
        %8317 = vmatprep.subr.mxu0 %v7915
        %8318 = vmatpush1.msra.mxu0 %v7914
        %8319 = vmatprep.subr.mxu0 %v7917
        %8320 = vmatpush1.msra.mxu0 %v7916
        %8321 = vmatprep.subr.mxu0 %v7919
        %8322 = vmatpush1.msra.mxu0 %v7918
        %8323 = vmatprep.subr.mxu0 %v7921
        %8324 = vmatpush1.msra.mxu0 %v7920
        %8325 = vmatprep.subr.mxu0 %v7923
        %8326 = vmatpush1.msra.mxu0 %v7922
        %8327 = vmatprep.subr.mxu0 %v7925
        %8328 = vmatpush1.msra.mxu0 %v7924
        %8329 = vmatprep.subr.mxu0 %v7927
        %8330 = vmatpush1.msra.mxu0 %v7926
        %8331 = vmatprep.subr.mxu0 %v7929
        %8332 = vmatpush1.msra.mxu0 %v7928
        %8333 = vmatprep.subr.mxu0 %v7931
        %8334 = vmatpush1.msra.mxu0 %v7930
        %8335 = vmatprep.subr.mxu0 %v7933
        %8336 = vmatpush1.msra.mxu0 %v7932
        %8337 = vmatprep.subr.mxu0 %v7935
        %8338 = vmatpush1.msra.mxu0 %v7934
        %8339 = vmatprep.subr.mxu0 %v7937
        %8340 = vmatpush1.msra.mxu0 %v7936
        %8341 = vmatprep.subr.mxu0 %v7939
        %8342 = vmatpush1.msra.mxu0 %v7938
        %8343 = vmatprep.subr.mxu0 %v7941
        %8344 = vmatpush1.msra.mxu0 %v7940
        %8345 = vmatprep.subr.mxu0 %v7943
        %8346 = vmatpush1.msra.mxu0 %v7942
        %8347 = vmatprep.subr.mxu0 %v7945
        %8348 = vmatpush1.msra.mxu0 %v7944
        %8349 = vmatprep.subr.mxu0 %v7947
        %8350 = vmatpush1.msra.mxu0 %v7946
        %8351 = vmatprep.subr.mxu0 %v7949
        %8352 = vmatpush1.msra.mxu0 %v7948
        %8353 = vmatprep.mubr.f32.mxu0 %v7689
        %8354 = vmatmul.mubr.f32.gmra.mrb[0].mxu0 %v7682
        %v8355 = vpop.f32.mrb[0].mxu0
        %v8356 = vadd.f32 %v8285, %v8355
        %v8357 = vpop.f32.mrb[0].mxu0
        %v8358 = vadd.f32 %v8287, %v8357
        %8359 = vdwg.mxu0
        %8360 = vmatprep.subr.mxu0 %v7951
        %8361 = vmatpush1.msra.mxu0 %v7950
        %8362 = vmatprep.subr.mxu0 %v7953
        %8363 = vmatpush1.msra.mxu0 %v7952
        %8364 = vmatprep.subr.mxu0 %v7955
        %8365 = vmatpush1.msra.mxu0 %v7954
        %8366 = vmatprep.subr.mxu0 %v7957
        %8367 = vmatpush1.msra.mxu0 %v7956
        %8368 = vmatprep.subr.mxu0 %v7959
        %8369 = vmatpush1.msra.mxu0 %v7958
        %8370 = vmatprep.subr.mxu0 %v7961
        %8371 = vmatpush1.msra.mxu0 %v7960
        %8372 = vmatprep.subr.mxu0 %v7963
        %8373 = vmatpush1.msra.mxu0 %v7962
        %8374 = vmatprep.subr.mxu0 %v7965
        %8375 = vmatpush1.msra.mxu0 %v7964
        %8376 = vmatprep.subr.mxu0 %v7967
        %8377 = vmatpush1.msra.mxu0 %v7966
        %8378 = vmatprep.subr.mxu0 %v7969
        %8379 = vmatpush1.msra.mxu0 %v7968
        %8380 = vmatprep.subr.mxu0 %v7971
        %8381 = vmatpush1.msra.mxu0 %v7970
        %8382 = vmatprep.subr.mxu0 %v7973
        %8383 = vmatpush1.msra.mxu0 %v7972
        %8384 = vmatprep.subr.mxu0 %v7975
        %8385 = vmatpush1.msra.mxu0 %v7974
        %8386 = vmatprep.subr.mxu0 %v7977
        %8387 = vmatpush1.msra.mxu0 %v7976
        %8388 = vmatprep.subr.mxu0 %v7979
        %8389 = vmatpush1.msra.mxu0 %v7978
        %8390 = vmatprep.subr.mxu0 %v7981
        %8391 = vmatpush1.msra.mxu0 %v7980
        %8392 = vmatprep.subr.mxu0 %v7983
        %8393 = vmatpush1.msra.mxu0 %v7982
        %8394 = vmatprep.subr.mxu0 %v7985
        %8395 = vmatpush1.msra.mxu0 %v7984
        %8396 = vmatprep.subr.mxu0 %v7987
        %8397 = vmatpush1.msra.mxu0 %v7986
        %8398 = vmatprep.subr.mxu0 %v7989
        %8399 = vmatpush1.msra.mxu0 %v7988
        %8400 = vmatprep.subr.mxu0 %v7991
        %8401 = vmatpush1.msra.mxu0 %v7990
        %8402 = vmatprep.subr.mxu0 %v7993
        %8403 = vmatpush1.msra.mxu0 %v7992
        %8404 = vmatprep.subr.mxu0 %v7995
        %8405 = vmatpush1.msra.mxu0 %v7994
        %8406 = vmatprep.subr.mxu0 %v7997
        %8407 = vmatpush1.msra.mxu0 %v7996
        %8408 = vmatprep.subr.mxu0 %v7999
        %8409 = vmatpush1.msra.mxu0 %v7998
        %8410 = vmatprep.subr.mxu0 %v8001
        %8411 = vmatpush1.msra.mxu0 %v8000
        %8412 = vmatprep.subr.mxu0 %v8003
        %8413 = vmatpush1.msra.mxu0 %v8002
        %8414 = vmatprep.subr.mxu0 %v8005
        %8415 = vmatpush1.msra.mxu0 %v8004
        %8416 = vmatprep.subr.mxu0 %v8007
        %8417 = vmatpush1.msra.mxu0 %v8006
        %8418 = vmatprep.subr.mxu0 %v8009
        %8419 = vmatpush1.msra.mxu0 %v8008
        %8420 = vmatprep.subr.mxu0 %v8011
        %8421 = vmatpush1.msra.mxu0 %v8010
        %8422 = vmatprep.subr.mxu0 %v8013
        %8423 = vmatpush1.msra.mxu0 %v8012
        %8424 = vmatprep.mubr.f32.mxu0 %v7739
        %8425 = vmatmul.mubr.f32.gmra.mrb[0].mxu0 %v7732
        %v8426 = vpop.f32.mrb[0].mxu0
        %v8427 = vadd.f32 %v8356, %v8426
        %v8428 = vpop.f32.mrb[0].mxu0
        %v8429 = vadd.f32 %v8358, %v8428
        %8430 = vdwg.mxu0
        %8431 = vmatprep.subr.mxu0 %v8015
        %8432 = vmatpush1.msra.mxu0 %v8014
        %8433 = vmatprep.subr.mxu0 %v8017
        %8434 = vmatpush1.msra.mxu0 %v8016
        %8435 = vmatprep.subr.mxu0 %v8019
        %8436 = vmatpush1.msra.mxu0 %v8018
        %8437 = vmatprep.subr.mxu0 %v8021
        %8438 = vmatpush1.msra.mxu0 %v8020
        %8439 = vmatprep.subr.mxu0 %v8023
        %8440 = vmatpush1.msra.mxu0 %v8022
        %8441 = vmatprep.subr.mxu0 %v8025
        %8442 = vmatpush1.msra.mxu0 %v8024
        %8443 = vmatprep.subr.mxu0 %v8027
        %8444 = vmatpush1.msra.mxu0 %v8026
        %8445 = vmatprep.subr.mxu0 %v8029
        %8446 = vmatpush1.msra.mxu0 %v8028
        %8447 = vmatprep.subr.mxu0 %v8031
        %8448 = vmatpush1.msra.mxu0 %v8030
        %8449 = vmatprep.subr.mxu0 %v8033
        %8450 = vmatpush1.msra.mxu0 %v8032
        %8451 = vmatprep.subr.mxu0 %v8035
        %8452 = vmatpush1.msra.mxu0 %v8034
        %8453 = vmatprep.subr.mxu0 %v8037
        %8454 = vmatpush1.msra.mxu0 %v8036
        %8455 = vmatprep.subr.mxu0 %v8039
        %8456 = vmatpush1.msra.mxu0 %v8038
        %8457 = vmatprep.subr.mxu0 %v8041
        %8458 = vmatpush1.msra.mxu0 %v8040
        %8459 = vmatprep.subr.mxu0 %v8043
        %8460 = vmatpush1.msra.mxu0 %v8042
        %8461 = vmatprep.subr.mxu0 %v8045
        %8462 = vmatpush1.msra.mxu0 %v8044
        %8463 = vmatprep.subr.mxu0 %v8047
        %8464 = vmatpush1.msra.mxu0 %v8046
        %8465 = vmatprep.subr.mxu0 %v8049
        %8466 = vmatpush1.msra.mxu0 %v8048
        %8467 = vmatprep.subr.mxu0 %v8051
        %8468 = vmatpush1.msra.mxu0 %v8050
        %8469 = vmatprep.subr.mxu0 %v8053
        %8470 = vmatpush1.msra.mxu0 %v8052
        %8471 = vmatprep.subr.mxu0 %v8055
        %8472 = vmatpush1.msra.mxu0 %v8054
        %8473 = vmatprep.subr.mxu0 %v8057
        %8474 = vmatpush1.msra.mxu0 %v8056
        %8475 = vmatprep.subr.mxu0 %v8059
        %8476 = vmatpush1.msra.mxu0 %v8058
        %8477 = vmatprep.subr.mxu0 %v8061
        %8478 = vmatpush1.msra.mxu0 %v8060
        %8479 = vmatprep.subr.mxu0 %v8063
        %8480 = vmatpush1.msra.mxu0 %v8062
        %8481 = vmatprep.subr.mxu0 %v8065
        %8482 = vmatpush1.msra.mxu0 %v8064
        %8483 = vmatprep.subr.mxu0 %v8067
        %8484 = vmatpush1.msra.mxu0 %v8066
        %8485 = vmatprep.subr.mxu0 %v8069
        %8486 = vmatpush1.msra.mxu0 %v8068
        %8487 = vmatprep.subr.mxu0 %v8071
        %8488 = vmatpush1.msra.mxu0 %v8070
        %8489 = vmatprep.subr.mxu0 %v8073
        %8490 = vmatpush1.msra.mxu0 %v8072
        %8491 = vmatprep.subr.mxu0 %v8075
        %8492 = vmatpush1.msra.mxu0 %v8074
        %8493 = vmatprep.subr.mxu0 %v8077
        %8494 = vmatpush1.msra.mxu0 %v8076
        %8495 = vmatprep.mubr.f32.mxu0 %v7753
        %8496 = vmatmul.mubr.f32.gmra.mrb[0].mxu0 %v7746
        %v8497 = vpop.f32.mrb[0].mxu0
        %v8498 = vadd.f32 %v8427, %v8497
        %v8499 = vpop.f32.mrb[0].mxu0
        %v8500 = vadd.f32 %v8429, %v8499
        %8501 = vdwg.mxu0
        %8502 = vmatprep.subr.mxu0 %v8079
        %8503 = vmatpush1.msra.mxu0 %v8078
        %8504 = vmatprep.subr.mxu0 %v8081
        %8505 = vmatpush1.msra.mxu0 %v8080
        %8506 = vmatprep.subr.mxu0 %v8083
        %8507 = vmatpush1.msra.mxu0 %v8082
        %8508 = vmatprep.subr.mxu0 %v8085
        %8509 = vmatpush1.msra.mxu0 %v8084
        %8510 = vmatprep.subr.mxu0 %v8087
        %8511 = vmatpush1.msra.mxu0 %v8086
        %8512 = vmatprep.subr.mxu0 %v8089
        %8513 = vmatpush1.msra.mxu0 %v8088
        %8514 = vmatprep.subr.mxu0 %v8091
        %8515 = vmatpush1.msra.mxu0 %v8090
        %8516 = vmatprep.subr.mxu0 %v8093
        %8517 = vmatpush1.msra.mxu0 %v8092
        %8518 = vmatprep.subr.mxu0 %v8095
        %8519 = vmatpush1.msra.mxu0 %v8094
        %8520 = vmatprep.subr.mxu0 %v8097
        %8521 = vmatpush1.msra.mxu0 %v8096
        %8522 = vmatprep.subr.mxu0 %v8099
        %8523 = vmatpush1.msra.mxu0 %v8098
        %8524 = vmatprep.subr.mxu0 %v8101
        %8525 = vmatpush1.msra.mxu0 %v8100
        %8526 = vmatprep.subr.mxu0 %v8103
        %8527 = vmatpush1.msra.mxu0 %v8102
        %8528 = vmatprep.subr.mxu0 %v8105
        %8529 = vmatpush1.msra.mxu0 %v8104
        %8530 = vmatprep.subr.mxu0 %v8107
        %8531 = vmatpush1.msra.mxu0 %v8106
        %8532 = vmatprep.subr.mxu0 %v8109
        %8533 = vmatpush1.msra.mxu0 %v8108
        %8534 = vmatprep.subr.mxu0 %v8111
        %8535 = vmatpush1.msra.mxu0 %v8110
        %8536 = vmatprep.subr.mxu0 %v8113
        %8537 = vmatpush1.msra.mxu0 %v8112
        %8538 = vmatprep.subr.mxu0 %v8115
        %8539 = vmatpush1.msra.mxu0 %v8114
        %8540 = vmatprep.subr.mxu0 %v8117
        %8541 = vmatpush1.msra.mxu0 %v8116
        %8542 = vmatprep.subr.mxu0 %v8119
        %8543 = vmatpush1.msra.mxu0 %v8118
        %8544 = vmatprep.subr.mxu0 %v8121
        %8545 = vmatpush1.msra.mxu0 %v8120
        %8546 = vmatprep.subr.mxu0 %v8123
        %8547 = vmatpush1.msra.mxu0 %v8122
        %8548 = vmatprep.subr.mxu0 %v8125
        %8549 = vmatpush1.msra.mxu0 %v8124
        %8550 = vmatprep.subr.mxu0 %v8127
        %8551 = vmatpush1.msra.mxu0 %v8126
        %8552 = vmatprep.subr.mxu0 %v8129
        %8553 = vmatpush1.msra.mxu0 %v8128
        %8554 = vmatprep.subr.mxu0 %v8131
        %8555 = vmatpush1.msra.mxu0 %v8130
        %8556 = vmatprep.subr.mxu0 %v8133
        %8557 = vmatpush1.msra.mxu0 %v8132
        %8558 = vmatprep.subr.mxu0 %v8135
        %8559 = vmatpush1.msra.mxu0 %v8134
        %8560 = vmatprep.subr.mxu0 %v8137
        %8561 = vmatpush1.msra.mxu0 %v8136
        %8562 = vmatprep.subr.mxu0 %v8139
        %8563 = vmatpush1.msra.mxu0 %v8138
        %8564 = vmatprep.subr.mxu0 %v8141
        %8565 = vmatpush1.msra.mxu0 %v8140
        %8566 = vmatprep.mubr.f32.mxu0 %v7803
        %8567 = vmatmul.mubr.f32.gmra.mrb[0].mxu0 %v7796
        %v8568 = vpop.f32.mrb[0].mxu0
        %v8569 = vadd.f32 %v8498, %v8568
        %v8570 = vpop.f32.mrb[0].mxu0
        %v8571 = vadd.f32 %v8500, %v8570
        %8572 = vdwg.mxu0
        %8573 = vmatprep.subr.mxu0 %v8143
        %8574 = vmatpush1.msra.mxu0 %v8142
        %8575 = vmatprep.subr.mxu0 %v8145
        %8576 = vmatpush1.msra.mxu0 %v8144
        %8577 = vmatprep.subr.mxu0 %v8147
        %8578 = vmatpush1.msra.mxu0 %v8146
        %8579 = vmatprep.subr.mxu0 %v8149
        %8580 = vmatpush1.msra.mxu0 %v8148
        %8581 = vmatprep.subr.mxu0 %v8151
        %8582 = vmatpush1.msra.mxu0 %v8150
        %8583 = vmatprep.subr.mxu0 %v8153
        %8584 = vmatpush1.msra.mxu0 %v8152
        %8585 = vmatprep.subr.mxu0 %v8155
        %8586 = vmatpush1.msra.mxu0 %v8154
        %8587 = vmatprep.subr.mxu0 %v8157
        %8588 = vmatpush1.msra.mxu0 %v8156
        %8589 = vmatprep.subr.mxu0 %v8159
        %8590 = vmatpush1.msra.mxu0 %v8158
        %8591 = vmatprep.subr.mxu0 %v8161
        %8592 = vmatpush1.msra.mxu0 %v8160
        %8593 = vmatprep.subr.mxu0 %v8163
        %8594 = vmatpush1.msra.mxu0 %v8162
        %8595 = vmatprep.subr.mxu0 %v8165
        %8596 = vmatpush1.msra.mxu0 %v8164
        %8597 = vmatprep.subr.mxu0 %v8167
        %8598 = vmatpush1.msra.mxu0 %v8166
        %8599 = vmatprep.subr.mxu0 %v8169
        %8600 = vmatpush1.msra.mxu0 %v8168
        %8601 = vmatprep.subr.mxu0 %v8171
        %8602 = vmatpush1.msra.mxu0 %v8170
        %8603 = vmatprep.subr.mxu0 %v8173
        %8604 = vmatpush1.msra.mxu0 %v8172
        %8605 = vmatprep.subr.mxu0 %v8175
        %8606 = vmatpush1.msra.mxu0 %v8174
        %8607 = vmatprep.subr.mxu0 %v8177
        %8608 = vmatpush1.msra.mxu0 %v8176
        %8609 = vmatprep.subr.mxu0 %v8179
        %8610 = vmatpush1.msra.mxu0 %v8178
        %8611 = vmatprep.subr.mxu0 %v8181
        %8612 = vmatpush1.msra.mxu0 %v8180
        %8613 = vmatprep.subr.mxu0 %v8183
        %8614 = vmatpush1.msra.mxu0 %v8182
        %8615 = vmatprep.subr.mxu0 %v8185
        %8616 = vmatpush1.msra.mxu0 %v8184
        %8617 = vmatprep.subr.mxu0 %v8187
        %8618 = vmatpush1.msra.mxu0 %v8186
        %8619 = vmatprep.subr.mxu0 %v8189
        %8620 = vmatpush1.msra.mxu0 %v8188
        %8621 = vmatprep.subr.mxu0 %v8191
        %8622 = vmatpush1.msra.mxu0 %v8190
        %8623 = vmatprep.subr.mxu0 %v8193
        %8624 = vmatpush1.msra.mxu0 %v8192
        %8625 = vmatprep.subr.mxu0 %v8195
        %8626 = vmatpush1.msra.mxu0 %v8194
        %8627 = vmatprep.subr.mxu0 %v8197
        %8628 = vmatpush1.msra.mxu0 %v8196
        %8629 = vmatprep.subr.mxu0 %v8199
        %8630 = vmatpush1.msra.mxu0 %v8198
        %8631 = vmatprep.subr.mxu0 %v8201
        %8632 = vmatpush1.msra.mxu0 %v8200
        %8633 = vmatprep.subr.mxu0 %v8203
        %8634 = vmatpush1.msra.mxu0 %v8202
        %8635 = vmatprep.subr.mxu0 %v8205
        %8636 = vmatpush1.msra.mxu0 %v8204
        %8637 = vmatprep.mubr.f32.mxu0 %v7817
        %8638 = vmatmul.mubr.f32.gmra.mrb[0].mxu0 %v7810
        %v8639 = vpop.f32.mrb[0].mxu0
        %v8640 = vadd.f32 %v8569, %v8639
        %v8641 = vpop.f32.mrb[0].mxu0
        %v8642 = vadd.f32 %v8571, %v8641
        %8643 = vdwg.mxu0
        %v8644 = vmax.f32 %v8640, 0.0
        %v8645 = vmax.f32 %v8642, 0.0
        %v8646 = vld [vmem:[#allocation17] sm:$0xff]
        %v8647 = vld [vmem:[#allocation17 + $0x8] sm:$0xff]
        %v8648 = vld [vmem:[#allocation17 + $0x10] sm:$0xff]
        %v8649 = vld [vmem:[#allocation17 + $0x18] sm:$0xff]
        %v8650 = vld [vmem:[#allocation17 + $0x20] sm:$0xff]
        %v8651 = vld [vmem:[#allocation17 + $0x28] sm:$0xff]
        %v8652 = vld [vmem:[#allocation17 + $0x30] sm:$0xff]
        %v8653 = vld [vmem:[#allocation17 + $0x38] sm:$0xff]
        %v8654 = vld [vmem:[#allocation17 + $0x40] sm:$0xff]
        %v8655 = vld [vmem:[#allocation17 + $0x48] sm:$0xff]
        %v8656 = vld [vmem:[#allocation17 + $0x50] sm:$0xff]
        %v8657 = vld [vmem:[#allocation17 + $0x58] sm:$0xff]
        %v8658 = vld [vmem:[#allocation17 + $0x60] sm:$0xff]
        %v8659 = vld [vmem:[#allocation17 + $0x68] sm:$0xff]
        %v8660 = vld [vmem:[#allocation17 + $0x70] sm:$0xff]
        %v8661 = vld [vmem:[#allocation17 + $0x78] sm:$0xff]
        %v8662 = vld [vmem:[#allocation17 + $0x80] sm:$0xff]
        %v8663 = vld [vmem:[#allocation17 + $0x88] sm:$0xff]
        %v8664 = vld [vmem:[#allocation17 + $0x90] sm:$0xff]
        %v8665 = vld [vmem:[#allocation17 + $0x98] sm:$0xff]
        %v8666 = vld [vmem:[#allocation17 + $0xa0] sm:$0xff]
        %v8667 = vld [vmem:[#allocation17 + $0xa8] sm:$0xff]
        %v8668 = vld [vmem:[#allocation17 + $0xb0] sm:$0xff]
        %v8669 = vld [vmem:[#allocation17 + $0xb8] sm:$0xff]
        %v8670 = vld [vmem:[#allocation17 + $0xc0] sm:$0xff]
        %v8671 = vld [vmem:[#allocation17 + $0xc8] sm:$0xff]
        %v8672 = vld [vmem:[#allocation17 + $0xd0] sm:$0xff]
        %v8673 = vld [vmem:[#allocation17 + $0xd8] sm:$0xff]
        %v8674 = vld [vmem:[#allocation17 + $0xe0] sm:$0xff]
        %v8675 = vld [vmem:[#allocation17 + $0xe8] sm:$0xff]
        %v8676 = vld [vmem:[#allocation17 + $0xf0] sm:$0xff]
        %v8677 = vld [vmem:[#allocation17 + $0xf8] sm:$0xff]
        %v8678 = vld [vmem:[#allocation19] sm:$0x1]
        %v8680 = vlaneseq
        %v8681 = vshrl.u32 %v8680, 7
        %v8682 = vsub.s32 0, %v8681
        %v8683 = vrot.slane %v8678, %v8682
        %8685 = vmatprep.subr.mxu0 0.0
        %8686 = vmatpush1.msra.mxu0 %v8646
        %8687 = vmatprep.subr.mxu0 0.0
        %8688 = vmatpush1.msra.mxu0 %v8647
        %8689 = vmatprep.subr.mxu0 0.0
        %8690 = vmatpush1.msra.mxu0 %v8648
        %8691 = vmatprep.subr.mxu0 0.0
        %8692 = vmatpush1.msra.mxu0 %v8649
        %8693 = vmatprep.subr.mxu0 0.0
        %8694 = vmatpush1.msra.mxu0 %v8650
        %8695 = vmatprep.subr.mxu0 0.0
        %8696 = vmatpush1.msra.mxu0 %v8651
        %8697 = vmatprep.subr.mxu0 0.0
        %8698 = vmatpush1.msra.mxu0 %v8652
        %8699 = vmatprep.subr.mxu0 0.0
        %8700 = vmatpush1.msra.mxu0 %v8653
        %8701 = vmatprep.subr.mxu0 0.0
        %8702 = vmatpush1.msra.mxu0 %v8654
        %8703 = vmatprep.subr.mxu0 0.0
        %8704 = vmatpush1.msra.mxu0 %v8655
        %8705 = vmatprep.subr.mxu0 0.0
        %8706 = vmatpush1.msra.mxu0 %v8656
        %8707 = vmatprep.subr.mxu0 0.0
        %8708 = vmatpush1.msra.mxu0 %v8657
        %8709 = vmatprep.subr.mxu0 0.0
        %8710 = vmatpush1.msra.mxu0 %v8658
        %8711 = vmatprep.subr.mxu0 0.0
        %8712 = vmatpush1.msra.mxu0 %v8659
        %8713 = vmatprep.subr.mxu0 0.0
        %8714 = vmatpush1.msra.mxu0 %v8660
        %8715 = vmatprep.subr.mxu0 0.0
        %8716 = vmatpush1.msra.mxu0 %v8661
        %8717 = vmatprep.subr.mxu0 0.0
        %8718 = vmatpush1.msra.mxu0 %v8662
        %8719 = vmatprep.subr.mxu0 0.0
        %8720 = vmatpush1.msra.mxu0 %v8663
        %8721 = vmatprep.subr.mxu0 0.0
        %8722 = vmatpush1.msra.mxu0 %v8664
        %8723 = vmatprep.subr.mxu0 0.0
        %8724 = vmatpush1.msra.mxu0 %v8665
        %8725 = vmatprep.subr.mxu0 0.0
        %8726 = vmatpush1.msra.mxu0 %v8666
        %8727 = vmatprep.subr.mxu0 0.0
        %8728 = vmatpush1.msra.mxu0 %v8667
        %8729 = vmatprep.subr.mxu0 0.0
        %8730 = vmatpush1.msra.mxu0 %v8668
        %8731 = vmatprep.subr.mxu0 0.0
        %8732 = vmatpush1.msra.mxu0 %v8669
        %8733 = vmatprep.subr.mxu0 0.0
        %8734 = vmatpush1.msra.mxu0 %v8670
        %8735 = vmatprep.subr.mxu0 0.0
        %8736 = vmatpush1.msra.mxu0 %v8671
        %8737 = vmatprep.subr.mxu0 0.0
        %8738 = vmatpush1.msra.mxu0 %v8672
        %8739 = vmatprep.subr.mxu0 0.0
        %8740 = vmatpush1.msra.mxu0 %v8673
        %8741 = vmatprep.subr.mxu0 0.0
        %8742 = vmatpush1.msra.mxu0 %v8674
        %8743 = vmatprep.subr.mxu0 0.0
        %8744 = vmatpush1.msra.mxu0 %v8675
        %8745 = vmatprep.subr.mxu0 0.0
        %8746 = vmatpush1.msra.mxu0 %v8676
        %8747 = vmatprep.subr.mxu0 0.0
        %8748 = vmatpush1.msra.mxu0 %v8677
        %8749 = vmatprep.mubr.f32.mxu0 %v8645
        %8750 = vmatmul.mubr.f32.gmra.mrb[0].mxu0 %v8644
        %v8751 = vpop.f32.mrb[0].mxu0
        %v8752 = vadd.f32 %v8683, %v8751
        %v8753 = vpop.f32.mrb[0].mxu0
        %8754 = vdwg.mxu0
        %v8755 = vmax.f32 %v8752, 0.0
        %v8756 = vld [vmem:[#allocation20] sm:$0xff]
        %v8757 = vld [vmem:[#allocation20 + $0x8] sm:$0xff]
        %v8758 = vld [vmem:[#allocation20 + $0x10] sm:$0xff]
        %v8759 = vld [vmem:[#allocation20 + $0x18] sm:$0xff]
        %v8760 = vld [vmem:[#allocation20 + $0x20] sm:$0xff]
        %v8761 = vld [vmem:[#allocation20 + $0x28] sm:$0xff]
        %v8762 = vld [vmem:[#allocation20 + $0x30] sm:$0xff]
        %v8763 = vld [vmem:[#allocation20 + $0x38] sm:$0xff]
        %v8764 = vld [vmem:[#allocation20 + $0x40] sm:$0xff]
        %v8765 = vld [vmem:[#allocation20 + $0x48] sm:$0xff]
        %v8766 = vld [vmem:[#allocation20 + $0x50] sm:$0xff]
        %v8767 = vld [vmem:[#allocation20 + $0x58] sm:$0xff]
        %v8768 = vld [vmem:[#allocation20 + $0x60] sm:$0xff]
        %v8769 = vld [vmem:[#allocation20 + $0x68] sm:$0xff]
        %v8770 = vld [vmem:[#allocation20 + $0x70] sm:$0xff]
        %v8771 = vld [vmem:[#allocation20 + $0x78] sm:$0xff]
        %v8772 = vld [vmem:[#allocation22] sm:$0x1]
        %v8774 = vlaneseq
        %v8775 = vshrl.u32 %v8774, 7
        %v8776 = vsub.s32 0, %v8775
        %v8777 = vrot.slane %v8772, %v8776
        %8779 = vmatprep.subr.mxu0 0.0
        %8780 = vmatpush1.msra.mxu0 %v8756
        %8781 = vmatprep.subr.mxu0 0.0
        %8782 = vmatpush1.msra.mxu0 %v8757
        %8783 = vmatprep.subr.mxu0 0.0
        %8784 = vmatpush1.msra.mxu0 %v8758
        %8785 = vmatprep.subr.mxu0 0.0
        %8786 = vmatpush1.msra.mxu0 %v8759
        %8787 = vmatprep.subr.mxu0 0.0
        %8788 = vmatpush1.msra.mxu0 %v8760
        %8789 = vmatprep.subr.mxu0 0.0
        %8790 = vmatpush1.msra.mxu0 %v8761
        %8791 = vmatprep.subr.mxu0 0.0
        %8792 = vmatpush1.msra.mxu0 %v8762
        %8793 = vmatprep.subr.mxu0 0.0
        %8794 = vmatpush1.msra.mxu0 %v8763
        %8795 = vmatprep.subr.mxu0 0.0
        %8796 = vmatpush1.msra.mxu0 %v8764
        %8797 = vmatprep.subr.mxu0 0.0
        %8798 = vmatpush1.msra.mxu0 %v8765
        %8799 = vmatprep.subr.mxu0 0.0
        %8800 = vmatpush1.msra.mxu0 %v8766
        %8801 = vmatprep.subr.mxu0 0.0
        %8802 = vmatpush1.msra.mxu0 %v8767
        %8803 = vmatprep.subr.mxu0 0.0
        %8804 = vmatpush1.msra.mxu0 %v8768
        %8805 = vmatprep.subr.mxu0 0.0
        %8806 = vmatpush1.msra.mxu0 %v8769
        %8807 = vmatprep.subr.mxu0 0.0
        %8808 = vmatpush1.msra.mxu0 %v8770
        %8809 = vmatprep.subr.mxu0 0.0
        %8810 = vmatpush1.msra.mxu0 %v8771
        %8811 = vmatprep.subr.mxu0 0.0
        %8812 = vmatpush1.msra.mxu0 0.0
        %8813 = vmatprep.subr.mxu0 0.0
        %8814 = vmatpush1.msra.mxu0 0.0
        %8815 = vmatprep.subr.mxu0 0.0
        %8816 = vmatpush1.msra.mxu0 0.0
        %8817 = vmatprep.subr.mxu0 0.0
        %8818 = vmatpush1.msra.mxu0 0.0
        %8819 = vmatprep.subr.mxu0 0.0
        %8820 = vmatpush1.msra.mxu0 0.0
        %8821 = vmatprep.subr.mxu0 0.0
        %8822 = vmatpush1.msra.mxu0 0.0
        %8823 = vmatprep.subr.mxu0 0.0
        %8824 = vmatpush1.msra.mxu0 0.0
        %8825 = vmatprep.subr.mxu0 0.0
        %8826 = vmatpush1.msra.mxu0 0.0
        %8827 = vmatprep.subr.mxu0 0.0
        %8828 = vmatpush1.msra.mxu0 0.0
        %8829 = vmatprep.subr.mxu0 0.0
        %8830 = vmatpush1.msra.mxu0 0.0
        %8831 = vmatprep.subr.mxu0 0.0
        %8832 = vmatpush1.msra.mxu0 0.0
        %8833 = vmatprep.subr.mxu0 0.0
        %8834 = vmatpush1.msra.mxu0 0.0
        %8835 = vmatprep.subr.mxu0 0.0
        %8836 = vmatpush1.msra.mxu0 0.0
        %8837 = vmatprep.subr.mxu0 0.0
        %8838 = vmatpush1.msra.mxu0 0.0
        %8839 = vmatprep.subr.mxu0 0.0
        %8840 = vmatpush1.msra.mxu0 0.0
        %8841 = vmatprep.subr.mxu0 0.0
        %8842 = vmatpush1.msra.mxu0 0.0
        %8843 = vmatprep.mubr.f32.mxu0 0.0
        %8844 = vmatmul.mubr.f32.gmra.mrb[0].mxu0 %v8755
        %v8845 = vpop.f32.mrb[0].mxu0
        %v8846 = vadd.f32 %v8777, %v8845
        %v8847 = vpop.f32.mrb[0].mxu0
        %8848 = vdwg.mxu0
        %8849 = vst [vmem:[%s621] sm:$0xff] %v8846
        %s8850 = sand.u32 %s322, 1
        %s8851 = scalar_lea.sflag [#allocation4], %s8850
        %s8852 = sand.u32 %s322, 1
        %s8853 = smul.addr %s8852, 8
        %s8854 = scalar_lea.vmem [#allocation23], %s8853
        // Predicated region
        $region125: #{tpu_custom_call.1} parent=71 // pred_check
          %p8855 = pneg %p332
        $region126: #{tpu_custom_call.1} parent=71 // pred_check_branch
          %8857 = sbr.rel (%p8855) target = $region128
        $region127: #{tpu_custom_call.1} parent=71 // pred_region
          %s8859 = ssub.s32 128, 128
          %8860 = vsyncadd %s8851, %s8859
          %s8861 = smul.addr %s36, 128
          %s8862 = scalar_lea.hbm %s13, %s8861
          %s8864 = sshll.u32 %s8854, 4
          %s8865 = int_to_ptr.vmem [resolvable:$true] %s8864
          %8867 = dma.vmem_to_hbm [thread:$0]  %s8865, 128, %s8862, %s8851
        $region128: #{tpu_custom_call.1} parent=71 // pred_fallthru
          _
      $region72: #{tpu_custom_call.1} parent=5 // pred_fallthru
        _
      %p8868 = scmp.le.s32.totalorder 2, %s31
      // Predicated region
      $region129: #{tpu_custom_call.1} parent=5 // pred_check
        %p8869 = pneg %p8868
      $region130: #{tpu_custom_call.1} parent=5 // pred_check_branch
        %8871 = sbr.rel (%p8869) target = $region132
      $region131: #{tpu_custom_call.1} parent=5 // pred_region
        %s8872 = ssub.s32 %s31, 2
        // Predicated region
        $region133: #{tpu_custom_call.1} parent=131 // pred_check
          %p8873 = pneg %p338
        $region134: #{tpu_custom_call.1} parent=131 // pred_check_branch
          %8875 = sbr.rel (%p8873) target = $region136
        $region135: #{tpu_custom_call.1} parent=131 // pred_region
          %s8876 = sand.u32 %s323, 1
          %s8877 = scalar_lea.sflag [#allocation4], %s8876
          %s8878 = sand.u32 %s323, 1
          %s8879 = smul.addr %s8878, 8
          %s8880 = scalar_lea.vmem [#allocation23], %s8879
          %8881 = dma.done %s8877, 128
        $region136: #{tpu_custom_call.1} parent=131 // pred_fallthru
          _
      $region132: #{tpu_custom_call.1} parent=5 // pred_fallthru
        _
    $region6: #{tpu_custom_call.1} parent=1 // loop_footer
      %s35 = sadd.s32 1, %s31
    $region7: #{tpu_custom_call.1} parent=1 // loop_footer_branch
      %30 = sbr.rel target = $region3
    $region8: #{tpu_custom_call.1} parent=1 // loop_exit
      _
    %8882 = vsyncpa [#allocation3], 1
    %s8883 = scalar_lea.sflag [#allocation3], 1
    %8884 = vsyncpa %s8883, 1
    %8885 = vsyncpa [#allocation6], 1
    %8886 = vsyncpa [#allocation9], 1
    %8887 = vsyncpa [#allocation12], 1
    %8888 = vsyncpa [#allocation15], 1
    %8889 = vsyncpa [#allocation18], 1
    %8890 = vsyncpa [#allocation21], 1
    %8891 = vsyncpa [#allocation4], 1
    %s8892 = scalar_lea.sflag [#allocation4], 1
    %8893 = vsyncpa %s8892, 1

</llo_original>
